<compile_context>
chip_gen: v7x
topology: tpu7x:2x2x1
jax: 0.10.0
libtpu: 0.0.40
codegen_flags: <defaults>
</compile_context>

<pallas_src>
import functools

import jax
import jax.numpy as jnp
from jax.experimental import pallas as pl
from jax.experimental.pallas import tpu as pltpu


def decoder_kernel(
    # inputs (all fully VMEM-resident)
    emb_ref,        # (Bp, T, Emb)   embedded captions
    feat_ref,       # (Bp, P, E)     encoder features
    wenc_ref,       # (E, A)
    batt_ref,       # (1, A)         b_enc + b_dec folded
    wdec_ref,       # (D, A)
    wfull_ref,      # (1, 1, A)
    wlstm_ref,      # (Emb+E+D, 4D)  [w_ih_e; w_ih_c; w_hh] stacked on the K axis
    blstm_ref,      # (1, 4D)        b_ih + b_hh
    wfcn_ref,       # (D, V)
    bfcn_ref,       # (1, V)
    winit_ref,      # (E, 2D)        [w_init_h | w_init_c]
    binit_ref,      # (1, 2D)
    # outputs
    preds_ref,      # (Bp, T, V)
    attw_ref,       # (Bp, T, P)
    # scratch
    xc_ref,         # (Bp, Emb+E+D)  fused LSTM input operand
):
    Bp, T, Emb = emb_ref.shape
    E = feat_ref.shape[2]
    D = wdec_ref.shape[0]

    feats = feat_ref[...]                                     # (Bp, P, E)

    # ---- loop-invariant work (hoisted out of the recurrence) ----
    # Attention encoder projection with b_enc + b_dec folded in: computed once.
    enc_proj = jax.lax.dot_general(
        feats, wenc_ref[...], (((2,), (0,)), ((), ())),
        preferred_element_type=jnp.float32) + batt_ref[...]   # (Bp, P, A)

    # init_hidden_state: one fused matmul -> [h0 | c0]
    mean_f = jnp.mean(feats, axis=1)                          # (Bp, E)
    hc0 = (jnp.dot(mean_f, winit_ref[...], preferred_element_type=jnp.float32)
           + binit_ref[...])                                  # (Bp, 2D)
    h = hc0[:, :D]
    c = hc0[:, D:]

    wdec = wdec_ref[...]
    wfull = wfull_ref[...]                                    # (1, 1, A)
    wlstm = wlstm_ref[...]
    blstm = blstm_ref[...]
    wfcn = wfcn_ref[...]
    bfcn = bfcn_ref[...]

    # ---- recurrence: static unrolled time loop, everything VMEM-resident ----
    for t in range(T):
        # --- AttentionBahdanau (encoder projection hoisted above)
        dec_proj = jnp.dot(h, wdec, preferred_element_type=jnp.float32)   # (Bp, A)
        act = jnp.tanh(enc_proj + dec_proj[:, None, :])                   # (Bp, P, A)
        # NOTE: at large P/E these reductions should become batched MXU dot_generals;
        # at P=8 / E=32 the VPU/XLU forms are cheaper and lower robustly.
        energies = jnp.sum(act * wfull, axis=-1)                          # (Bp, P)
        m = jnp.max(energies, axis=1, keepdims=True)
        e = jnp.exp(energies - m)
        attw = e / jnp.sum(e, axis=1, keepdims=True)                      # (Bp, P)
        context = jnp.sum(feats * attw[:, :, None], axis=1)               # (Bp, E)

        # --- LSTMCell (gate order i, f, g, o): ONE fused matmul over [emb_t, ctx, h]
        xc_ref[:, :Emb] = emb_ref[:, t, :]
        xc_ref[:, Emb:Emb + E] = context
        xc_ref[:, Emb + E:] = h
        gates = (jnp.dot(xc_ref[...], wlstm, preferred_element_type=jnp.float32)
                 + blstm)                                                 # (Bp, 4D)
        i_g = jax.nn.sigmoid(gates[:, 0 * D:1 * D])
        f_g = jax.nn.sigmoid(gates[:, 1 * D:2 * D])
        g_g = jnp.tanh(gates[:, 2 * D:3 * D])
        o_g = jax.nn.sigmoid(gates[:, 3 * D:4 * D])
        c = f_g * c + i_g * g_g
        h = o_g * jnp.tanh(c)

        # --- output projection (nn.Dropout is identity in eval mode)
        # TODO(synk): training-mode dropout masking (pltpu.prng_*) not implemented.
        out = jnp.dot(h, wfcn, preferred_element_type=jnp.float32) + bfcn  # (Bp, V)

        preds_ref[:, t, :] = out
        attw_ref[:, t, :] = attw


def decoder_forward(features, captions, params):
    """features: (B, P, E) f32, captions: (B, S) int32. Returns (preds, attn_w)."""
    B, P, E = features.shape
    S = captions.shape[1]
    T = S - 1
    emb_table = params["embedding"]                      # (V, Emb)
    Emb = emb_table.shape[1]
    D = params["w_hh"].shape[0]
    V = params["w_fcn"].shape[1]
    A = params["w_enc"].shape[1]

    # --- one-time, loop-invariant parameter fusions (tiny XLA glue) ---
    w_lstm = jnp.concatenate(
        [params["w_ih_e"], params["w_ih_c"], params["w_hh"]], axis=0)   # (Emb+E+D, 4D)
    b_lstm = params["b_ih"] + params["b_hh"]                            # (1, 4D)
    w_init = jnp.concatenate(
        [params["w_init_h"], params["w_init_c"]], axis=1)               # (E, 2D)
    b_init = jnp.concatenate(
        [params["b_init_h"], params["b_init_c"]], axis=1)               # (1, 2D)
    b_att = params["b_enc"] + params["b_dec"]                           # (1, A)
    # b_full is dropped: softmax(e + const) == softmax(e), so it cannot affect outputs.

    # embedding gather (glue)
    embedded = emb_table[captions[:, :T]]                # (B, T, Emb)

    # pad batch to the sublane width (8) so vregs / MXU rows are well utilized
    Bp = max(8, ((B + 7) // 8) * 8)
    if Bp != B:
        features_k = jnp.pad(features, ((0, Bp - B), (0, 0), (0, 0)))
        embedded_k = jnp.pad(embedded, ((0, Bp - B), (0, 0), (0, 0)))
    else:
        features_k, embedded_k = features, embedded

    K = Emb + E + D
    vmem_spec = pl.BlockSpec(memory_space=pltpu.MemorySpace.VMEM)

    preds_p, attw_p = pl.pallas_call(
        decoder_kernel,
        out_shape=(
            jax.ShapeDtypeStruct((Bp, T, V), jnp.float32),
            jax.ShapeDtypeStruct((Bp, T, P), jnp.float32),
        ),
        in_specs=[vmem_spec] * 12,
        out_specs=(vmem_spec, vmem_spec),
        scratch_shapes=[pltpu.VMEM((Bp, K), jnp.float32)],
    )(
        embedded_k, features_k,
        params["w_enc"], b_att,
        params["w_dec"], params["w_full"],
        w_lstm, b_lstm,
        params["w_fcn"], params["b_fcn"],
        w_init, b_init,
    )

    # drop batch padding; layout is already (B, T, V) / (B, T, P)
    return preds_p[:B], attw_p[:B]


def decoder_forward_ref(features, captions, params):
    """Pure-JAX reference (mirrors the PyTorch forward, including b_full)."""
    B, P, E = features.shape
    T = captions.shape[1] - 1
    D = params["w_hh"].shape[0]
    emb = params["embedding"][captions[:, :T]]               # (B, T, Emb)
    mean_f = jnp.mean(features, axis=1)
    h = mean_f @ params["w_init_h"] + params["b_init_h"]
    c = mean_f @ params["w_init_c"] + params["b_init_c"]
    preds, attws = [], []
    for i in range(T):
        enc_proj = jnp.einsum("bpe,ea->bpa", features, params["w_enc"]) + params["b_enc"]
        dec_proj = h @ params["w_dec"] + params["b_dec"]
        act = jnp.tanh(enc_proj + dec_proj[:, None, :])
        energies = jnp.sum(act * params["w_full"], axis=-1) + params["b_full"]
        attw = jax.nn.softmax(energies, axis=1)
        ctx = jnp.sum(features * attw[:, :, None], axis=1)
        gates = (emb[:, i] @ params["w_ih_e"] + ctx @ params["w_ih_c"] + params["b_ih"]
                 + h @ params["w_hh"] + params["b_hh"])
        i_g = jax.nn.sigmoid(gates[:, 0 * D:1 * D])
        f_g = jax.nn.sigmoid(gates[:, 1 * D:2 * D])
        g_g = jnp.tanh(gates[:, 2 * D:3 * D])
        o_g = jax.nn.sigmoid(gates[:, 3 * D:4 * D])
        c = f_g * c + i_g * g_g
        h = o_g * jnp.tanh(c)
        preds.append(h @ params["w_fcn"] + params["b_fcn"])
        attws.append(attw)
    return jnp.stack(preds, axis=1), jnp.stack(attws, axis=1)


def make_params(key, *, vocab_size, embedding_dim, encoder_dim, decoder_dim, attention_dim):
    """Deterministic synthetic parameters. Linear weights stored pre-transposed (in, out)."""
    ks = iter(jax.random.split(key, 32))
    u = lambda shape, s=0.1: jax.random.uniform(next(ks), shape, jnp.float32, -s, s)
    return {
        "embedding": u((vocab_size, embedding_dim)),
        # attention
        "w_enc": u((encoder_dim, attention_dim)), "b_enc": u((1, attention_dim)),
        "w_dec": u((decoder_dim, attention_dim)), "b_dec": u((1, attention_dim)),
        "w_full": u((1, 1, attention_dim)), "b_full": u((1, 1)),
        # LSTMCell (input weights split into embedding / context parts)
        "w_ih_e": u((embedding_dim, 4 * decoder_dim)),
        "w_ih_c": u((encoder_dim, 4 * decoder_dim)),
        "b_ih": u((1, 4 * decoder_dim)),
        "w_hh": u((decoder_dim, 4 * decoder_dim)), "b_hh": u((1, 4 * decoder_dim)),
        # output projection
        "w_fcn": u((decoder_dim, vocab_size)), "b_fcn": jnp.zeros((1, vocab_size), jnp.float32),
        # hidden-state init
        "w_init_h": u((encoder_dim, decoder_dim)), "b_init_h": u((1, decoder_dim)),
        "w_init_c": u((encoder_dim, decoder_dim)), "b_init_c": u((1, decoder_dim)),
    }


if __name__ == "__main__":
    B, P = 2, 8                 # batch, num_pixels
    E, D, A = 32, 32, 16        # encoder_dim, decoder_dim, attention_dim
    Emb, V = 16, 32             # embedding_dim, vocab_size
    S = 9                       # caption length (T = S - 1 = 8 decode steps)

    key = jax.random.PRNGKey(0)
    k_feat, k_cap, k_par = jax.random.split(key, 3)
    features = jax.random.normal(k_feat, (B, P, E), jnp.float32)
    captions = jax.random.randint(k_cap, (B, S), 0, V, jnp.int32)
    params = make_params(k_par, vocab_size=V, embedding_dim=Emb,
                         encoder_dim=E, decoder_dim=D, attention_dim=A)

    preds, attw = jax.jit(functools.partial(decoder_forward, params=params))(features, captions)
    jax.block_until_ready((preds, attw))

    preds_ref, attw_ref = decoder_forward_ref(features, captions, params)
    assert preds.shape == (B, S - 1, V) and attw.shape == (B, S - 1, P)
    assert jnp.allclose(preds, preds_ref, atol=1e-3, rtol=1e-3)
    assert jnp.allclose(attw, attw_ref, atol=1e-3, rtol=1e-3)

    print("KERNEL_OK")
</pallas_src>

<mosaic_0001>
module attributes {stable_mosaic.version = 11 : i64} {
  func.func @decoder_kernel(%arg0: memref<8x8x16xf32, #tpu.memory_space<vmem>>, %arg1: memref<8x8x32xf32, #tpu.memory_space<vmem>>, %arg2: memref<32x16xf32, #tpu.memory_space<vmem>>, %arg3: memref<1x16xf32, #tpu.memory_space<vmem>>, %arg4: memref<32x16xf32, #tpu.memory_space<vmem>>, %arg5: memref<1x1x16xf32, #tpu.memory_space<vmem>>, %arg6: memref<80x128xf32, #tpu.memory_space<vmem>>, %arg7: memref<1x128xf32, #tpu.memory_space<vmem>>, %arg8: memref<32x32xf32, #tpu.memory_space<vmem>>, %arg9: memref<1x32xf32, #tpu.memory_space<vmem>>, %arg10: memref<32x64xf32, #tpu.memory_space<vmem>>, %arg11: memref<1x64xf32, #tpu.memory_space<vmem>>, %arg12: memref<8x8x32xf32, #tpu.memory_space<vmem>>, %arg13: memref<8x8x8xf32, #tpu.memory_space<vmem>>, %arg14: memref<8x80xf32, #tpu.memory_space<vmem>>) attributes {dimension_semantics = [], scalar_prefetch = 0 : i64, scratch_operands = 1 : i64, tpu.core_type = #tpu.core_type<tc>} {
    %c0 = arith.constant 0 : index
    %c0_0 = arith.constant 0 : index
    %c0_1 = arith.constant 0 : index
    %0 = vector.load %arg1[%c0, %c0_0, %c0_1] : memref<8x8x32xf32, #tpu.memory_space<vmem>>, vector<8x8x32xf32>
    %c0_2 = arith.constant 0 : index
    %c0_3 = arith.constant 0 : index
    %1 = vector.load %arg2[%c0_2, %c0_3] : memref<32x16xf32, #tpu.memory_space<vmem>>, vector<32x16xf32>
    %cst = arith.constant dense<0.000000e+00> : vector<8x8x16xf32>
    %2 = tpu.matmul %0, %1, %cst {dimension_numbers = #tpu.dot_dimension_numbers<[2], [0], [0, 1], [1], [0, 0, 0, 1, 1, 1], [], []>} : vector<8x8x32xf32>, vector<32x16xf32>, vector<8x8x16xf32> -> vector<8x8x16xf32>
    %c0_4 = arith.constant 0 : index
    %c0_5 = arith.constant 0 : index
    %3 = vector.load %arg3[%c0_4, %c0_5] : memref<1x16xf32, #tpu.memory_space<vmem>>, vector<1x16xf32>
    %4 = vector.shape_cast %3 : vector<1x16xf32> to vector<1x1x16xf32>
    %5 = vector.broadcast %4 : vector<1x1x16xf32> to vector<8x8x16xf32>
    %6 = arith.addf %2, %5 : vector<8x8x16xf32>
    %cst_6 = arith.constant dense<0.000000e+00> : vector<8x32xf32>
    %7 = vector.multi_reduction <add>, %0, %cst_6 [1] : vector<8x8x32xf32> to vector<8x32xf32>
    %cst_7 = arith.constant 8.000000e+00 : f32
    %8 = vector.broadcast %cst_7 : f32 to vector<8x32xf32>
    %9 = arith.divf %7, %8 : vector<8x32xf32>
    %c0_8 = arith.constant 0 : index
    %c0_9 = arith.constant 0 : index
    %10 = vector.load %arg10[%c0_8, %c0_9] : memref<32x64xf32, #tpu.memory_space<vmem>>, vector<32x64xf32>
    %cst_10 = arith.constant dense<0.000000e+00> : vector<8x64xf32>
    %11 = tpu.matmul %9, %10, %cst_10 {dimension_numbers = #tpu.dot_dimension_numbers<[1], [0], [0], [1], [0, 0, 1, 1], [], []>} : vector<8x32xf32>, vector<32x64xf32>, vector<8x64xf32> -> vector<8x64xf32>
    %c0_11 = arith.constant 0 : index
    %c0_12 = arith.constant 0 : index
    %12 = vector.load %arg11[%c0_11, %c0_12] : memref<1x64xf32, #tpu.memory_space<vmem>>, vector<1x64xf32>
    %13 = vector.broadcast %12 : vector<1x64xf32> to vector<8x64xf32>
    %14 = arith.addf %11, %13 : vector<8x64xf32>
    %15 = vector.extract_strided_slice %14 {offsets = [0, 0], sizes = [8, 32], strides = [1, 1]} : vector<8x64xf32> to vector<8x32xf32>
    %16 = vector.extract_strided_slice %14 {offsets = [0, 32], sizes = [8, 32], strides = [1, 1]} : vector<8x64xf32> to vector<8x32xf32>
    %c0_13 = arith.constant 0 : index
    %c0_14 = arith.constant 0 : index
    %17 = vector.load %arg4[%c0_13, %c0_14] : memref<32x16xf32, #tpu.memory_space<vmem>>, vector<32x16xf32>
    %c0_15 = arith.constant 0 : index
    %c0_16 = arith.constant 0 : index
    %c0_17 = arith.constant 0 : index
    %18 = vector.load %arg5[%c0_15, %c0_16, %c0_17] : memref<1x1x16xf32, #tpu.memory_space<vmem>>, vector<1x1x16xf32>
    %c0_18 = arith.constant 0 : index
    %c0_19 = arith.constant 0 : index
    %19 = vector.load %arg6[%c0_18, %c0_19] : memref<80x128xf32, #tpu.memory_space<vmem>>, vector<80x128xf32>
    %c0_20 = arith.constant 0 : index
    %c0_21 = arith.constant 0 : index
    %20 = vector.load %arg7[%c0_20, %c0_21] : memref<1x128xf32, #tpu.memory_space<vmem>>, vector<1x128xf32>
    %c0_22 = arith.constant 0 : index
    %c0_23 = arith.constant 0 : index
    %21 = vector.load %arg8[%c0_22, %c0_23] : memref<32x32xf32, #tpu.memory_space<vmem>>, vector<32x32xf32>
    %c0_24 = arith.constant 0 : index
    %c0_25 = arith.constant 0 : index
    %22 = vector.load %arg9[%c0_24, %c0_25] : memref<1x32xf32, #tpu.memory_space<vmem>>, vector<1x32xf32>
    %cst_26 = arith.constant dense<0.000000e+00> : vector<8x16xf32>
    %23 = tpu.matmul %15, %17, %cst_26 {dimension_numbers = #tpu.dot_dimension_numbers<[1], [0], [0], [1], [0, 0, 1, 1], [], []>} : vector<8x32xf32>, vector<32x16xf32>, vector<8x16xf32> -> vector<8x16xf32>
    %24 = vector.shape_cast %23 : vector<8x16xf32> to vector<8x1x16xf32>
    %25 = vector.broadcast %24 : vector<8x1x16xf32> to vector<8x8x16xf32>
    %26 = arith.addf %6, %25 : vector<8x8x16xf32>
    %27 = math.tanh %26 : vector<8x8x16xf32>
    %28 = vector.broadcast %18 : vector<1x1x16xf32> to vector<8x8x16xf32>
    %29 = arith.mulf %27, %28 : vector<8x8x16xf32>
    %cst_27 = arith.constant dense<0.000000e+00> : vector<8x8xf32>
    %30 = vector.multi_reduction <add>, %29, %cst_27 [2] : vector<8x8x16xf32> to vector<8x8xf32>
    %cst_28 = arith.constant dense<0xFF800000> : vector<8xf32>
    %31 = vector.multi_reduction <maximumf>, %30, %cst_28 [1] : vector<8x8xf32> to vector<8xf32>
    %32 = vector.shape_cast %31 : vector<8xf32> to vector<8x1xf32>
    %33 = vector.broadcast %32 : vector<8x1xf32> to vector<8x8xf32>
    %34 = arith.subf %30, %33 : vector<8x8xf32>
    %35 = math.exp %34 : vector<8x8xf32>
    %cst_29 = arith.constant dense<0.000000e+00> : vector<8xf32>
    %36 = vector.multi_reduction <add>, %35, %cst_29 [1] : vector<8x8xf32> to vector<8xf32>
    %37 = vector.shape_cast %36 : vector<8xf32> to vector<8x1xf32>
    %38 = vector.broadcast %37 : vector<8x1xf32> to vector<8x8xf32>
    %39 = arith.divf %35, %38 : vector<8x8xf32>
    %40 = vector.shape_cast %39 : vector<8x8xf32> to vector<8x8x1xf32>
    %41 = vector.broadcast %40 : vector<8x8x1xf32> to vector<8x8x32xf32>
    %42 = arith.mulf %0, %41 : vector<8x8x32xf32>
    %cst_30 = arith.constant dense<0.000000e+00> : vector<8x32xf32>
    %43 = vector.multi_reduction <add>, %42, %cst_30 [1] : vector<8x8x32xf32> to vector<8x32xf32>
    %c0_31 = arith.constant 0 : index
    %c0_32 = arith.constant 0 : index
    %c0_33 = arith.constant 0 : index
    %44 = vector.load %arg0[%c0_31, %c0_32, %c0_33] : memref<8x8x16xf32, #tpu.memory_space<vmem>>, vector<8x1x16xf32>
    %45 = vector.shape_cast %44 : vector<8x1x16xf32> to vector<8x16xf32>
    %c0_34 = arith.constant 0 : index
    %c0_35 = arith.constant 0 : index
    %46 = vector.load %arg14[%c0_34, %c0_35] : memref<8x80xf32, #tpu.memory_space<vmem>>, vector<8x16xf32>
    tpu.vector_store %arg14[%c0_34, %c0_35], %45 {strides = array<i32>} : memref<8x80xf32, #tpu.memory_space<vmem>>, vector<8x16xf32>,
    %c0_36 = arith.constant 0 : index
    %c16 = arith.constant 16 : index
    %47 = vector.load %arg14[%c0_36, %c16] : memref<8x80xf32, #tpu.memory_space<vmem>>, vector<8x32xf32>
    tpu.vector_store %arg14[%c0_36, %c16], %43 {strides = array<i32>} : memref<8x80xf32, #tpu.memory_space<vmem>>, vector<8x32xf32>,
    %c0_37 = arith.constant 0 : index
    %c48 = arith.constant 48 : index
    %48 = vector.load %arg14[%c0_37, %c48] : memref<8x80xf32, #tpu.memory_space<vmem>>, vector<8x32xf32>
    tpu.vector_store %arg14[%c0_37, %c48], %15 {strides = array<i32>} : memref<8x80xf32, #tpu.memory_space<vmem>>, vector<8x32xf32>,
    %c0_38 = arith.constant 0 : index
    %c0_39 = arith.constant 0 : index
    %49 = vector.load %arg14[%c0_38, %c0_39] : memref<8x80xf32, #tpu.memory_space<vmem>>, vector<8x80xf32>
    %cst_40 = arith.constant dense<0.000000e+00> : vector<8x128xf32>
    %50 = tpu.matmul %49, %19, %cst_40 {dimension_numbers = #tpu.dot_dimension_numbers<[1], [0], [0], [1], [0, 0, 1, 1], [], []>} : vector<8x80xf32>, vector<80x128xf32>, vector<8x128xf32> -> vector<8x128xf32>
    %51 = vector.broadcast %20 : vector<1x128xf32> to vector<8x128xf32>
    %52 = arith.addf %50, %51 : vector<8x128xf32>
    %53 = vector.extract_strided_slice %52 {offsets = [0, 0], sizes = [8, 32], strides = [1, 1]} : vector<8x128xf32> to vector<8x32xf32>
    %54 = arith.negf %53 : vector<8x32xf32>
    %55 = math.exp %54 : vector<8x32xf32>
    %cst_41 = arith.constant 1.000000e+00 : f32
    %56 = vector.broadcast %cst_41 : f32 to vector<8x32xf32>
    %57 = arith.addf %56, %55 : vector<8x32xf32>
    %58 = arith.divf %56, %57 : vector<8x32xf32>
    %59 = vector.extract_strided_slice %52 {offsets = [0, 32], sizes = [8, 32], strides = [1, 1]} : vector<8x128xf32> to vector<8x32xf32>
    %60 = arith.negf %59 : vector<8x32xf32>
    %61 = math.exp %60 : vector<8x32xf32>
    %cst_42 = arith.constant 1.000000e+00 : f32
    %62 = vector.broadcast %cst_42 : f32 to vector<8x32xf32>
    %63 = arith.addf %62, %61 : vector<8x32xf32>
    %64 = arith.divf %62, %63 : vector<8x32xf32>
    %65 = vector.extract_strided_slice %52 {offsets = [0, 64], sizes = [8, 32], strides = [1, 1]} : vector<8x128xf32> to vector<8x32xf32>
    %66 = math.tanh %65 : vector<8x32xf32>
    %67 = vector.extract_strided_slice %52 {offsets = [0, 96], sizes = [8, 32], strides = [1, 1]} : vector<8x128xf32> to vector<8x32xf32>
    %68 = arith.negf %67 : vector<8x32xf32>
    %69 = math.exp %68 : vector<8x32xf32>
    %cst_43 = arith.constant 1.000000e+00 : f32
    %70 = vector.broadcast %cst_43 : f32 to vector<8x32xf32>
    %71 = arith.addf %70, %69 : vector<8x32xf32>
    %72 = arith.divf %70, %71 : vector<8x32xf32>
    %73 = arith.mulf %64, %16 : vector<8x32xf32>
    %74 = arith.mulf %58, %66 : vector<8x32xf32>
    %75 = arith.addf %73, %74 : vector<8x32xf32>
    %76 = math.tanh %75 : vector<8x32xf32>
    %77 = arith.mulf %72, %76 : vector<8x32xf32>
    %cst_44 = arith.constant dense<0.000000e+00> : vector<8x32xf32>
    %78 = tpu.matmul %77, %21, %cst_44 {dimension_numbers = #tpu.dot_dimension_numbers<[1], [0], [0], [1], [0, 0, 1, 1], [], []>} : vector<8x32xf32>, vector<32x32xf32>, vector<8x32xf32> -> vector<8x32xf32>
    %79 = vector.broadcast %22 : vector<1x32xf32> to vector<8x32xf32>
    %80 = arith.addf %78, %79 : vector<8x32xf32>
    %c0_45 = arith.constant 0 : index
    %c0_46 = arith.constant 0 : index
    %c0_47 = arith.constant 0 : index
    %81 = vector.load %arg12[%c0_45, %c0_46, %c0_47] : memref<8x8x32xf32, #tpu.memory_space<vmem>>, vector<8x1x32xf32>
    %82 = vector.shape_cast %81 : vector<8x1x32xf32> to vector<8x32xf32>
    %83 = vector.shape_cast %80 : vector<8x32xf32> to vector<8x1x32xf32>
    tpu.vector_store %arg12[%c0_45, %c0_46, %c0_47], %83 {strides = array<i32>} : memref<8x8x32xf32, #tpu.memory_space<vmem>>, vector<8x1x32xf32>,
    %c0_48 = arith.constant 0 : index
    %c0_49 = arith.constant 0 : index
    %c0_50 = arith.constant 0 : index
    %84 = vector.load %arg13[%c0_48, %c0_49, %c0_50] : memref<8x8x8xf32, #tpu.memory_space<vmem>>, vector<8x1x8xf32>
    %85 = vector.shape_cast %84 : vector<8x1x8xf32> to vector<8x8xf32>
    %86 = vector.shape_cast %39 : vector<8x8xf32> to vector<8x1x8xf32>
    tpu.vector_store %arg13[%c0_48, %c0_49, %c0_50], %86 {strides = array<i32>} : memref<8x8x8xf32, #tpu.memory_space<vmem>>, vector<8x1x8xf32>,
    %cst_51 = arith.constant dense<0.000000e+00> : vector<8x16xf32>
    %87 = tpu.matmul %77, %17, %cst_51 {dimension_numbers = #tpu.dot_dimension_numbers<[1], [0], [0], [1], [0, 0, 1, 1], [], []>} : vector<8x32xf32>, vector<32x16xf32>, vector<8x16xf32> -> vector<8x16xf32>
    %88 = vector.shape_cast %87 : vector<8x16xf32> to vector<8x1x16xf32>
    %89 = vector.broadcast %88 : vector<8x1x16xf32> to vector<8x8x16xf32>
    %90 = arith.addf %6, %89 : vector<8x8x16xf32>
    %91 = math.tanh %90 : vector<8x8x16xf32>
    %92 = vector.broadcast %18 : vector<1x1x16xf32> to vector<8x8x16xf32>
    %93 = arith.mulf %91, %92 : vector<8x8x16xf32>
    %cst_52 = arith.constant dense<0.000000e+00> : vector<8x8xf32>
    %94 = vector.multi_reduction <add>, %93, %cst_52 [2] : vector<8x8x16xf32> to vector<8x8xf32>
    %cst_53 = arith.constant dense<0xFF800000> : vector<8xf32>
    %95 = vector.multi_reduction <maximumf>, %94, %cst_53 [1] : vector<8x8xf32> to vector<8xf32>
    %96 = vector.shape_cast %95 : vector<8xf32> to vector<8x1xf32>
    %97 = vector.broadcast %96 : vector<8x1xf32> to vector<8x8xf32>
    %98 = arith.subf %94, %97 : vector<8x8xf32>
    %99 = math.exp %98 : vector<8x8xf32>
    %cst_54 = arith.constant dense<0.000000e+00> : vector<8xf32>
    %100 = vector.multi_reduction <add>, %99, %cst_54 [1] : vector<8x8xf32> to vector<8xf32>
    %101 = vector.shape_cast %100 : vector<8xf32> to vector<8x1xf32>
    %102 = vector.broadcast %101 : vector<8x1xf32> to vector<8x8xf32>
    %103 = arith.divf %99, %102 : vector<8x8xf32>
    %104 = vector.shape_cast %103 : vector<8x8xf32> to vector<8x8x1xf32>
    %105 = vector.broadcast %104 : vector<8x8x1xf32> to vector<8x8x32xf32>
    %106 = arith.mulf %0, %105 : vector<8x8x32xf32>
    %cst_55 = arith.constant dense<0.000000e+00> : vector<8x32xf32>
    %107 = vector.multi_reduction <add>, %106, %cst_55 [1] : vector<8x8x32xf32> to vector<8x32xf32>
    %c0_56 = arith.constant 0 : index
    %c1 = arith.constant 1 : index
    %c0_57 = arith.constant 0 : index
    %108 = vector.load %arg0[%c0_56, %c1, %c0_57] : memref<8x8x16xf32, #tpu.memory_space<vmem>>, vector<8x1x16xf32>
    %109 = vector.shape_cast %108 : vector<8x1x16xf32> to vector<8x16xf32>
    %c0_58 = arith.constant 0 : index
    %c0_59 = arith.constant 0 : index
    %110 = vector.load %arg14[%c0_58, %c0_59] : memref<8x80xf32, #tpu.memory_space<vmem>>, vector<8x16xf32>
    tpu.vector_store %arg14[%c0_58, %c0_59], %109 {strides = array<i32>} : memref<8x80xf32, #tpu.memory_space<vmem>>, vector<8x16xf32>,
    %c0_60 = arith.constant 0 : index
    %c16_61 = arith.constant 16 : index
    %111 = vector.load %arg14[%c0_60, %c16_61] : memref<8x80xf32, #tpu.memory_space<vmem>>, vector<8x32xf32>
    tpu.vector_store %arg14[%c0_60, %c16_61], %107 {strides = array<i32>} : memref<8x80xf32, #tpu.memory_space<vmem>>, vector<8x32xf32>,
    %c0_62 = arith.constant 0 : index
    %c48_63 = arith.constant 48 : index
    %112 = vector.load %arg14[%c0_62, %c48_63] : memref<8x80xf32, #tpu.memory_space<vmem>>, vector<8x32xf32>
    tpu.vector_store %arg14[%c0_62, %c48_63], %77 {strides = array<i32>} : memref<8x80xf32, #tpu.memory_space<vmem>>, vector<8x32xf32>,
    %c0_64 = arith.constant 0 : index
    %c0_65 = arith.constant 0 : index
    %113 = vector.load %arg14[%c0_64, %c0_65] : memref<8x80xf32, #tpu.memory_space<vmem>>, vector<8x80xf32>
    %cst_66 = arith.constant dense<0.000000e+00> : vector<8x128xf32>
    %114 = tpu.matmul %113, %19, %cst_66 {dimension_numbers = #tpu.dot_dimension_numbers<[1], [0], [0], [1], [0, 0, 1, 1], [], []>} : vector<8x80xf32>, vector<80x128xf32>, vector<8x128xf32> -> vector<8x128xf32>
    %115 = vector.broadcast %20 : vector<1x128xf32> to vector<8x128xf32>
    %116 = arith.addf %114, %115 : vector<8x128xf32>
    %117 = vector.extract_strided_slice %116 {offsets = [0, 0], sizes = [8, 32], strides = [1, 1]} : vector<8x128xf32> to vector<8x32xf32>
    %118 = arith.negf %117 : vector<8x32xf32>
    %119 = math.exp %118 : vector<8x32xf32>
    %cst_67 = arith.constant 1.000000e+00 : f32
    %120 = vector.broadcast %cst_67 : f32 to vector<8x32xf32>
    %121 = arith.addf %120, %119 : vector<8x32xf32>
    %122 = arith.divf %120, %121 : vector<8x32xf32>
    %123 = vector.extract_strided_slice %116 {offsets = [0, 32], sizes = [8, 32], strides = [1, 1]} : vector<8x128xf32> to vector<8x32xf32>
    %124 = arith.negf %123 : vector<8x32xf32>
    %125 = math.exp %124 : vector<8x32xf32>
    %cst_68 = arith.constant 1.000000e+00 : f32
    %126 = vector.broadcast %cst_68 : f32 to vector<8x32xf32>
    %127 = arith.addf %126, %125 : vector<8x32xf32>
    %128 = arith.divf %126, %127 : vector<8x32xf32>
    %129 = vector.extract_strided_slice %116 {offsets = [0, 64], sizes = [8, 32], strides = [1, 1]} : vector<8x128xf32> to vector<8x32xf32>
    %130 = math.tanh %129 : vector<8x32xf32>
    %131 = vector.extract_strided_slice %116 {offsets = [0, 96], sizes = [8, 32], strides = [1, 1]} : vector<8x128xf32> to vector<8x32xf32>
    %132 = arith.negf %131 : vector<8x32xf32>
    %133 = math.exp %132 : vector<8x32xf32>
    %cst_69 = arith.constant 1.000000e+00 : f32
    %134 = vector.broadcast %cst_69 : f32 to vector<8x32xf32>
    %135 = arith.addf %134, %133 : vector<8x32xf32>
    %136 = arith.divf %134, %135 : vector<8x32xf32>
    %137 = arith.mulf %128, %75 : vector<8x32xf32>
    %138 = arith.mulf %122, %130 : vector<8x32xf32>
    %139 = arith.addf %137, %138 : vector<8x32xf32>
    %140 = math.tanh %139 : vector<8x32xf32>
    %141 = arith.mulf %136, %140 : vector<8x32xf32>
    %cst_70 = arith.constant dense<0.000000e+00> : vector<8x32xf32>
    %142 = tpu.matmul %141, %21, %cst_70 {dimension_numbers = #tpu.dot_dimension_numbers<[1], [0], [0], [1], [0, 0, 1, 1], [], []>} : vector<8x32xf32>, vector<32x32xf32>, vector<8x32xf32> -> vector<8x32xf32>
    %143 = vector.broadcast %22 : vector<1x32xf32> to vector<8x32xf32>
    %144 = arith.addf %142, %143 : vector<8x32xf32>
    %c0_71 = arith.constant 0 : index
    %c1_72 = arith.constant 1 : index
    %c0_73 = arith.constant 0 : index
    %145 = vector.load %arg12[%c0_71, %c1_72, %c0_73] : memref<8x8x32xf32, #tpu.memory_space<vmem>>, vector<8x1x32xf32>
    %146 = vector.shape_cast %145 : vector<8x1x32xf32> to vector<8x32xf32>
    %147 = vector.shape_cast %144 : vector<8x32xf32> to vector<8x1x32xf32>
    tpu.vector_store %arg12[%c0_71, %c1_72, %c0_73], %147 {strides = array<i32>} : memref<8x8x32xf32, #tpu.memory_space<vmem>>, vector<8x1x32xf32>,
    %c0_74 = arith.constant 0 : index
    %c1_75 = arith.constant 1 : index
    %c0_76 = arith.constant 0 : index
    %148 = vector.load %arg13[%c0_74, %c1_75, %c0_76] : memref<8x8x8xf32, #tpu.memory_space<vmem>>, vector<8x1x8xf32>
    %149 = vector.shape_cast %148 : vector<8x1x8xf32> to vector<8x8xf32>
    %150 = vector.shape_cast %103 : vector<8x8xf32> to vector<8x1x8xf32>
    tpu.vector_store %arg13[%c0_74, %c1_75, %c0_76], %150 {strides = array<i32>} : memref<8x8x8xf32, #tpu.memory_space<vmem>>, vector<8x1x8xf32>,
    %cst_77 = arith.constant dense<0.000000e+00> : vector<8x16xf32>
    %151 = tpu.matmul %141, %17, %cst_77 {dimension_numbers = #tpu.dot_dimension_numbers<[1], [0], [0], [1], [0, 0, 1, 1], [], []>} : vector<8x32xf32>, vector<32x16xf32>, vector<8x16xf32> -> vector<8x16xf32>
    %152 = vector.shape_cast %151 : vector<8x16xf32> to vector<8x1x16xf32>
    %153 = vector.broadcast %152 : vector<8x1x16xf32> to vector<8x8x16xf32>
    %154 = arith.addf %6, %153 : vector<8x8x16xf32>
    %155 = math.tanh %154 : vector<8x8x16xf32>
    %156 = vector.broadcast %18 : vector<1x1x16xf32> to vector<8x8x16xf32>
    %157 = arith.mulf %155, %156 : vector<8x8x16xf32>
    %cst_78 = arith.constant dense<0.000000e+00> : vector<8x8xf32>
    %158 = vector.multi_reduction <add>, %157, %cst_78 [2] : vector<8x8x16xf32> to vector<8x8xf32>
    %cst_79 = arith.constant dense<0xFF800000> : vector<8xf32>
    %159 = vector.multi_reduction <maximumf>, %158, %cst_79 [1] : vector<8x8xf32> to vector<8xf32>
    %160 = vector.shape_cast %159 : vector<8xf32> to vector<8x1xf32>
    %161 = vector.broadcast %160 : vector<8x1xf32> to vector<8x8xf32>
    %162 = arith.subf %158, %161 : vector<8x8xf32>
    %163 = math.exp %162 : vector<8x8xf32>
    %cst_80 = arith.constant dense<0.000000e+00> : vector<8xf32>
    %164 = vector.multi_reduction <add>, %163, %cst_80 [1] : vector<8x8xf32> to vector<8xf32>
    %165 = vector.shape_cast %164 : vector<8xf32> to vector<8x1xf32>
    %166 = vector.broadcast %165 : vector<8x1xf32> to vector<8x8xf32>
    %167 = arith.divf %163, %166 : vector<8x8xf32>
    %168 = vector.shape_cast %167 : vector<8x8xf32> to vector<8x8x1xf32>
    %169 = vector.broadcast %168 : vector<8x8x1xf32> to vector<8x8x32xf32>
    %170 = arith.mulf %0, %169 : vector<8x8x32xf32>
    %cst_81 = arith.constant dense<0.000000e+00> : vector<8x32xf32>
    %171 = vector.multi_reduction <add>, %170, %cst_81 [1] : vector<8x8x32xf32> to vector<8x32xf32>
    %c0_82 = arith.constant 0 : index
    %c2 = arith.constant 2 : index
    %c0_83 = arith.constant 0 : index
    %172 = vector.load %arg0[%c0_82, %c2, %c0_83] : memref<8x8x16xf32, #tpu.memory_space<vmem>>, vector<8x1x16xf32>
    %173 = vector.shape_cast %172 : vector<8x1x16xf32> to vector<8x16xf32>
    %c0_84 = arith.constant 0 : index
    %c0_85 = arith.constant 0 : index
    %174 = vector.load %arg14[%c0_84, %c0_85] : memref<8x80xf32, #tpu.memory_space<vmem>>, vector<8x16xf32>
    tpu.vector_store %arg14[%c0_84, %c0_85], %173 {strides = array<i32>} : memref<8x80xf32, #tpu.memory_space<vmem>>, vector<8x16xf32>,
    %c0_86 = arith.constant 0 : index
    %c16_87 = arith.constant 16 : index
    %175 = vector.load %arg14[%c0_86, %c16_87] : memref<8x80xf32, #tpu.memory_space<vmem>>, vector<8x32xf32>
    tpu.vector_store %arg14[%c0_86, %c16_87], %171 {strides = array<i32>} : memref<8x80xf32, #tpu.memory_space<vmem>>, vector<8x32xf32>,
    %c0_88 = arith.constant 0 : index
    %c48_89 = arith.constant 48 : index
    %176 = vector.load %arg14[%c0_88, %c48_89] : memref<8x80xf32, #tpu.memory_space<vmem>>, vector<8x32xf32>
    tpu.vector_store %arg14[%c0_88, %c48_89], %141 {strides = array<i32>} : memref<8x80xf32, #tpu.memory_space<vmem>>, vector<8x32xf32>,
    %c0_90 = arith.constant 0 : index
    %c0_91 = arith.constant 0 : index
    %177 = vector.load %arg14[%c0_90, %c0_91] : memref<8x80xf32, #tpu.memory_space<vmem>>, vector<8x80xf32>
    %cst_92 = arith.constant dense<0.000000e+00> : vector<8x128xf32>
    %178 = tpu.matmul %177, %19, %cst_92 {dimension_numbers = #tpu.dot_dimension_numbers<[1], [0], [0], [1], [0, 0, 1, 1], [], []>} : vector<8x80xf32>, vector<80x128xf32>, vector<8x128xf32> -> vector<8x128xf32>
    %179 = vector.broadcast %20 : vector<1x128xf32> to vector<8x128xf32>
    %180 = arith.addf %178, %179 : vector<8x128xf32>
    %181 = vector.extract_strided_slice %180 {offsets = [0, 0], sizes = [8, 32], strides = [1, 1]} : vector<8x128xf32> to vector<8x32xf32>
    %182 = arith.negf %181 : vector<8x32xf32>
    %183 = math.exp %182 : vector<8x32xf32>
    %cst_93 = arith.constant 1.000000e+00 : f32
    %184 = vector.broadcast %cst_93 : f32 to vector<8x32xf32>
    %185 = arith.addf %184, %183 : vector<8x32xf32>
    %186 = arith.divf %184, %185 : vector<8x32xf32>
    %187 = vector.extract_strided_slice %180 {offsets = [0, 32], sizes = [8, 32], strides = [1, 1]} : vector<8x128xf32> to vector<8x32xf32>
    %188 = arith.negf %187 : vector<8x32xf32>
    %189 = math.exp %188 : vector<8x32xf32>
    %cst_94 = arith.constant 1.000000e+00 : f32
    %190 = vector.broadcast %cst_94 : f32 to vector<8x32xf32>
    %191 = arith.addf %190, %189 : vector<8x32xf32>
    %192 = arith.divf %190, %191 : vector<8x32xf32>
    %193 = vector.extract_strided_slice %180 {offsets = [0, 64], sizes = [8, 32], strides = [1, 1]} : vector<8x128xf32> to vector<8x32xf32>
    %194 = math.tanh %193 : vector<8x32xf32>
    %195 = vector.extract_strided_slice %180 {offsets = [0, 96], sizes = [8, 32], strides = [1, 1]} : vector<8x128xf32> to vector<8x32xf32>
    %196 = arith.negf %195 : vector<8x32xf32>
    %197 = math.exp %196 : vector<8x32xf32>
    %cst_95 = arith.constant 1.000000e+00 : f32
    %198 = vector.broadcast %cst_95 : f32 to vector<8x32xf32>
    %199 = arith.addf %198, %197 : vector<8x32xf32>
    %200 = arith.divf %198, %199 : vector<8x32xf32>
    %201 = arith.mulf %192, %139 : vector<8x32xf32>
    %202 = arith.mulf %186, %194 : vector<8x32xf32>
    %203 = arith.addf %201, %202 : vector<8x32xf32>
    %204 = math.tanh %203 : vector<8x32xf32>
    %205 = arith.mulf %200, %204 : vector<8x32xf32>
    %cst_96 = arith.constant dense<0.000000e+00> : vector<8x32xf32>
    %206 = tpu.matmul %205, %21, %cst_96 {dimension_numbers = #tpu.dot_dimension_numbers<[1], [0], [0], [1], [0, 0, 1, 1], [], []>} : vector<8x32xf32>, vector<32x32xf32>, vector<8x32xf32> -> vector<8x32xf32>
    %207 = vector.broadcast %22 : vector<1x32xf32> to vector<8x32xf32>
    %208 = arith.addf %206, %207 : vector<8x32xf32>
    %c0_97 = arith.constant 0 : index
    %c2_98 = arith.constant 2 : index
    %c0_99 = arith.constant 0 : index
    %209 = vector.load %arg12[%c0_97, %c2_98, %c0_99] : memref<8x8x32xf32, #tpu.memory_space<vmem>>, vector<8x1x32xf32>
    %210 = vector.shape_cast %209 : vector<8x1x32xf32> to vector<8x32xf32>
    %211 = vector.shape_cast %208 : vector<8x32xf32> to vector<8x1x32xf32>
    tpu.vector_store %arg12[%c0_97, %c2_98, %c0_99], %211 {strides = array<i32>} : memref<8x8x32xf32, #tpu.memory_space<vmem>>, vector<8x1x32xf32>,
    %c0_100 = arith.constant 0 : index
    %c2_101 = arith.constant 2 : index
    %c0_102 = arith.constant 0 : index
    %212 = vector.load %arg13[%c0_100, %c2_101, %c0_102] : memref<8x8x8xf32, #tpu.memory_space<vmem>>, vector<8x1x8xf32>
    %213 = vector.shape_cast %212 : vector<8x1x8xf32> to vector<8x8xf32>
    %214 = vector.shape_cast %167 : vector<8x8xf32> to vector<8x1x8xf32>
    tpu.vector_store %arg13[%c0_100, %c2_101, %c0_102], %214 {strides = array<i32>} : memref<8x8x8xf32, #tpu.memory_space<vmem>>, vector<8x1x8xf32>,
    %cst_103 = arith.constant dense<0.000000e+00> : vector<8x16xf32>
    %215 = tpu.matmul %205, %17, %cst_103 {dimension_numbers = #tpu.dot_dimension_numbers<[1], [0], [0], [1], [0, 0, 1, 1], [], []>} : vector<8x32xf32>, vector<32x16xf32>, vector<8x16xf32> -> vector<8x16xf32>
    %216 = vector.shape_cast %215 : vector<8x16xf32> to vector<8x1x16xf32>
    %217 = vector.broadcast %216 : vector<8x1x16xf32> to vector<8x8x16xf32>
    %218 = arith.addf %6, %217 : vector<8x8x16xf32>
    %219 = math.tanh %218 : vector<8x8x16xf32>
    %220 = vector.broadcast %18 : vector<1x1x16xf32> to vector<8x8x16xf32>
    %221 = arith.mulf %219, %220 : vector<8x8x16xf32>
    %cst_104 = arith.constant dense<0.000000e+00> : vector<8x8xf32>
    %222 = vector.multi_reduction <add>, %221, %cst_104 [2] : vector<8x8x16xf32> to vector<8x8xf32>
    %cst_105 = arith.constant dense<0xFF800000> : vector<8xf32>
    %223 = vector.multi_reduction <maximumf>, %222, %cst_105 [1] : vector<8x8xf32> to vector<8xf32>
    %224 = vector.shape_cast %223 : vector<8xf32> to vector<8x1xf32>
    %225 = vector.broadcast %224 : vector<8x1xf32> to vector<8x8xf32>
    %226 = arith.subf %222, %225 : vector<8x8xf32>
    %227 = math.exp %226 : vector<8x8xf32>
    %cst_106 = arith.constant dense<0.000000e+00> : vector<8xf32>
    %228 = vector.multi_reduction <add>, %227, %cst_106 [1] : vector<8x8xf32> to vector<8xf32>
    %229 = vector.shape_cast %228 : vector<8xf32> to vector<8x1xf32>
    %230 = vector.broadcast %229 : vector<8x1xf32> to vector<8x8xf32>
    %231 = arith.divf %227, %230 : vector<8x8xf32>
    %232 = vector.shape_cast %231 : vector<8x8xf32> to vector<8x8x1xf32>
    %233 = vector.broadcast %232 : vector<8x8x1xf32> to vector<8x8x32xf32>
    %234 = arith.mulf %0, %233 : vector<8x8x32xf32>
    %cst_107 = arith.constant dense<0.000000e+00> : vector<8x32xf32>
    %235 = vector.multi_reduction <add>, %234, %cst_107 [1] : vector<8x8x32xf32> to vector<8x32xf32>
    %c0_108 = arith.constant 0 : index
    %c3 = arith.constant 3 : index
    %c0_109 = arith.constant 0 : index
    %236 = vector.load %arg0[%c0_108, %c3, %c0_109] : memref<8x8x16xf32, #tpu.memory_space<vmem>>, vector<8x1x16xf32>
    %237 = vector.shape_cast %236 : vector<8x1x16xf32> to vector<8x16xf32>
    %c0_110 = arith.constant 0 : index
    %c0_111 = arith.constant 0 : index
    %238 = vector.load %arg14[%c0_110, %c0_111] : memref<8x80xf32, #tpu.memory_space<vmem>>, vector<8x16xf32>
    tpu.vector_store %arg14[%c0_110, %c0_111], %237 {strides = array<i32>} : memref<8x80xf32, #tpu.memory_space<vmem>>, vector<8x16xf32>,
    %c0_112 = arith.constant 0 : index
    %c16_113 = arith.constant 16 : index
    %239 = vector.load %arg14[%c0_112, %c16_113] : memref<8x80xf32, #tpu.memory_space<vmem>>, vector<8x32xf32>
    tpu.vector_store %arg14[%c0_112, %c16_113], %235 {strides = array<i32>} : memref<8x80xf32, #tpu.memory_space<vmem>>, vector<8x32xf32>,
    %c0_114 = arith.constant 0 : index
    %c48_115 = arith.constant 48 : index
    %240 = vector.load %arg14[%c0_114, %c48_115] : memref<8x80xf32, #tpu.memory_space<vmem>>, vector<8x32xf32>
    tpu.vector_store %arg14[%c0_114, %c48_115], %205 {strides = array<i32>} : memref<8x80xf32, #tpu.memory_space<vmem>>, vector<8x32xf32>,
    %c0_116 = arith.constant 0 : index
    %c0_117 = arith.constant 0 : index
    %241 = vector.load %arg14[%c0_116, %c0_117] : memref<8x80xf32, #tpu.memory_space<vmem>>, vector<8x80xf32>
    %cst_118 = arith.constant dense<0.000000e+00> : vector<8x128xf32>
    %242 = tpu.matmul %241, %19, %cst_118 {dimension_numbers = #tpu.dot_dimension_numbers<[1], [0], [0], [1], [0, 0, 1, 1], [], []>} : vector<8x80xf32>, vector<80x128xf32>, vector<8x128xf32> -> vector<8x128xf32>
    %243 = vector.broadcast %20 : vector<1x128xf32> to vector<8x128xf32>
    %244 = arith.addf %242, %243 : vector<8x128xf32>
    %245 = vector.extract_strided_slice %244 {offsets = [0, 0], sizes = [8, 32], strides = [1, 1]} : vector<8x128xf32> to vector<8x32xf32>
    %246 = arith.negf %245 : vector<8x32xf32>
    %247 = math.exp %246 : vector<8x32xf32>
    %cst_119 = arith.constant 1.000000e+00 : f32
    %248 = vector.broadcast %cst_119 : f32 to vector<8x32xf32>
    %249 = arith.addf %248, %247 : vector<8x32xf32>
    %250 = arith.divf %248, %249 : vector<8x32xf32>
    %251 = vector.extract_strided_slice %244 {offsets = [0, 32], sizes = [8, 32], strides = [1, 1]} : vector<8x128xf32> to vector<8x32xf32>
    %252 = arith.negf %251 : vector<8x32xf32>
    %253 = math.exp %252 : vector<8x32xf32>
    %cst_120 = arith.constant 1.000000e+00 : f32
    %254 = vector.broadcast %cst_120 : f32 to vector<8x32xf32>
    %255 = arith.addf %254, %253 : vector<8x32xf32>
    %256 = arith.divf %254, %255 : vector<8x32xf32>
    %257 = vector.extract_strided_slice %244 {offsets = [0, 64], sizes = [8, 32], strides = [1, 1]} : vector<8x128xf32> to vector<8x32xf32>
    %258 = math.tanh %257 : vector<8x32xf32>
    %259 = vector.extract_strided_slice %244 {offsets = [0, 96], sizes = [8, 32], strides = [1, 1]} : vector<8x128xf32> to vector<8x32xf32>
    %260 = arith.negf %259 : vector<8x32xf32>
    %261 = math.exp %260 : vector<8x32xf32>
    %cst_121 = arith.constant 1.000000e+00 : f32
    %262 = vector.broadcast %cst_121 : f32 to vector<8x32xf32>
    %263 = arith.addf %262, %261 : vector<8x32xf32>
    %264 = arith.divf %262, %263 : vector<8x32xf32>
    %265 = arith.mulf %256, %203 : vector<8x32xf32>
    %266 = arith.mulf %250, %258 : vector<8x32xf32>
    %267 = arith.addf %265, %266 : vector<8x32xf32>
    %268 = math.tanh %267 : vector<8x32xf32>
    %269 = arith.mulf %264, %268 : vector<8x32xf32>
    %cst_122 = arith.constant dense<0.000000e+00> : vector<8x32xf32>
    %270 = tpu.matmul %269, %21, %cst_122 {dimension_numbers = #tpu.dot_dimension_numbers<[1], [0], [0], [1], [0, 0, 1, 1], [], []>} : vector<8x32xf32>, vector<32x32xf32>, vector<8x32xf32> -> vector<8x32xf32>
    %271 = vector.broadcast %22 : vector<1x32xf32> to vector<8x32xf32>
    %272 = arith.addf %270, %271 : vector<8x32xf32>
    %c0_123 = arith.constant 0 : index
    %c3_124 = arith.constant 3 : index
    %c0_125 = arith.constant 0 : index
    %273 = vector.load %arg12[%c0_123, %c3_124, %c0_125] : memref<8x8x32xf32, #tpu.memory_space<vmem>>, vector<8x1x32xf32>
    %274 = vector.shape_cast %273 : vector<8x1x32xf32> to vector<8x32xf32>
    %275 = vector.shape_cast %272 : vector<8x32xf32> to vector<8x1x32xf32>
    tpu.vector_store %arg12[%c0_123, %c3_124, %c0_125], %275 {strides = array<i32>} : memref<8x8x32xf32, #tpu.memory_space<vmem>>, vector<8x1x32xf32>,
    %c0_126 = arith.constant 0 : index
    %c3_127 = arith.constant 3 : index
    %c0_128 = arith.constant 0 : index
    %276 = vector.load %arg13[%c0_126, %c3_127, %c0_128] : memref<8x8x8xf32, #tpu.memory_space<vmem>>, vector<8x1x8xf32>
    %277 = vector.shape_cast %276 : vector<8x1x8xf32> to vector<8x8xf32>
    %278 = vector.shape_cast %231 : vector<8x8xf32> to vector<8x1x8xf32>
    tpu.vector_store %arg13[%c0_126, %c3_127, %c0_128], %278 {strides = array<i32>} : memref<8x8x8xf32, #tpu.memory_space<vmem>>, vector<8x1x8xf32>,
    %cst_129 = arith.constant dense<0.000000e+00> : vector<8x16xf32>
    %279 = tpu.matmul %269, %17, %cst_129 {dimension_numbers = #tpu.dot_dimension_numbers<[1], [0], [0], [1], [0, 0, 1, 1], [], []>} : vector<8x32xf32>, vector<32x16xf32>, vector<8x16xf32> -> vector<8x16xf32>
    %280 = vector.shape_cast %279 : vector<8x16xf32> to vector<8x1x16xf32>
    %281 = vector.broadcast %280 : vector<8x1x16xf32> to vector<8x8x16xf32>
    %282 = arith.addf %6, %281 : vector<8x8x16xf32>
    %283 = math.tanh %282 : vector<8x8x16xf32>
    %284 = vector.broadcast %18 : vector<1x1x16xf32> to vector<8x8x16xf32>
    %285 = arith.mulf %283, %284 : vector<8x8x16xf32>
    %cst_130 = arith.constant dense<0.000000e+00> : vector<8x8xf32>
    %286 = vector.multi_reduction <add>, %285, %cst_130 [2] : vector<8x8x16xf32> to vector<8x8xf32>
    %cst_131 = arith.constant dense<0xFF800000> : vector<8xf32>
    %287 = vector.multi_reduction <maximumf>, %286, %cst_131 [1] : vector<8x8xf32> to vector<8xf32>
    %288 = vector.shape_cast %287 : vector<8xf32> to vector<8x1xf32>
    %289 = vector.broadcast %288 : vector<8x1xf32> to vector<8x8xf32>
    %290 = arith.subf %286, %289 : vector<8x8xf32>
    %291 = math.exp %290 : vector<8x8xf32>
    %cst_132 = arith.constant dense<0.000000e+00> : vector<8xf32>
    %292 = vector.multi_reduction <add>, %291, %cst_132 [1] : vector<8x8xf32> to vector<8xf32>
    %293 = vector.shape_cast %292 : vector<8xf32> to vector<8x1xf32>
    %294 = vector.broadcast %293 : vector<8x1xf32> to vector<8x8xf32>
    %295 = arith.divf %291, %294 : vector<8x8xf32>
    %296 = vector.shape_cast %295 : vector<8x8xf32> to vector<8x8x1xf32>
    %297 = vector.broadcast %296 : vector<8x8x1xf32> to vector<8x8x32xf32>
    %298 = arith.mulf %0, %297 : vector<8x8x32xf32>
    %cst_133 = arith.constant dense<0.000000e+00> : vector<8x32xf32>
    %299 = vector.multi_reduction <add>, %298, %cst_133 [1] : vector<8x8x32xf32> to vector<8x32xf32>
    %c0_134 = arith.constant 0 : index
    %c4 = arith.constant 4 : index
    %c0_135 = arith.constant 0 : index
    %300 = vector.load %arg0[%c0_134, %c4, %c0_135] : memref<8x8x16xf32, #tpu.memory_space<vmem>>, vector<8x1x16xf32>
    %301 = vector.shape_cast %300 : vector<8x1x16xf32> to vector<8x16xf32>
    %c0_136 = arith.constant 0 : index
    %c0_137 = arith.constant 0 : index
    %302 = vector.load %arg14[%c0_136, %c0_137] : memref<8x80xf32, #tpu.memory_space<vmem>>, vector<8x16xf32>
    tpu.vector_store %arg14[%c0_136, %c0_137], %301 {strides = array<i32>} : memref<8x80xf32, #tpu.memory_space<vmem>>, vector<8x16xf32>,
    %c0_138 = arith.constant 0 : index
    %c16_139 = arith.constant 16 : index
    %303 = vector.load %arg14[%c0_138, %c16_139] : memref<8x80xf32, #tpu.memory_space<vmem>>, vector<8x32xf32>
    tpu.vector_store %arg14[%c0_138, %c16_139], %299 {strides = array<i32>} : memref<8x80xf32, #tpu.memory_space<vmem>>, vector<8x32xf32>,
    %c0_140 = arith.constant 0 : index
    %c48_141 = arith.constant 48 : index
    %304 = vector.load %arg14[%c0_140, %c48_141] : memref<8x80xf32, #tpu.memory_space<vmem>>, vector<8x32xf32>
    tpu.vector_store %arg14[%c0_140, %c48_141], %269 {strides = array<i32>} : memref<8x80xf32, #tpu.memory_space<vmem>>, vector<8x32xf32>,
    %c0_142 = arith.constant 0 : index
    %c0_143 = arith.constant 0 : index
    %305 = vector.load %arg14[%c0_142, %c0_143] : memref<8x80xf32, #tpu.memory_space<vmem>>, vector<8x80xf32>
    %cst_144 = arith.constant dense<0.000000e+00> : vector<8x128xf32>
    %306 = tpu.matmul %305, %19, %cst_144 {dimension_numbers = #tpu.dot_dimension_numbers<[1], [0], [0], [1], [0, 0, 1, 1], [], []>} : vector<8x80xf32>, vector<80x128xf32>, vector<8x128xf32> -> vector<8x128xf32>
    %307 = vector.broadcast %20 : vector<1x128xf32> to vector<8x128xf32>
    %308 = arith.addf %306, %307 : vector<8x128xf32>
    %309 = vector.extract_strided_slice %308 {offsets = [0, 0], sizes = [8, 32], strides = [1, 1]} : vector<8x128xf32> to vector<8x32xf32>
    %310 = arith.negf %309 : vector<8x32xf32>
    %311 = math.exp %310 : vector<8x32xf32>
    %cst_145 = arith.constant 1.000000e+00 : f32
    %312 = vector.broadcast %cst_145 : f32 to vector<8x32xf32>
    %313 = arith.addf %312, %311 : vector<8x32xf32>
    %314 = arith.divf %312, %313 : vector<8x32xf32>
    %315 = vector.extract_strided_slice %308 {offsets = [0, 32], sizes = [8, 32], strides = [1, 1]} : vector<8x128xf32> to vector<8x32xf32>
    %316 = arith.negf %315 : vector<8x32xf32>
    %317 = math.exp %316 : vector<8x32xf32>
    %cst_146 = arith.constant 1.000000e+00 : f32
    %318 = vector.broadcast %cst_146 : f32 to vector<8x32xf32>
    %319 = arith.addf %318, %317 : vector<8x32xf32>
    %320 = arith.divf %318, %319 : vector<8x32xf32>
    %321 = vector.extract_strided_slice %308 {offsets = [0, 64], sizes = [8, 32], strides = [1, 1]} : vector<8x128xf32> to vector<8x32xf32>
    %322 = math.tanh %321 : vector<8x32xf32>
    %323 = vector.extract_strided_slice %308 {offsets = [0, 96], sizes = [8, 32], strides = [1, 1]} : vector<8x128xf32> to vector<8x32xf32>
    %324 = arith.negf %323 : vector<8x32xf32>
    %325 = math.exp %324 : vector<8x32xf32>
    %cst_147 = arith.constant 1.000000e+00 : f32
    %326 = vector.broadcast %cst_147 : f32 to vector<8x32xf32>
    %327 = arith.addf %326, %325 : vector<8x32xf32>
    %328 = arith.divf %326, %327 : vector<8x32xf32>
    %329 = arith.mulf %320, %267 : vector<8x32xf32>
    %330 = arith.mulf %314, %322 : vector<8x32xf32>
    %331 = arith.addf %329, %330 : vector<8x32xf32>
    %332 = math.tanh %331 : vector<8x32xf32>
    %333 = arith.mulf %328, %332 : vector<8x32xf32>
    %cst_148 = arith.constant dense<0.000000e+00> : vector<8x32xf32>
    %334 = tpu.matmul %333, %21, %cst_148 {dimension_numbers = #tpu.dot_dimension_numbers<[1], [0], [0], [1], [0, 0, 1, 1], [], []>} : vector<8x32xf32>, vector<32x32xf32>, vector<8x32xf32> -> vector<8x32xf32>
    %335 = vector.broadcast %22 : vector<1x32xf32> to vector<8x32xf32>
    %336 = arith.addf %334, %335 : vector<8x32xf32>
    %c0_149 = arith.constant 0 : index
    %c4_150 = arith.constant 4 : index
    %c0_151 = arith.constant 0 : index
    %337 = vector.load %arg12[%c0_149, %c4_150, %c0_151] : memref<8x8x32xf32, #tpu.memory_space<vmem>>, vector<8x1x32xf32>
    %338 = vector.shape_cast %337 : vector<8x1x32xf32> to vector<8x32xf32>
    %339 = vector.shape_cast %336 : vector<8x32xf32> to vector<8x1x32xf32>
    tpu.vector_store %arg12[%c0_149, %c4_150, %c0_151], %339 {strides = array<i32>} : memref<8x8x32xf32, #tpu.memory_space<vmem>>, vector<8x1x32xf32>,
    %c0_152 = arith.constant 0 : index
    %c4_153 = arith.constant 4 : index
    %c0_154 = arith.constant 0 : index
    %340 = vector.load %arg13[%c0_152, %c4_153, %c0_154] : memref<8x8x8xf32, #tpu.memory_space<vmem>>, vector<8x1x8xf32>
    %341 = vector.shape_cast %340 : vector<8x1x8xf32> to vector<8x8xf32>
    %342 = vector.shape_cast %295 : vector<8x8xf32> to vector<8x1x8xf32>
    tpu.vector_store %arg13[%c0_152, %c4_153, %c0_154], %342 {strides = array<i32>} : memref<8x8x8xf32, #tpu.memory_space<vmem>>, vector<8x1x8xf32>,
    %cst_155 = arith.constant dense<0.000000e+00> : vector<8x16xf32>
    %343 = tpu.matmul %333, %17, %cst_155 {dimension_numbers = #tpu.dot_dimension_numbers<[1], [0], [0], [1], [0, 0, 1, 1], [], []>} : vector<8x32xf32>, vector<32x16xf32>, vector<8x16xf32> -> vector<8x16xf32>
    %344 = vector.shape_cast %343 : vector<8x16xf32> to vector<8x1x16xf32>
    %345 = vector.broadcast %344 : vector<8x1x16xf32> to vector<8x8x16xf32>
    %346 = arith.addf %6, %345 : vector<8x8x16xf32>
    %347 = math.tanh %346 : vector<8x8x16xf32>
    %348 = vector.broadcast %18 : vector<1x1x16xf32> to vector<8x8x16xf32>
    %349 = arith.mulf %347, %348 : vector<8x8x16xf32>
    %cst_156 = arith.constant dense<0.000000e+00> : vector<8x8xf32>
    %350 = vector.multi_reduction <add>, %349, %cst_156 [2] : vector<8x8x16xf32> to vector<8x8xf32>
    %cst_157 = arith.constant dense<0xFF800000> : vector<8xf32>
    %351 = vector.multi_reduction <maximumf>, %350, %cst_157 [1] : vector<8x8xf32> to vector<8xf32>
    %352 = vector.shape_cast %351 : vector<8xf32> to vector<8x1xf32>
    %353 = vector.broadcast %352 : vector<8x1xf32> to vector<8x8xf32>
    %354 = arith.subf %350, %353 : vector<8x8xf32>
    %355 = math.exp %354 : vector<8x8xf32>
    %cst_158 = arith.constant dense<0.000000e+00> : vector<8xf32>
    %356 = vector.multi_reduction <add>, %355, %cst_158 [1] : vector<8x8xf32> to vector<8xf32>
    %357 = vector.shape_cast %356 : vector<8xf32> to vector<8x1xf32>
    %358 = vector.broadcast %357 : vector<8x1xf32> to vector<8x8xf32>
    %359 = arith.divf %355, %358 : vector<8x8xf32>
    %360 = vector.shape_cast %359 : vector<8x8xf32> to vector<8x8x1xf32>
    %361 = vector.broadcast %360 : vector<8x8x1xf32> to vector<8x8x32xf32>
    %362 = arith.mulf %0, %361 : vector<8x8x32xf32>
    %cst_159 = arith.constant dense<0.000000e+00> : vector<8x32xf32>
    %363 = vector.multi_reduction <add>, %362, %cst_159 [1] : vector<8x8x32xf32> to vector<8x32xf32>
    %c0_160 = arith.constant 0 : index
    %c5 = arith.constant 5 : index
    %c0_161 = arith.constant 0 : index
    %364 = vector.load %arg0[%c0_160, %c5, %c0_161] : memref<8x8x16xf32, #tpu.memory_space<vmem>>, vector<8x1x16xf32>
    %365 = vector.shape_cast %364 : vector<8x1x16xf32> to vector<8x16xf32>
    %c0_162 = arith.constant 0 : index
    %c0_163 = arith.constant 0 : index
    %366 = vector.load %arg14[%c0_162, %c0_163] : memref<8x80xf32, #tpu.memory_space<vmem>>, vector<8x16xf32>
    tpu.vector_store %arg14[%c0_162, %c0_163], %365 {strides = array<i32>} : memref<8x80xf32, #tpu.memory_space<vmem>>, vector<8x16xf32>,
    %c0_164 = arith.constant 0 : index
    %c16_165 = arith.constant 16 : index
    %367 = vector.load %arg14[%c0_164, %c16_165] : memref<8x80xf32, #tpu.memory_space<vmem>>, vector<8x32xf32>
    tpu.vector_store %arg14[%c0_164, %c16_165], %363 {strides = array<i32>} : memref<8x80xf32, #tpu.memory_space<vmem>>, vector<8x32xf32>,
    %c0_166 = arith.constant 0 : index
    %c48_167 = arith.constant 48 : index
    %368 = vector.load %arg14[%c0_166, %c48_167] : memref<8x80xf32, #tpu.memory_space<vmem>>, vector<8x32xf32>
    tpu.vector_store %arg14[%c0_166, %c48_167], %333 {strides = array<i32>} : memref<8x80xf32, #tpu.memory_space<vmem>>, vector<8x32xf32>,
    %c0_168 = arith.constant 0 : index
    %c0_169 = arith.constant 0 : index
    %369 = vector.load %arg14[%c0_168, %c0_169] : memref<8x80xf32, #tpu.memory_space<vmem>>, vector<8x80xf32>
    %cst_170 = arith.constant dense<0.000000e+00> : vector<8x128xf32>
    %370 = tpu.matmul %369, %19, %cst_170 {dimension_numbers = #tpu.dot_dimension_numbers<[1], [0], [0], [1], [0, 0, 1, 1], [], []>} : vector<8x80xf32>, vector<80x128xf32>, vector<8x128xf32> -> vector<8x128xf32>
    %371 = vector.broadcast %20 : vector<1x128xf32> to vector<8x128xf32>
    %372 = arith.addf %370, %371 : vector<8x128xf32>
    %373 = vector.extract_strided_slice %372 {offsets = [0, 0], sizes = [8, 32], strides = [1, 1]} : vector<8x128xf32> to vector<8x32xf32>
    %374 = arith.negf %373 : vector<8x32xf32>
    %375 = math.exp %374 : vector<8x32xf32>
    %cst_171 = arith.constant 1.000000e+00 : f32
    %376 = vector.broadcast %cst_171 : f32 to vector<8x32xf32>
    %377 = arith.addf %376, %375 : vector<8x32xf32>
    %378 = arith.divf %376, %377 : vector<8x32xf32>
    %379 = vector.extract_strided_slice %372 {offsets = [0, 32], sizes = [8, 32], strides = [1, 1]} : vector<8x128xf32> to vector<8x32xf32>
    %380 = arith.negf %379 : vector<8x32xf32>
    %381 = math.exp %380 : vector<8x32xf32>
    %cst_172 = arith.constant 1.000000e+00 : f32
    %382 = vector.broadcast %cst_172 : f32 to vector<8x32xf32>
    %383 = arith.addf %382, %381 : vector<8x32xf32>
    %384 = arith.divf %382, %383 : vector<8x32xf32>
    %385 = vector.extract_strided_slice %372 {offsets = [0, 64], sizes = [8, 32], strides = [1, 1]} : vector<8x128xf32> to vector<8x32xf32>
    %386 = math.tanh %385 : vector<8x32xf32>
    %387 = vector.extract_strided_slice %372 {offsets = [0, 96], sizes = [8, 32], strides = [1, 1]} : vector<8x128xf32> to vector<8x32xf32>
    %388 = arith.negf %387 : vector<8x32xf32>
    %389 = math.exp %388 : vector<8x32xf32>
    %cst_173 = arith.constant 1.000000e+00 : f32
    %390 = vector.broadcast %cst_173 : f32 to vector<8x32xf32>
    %391 = arith.addf %390, %389 : vector<8x32xf32>
    %392 = arith.divf %390, %391 : vector<8x32xf32>
    %393 = arith.mulf %384, %331 : vector<8x32xf32>
    %394 = arith.mulf %378, %386 : vector<8x32xf32>
    %395 = arith.addf %393, %394 : vector<8x32xf32>
    %396 = math.tanh %395 : vector<8x32xf32>
    %397 = arith.mulf %392, %396 : vector<8x32xf32>
    %cst_174 = arith.constant dense<0.000000e+00> : vector<8x32xf32>
    %398 = tpu.matmul %397, %21, %cst_174 {dimension_numbers = #tpu.dot_dimension_numbers<[1], [0], [0], [1], [0, 0, 1, 1], [], []>} : vector<8x32xf32>, vector<32x32xf32>, vector<8x32xf32> -> vector<8x32xf32>
    %399 = vector.broadcast %22 : vector<1x32xf32> to vector<8x32xf32>
    %400 = arith.addf %398, %399 : vector<8x32xf32>
    %c0_175 = arith.constant 0 : index
    %c5_176 = arith.constant 5 : index
    %c0_177 = arith.constant 0 : index
    %401 = vector.load %arg12[%c0_175, %c5_176, %c0_177] : memref<8x8x32xf32, #tpu.memory_space<vmem>>, vector<8x1x32xf32>
    %402 = vector.shape_cast %401 : vector<8x1x32xf32> to vector<8x32xf32>
    %403 = vector.shape_cast %400 : vector<8x32xf32> to vector<8x1x32xf32>
    tpu.vector_store %arg12[%c0_175, %c5_176, %c0_177], %403 {strides = array<i32>} : memref<8x8x32xf32, #tpu.memory_space<vmem>>, vector<8x1x32xf32>,
    %c0_178 = arith.constant 0 : index
    %c5_179 = arith.constant 5 : index
    %c0_180 = arith.constant 0 : index
    %404 = vector.load %arg13[%c0_178, %c5_179, %c0_180] : memref<8x8x8xf32, #tpu.memory_space<vmem>>, vector<8x1x8xf32>
    %405 = vector.shape_cast %404 : vector<8x1x8xf32> to vector<8x8xf32>
    %406 = vector.shape_cast %359 : vector<8x8xf32> to vector<8x1x8xf32>
    tpu.vector_store %arg13[%c0_178, %c5_179, %c0_180], %406 {strides = array<i32>} : memref<8x8x8xf32, #tpu.memory_space<vmem>>, vector<8x1x8xf32>,
    %cst_181 = arith.constant dense<0.000000e+00> : vector<8x16xf32>
    %407 = tpu.matmul %397, %17, %cst_181 {dimension_numbers = #tpu.dot_dimension_numbers<[1], [0], [0], [1], [0, 0, 1, 1], [], []>} : vector<8x32xf32>, vector<32x16xf32>, vector<8x16xf32> -> vector<8x16xf32>
    %408 = vector.shape_cast %407 : vector<8x16xf32> to vector<8x1x16xf32>
    %409 = vector.broadcast %408 : vector<8x1x16xf32> to vector<8x8x16xf32>
    %410 = arith.addf %6, %409 : vector<8x8x16xf32>
    %411 = math.tanh %410 : vector<8x8x16xf32>
    %412 = vector.broadcast %18 : vector<1x1x16xf32> to vector<8x8x16xf32>
    %413 = arith.mulf %411, %412 : vector<8x8x16xf32>
    %cst_182 = arith.constant dense<0.000000e+00> : vector<8x8xf32>
    %414 = vector.multi_reduction <add>, %413, %cst_182 [2] : vector<8x8x16xf32> to vector<8x8xf32>
    %cst_183 = arith.constant dense<0xFF800000> : vector<8xf32>
    %415 = vector.multi_reduction <maximumf>, %414, %cst_183 [1] : vector<8x8xf32> to vector<8xf32>
    %416 = vector.shape_cast %415 : vector<8xf32> to vector<8x1xf32>
    %417 = vector.broadcast %416 : vector<8x1xf32> to vector<8x8xf32>
    %418 = arith.subf %414, %417 : vector<8x8xf32>
    %419 = math.exp %418 : vector<8x8xf32>
    %cst_184 = arith.constant dense<0.000000e+00> : vector<8xf32>
    %420 = vector.multi_reduction <add>, %419, %cst_184 [1] : vector<8x8xf32> to vector<8xf32>
    %421 = vector.shape_cast %420 : vector<8xf32> to vector<8x1xf32>
    %422 = vector.broadcast %421 : vector<8x1xf32> to vector<8x8xf32>
    %423 = arith.divf %419, %422 : vector<8x8xf32>
    %424 = vector.shape_cast %423 : vector<8x8xf32> to vector<8x8x1xf32>
    %425 = vector.broadcast %424 : vector<8x8x1xf32> to vector<8x8x32xf32>
    %426 = arith.mulf %0, %425 : vector<8x8x32xf32>
    %cst_185 = arith.constant dense<0.000000e+00> : vector<8x32xf32>
    %427 = vector.multi_reduction <add>, %426, %cst_185 [1] : vector<8x8x32xf32> to vector<8x32xf32>
    %c0_186 = arith.constant 0 : index
    %c6 = arith.constant 6 : index
    %c0_187 = arith.constant 0 : index
    %428 = vector.load %arg0[%c0_186, %c6, %c0_187] : memref<8x8x16xf32, #tpu.memory_space<vmem>>, vector<8x1x16xf32>
    %429 = vector.shape_cast %428 : vector<8x1x16xf32> to vector<8x16xf32>
    %c0_188 = arith.constant 0 : index
    %c0_189 = arith.constant 0 : index
    %430 = vector.load %arg14[%c0_188, %c0_189] : memref<8x80xf32, #tpu.memory_space<vmem>>, vector<8x16xf32>
    tpu.vector_store %arg14[%c0_188, %c0_189], %429 {strides = array<i32>} : memref<8x80xf32, #tpu.memory_space<vmem>>, vector<8x16xf32>,
    %c0_190 = arith.constant 0 : index
    %c16_191 = arith.constant 16 : index
    %431 = vector.load %arg14[%c0_190, %c16_191] : memref<8x80xf32, #tpu.memory_space<vmem>>, vector<8x32xf32>
    tpu.vector_store %arg14[%c0_190, %c16_191], %427 {strides = array<i32>} : memref<8x80xf32, #tpu.memory_space<vmem>>, vector<8x32xf32>,
    %c0_192 = arith.constant 0 : index
    %c48_193 = arith.constant 48 : index
    %432 = vector.load %arg14[%c0_192, %c48_193] : memref<8x80xf32, #tpu.memory_space<vmem>>, vector<8x32xf32>
    tpu.vector_store %arg14[%c0_192, %c48_193], %397 {strides = array<i32>} : memref<8x80xf32, #tpu.memory_space<vmem>>, vector<8x32xf32>,
    %c0_194 = arith.constant 0 : index
    %c0_195 = arith.constant 0 : index
    %433 = vector.load %arg14[%c0_194, %c0_195] : memref<8x80xf32, #tpu.memory_space<vmem>>, vector<8x80xf32>
    %cst_196 = arith.constant dense<0.000000e+00> : vector<8x128xf32>
    %434 = tpu.matmul %433, %19, %cst_196 {dimension_numbers = #tpu.dot_dimension_numbers<[1], [0], [0], [1], [0, 0, 1, 1], [], []>} : vector<8x80xf32>, vector<80x128xf32>, vector<8x128xf32> -> vector<8x128xf32>
    %435 = vector.broadcast %20 : vector<1x128xf32> to vector<8x128xf32>
    %436 = arith.addf %434, %435 : vector<8x128xf32>
    %437 = vector.extract_strided_slice %436 {offsets = [0, 0], sizes = [8, 32], strides = [1, 1]} : vector<8x128xf32> to vector<8x32xf32>
    %438 = arith.negf %437 : vector<8x32xf32>
    %439 = math.exp %438 : vector<8x32xf32>
    %cst_197 = arith.constant 1.000000e+00 : f32
    %440 = vector.broadcast %cst_197 : f32 to vector<8x32xf32>
    %441 = arith.addf %440, %439 : vector<8x32xf32>
    %442 = arith.divf %440, %441 : vector<8x32xf32>
    %443 = vector.extract_strided_slice %436 {offsets = [0, 32], sizes = [8, 32], strides = [1, 1]} : vector<8x128xf32> to vector<8x32xf32>
    %444 = arith.negf %443 : vector<8x32xf32>
    %445 = math.exp %444 : vector<8x32xf32>
    %cst_198 = arith.constant 1.000000e+00 : f32
    %446 = vector.broadcast %cst_198 : f32 to vector<8x32xf32>
    %447 = arith.addf %446, %445 : vector<8x32xf32>
    %448 = arith.divf %446, %447 : vector<8x32xf32>
    %449 = vector.extract_strided_slice %436 {offsets = [0, 64], sizes = [8, 32], strides = [1, 1]} : vector<8x128xf32> to vector<8x32xf32>
    %450 = math.tanh %449 : vector<8x32xf32>
    %451 = vector.extract_strided_slice %436 {offsets = [0, 96], sizes = [8, 32], strides = [1, 1]} : vector<8x128xf32> to vector<8x32xf32>
    %452 = arith.negf %451 : vector<8x32xf32>
    %453 = math.exp %452 : vector<8x32xf32>
    %cst_199 = arith.constant 1.000000e+00 : f32
    %454 = vector.broadcast %cst_199 : f32 to vector<8x32xf32>
    %455 = arith.addf %454, %453 : vector<8x32xf32>
    %456 = arith.divf %454, %455 : vector<8x32xf32>
    %457 = arith.mulf %448, %395 : vector<8x32xf32>
    %458 = arith.mulf %442, %450 : vector<8x32xf32>
    %459 = arith.addf %457, %458 : vector<8x32xf32>
    %460 = math.tanh %459 : vector<8x32xf32>
    %461 = arith.mulf %456, %460 : vector<8x32xf32>
    %cst_200 = arith.constant dense<0.000000e+00> : vector<8x32xf32>
    %462 = tpu.matmul %461, %21, %cst_200 {dimension_numbers = #tpu.dot_dimension_numbers<[1], [0], [0], [1], [0, 0, 1, 1], [], []>} : vector<8x32xf32>, vector<32x32xf32>, vector<8x32xf32> -> vector<8x32xf32>
    %463 = vector.broadcast %22 : vector<1x32xf32> to vector<8x32xf32>
    %464 = arith.addf %462, %463 : vector<8x32xf32>
    %c0_201 = arith.constant 0 : index
    %c6_202 = arith.constant 6 : index
    %c0_203 = arith.constant 0 : index
    %465 = vector.load %arg12[%c0_201, %c6_202, %c0_203] : memref<8x8x32xf32, #tpu.memory_space<vmem>>, vector<8x1x32xf32>
    %466 = vector.shape_cast %465 : vector<8x1x32xf32> to vector<8x32xf32>
    %467 = vector.shape_cast %464 : vector<8x32xf32> to vector<8x1x32xf32>
    tpu.vector_store %arg12[%c0_201, %c6_202, %c0_203], %467 {strides = array<i32>} : memref<8x8x32xf32, #tpu.memory_space<vmem>>, vector<8x1x32xf32>,
    %c0_204 = arith.constant 0 : index
    %c6_205 = arith.constant 6 : index
    %c0_206 = arith.constant 0 : index
    %468 = vector.load %arg13[%c0_204, %c6_205, %c0_206] : memref<8x8x8xf32, #tpu.memory_space<vmem>>, vector<8x1x8xf32>
    %469 = vector.shape_cast %468 : vector<8x1x8xf32> to vector<8x8xf32>
    %470 = vector.shape_cast %423 : vector<8x8xf32> to vector<8x1x8xf32>
    tpu.vector_store %arg13[%c0_204, %c6_205, %c0_206], %470 {strides = array<i32>} : memref<8x8x8xf32, #tpu.memory_space<vmem>>, vector<8x1x8xf32>,
    %cst_207 = arith.constant dense<0.000000e+00> : vector<8x16xf32>
    %471 = tpu.matmul %461, %17, %cst_207 {dimension_numbers = #tpu.dot_dimension_numbers<[1], [0], [0], [1], [0, 0, 1, 1], [], []>} : vector<8x32xf32>, vector<32x16xf32>, vector<8x16xf32> -> vector<8x16xf32>
    %472 = vector.shape_cast %471 : vector<8x16xf32> to vector<8x1x16xf32>
    %473 = vector.broadcast %472 : vector<8x1x16xf32> to vector<8x8x16xf32>
    %474 = arith.addf %6, %473 : vector<8x8x16xf32>
    %475 = math.tanh %474 : vector<8x8x16xf32>
    %476 = vector.broadcast %18 : vector<1x1x16xf32> to vector<8x8x16xf32>
    %477 = arith.mulf %475, %476 : vector<8x8x16xf32>
    %cst_208 = arith.constant dense<0.000000e+00> : vector<8x8xf32>
    %478 = vector.multi_reduction <add>, %477, %cst_208 [2] : vector<8x8x16xf32> to vector<8x8xf32>
    %cst_209 = arith.constant dense<0xFF800000> : vector<8xf32>
    %479 = vector.multi_reduction <maximumf>, %478, %cst_209 [1] : vector<8x8xf32> to vector<8xf32>
    %480 = vector.shape_cast %479 : vector<8xf32> to vector<8x1xf32>
    %481 = vector.broadcast %480 : vector<8x1xf32> to vector<8x8xf32>
    %482 = arith.subf %478, %481 : vector<8x8xf32>
    %483 = math.exp %482 : vector<8x8xf32>
    %cst_210 = arith.constant dense<0.000000e+00> : vector<8xf32>
    %484 = vector.multi_reduction <add>, %483, %cst_210 [1] : vector<8x8xf32> to vector<8xf32>
    %485 = vector.shape_cast %484 : vector<8xf32> to vector<8x1xf32>
    %486 = vector.broadcast %485 : vector<8x1xf32> to vector<8x8xf32>
    %487 = arith.divf %483, %486 : vector<8x8xf32>
    %488 = vector.shape_cast %487 : vector<8x8xf32> to vector<8x8x1xf32>
    %489 = vector.broadcast %488 : vector<8x8x1xf32> to vector<8x8x32xf32>
    %490 = arith.mulf %0, %489 : vector<8x8x32xf32>
    %cst_211 = arith.constant dense<0.000000e+00> : vector<8x32xf32>
    %491 = vector.multi_reduction <add>, %490, %cst_211 [1] : vector<8x8x32xf32> to vector<8x32xf32>
    %c0_212 = arith.constant 0 : index
    %c7 = arith.constant 7 : index
    %c0_213 = arith.constant 0 : index
    %492 = vector.load %arg0[%c0_212, %c7, %c0_213] : memref<8x8x16xf32, #tpu.memory_space<vmem>>, vector<8x1x16xf32>
    %493 = vector.shape_cast %492 : vector<8x1x16xf32> to vector<8x16xf32>
    %c0_214 = arith.constant 0 : index
    %c0_215 = arith.constant 0 : index
    %494 = vector.load %arg14[%c0_214, %c0_215] : memref<8x80xf32, #tpu.memory_space<vmem>>, vector<8x16xf32>
    tpu.vector_store %arg14[%c0_214, %c0_215], %493 {strides = array<i32>} : memref<8x80xf32, #tpu.memory_space<vmem>>, vector<8x16xf32>,
    %c0_216 = arith.constant 0 : index
    %c16_217 = arith.constant 16 : index
    %495 = vector.load %arg14[%c0_216, %c16_217] : memref<8x80xf32, #tpu.memory_space<vmem>>, vector<8x32xf32>
    tpu.vector_store %arg14[%c0_216, %c16_217], %491 {strides = array<i32>} : memref<8x80xf32, #tpu.memory_space<vmem>>, vector<8x32xf32>,
    %c0_218 = arith.constant 0 : index
    %c48_219 = arith.constant 48 : index
    %496 = vector.load %arg14[%c0_218, %c48_219] : memref<8x80xf32, #tpu.memory_space<vmem>>, vector<8x32xf32>
    tpu.vector_store %arg14[%c0_218, %c48_219], %461 {strides = array<i32>} : memref<8x80xf32, #tpu.memory_space<vmem>>, vector<8x32xf32>,
    %c0_220 = arith.constant 0 : index
    %c0_221 = arith.constant 0 : index
    %497 = vector.load %arg14[%c0_220, %c0_221] : memref<8x80xf32, #tpu.memory_space<vmem>>, vector<8x80xf32>
    %cst_222 = arith.constant dense<0.000000e+00> : vector<8x128xf32>
    %498 = tpu.matmul %497, %19, %cst_222 {dimension_numbers = #tpu.dot_dimension_numbers<[1], [0], [0], [1], [0, 0, 1, 1], [], []>} : vector<8x80xf32>, vector<80x128xf32>, vector<8x128xf32> -> vector<8x128xf32>
    %499 = vector.broadcast %20 : vector<1x128xf32> to vector<8x128xf32>
    %500 = arith.addf %498, %499 : vector<8x128xf32>
    %501 = vector.extract_strided_slice %500 {offsets = [0, 0], sizes = [8, 32], strides = [1, 1]} : vector<8x128xf32> to vector<8x32xf32>
    %502 = arith.negf %501 : vector<8x32xf32>
    %503 = math.exp %502 : vector<8x32xf32>
    %cst_223 = arith.constant 1.000000e+00 : f32
    %504 = vector.broadcast %cst_223 : f32 to vector<8x32xf32>
    %505 = arith.addf %504, %503 : vector<8x32xf32>
    %506 = arith.divf %504, %505 : vector<8x32xf32>
    %507 = vector.extract_strided_slice %500 {offsets = [0, 32], sizes = [8, 32], strides = [1, 1]} : vector<8x128xf32> to vector<8x32xf32>
    %508 = arith.negf %507 : vector<8x32xf32>
    %509 = math.exp %508 : vector<8x32xf32>
    %cst_224 = arith.constant 1.000000e+00 : f32
    %510 = vector.broadcast %cst_224 : f32 to vector<8x32xf32>
    %511 = arith.addf %510, %509 : vector<8x32xf32>
    %512 = arith.divf %510, %511 : vector<8x32xf32>
    %513 = vector.extract_strided_slice %500 {offsets = [0, 64], sizes = [8, 32], strides = [1, 1]} : vector<8x128xf32> to vector<8x32xf32>
    %514 = math.tanh %513 : vector<8x32xf32>
    %515 = vector.extract_strided_slice %500 {offsets = [0, 96], sizes = [8, 32], strides = [1, 1]} : vector<8x128xf32> to vector<8x32xf32>
    %516 = arith.negf %515 : vector<8x32xf32>
    %517 = math.exp %516 : vector<8x32xf32>
    %cst_225 = arith.constant 1.000000e+00 : f32
    %518 = vector.broadcast %cst_225 : f32 to vector<8x32xf32>
    %519 = arith.addf %518, %517 : vector<8x32xf32>
    %520 = arith.divf %518, %519 : vector<8x32xf32>
    %521 = arith.mulf %512, %459 : vector<8x32xf32>
    %522 = arith.mulf %506, %514 : vector<8x32xf32>
    %523 = arith.addf %521, %522 : vector<8x32xf32>
    %524 = math.tanh %523 : vector<8x32xf32>
    %525 = arith.mulf %520, %524 : vector<8x32xf32>
    %cst_226 = arith.constant dense<0.000000e+00> : vector<8x32xf32>
    %526 = tpu.matmul %525, %21, %cst_226 {dimension_numbers = #tpu.dot_dimension_numbers<[1], [0], [0], [1], [0, 0, 1, 1], [], []>} : vector<8x32xf32>, vector<32x32xf32>, vector<8x32xf32> -> vector<8x32xf32>
    %527 = vector.broadcast %22 : vector<1x32xf32> to vector<8x32xf32>
    %528 = arith.addf %526, %527 : vector<8x32xf32>
    %c0_227 = arith.constant 0 : index
    %c7_228 = arith.constant 7 : index
    %c0_229 = arith.constant 0 : index
    %529 = vector.load %arg12[%c0_227, %c7_228, %c0_229] : memref<8x8x32xf32, #tpu.memory_space<vmem>>, vector<8x1x32xf32>
    %530 = vector.shape_cast %529 : vector<8x1x32xf32> to vector<8x32xf32>
    %531 = vector.shape_cast %528 : vector<8x32xf32> to vector<8x1x32xf32>
    tpu.vector_store %arg12[%c0_227, %c7_228, %c0_229], %531 {strides = array<i32>} : memref<8x8x32xf32, #tpu.memory_space<vmem>>, vector<8x1x32xf32>,
    %c0_230 = arith.constant 0 : index
    %c7_231 = arith.constant 7 : index
    %c0_232 = arith.constant 0 : index
    %532 = vector.load %arg13[%c0_230, %c7_231, %c0_232] : memref<8x8x8xf32, #tpu.memory_space<vmem>>, vector<8x1x8xf32>
    %533 = vector.shape_cast %532 : vector<8x1x8xf32> to vector<8x8xf32>
    %534 = vector.shape_cast %487 : vector<8x8xf32> to vector<8x1x8xf32>
    tpu.vector_store %arg13[%c0_230, %c7_231, %c0_232], %534 {strides = array<i32>} : memref<8x8x8xf32, #tpu.memory_space<vmem>>, vector<8x1x8xf32>,
    return
  }
}

</mosaic_0001>

<llo_original>
// kernel: decoder_forward.1
$region0: #{decoder_forward.1}
  #allocation0 [shape = 'u32[]', space=smem, size = 0x4, offset = 0x4, fixed_abs, tag = 'smem constant byte address 0x4 - core index']
  #allocation1 [shape = 'u32[144,128]{1,0:T(1,128)}', space=vmem, size = 0x12000, scoped, tag = 'internal scratch']
  #allocation2 [shape = 'f32[8,80]{1,0:T(8,128)}', space=vmem, size = 0x1000, scoped, tag = 'scratch operand']
  %s0 = inlined_call_operand.vmem [shape: f32[8,8,16], index: 0, kind: input, shape index: {}]
  %s1 = inlined_call_operand.vmem [shape: f32[8,8,32], index: 1, kind: input, shape index: {}]
  %s2 = inlined_call_operand.vmem [shape: f32[32,16], index: 2, kind: input, shape index: {}]
  %s3 = inlined_call_operand.vmem [shape: f32[1,16], index: 3, kind: input, shape index: {}]
  %s4 = inlined_call_operand.vmem [shape: f32[32,16], index: 4, kind: input, shape index: {}]
  %s5 = inlined_call_operand.vmem [shape: f32[1,1,16], index: 5, kind: input, shape index: {}]
  %s6 = inlined_call_operand.vmem [shape: f32[80,128], index: 6, kind: input, shape index: {}]
  %s7 = inlined_call_operand.vmem [shape: f32[1,128], index: 7, kind: input, shape index: {}]
  %s8 = inlined_call_operand.vmem [shape: f32[32,32], index: 8, kind: input, shape index: {}]
  %s9 = inlined_call_operand.vmem [shape: f32[1,32], index: 9, kind: input, shape index: {}]
  %s10 = inlined_call_operand.vmem [shape: f32[32,64], index: 10, kind: input, shape index: {}]
  %s11 = inlined_call_operand.vmem [shape: f32[1,64], index: 11, kind: input, shape index: {}]
  %s12 = inlined_call_operand.vmem [shape: f32[8,8,32], index: 12, kind: output, shape index: {0}]
  %s13 = inlined_call_operand.vmem [shape: f32[8,8,8], index: 13, kind: output, shape index: {1}]
  %14 = xla_tuple %s12, %s13
  %s15 = sld [smem:[#allocation0]]
  $region66: #{decoder_forward.1} parent=0
    _
  %s17 = ssub.s32 1, %s15
  %s18 = scalar_select 0, %s17, %s15
  // Predicated region
  $region2: #{decoder_forward.1} parent=0 // pred_check
    _
  $region3: #{decoder_forward.1} parent=0 // pred_check_branch
    %20 = sbr.rel (0) target = $region5
  $region4: #{decoder_forward.1} parent=0 // pred_region
    _
  $region5: #{decoder_forward.1} parent=0 // pred_fallthru
    _
  // Predicated region
  $region6: #{decoder_forward.1} parent=0 // pred_check
    _
  $region7: #{decoder_forward.1} parent=0 // pred_check_branch
    %22 = sbr.rel (0) target = $region9
  $region8: #{decoder_forward.1} parent=0 // pred_region
    _
  $region9: #{decoder_forward.1} parent=0 // pred_fallthru
    _
  // Predicated region
  $region10: #{decoder_forward.1} parent=0 // pred_check
    _
  $region11: #{decoder_forward.1} parent=0 // pred_check_branch
    %24 = sbr.rel (0) target = $region13
  $region12: #{decoder_forward.1} parent=0 // pred_region
    _
  $region13: #{decoder_forward.1} parent=0 // pred_fallthru
    _
  // Predicated region
  $region14: #{decoder_forward.1} parent=0 // pred_check
    _
  $region15: #{decoder_forward.1} parent=0 // pred_check_branch
    %26 = sbr.rel (0) target = $region17
  $region16: #{decoder_forward.1} parent=0 // pred_region
    _
  $region17: #{decoder_forward.1} parent=0 // pred_fallthru
    _
  // Predicated region
  $region18: #{decoder_forward.1} parent=0 // pred_check
    _
  $region19: #{decoder_forward.1} parent=0 // pred_check_branch
    %28 = sbr.rel (0) target = $region21
  $region20: #{decoder_forward.1} parent=0 // pred_region
    _
  $region21: #{decoder_forward.1} parent=0 // pred_fallthru
    _
  // Predicated region
  $region22: #{decoder_forward.1} parent=0 // pred_check
    _
  $region23: #{decoder_forward.1} parent=0 // pred_check_branch
    %30 = sbr.rel (0) target = $region25
  $region24: #{decoder_forward.1} parent=0 // pred_region
    _
  $region25: #{decoder_forward.1} parent=0 // pred_fallthru
    _
  // Predicated region
  $region26: #{decoder_forward.1} parent=0 // pred_check
    _
  $region27: #{decoder_forward.1} parent=0 // pred_check_branch
    %32 = sbr.rel (0) target = $region29
  $region28: #{decoder_forward.1} parent=0 // pred_region
    _
  $region29: #{decoder_forward.1} parent=0 // pred_fallthru
    _
  // Predicated region
  $region30: #{decoder_forward.1} parent=0 // pred_check
    _
  $region31: #{decoder_forward.1} parent=0 // pred_check_branch
    %34 = sbr.rel (0) target = $region33
  $region32: #{decoder_forward.1} parent=0 // pred_region
    _
  $region33: #{decoder_forward.1} parent=0 // pred_fallthru
    _
  // Predicated region
  $region34: #{decoder_forward.1} parent=0 // pred_check
    _
  $region35: #{decoder_forward.1} parent=0 // pred_check_branch
    %36 = sbr.rel (0) target = $region37
  $region36: #{decoder_forward.1} parent=0 // pred_region
    _
  $region37: #{decoder_forward.1} parent=0 // pred_fallthru
    _
  // Predicated region
  $region38: #{decoder_forward.1} parent=0 // pred_check
    _
  $region39: #{decoder_forward.1} parent=0 // pred_check_branch
    %38 = sbr.rel (0) target = $region41
  $region40: #{decoder_forward.1} parent=0 // pred_region
    _
  $region41: #{decoder_forward.1} parent=0 // pred_fallthru
    _
  // Predicated region
  $region42: #{decoder_forward.1} parent=0 // pred_check
    _
  $region43: #{decoder_forward.1} parent=0 // pred_check_branch
    %40 = sbr.rel (0) target = $region45
  $region44: #{decoder_forward.1} parent=0 // pred_region
    _
  $region45: #{decoder_forward.1} parent=0 // pred_fallthru
    _
  // Predicated region
  $region46: #{decoder_forward.1} parent=0 // pred_check
    _
  $region47: #{decoder_forward.1} parent=0 // pred_check_branch
    %42 = sbr.rel (0) target = $region49
  $region48: #{decoder_forward.1} parent=0 // pred_region
    _
  $region49: #{decoder_forward.1} parent=0 // pred_fallthru
    _
  %v43 = vld [vmem:[%s1] sm:$0xff]
  %v44 = vld [vmem:[%s1 + $0x8] sm:$0xff]
  %v45 = vld [vmem:[%s1 + $0x10] sm:$0xff]
  %v46 = vld [vmem:[%s1 + $0x18] sm:$0xff]
  %v47 = vld [vmem:[%s1 + $0x20] sm:$0xff]
  %v48 = vld [vmem:[%s1 + $0x28] sm:$0xff]
  %v49 = vld [vmem:[%s1 + $0x30] sm:$0xff]
  %v50 = vld [vmem:[%s1 + $0x38] sm:$0xff]
  %v51 = vld [vmem:[%s2] sm:$0xff]
  %v52 = vld [vmem:[%s2 + $0x8] sm:$0xff]
  %v53 = vld [vmem:[%s2 + $0x10] sm:$0xff]
  %v54 = vld [vmem:[%s2 + $0x18] sm:$0xff]
  %v55 = vld [vmem:[%s3] sm:$0x1]
  %v57 = vlaneseq
  %v58 = vshrl.u32 %v57, 7
  %v59 = vsub.s32 0, %v58
  %v60 = vrot.slane %v55, %v59
  %vm62 = vcmask 261120
  %v64 = vsel %vm62, %v43, 0
  %v67 = vsel %vm62, %v44, 0
  %v70 = vsel %vm62, %v45, 0
  %v73 = vsel %vm62, %v46, 0
  %v76 = vsel %vm62, %v47, 0
  %v79 = vsel %vm62, %v48, 0
  %v82 = vsel %vm62, %v49, 0
  %v85 = vsel %vm62, %v50, 0
  %87 = vmatprep.subr.mxu0 0.0
  %88 = vmatpush1.msra.mxu0 %v51
  %89 = vmatprep.subr.mxu0 0.0
  %90 = vmatpush1.msra.mxu0 %v52
  %91 = vmatprep.subr.mxu0 0.0
  %92 = vmatpush1.msra.mxu0 %v53
  %93 = vmatprep.subr.mxu0 0.0
  %94 = vmatpush1.msra.mxu0 %v54
  %95 = vmatprep.subr.mxu0 0.0
  %96 = vmatpush1.msra.mxu0 0.0
  %97 = vmatprep.subr.mxu0 0.0
  %98 = vmatpush1.msra.mxu0 0.0
  %99 = vmatprep.subr.mxu0 0.0
  %100 = vmatpush1.msra.mxu0 0.0
  %101 = vmatprep.subr.mxu0 0.0
  %102 = vmatpush1.msra.mxu0 0.0
  %103 = vmatprep.subr.mxu0 0.0
  %104 = vmatpush1.msra.mxu0 0.0
  %105 = vmatprep.subr.mxu0 0.0
  %106 = vmatpush1.msra.mxu0 0.0
  %107 = vmatprep.subr.mxu0 0.0
  %108 = vmatpush1.msra.mxu0 0.0
  %109 = vmatprep.subr.mxu0 0.0
  %110 = vmatpush1.msra.mxu0 0.0
  %111 = vmatprep.subr.mxu0 0.0
  %112 = vmatpush1.msra.mxu0 0.0
  %113 = vmatprep.subr.mxu0 0.0
  %114 = vmatpush1.msra.mxu0 0.0
  %115 = vmatprep.subr.mxu0 0.0
  %116 = vmatpush1.msra.mxu0 0.0
  %117 = vmatprep.subr.mxu0 0.0
  %118 = vmatpush1.msra.mxu0 0.0
  %119 = vmatprep.subr.mxu0 0.0
  %120 = vmatpush1.msra.mxu0 0.0
  %121 = vmatprep.subr.mxu0 0.0
  %122 = vmatpush1.msra.mxu0 0.0
  %123 = vmatprep.subr.mxu0 0.0
  %124 = vmatpush1.msra.mxu0 0.0
  %125 = vmatprep.subr.mxu0 0.0
  %126 = vmatpush1.msra.mxu0 0.0
  %127 = vmatprep.subr.mxu0 0.0
  %128 = vmatpush1.msra.mxu0 0.0
  %129 = vmatprep.subr.mxu0 0.0
  %130 = vmatpush1.msra.mxu0 0.0
  %131 = vmatprep.subr.mxu0 0.0
  %132 = vmatpush1.msra.mxu0 0.0
  %133 = vmatprep.subr.mxu0 0.0
  %134 = vmatpush1.msra.mxu0 0.0
  %135 = vmatprep.subr.mxu0 0.0
  %136 = vmatpush1.msra.mxu0 0.0
  %137 = vmatprep.subr.mxu0 0.0
  %138 = vmatpush1.msra.mxu0 0.0
  %139 = vmatprep.subr.mxu0 0.0
  %140 = vmatpush1.msra.mxu0 0.0
  %141 = vmatprep.subr.mxu0 0.0
  %142 = vmatpush1.msra.mxu0 0.0
  %143 = vmatprep.subr.mxu0 0.0
  %144 = vmatpush1.msra.mxu0 0.0
  %145 = vmatprep.subr.mxu0 0.0
  %146 = vmatpush1.msra.mxu0 0.0
  %147 = vmatprep.subr.mxu0 0.0
  %148 = vmatpush1.msra.mxu0 0.0
  %149 = vmatprep.subr.mxu0 0.0
  %150 = vmatpush1.msra.mxu0 0.0
  %151 = vmatprep.mubr.f32.mxu0 0.0
  %152 = vmatmul.mubr.f32.gmra.mrb[0].mxu0 %v64
  %v153 = vpop.f32.mrb[0].mxu0
  %v154 = vadd.f32 %v60, %v153
  %v155 = vpop.f32.mrb[0].mxu0
  %156 = vmatprep.mubr.f32.mxu0 0.0
  %157 = vmatmul.mubr.f32.gmra.mrb[0].mxu0 %v67
  %v158 = vpop.f32.mrb[0].mxu0
  %v159 = vadd.f32 %v60, %v158
  %v160 = vpop.f32.mrb[0].mxu0
  %161 = vmatprep.mubr.f32.mxu0 0.0
  %162 = vmatmul.mubr.f32.gmra.mrb[0].mxu0 %v70
  %v163 = vpop.f32.mrb[0].mxu0
  %v164 = vadd.f32 %v60, %v163
  %v165 = vpop.f32.mrb[0].mxu0
  %166 = vmatprep.mubr.f32.mxu0 0.0
  %167 = vmatmul.mubr.f32.gmra.mrb[0].mxu0 %v73
  %v168 = vpop.f32.mrb[0].mxu0
  %v169 = vadd.f32 %v60, %v168
  %v170 = vpop.f32.mrb[0].mxu0
  %171 = vmatprep.mubr.f32.mxu0 0.0
  %172 = vmatmul.mubr.f32.gmra.mrb[0].mxu0 %v76
  %v173 = vpop.f32.mrb[0].mxu0
  %v174 = vadd.f32 %v60, %v173
  %v175 = vpop.f32.mrb[0].mxu0
  %176 = vmatprep.mubr.f32.mxu0 0.0
  %177 = vmatmul.mubr.f32.gmra.mrb[0].mxu0 %v79
  %v178 = vpop.f32.mrb[0].mxu0
  %v179 = vadd.f32 %v60, %v178
  %v180 = vpop.f32.mrb[0].mxu0
  %181 = vmatprep.mubr.f32.mxu0 0.0
  %182 = vmatmul.mubr.f32.gmra.mrb[0].mxu0 %v82
  %v183 = vpop.f32.mrb[0].mxu0
  %v184 = vadd.f32 %v60, %v183
  %v185 = vpop.f32.mrb[0].mxu0
  %186 = vmatprep.mubr.f32.mxu0 0.0
  %187 = vmatmul.mubr.f32.gmra.mrb[0].mxu0 %v85
  %v188 = vpop.f32.mrb[0].mxu0
  %v189 = vadd.f32 %v60, %v188
  %v190 = vpop.f32.mrb[0].mxu0
  %191 = vdwg.mxu0
  %v192 = vsel %vm62, %v43, 0.0
  %v193 = vrot.slane %v192, 4
  %v194 = vadd.f32 %v192, %v193
  %v195 = vrot.slane %v194, 2
  %v196 = vadd.f32 %v194, %v195
  %v197 = vrot.slane %v196, 1
  %v198 = vadd.f32 %v196, %v197
  %v199 = vsel %vm62, %v44, 0.0
  %v200 = vrot.slane %v199, 4
  %v201 = vadd.f32 %v199, %v200
  %v202 = vrot.slane %v201, 2
  %v203 = vadd.f32 %v201, %v202
  %v204 = vrot.slane %v203, 1
  %v205 = vadd.f32 %v203, %v204
  %v206 = vsel %vm62, %v45, 0.0
  %v207 = vrot.slane %v206, 4
  %v208 = vadd.f32 %v206, %v207
  %v209 = vrot.slane %v208, 2
  %v210 = vadd.f32 %v208, %v209
  %v211 = vrot.slane %v210, 1
  %v212 = vadd.f32 %v210, %v211
  %v213 = vsel %vm62, %v46, 0.0
  %v214 = vrot.slane %v213, 4
  %v215 = vadd.f32 %v213, %v214
  %v216 = vrot.slane %v215, 2
  %v217 = vadd.f32 %v215, %v216
  %v218 = vrot.slane %v217, 1
  %v219 = vadd.f32 %v217, %v218
  %v220 = vsel %vm62, %v47, 0.0
  %v221 = vrot.slane %v220, 4
  %v222 = vadd.f32 %v220, %v221
  %v223 = vrot.slane %v222, 2
  %v224 = vadd.f32 %v222, %v223
  %v225 = vrot.slane %v224, 1
  %v226 = vadd.f32 %v224, %v225
  %v227 = vsel %vm62, %v48, 0.0
  %v228 = vrot.slane %v227, 4
  %v229 = vadd.f32 %v227, %v228
  %v230 = vrot.slane %v229, 2
  %v231 = vadd.f32 %v229, %v230
  %v232 = vrot.slane %v231, 1
  %v233 = vadd.f32 %v231, %v232
  %v234 = vsel %vm62, %v49, 0.0
  %v235 = vrot.slane %v234, 4
  %v236 = vadd.f32 %v234, %v235
  %v237 = vrot.slane %v236, 2
  %v238 = vadd.f32 %v236, %v237
  %v239 = vrot.slane %v238, 1
  %v240 = vadd.f32 %v238, %v239
  %v241 = vsel %vm62, %v50, 0.0
  %v242 = vrot.slane %v241, 4
  %v243 = vadd.f32 %v241, %v242
  %v244 = vrot.slane %v243, 2
  %v245 = vadd.f32 %v243, %v244
  %v246 = vrot.slane %v245, 1
  %v247 = vadd.f32 %v245, %v246
  %v248 = vrcp.pop 8.0
  %v249 = vmul.f32 %v198, %v248
  %v250 = vmul.f32 %v205, %v248
  %v251 = vmul.f32 %v212, %v248
  %v252 = vmul.f32 %v219, %v248
  %v253 = vmul.f32 %v226, %v248
  %v254 = vmul.f32 %v233, %v248
  %v255 = vmul.f32 %v240, %v248
  %v256 = vmul.f32 %v247, %v248
  %v257 = vld [vmem:[%s10] sm:$0xff]
  %v258 = vld [vmem:[%s10 + $0x8] sm:$0xff]
  %v259 = vld [vmem:[%s10 + $0x10] sm:$0xff]
  %v260 = vld [vmem:[%s10 + $0x18] sm:$0xff]
  %v261 = vld [vmem:[%s11] sm:$0x1]
  %v263 = vlaneseq
  %v264 = vshrl.u32 %v263, 7
  %v265 = vsub.s32 0, %v264
  %v266 = vrot.slane %v261, %v265
  %vm276 = vcmask 1041409
  %v277 = vsel %vm276, %v250, %v249
  %vm278 = vcmask 1042434
  %v279 = vsel %vm278, %v251, %v277
  %vm280 = vcmask 1043459
  %v281 = vsel %vm280, %v252, %v279
  %vm282 = vcmask 1044484
  %v283 = vsel %vm282, %v253, %v281
  %vm284 = vcmask 1045509
  %v285 = vsel %vm284, %v254, %v283
  %vm286 = vcmask 1046534
  %v287 = vsel %vm286, %v255, %v285
  %vm288 = vcmask 1047559
  %v289 = vsel %vm288, %v256, %v287
  %v290 = vsel %vm62, %v289, 0
  %292 = vmatprep.subr.mxu0 0.0
  %293 = vmatpush1.msra.mxu0 %v257
  %294 = vmatprep.subr.mxu0 0.0
  %295 = vmatpush1.msra.mxu0 %v258
  %296 = vmatprep.subr.mxu0 0.0
  %297 = vmatpush1.msra.mxu0 %v259
  %298 = vmatprep.subr.mxu0 0.0
  %299 = vmatpush1.msra.mxu0 %v260
  %300 = vmatprep.subr.mxu0 0.0
  %301 = vmatpush1.msra.mxu0 0.0
  %302 = vmatprep.subr.mxu0 0.0
  %303 = vmatpush1.msra.mxu0 0.0
  %304 = vmatprep.subr.mxu0 0.0
  %305 = vmatpush1.msra.mxu0 0.0
  %306 = vmatprep.subr.mxu0 0.0
  %307 = vmatpush1.msra.mxu0 0.0
  %308 = vmatprep.subr.mxu0 0.0
  %309 = vmatpush1.msra.mxu0 0.0
  %310 = vmatprep.subr.mxu0 0.0
  %311 = vmatpush1.msra.mxu0 0.0
  %312 = vmatprep.subr.mxu0 0.0
  %313 = vmatpush1.msra.mxu0 0.0
  %314 = vmatprep.subr.mxu0 0.0
  %315 = vmatpush1.msra.mxu0 0.0
  %316 = vmatprep.subr.mxu0 0.0
  %317 = vmatpush1.msra.mxu0 0.0
  %318 = vmatprep.subr.mxu0 0.0
  %319 = vmatpush1.msra.mxu0 0.0
  %320 = vmatprep.subr.mxu0 0.0
  %321 = vmatpush1.msra.mxu0 0.0
  %322 = vmatprep.subr.mxu0 0.0
  %323 = vmatpush1.msra.mxu0 0.0
  %324 = vmatprep.subr.mxu0 0.0
  %325 = vmatpush1.msra.mxu0 0.0
  %326 = vmatprep.subr.mxu0 0.0
  %327 = vmatpush1.msra.mxu0 0.0
  %328 = vmatprep.subr.mxu0 0.0
  %329 = vmatpush1.msra.mxu0 0.0
  %330 = vmatprep.subr.mxu0 0.0
  %331 = vmatpush1.msra.mxu0 0.0
  %332 = vmatprep.subr.mxu0 0.0
  %333 = vmatpush1.msra.mxu0 0.0
  %334 = vmatprep.subr.mxu0 0.0
  %335 = vmatpush1.msra.mxu0 0.0
  %336 = vmatprep.subr.mxu0 0.0
  %337 = vmatpush1.msra.mxu0 0.0
  %338 = vmatprep.subr.mxu0 0.0
  %339 = vmatpush1.msra.mxu0 0.0
  %340 = vmatprep.subr.mxu0 0.0
  %341 = vmatpush1.msra.mxu0 0.0
  %342 = vmatprep.subr.mxu0 0.0
  %343 = vmatpush1.msra.mxu0 0.0
  %344 = vmatprep.subr.mxu0 0.0
  %345 = vmatpush1.msra.mxu0 0.0
  %346 = vmatprep.subr.mxu0 0.0
  %347 = vmatpush1.msra.mxu0 0.0
  %348 = vmatprep.subr.mxu0 0.0
  %349 = vmatpush1.msra.mxu0 0.0
  %350 = vmatprep.subr.mxu0 0.0
  %351 = vmatpush1.msra.mxu0 0.0
  %352 = vmatprep.subr.mxu0 0.0
  %353 = vmatpush1.msra.mxu0 0.0
  %354 = vmatprep.subr.mxu0 0.0
  %355 = vmatpush1.msra.mxu0 0.0
  %356 = vmatprep.mubr.f32.mxu0 0.0
  %357 = vmatmul.mubr.f32.gmra.mrb[0].mxu0 %v290
  %v358 = vpop.f32.mrb[0].mxu0
  %v359 = vadd.f32 %v266, %v358
  %v360 = vpop.f32.mrb[0].mxu0
  %361 = vdwg.mxu0
  %v362 = vld [vmem:[%s4] sm:$0xff]
  %v363 = vld [vmem:[%s4 + $0x8] sm:$0xff]
  %v364 = vld [vmem:[%s4 + $0x10] sm:$0xff]
  %v365 = vld [vmem:[%s4 + $0x18] sm:$0xff]
  %v366 = vld [vmem:[%s5] sm:$0x1]
  %v367 = vld [vmem:[%s6] sm:$0xff]
  %v368 = vld [vmem:[%s6 + $0x8] sm:$0xff]
  %v369 = vld [vmem:[%s6 + $0x10] sm:$0xff]
  %v370 = vld [vmem:[%s6 + $0x18] sm:$0xff]
  %v371 = vld [vmem:[%s6 + $0x20] sm:$0xff]
  %v372 = vld [vmem:[%s6 + $0x28] sm:$0xff]
  %v373 = vld [vmem:[%s6 + $0x30] sm:$0xff]
  %v374 = vld [vmem:[%s6 + $0x38] sm:$0xff]
  %v375 = vld [vmem:[%s6 + $0x40] sm:$0xff]
  %v376 = vld [vmem:[%s6 + $0x48] sm:$0xff]
  %v377 = vld [vmem:[%s7] sm:$0x1]
  %v378 = vld [vmem:[%s8] sm:$0xff]
  %v379 = vld [vmem:[%s8 + $0x8] sm:$0xff]
  %v380 = vld [vmem:[%s8 + $0x10] sm:$0xff]
  %v381 = vld [vmem:[%s8 + $0x18] sm:$0xff]
  %v382 = vld [vmem:[%s9] sm:$0x1]
  %v384 = vsel %vm62, %v359, 0
  %386 = vmatprep.subr.mxu0 0.0
  %387 = vmatpush1.msra.mxu0 %v362
  %388 = vmatprep.subr.mxu0 0.0
  %389 = vmatpush1.msra.mxu0 %v363
  %390 = vmatprep.subr.mxu0 0.0
  %391 = vmatpush1.msra.mxu0 %v364
  %392 = vmatprep.subr.mxu0 0.0
  %393 = vmatpush1.msra.mxu0 %v365
  %394 = vmatprep.subr.mxu0 0.0
  %395 = vmatpush1.msra.mxu0 0.0
  %396 = vmatprep.subr.mxu0 0.0
  %397 = vmatpush1.msra.mxu0 0.0
  %398 = vmatprep.subr.mxu0 0.0
  %399 = vmatpush1.msra.mxu0 0.0
  %400 = vmatprep.subr.mxu0 0.0
  %401 = vmatpush1.msra.mxu0 0.0
  %402 = vmatprep.subr.mxu0 0.0
  %403 = vmatpush1.msra.mxu0 0.0
  %404 = vmatprep.subr.mxu0 0.0
  %405 = vmatpush1.msra.mxu0 0.0
  %406 = vmatprep.subr.mxu0 0.0
  %407 = vmatpush1.msra.mxu0 0.0
  %408 = vmatprep.subr.mxu0 0.0
  %409 = vmatpush1.msra.mxu0 0.0
  %410 = vmatprep.subr.mxu0 0.0
  %411 = vmatpush1.msra.mxu0 0.0
  %412 = vmatprep.subr.mxu0 0.0
  %413 = vmatpush1.msra.mxu0 0.0
  %414 = vmatprep.subr.mxu0 0.0
  %415 = vmatpush1.msra.mxu0 0.0
  %416 = vmatprep.subr.mxu0 0.0
  %417 = vmatpush1.msra.mxu0 0.0
  %418 = vmatprep.subr.mxu0 0.0
  %419 = vmatpush1.msra.mxu0 0.0
  %420 = vmatprep.subr.mxu0 0.0
  %421 = vmatpush1.msra.mxu0 0.0
  %422 = vmatprep.subr.mxu0 0.0
  %423 = vmatpush1.msra.mxu0 0.0
  %424 = vmatprep.subr.mxu0 0.0
  %425 = vmatpush1.msra.mxu0 0.0
  %426 = vmatprep.subr.mxu0 0.0
  %427 = vmatpush1.msra.mxu0 0.0
  %428 = vmatprep.subr.mxu0 0.0
  %429 = vmatpush1.msra.mxu0 0.0
  %430 = vmatprep.subr.mxu0 0.0
  %431 = vmatpush1.msra.mxu0 0.0
  %432 = vmatprep.subr.mxu0 0.0
  %433 = vmatpush1.msra.mxu0 0.0
  %434 = vmatprep.subr.mxu0 0.0
  %435 = vmatpush1.msra.mxu0 0.0
  %436 = vmatprep.subr.mxu0 0.0
  %437 = vmatpush1.msra.mxu0 0.0
  %438 = vmatprep.subr.mxu0 0.0
  %439 = vmatpush1.msra.mxu0 0.0
  %440 = vmatprep.subr.mxu0 0.0
  %441 = vmatpush1.msra.mxu0 0.0
  %442 = vmatprep.subr.mxu0 0.0
  %443 = vmatpush1.msra.mxu0 0.0
  %444 = vmatprep.subr.mxu0 0.0
  %445 = vmatpush1.msra.mxu0 0.0
  %446 = vmatprep.subr.mxu0 0.0
  %447 = vmatpush1.msra.mxu0 0.0
  %448 = vmatprep.subr.mxu0 0.0
  %449 = vmatpush1.msra.mxu0 0.0
  %450 = vmatprep.mubr.f32.mxu0 0.0
  %451 = vmatmul.mubr.f32.gmra.mrb[0].mxu0 %v384
  %v452 = vpop.f32.mrb[0].mxu0
  %v453 = vadd.f32 0.0, %v452
  %v454 = vpop.f32.mrb[0].mxu0
  %455 = vdwg.mxu0
  %v457 = vcombine.high %v453, %v453
  %v459 = vunpack.c.l.s4 1966171168
  %v460 = vunpack.c.0.s8 %v459
  %v461 = vlaneseq
  %v462 = vshrl.u32 %v461, 7
  %v463 = vsub.s32 %v460, %v462
  %v464 = vrot.slane %v453, %v463
  %v466 = vunpack.c.l.s4 1966171168
  %v467 = vunpack.c.0.s8 %v466
  %v468 = vlaneseq
  %v469 = vshrl.u32 %v468, 7
  %v470 = vsub.s32 %v467, %v469
  %v471 = vrot.slane %v457, %v470
  %v472 = vcombine.high %v464, %v464
  %v473 = vcombine.high %v471, %v471
  %v475 = vunpack.c.l.s4 1966171168
  %v476 = vunpack.c.0.s8 %v475
  %v477 = vlaneseq
  %v478 = vshrl.u32 %v477, 7
  %v479 = vsub.s32 %v476, %v478
  %v480 = vrot.slane %v464, %v479
  %v482 = vunpack.c.l.s4 1966171168
  %v483 = vunpack.c.0.s8 %v482
  %v484 = vlaneseq
  %v485 = vshrl.u32 %v484, 7
  %v486 = vsub.s32 %v483, %v485
  %v487 = vrot.slane %v471, %v486
  %v489 = vunpack.c.l.s4 1966171168
  %v490 = vunpack.c.0.s8 %v489
  %v491 = vlaneseq
  %v492 = vshrl.u32 %v491, 7
  %v493 = vsub.s32 %v490, %v492
  %v494 = vrot.slane %v472, %v493
  %v496 = vunpack.c.l.s4 1966171168
  %v497 = vunpack.c.0.s8 %v496
  %v498 = vlaneseq
  %v499 = vshrl.u32 %v498, 7
  %v500 = vsub.s32 %v497, %v499
  %v501 = vrot.slane %v473, %v500
  %v502 = vcombine.high %v480, %v480
  %v503 = vcombine.high %v487, %v487
  %v504 = vcombine.high %v494, %v494
  %v505 = vcombine.high %v501, %v501
  %v506 = vlaneseq
  %v507 = vshrl.u32 %v506, 7
  %v508 = vsub.s32 0, %v507
  %v509 = vrot.slane %v480, %v508
  %v510 = vlaneseq
  %v511 = vshrl.u32 %v510, 7
  %v512 = vsub.s32 0, %v511
  %v513 = vrot.slane %v494, %v512
  %v514 = vlaneseq
  %v515 = vshrl.u32 %v514, 7
  %v516 = vsub.s32 0, %v515
  %v517 = vrot.slane %v502, %v516
  %v518 = vlaneseq
  %v519 = vshrl.u32 %v518, 7
  %v520 = vsub.s32 0, %v519
  %v521 = vrot.slane %v504, %v520
  %v522 = vlaneseq
  %v523 = vshrl.u32 %v522, 7
  %v524 = vsub.s32 0, %v523
  %v525 = vrot.slane %v487, %v524
  %v526 = vlaneseq
  %v527 = vshrl.u32 %v526, 7
  %v528 = vsub.s32 0, %v527
  %v529 = vrot.slane %v501, %v528
  %v530 = vlaneseq
  %v531 = vshrl.u32 %v530, 7
  %v532 = vsub.s32 0, %v531
  %v533 = vrot.slane %v503, %v532
  %v534 = vlaneseq
  %v535 = vshrl.u32 %v534, 7
  %v536 = vsub.s32 0, %v535
  %v537 = vrot.slane %v505, %v536
  %v546 = vadd.f32 %v154, %v509
  %v547 = vadd.f32 %v159, %v513
  %v548 = vadd.f32 %v164, %v517
  %v549 = vadd.f32 %v169, %v521
  %v550 = vadd.f32 %v174, %v525
  %v551 = vadd.f32 %v179, %v529
  %v552 = vadd.f32 %v184, %v533
  %v553 = vadd.f32 %v189, %v537
  %v554 = vtanh.pop %v546
  %v555 = vtanh.pop %v547
  %v556 = vtanh.pop %v548
  %v557 = vtanh.pop %v549
  %v558 = vtanh.pop %v550
  %v559 = vtanh.pop %v551
  %v560 = vtanh.pop %v552
  %v561 = vtanh.pop %v553
  %v563 = vlaneseq
  %v564 = vshrl.u32 %v563, 7
  %v565 = vsub.s32 0, %v564
  %v566 = vrot.slane %v366, %v565
  %v568 = vmul.f32 %v554, %v566
  %v569 = vmul.f32 %v555, %v566
  %v570 = vmul.f32 %v556, %v566
  %v571 = vmul.f32 %v557, %v566
  %v572 = vmul.f32 %v558, %v566
  %v573 = vmul.f32 %v559, %v566
  %v574 = vmul.f32 %v560, %v566
  %v575 = vmul.f32 %v561, %v566
  %vm576 = vcmask 130048
  %v577 = vsel %vm576, %v568, 0.0
  %578 = vadd.xlane.f32.xlu0 %v577
  %v579 = vpop.xlane.xlu0 %578
  %v580 = vsel %vm576, %v569, 0.0
  %581 = vadd.xlane.f32.xlu0 %v580
  %v582 = vpop.xlane.xlu0 %581
  %v583 = vsel %vm576, %v570, 0.0
  %584 = vadd.xlane.f32.xlu0 %v583
  %v585 = vpop.xlane.xlu0 %584
  %v586 = vsel %vm576, %v571, 0.0
  %587 = vadd.xlane.f32.xlu0 %v586
  %v588 = vpop.xlane.xlu0 %587
  %v589 = vsel %vm576, %v572, 0.0
  %590 = vadd.xlane.f32.xlu0 %v589
  %v591 = vpop.xlane.xlu0 %590
  %v592 = vsel %vm576, %v573, 0.0
  %593 = vadd.xlane.f32.xlu0 %v592
  %v594 = vpop.xlane.xlu0 %593
  %v595 = vsel %vm576, %v574, 0.0
  %596 = vadd.xlane.f32.xlu0 %v595
  %v597 = vpop.xlane.xlu0 %596
  %v598 = vsel %vm576, %v575, 0.0
  %599 = vadd.xlane.f32.xlu0 %v598
  %v600 = vpop.xlane.xlu0 %599
  %v609 = vlaneseq
  %v610 = vand.u32 %v609, 127
  %v611 = vlaneseq
  %v612 = vshrl.u32 %v611, 7
  %v613 = vsub.s32 %v610, %v612
  %v614 = vrot.slane %v579, %v613
  %v615 = vlaneseq
  %v616 = vshrl.u32 %v615, 7
  %v617 = vsub.s32 %v610, %v616
  %v618 = vrot.slane %v582, %v617
  %v619 = vlaneseq
  %v620 = vshrl.u32 %v619, 7
  %v621 = vsub.s32 %v610, %v620
  %v622 = vrot.slane %v585, %v621
  %v623 = vlaneseq
  %v624 = vshrl.u32 %v623, 7
  %v625 = vsub.s32 %v610, %v624
  %v626 = vrot.slane %v588, %v625
  %v627 = vlaneseq
  %v628 = vshrl.u32 %v627, 7
  %v629 = vsub.s32 %v610, %v628
  %v630 = vrot.slane %v591, %v629
  %v631 = vlaneseq
  %v632 = vshrl.u32 %v631, 7
  %v633 = vsub.s32 %v610, %v632
  %v634 = vrot.slane %v594, %v633
  %v635 = vlaneseq
  %v636 = vshrl.u32 %v635, 7
  %v637 = vsub.s32 %v610, %v636
  %v638 = vrot.slane %v597, %v637
  %v639 = vlaneseq
  %v640 = vshrl.u32 %v639, 7
  %v641 = vsub.s32 %v610, %v640
  %v642 = vrot.slane %v600, %v641
  %v643 = vsel %vm276, %v618, %v614
  %v644 = vsel %vm278, %v622, %v643
  %v645 = vsel %vm280, %v626, %v644
  %v646 = vsel %vm282, %v630, %v645
  %v647 = vsel %vm284, %v634, %v646
  %v648 = vsel %vm286, %v638, %v647
  %v649 = vsel %vm288, %v642, %v648
  %vm651 = vcmask 64512
  %v652 = vsel %vm651, %v649, -inf
  %653 = vmax.xlane.f32.xlu0 %v652
  %v654 = vpop.xlane.xlu0 %653
  %v656 = vlaneseq
  %v657 = vshrl.u32 %v656, 7
  %v658 = vsub.s32 0, %v657
  %v659 = vrot.slane %v654, %v658
  %v660 = vlaneseq
  %v661 = vshrl.u32 %v660, 7
  %v662 = vsub.s32 1, %v661
  %v663 = vrot.slane %v654, %v662
  %v664 = vlaneseq
  %v665 = vshrl.u32 %v664, 7
  %v666 = vsub.s32 2, %v665
  %v667 = vrot.slane %v654, %v666
  %v668 = vlaneseq
  %v669 = vshrl.u32 %v668, 7
  %v670 = vsub.s32 3, %v669
  %v671 = vrot.slane %v654, %v670
  %v672 = vlaneseq
  %v673 = vshrl.u32 %v672, 7
  %v674 = vsub.s32 4, %v673
  %v675 = vrot.slane %v654, %v674
  %v676 = vlaneseq
  %v677 = vshrl.u32 %v676, 7
  %v678 = vsub.s32 5, %v677
  %v679 = vrot.slane %v654, %v678
  %v680 = vlaneseq
  %v681 = vshrl.u32 %v680, 7
  %v682 = vsub.s32 6, %v681
  %v683 = vrot.slane %v654, %v682
  %v684 = vlaneseq
  %v685 = vshrl.u32 %v684, 7
  %v686 = vsub.s32 7, %v685
  %v687 = vrot.slane %v654, %v686
  %v696 = vsub.f32 %v579, %v659
  %v697 = vsub.f32 %v582, %v663
  %v698 = vsub.f32 %v585, %v667
  %v699 = vsub.f32 %v588, %v671
  %v700 = vsub.f32 %v591, %v675
  %v701 = vsub.f32 %v594, %v679
  %v702 = vsub.f32 %v597, %v683
  %v703 = vsub.f32 %v600, %v687
  %v704 = vmul.f32 %v696, 1.442695
  %v705 = vpow.pop %v704
  %v706 = vmul.f32 %v697, 1.442695
  %v707 = vpow.pop %v706
  %v708 = vmul.f32 %v698, 1.442695
  %v709 = vpow.pop %v708
  %v710 = vmul.f32 %v699, 1.442695
  %v711 = vpow.pop %v710
  %v712 = vmul.f32 %v700, 1.442695
  %v713 = vpow.pop %v712
  %v714 = vmul.f32 %v701, 1.442695
  %v715 = vpow.pop %v714
  %v716 = vmul.f32 %v702, 1.442695
  %v717 = vpow.pop %v716
  %v718 = vmul.f32 %v703, 1.442695
  %v719 = vpow.pop %v718
  %728 = vset.pattern.permute.xlu0 0
  %729 = vperm.xlu0 %728, %v705
  %v730 = vpop.permute.xlu0 %729
  %731 = vset.pattern.permute.xlu0 0
  %732 = vperm.xlu0 %731, %v707
  %v733 = vpop.permute.xlu0 %732
  %734 = vset.pattern.permute.xlu0 0
  %735 = vperm.xlu0 %734, %v709
  %v736 = vpop.permute.xlu0 %735
  %737 = vset.pattern.permute.xlu0 0
  %738 = vperm.xlu0 %737, %v711
  %v739 = vpop.permute.xlu0 %738
  %740 = vset.pattern.permute.xlu0 0
  %741 = vperm.xlu0 %740, %v713
  %v742 = vpop.permute.xlu0 %741
  %743 = vset.pattern.permute.xlu0 0
  %744 = vperm.xlu0 %743, %v715
  %v745 = vpop.permute.xlu0 %744
  %746 = vset.pattern.permute.xlu0 0
  %747 = vperm.xlu0 %746, %v717
  %v748 = vpop.permute.xlu0 %747
  %749 = vset.pattern.permute.xlu0 0
  %750 = vperm.xlu0 %749, %v719
  %v751 = vpop.permute.xlu0 %750
  %v752 = vlaneseq
  %v753 = vshrl.u32 %v752, 7
  %v754 = vsub.s32 %v610, %v753
  %v755 = vrot.slane %v730, %v754
  %v756 = vlaneseq
  %v757 = vshrl.u32 %v756, 7
  %v758 = vsub.s32 %v610, %v757
  %v759 = vrot.slane %v733, %v758
  %v760 = vlaneseq
  %v761 = vshrl.u32 %v760, 7
  %v762 = vsub.s32 %v610, %v761
  %v763 = vrot.slane %v736, %v762
  %v764 = vlaneseq
  %v765 = vshrl.u32 %v764, 7
  %v766 = vsub.s32 %v610, %v765
  %v767 = vrot.slane %v739, %v766
  %v768 = vlaneseq
  %v769 = vshrl.u32 %v768, 7
  %v770 = vsub.s32 %v610, %v769
  %v771 = vrot.slane %v742, %v770
  %v772 = vlaneseq
  %v773 = vshrl.u32 %v772, 7
  %v774 = vsub.s32 %v610, %v773
  %v775 = vrot.slane %v745, %v774
  %v776 = vlaneseq
  %v777 = vshrl.u32 %v776, 7
  %v778 = vsub.s32 %v610, %v777
  %v779 = vrot.slane %v748, %v778
  %v780 = vlaneseq
  %v781 = vshrl.u32 %v780, 7
  %v782 = vsub.s32 %v610, %v781
  %v783 = vrot.slane %v751, %v782
  %v784 = vsel %vm276, %v759, %v755
  %v785 = vsel %vm278, %v763, %v784
  %v786 = vsel %vm280, %v767, %v785
  %v787 = vsel %vm282, %v771, %v786
  %v788 = vsel %vm284, %v775, %v787
  %v789 = vsel %vm286, %v779, %v788
  %v790 = vsel %vm288, %v783, %v789
  %v792 = vsel %vm651, %v790, 0.0
  %793 = vadd.xlane.f32.xlu0 %v792
  %v794 = vpop.xlane.xlu0 %793
  %v796 = vlaneseq
  %v797 = vshrl.u32 %v796, 7
  %v798 = vsub.s32 0, %v797
  %v799 = vrot.slane %v794, %v798
  %v800 = vlaneseq
  %v801 = vshrl.u32 %v800, 7
  %v802 = vsub.s32 1, %v801
  %v803 = vrot.slane %v794, %v802
  %v804 = vlaneseq
  %v805 = vshrl.u32 %v804, 7
  %v806 = vsub.s32 2, %v805
  %v807 = vrot.slane %v794, %v806
  %v808 = vlaneseq
  %v809 = vshrl.u32 %v808, 7
  %v810 = vsub.s32 3, %v809
  %v811 = vrot.slane %v794, %v810
  %v812 = vlaneseq
  %v813 = vshrl.u32 %v812, 7
  %v814 = vsub.s32 4, %v813
  %v815 = vrot.slane %v794, %v814
  %v816 = vlaneseq
  %v817 = vshrl.u32 %v816, 7
  %v818 = vsub.s32 5, %v817
  %v819 = vrot.slane %v794, %v818
  %v820 = vlaneseq
  %v821 = vshrl.u32 %v820, 7
  %v822 = vsub.s32 6, %v821
  %v823 = vrot.slane %v794, %v822
  %v824 = vlaneseq
  %v825 = vshrl.u32 %v824, 7
  %v826 = vsub.s32 7, %v825
  %v827 = vrot.slane %v794, %v826
  %v836 = vrcp.pop %v799
  %v837 = vmul.f32 %v705, %v836
  %v838 = vrcp.pop %v803
  %v839 = vmul.f32 %v707, %v838
  %v840 = vrcp.pop %v807
  %v841 = vmul.f32 %v709, %v840
  %v842 = vrcp.pop %v811
  %v843 = vmul.f32 %v711, %v842
  %v844 = vrcp.pop %v815
  %v845 = vmul.f32 %v713, %v844
  %v846 = vrcp.pop %v819
  %v847 = vmul.f32 %v715, %v846
  %v848 = vrcp.pop %v823
  %v849 = vmul.f32 %v717, %v848
  %v850 = vrcp.pop %v827
  %v851 = vmul.f32 %v719, %v850
  %853 = vset.pattern.permute.xlu0 0
  %854 = vperm.xlu0 %853, %v837
  %v855 = vpop.permute.xlu0 %854
  %858 = vset.pattern.permute.xlu0 0
  %859 = vperm.xlu0 %858, %v839
  %v860 = vpop.permute.xlu0 %859
  %863 = vset.pattern.permute.xlu0 0
  %864 = vperm.xlu0 %863, %v841
  %v865 = vpop.permute.xlu0 %864
  %868 = vset.pattern.permute.xlu0 0
  %869 = vperm.xlu0 %868, %v843
  %v870 = vpop.permute.xlu0 %869
  %873 = vset.pattern.permute.xlu0 0
  %874 = vperm.xlu0 %873, %v845
  %v875 = vpop.permute.xlu0 %874
  %878 = vset.pattern.permute.xlu0 0
  %879 = vperm.xlu0 %878, %v847
  %v880 = vpop.permute.xlu0 %879
  %883 = vset.pattern.permute.xlu0 0
  %884 = vperm.xlu0 %883, %v849
  %v885 = vpop.permute.xlu0 %884
  %888 = vset.pattern.permute.xlu0 0
  %889 = vperm.xlu0 %888, %v851
  %v890 = vpop.permute.xlu0 %889
  %v892 = vmul.f32 %v43, %v855
  %v893 = vmul.f32 %v44, %v860
  %v894 = vmul.f32 %v45, %v865
  %v895 = vmul.f32 %v46, %v870
  %v896 = vmul.f32 %v47, %v875
  %v897 = vmul.f32 %v48, %v880
  %v898 = vmul.f32 %v49, %v885
  %v899 = vmul.f32 %v50, %v890
  %v900 = vsel %vm62, %v892, 0.0
  %v901 = vrot.slane %v900, 4
  %v902 = vadd.f32 %v900, %v901
  %v903 = vrot.slane %v902, 2
  %v904 = vadd.f32 %v902, %v903
  %v905 = vrot.slane %v904, 1
  %v906 = vadd.f32 %v904, %v905
  %v907 = vsel %vm62, %v893, 0.0
  %v908 = vrot.slane %v907, 4
  %v909 = vadd.f32 %v907, %v908
  %v910 = vrot.slane %v909, 2
  %v911 = vadd.f32 %v909, %v910
  %v912 = vrot.slane %v911, 1
  %v913 = vadd.f32 %v911, %v912
  %v914 = vsel %vm62, %v894, 0.0
  %v915 = vrot.slane %v914, 4
  %v916 = vadd.f32 %v914, %v915
  %v917 = vrot.slane %v916, 2
  %v918 = vadd.f32 %v916, %v917
  %v919 = vrot.slane %v918, 1
  %v920 = vadd.f32 %v918, %v919
  %v921 = vsel %vm62, %v895, 0.0
  %v922 = vrot.slane %v921, 4
  %v923 = vadd.f32 %v921, %v922
  %v924 = vrot.slane %v923, 2
  %v925 = vadd.f32 %v923, %v924
  %v926 = vrot.slane %v925, 1
  %v927 = vadd.f32 %v925, %v926
  %v928 = vsel %vm62, %v896, 0.0
  %v929 = vrot.slane %v928, 4
  %v930 = vadd.f32 %v928, %v929
  %v931 = vrot.slane %v930, 2
  %v932 = vadd.f32 %v930, %v931
  %v933 = vrot.slane %v932, 1
  %v934 = vadd.f32 %v932, %v933
  %v935 = vsel %vm62, %v897, 0.0
  %v936 = vrot.slane %v935, 4
  %v937 = vadd.f32 %v935, %v936
  %v938 = vrot.slane %v937, 2
  %v939 = vadd.f32 %v937, %v938
  %v940 = vrot.slane %v939, 1
  %v941 = vadd.f32 %v939, %v940
  %v942 = vsel %vm62, %v898, 0.0
  %v943 = vrot.slane %v942, 4
  %v944 = vadd.f32 %v942, %v943
  %v945 = vrot.slane %v944, 2
  %v946 = vadd.f32 %v944, %v945
  %v947 = vrot.slane %v946, 1
  %v948 = vadd.f32 %v946, %v947
  %v949 = vsel %vm62, %v899, 0.0
  %v950 = vrot.slane %v949, 4
  %v951 = vadd.f32 %v949, %v950
  %v952 = vrot.slane %v951, 2
  %v953 = vadd.f32 %v951, %v952
  %v954 = vrot.slane %v953, 1
  %v955 = vadd.f32 %v953, %v954
  %v956 = vld [vmem:[%s0] sm:$0x1]
  %v957 = vld [vmem:[%s0 + $0x8] sm:$0x1]
  %v958 = vld [vmem:[%s0 + $0x10] sm:$0x1]
  %v959 = vld [vmem:[%s0 + $0x18] sm:$0x1]
  %v960 = vld [vmem:[%s0 + $0x20] sm:$0x1]
  %v961 = vld [vmem:[%s0 + $0x28] sm:$0x1]
  %v962 = vld [vmem:[%s0 + $0x30] sm:$0x1]
  %v963 = vld [vmem:[%s0 + $0x38] sm:$0x1]
  %v972 = vrot.slane %v957, 7
  %v973 = vsel %vm276, %v972, %v956
  %v974 = vrot.slane %v958, 6
  %v975 = vsel %vm278, %v974, %v973
  %v976 = vrot.slane %v959, 5
  %v977 = vsel %vm280, %v976, %v975
  %v978 = vrot.slane %v960, 4
  %v979 = vsel %vm282, %v978, %v977
  %v980 = vrot.slane %v961, 3
  %v981 = vsel %vm284, %v980, %v979
  %v982 = vrot.slane %v962, 2
  %v983 = vsel %vm286, %v982, %v981
  %v984 = vrot.slane %v963, 1
  %v985 = vsel %vm288, %v984, %v983
  %987 = vst.msk [vmem:[#allocation2] sm:$0xff] %vm576, %v985
  %v996 = vsel %vm276, %v913, %v906
  %v997 = vsel %vm278, %v920, %v996
  %v998 = vsel %vm280, %v927, %v997
  %v999 = vsel %vm282, %v934, %v998
  %v1000 = vsel %vm284, %v941, %v999
  %v1001 = vsel %vm286, %v948, %v1000
  %v1002 = vsel %vm288, %v955, %v1001
  %1003 = vrot.lane.b32.xlu0 %v1002, 16
  %v1004 = vpop.permute.xlu0 %1003
  %vm1006 = vcmask 392320
  %1007 = vst.msk [vmem:[#allocation2] sm:$0xff] %vm1006, %v1004
  %1008 = vrot.lane.b32.xlu0 %v359, 48
  %v1009 = vpop.permute.xlu0 %1008
  %vm1011 = vcmask 654720
  %1012 = vst.msk [vmem:[#allocation2] sm:$0xff] %vm1011, %v1009
  %v1013 = vld [vmem:[#allocation2] sm:$0xff]
  %v1015 = vlaneseq
  %v1016 = vshrl.u32 %v1015, 7
  %v1017 = vsub.s32 0, %v1016
  %v1018 = vrot.slane %v377, %v1017
  %vm1020 = vcmask 654336
  %v1022 = vsel %vm1020, %v1013, 0
  %1024 = vmatprep.subr.mxu0 0.0
  %1025 = vmatpush1.msra.mxu0 %v367
  %1026 = vmatprep.subr.mxu0 0.0
  %1027 = vmatpush1.msra.mxu0 %v368
  %1028 = vmatprep.subr.mxu0 0.0
  %1029 = vmatpush1.msra.mxu0 %v369
  %1030 = vmatprep.subr.mxu0 0.0
  %1031 = vmatpush1.msra.mxu0 %v370
  %1032 = vmatprep.subr.mxu0 0.0
  %1033 = vmatpush1.msra.mxu0 %v371
  %1034 = vmatprep.subr.mxu0 0.0
  %1035 = vmatpush1.msra.mxu0 %v372
  %1036 = vmatprep.subr.mxu0 0.0
  %1037 = vmatpush1.msra.mxu0 %v373
  %1038 = vmatprep.subr.mxu0 0.0
  %1039 = vmatpush1.msra.mxu0 %v374
  %1040 = vmatprep.subr.mxu0 0.0
  %1041 = vmatpush1.msra.mxu0 %v375
  %1042 = vmatprep.subr.mxu0 0.0
  %1043 = vmatpush1.msra.mxu0 %v376
  %1044 = vmatprep.subr.mxu0 0.0
  %1045 = vmatpush1.msra.mxu0 0.0
  %1046 = vmatprep.subr.mxu0 0.0
  %1047 = vmatpush1.msra.mxu0 0.0
  %1048 = vmatprep.subr.mxu0 0.0
  %1049 = vmatpush1.msra.mxu0 0.0
  %1050 = vmatprep.subr.mxu0 0.0
  %1051 = vmatpush1.msra.mxu0 0.0
  %1052 = vmatprep.subr.mxu0 0.0
  %1053 = vmatpush1.msra.mxu0 0.0
  %1054 = vmatprep.subr.mxu0 0.0
  %1055 = vmatpush1.msra.mxu0 0.0
  %1056 = vmatprep.subr.mxu0 0.0
  %1057 = vmatpush1.msra.mxu0 0.0
  %1058 = vmatprep.subr.mxu0 0.0
  %1059 = vmatpush1.msra.mxu0 0.0
  %1060 = vmatprep.subr.mxu0 0.0
  %1061 = vmatpush1.msra.mxu0 0.0
  %1062 = vmatprep.subr.mxu0 0.0
  %1063 = vmatpush1.msra.mxu0 0.0
  %1064 = vmatprep.subr.mxu0 0.0
  %1065 = vmatpush1.msra.mxu0 0.0
  %1066 = vmatprep.subr.mxu0 0.0
  %1067 = vmatpush1.msra.mxu0 0.0
  %1068 = vmatprep.subr.mxu0 0.0
  %1069 = vmatpush1.msra.mxu0 0.0
  %1070 = vmatprep.subr.mxu0 0.0
  %1071 = vmatpush1.msra.mxu0 0.0
  %1072 = vmatprep.subr.mxu0 0.0
  %1073 = vmatpush1.msra.mxu0 0.0
  %1074 = vmatprep.subr.mxu0 0.0
  %1075 = vmatpush1.msra.mxu0 0.0
  %1076 = vmatprep.subr.mxu0 0.0
  %1077 = vmatpush1.msra.mxu0 0.0
  %1078 = vmatprep.subr.mxu0 0.0
  %1079 = vmatpush1.msra.mxu0 0.0
  %1080 = vmatprep.subr.mxu0 0.0
  %1081 = vmatpush1.msra.mxu0 0.0
  %1082 = vmatprep.subr.mxu0 0.0
  %1083 = vmatpush1.msra.mxu0 0.0
  %1084 = vmatprep.subr.mxu0 0.0
  %1085 = vmatpush1.msra.mxu0 0.0
  %1086 = vmatprep.subr.mxu0 0.0
  %1087 = vmatpush1.msra.mxu0 0.0
  %1088 = vmatprep.mubr.f32.mxu0 0.0
  %1089 = vmatmul.mubr.f32.gmra.mrb[0].mxu0 %v1022
  %v1090 = vpop.f32.mrb[0].mxu0
  %v1091 = vadd.f32 %v1018, %v1090
  %v1092 = vpop.f32.mrb[0].mxu0
  %1093 = vdwg.mxu0
  %v1094 = vxor.u32 %v1091, 2147483648
  %v1095 = vmul.f32 %v1094, 1.442695
  %v1096 = vpow.pop %v1095
  %v1097 = vadd.f32 %v1096, 1.0
  %v1098 = vrcp.pop %v1097
  %v1099 = vmul.f32 1.0, %v1098
  %v1100 = vtanh.pop %v1091
  %v1101 = vmul.f32 %v1099, %v359
  %1103 = vrot.lane.b32.xlu0 %v1100, 64
  %v1104 = vpop.permute.xlu0 %1103
  %v1106 = vmul.f32 %v1099, %v1104
  %1108 = vrot.lane.b32.xlu0 %v1106, 32
  %v1109 = vpop.permute.xlu0 %1108
  %v1111 = vadd.f32 %v1101, %v1109
  %v1112 = vtanh.pop %v1111
  %1114 = vrot.lane.b32.xlu0 %v1112, 64
  %v1115 = vpop.permute.xlu0 %1114
  %v1117 = vmul.f32 %v1099, %v1115
  %v1119 = vlaneseq
  %v1120 = vshrl.u32 %v1119, 7
  %v1121 = vsub.s32 0, %v1120
  %v1122 = vrot.slane %v382, %v1121
  %1125 = vrot.lane.b32.xlu0 %v1117, 32
  %v1126 = vpop.permute.xlu0 %1125
  %v1127 = vsel %vm62, %v1126, 0
  %1129 = vmatprep.subr.mxu0 0.0
  %1130 = vmatpush1.msra.mxu0 %v378
  %1131 = vmatprep.subr.mxu0 0.0
  %1132 = vmatpush1.msra.mxu0 %v379
  %1133 = vmatprep.subr.mxu0 0.0
  %1134 = vmatpush1.msra.mxu0 %v380
  %1135 = vmatprep.subr.mxu0 0.0
  %1136 = vmatpush1.msra.mxu0 %v381
  %1137 = vmatprep.subr.mxu0 0.0
  %1138 = vmatpush1.msra.mxu0 0.0
  %1139 = vmatprep.subr.mxu0 0.0
  %1140 = vmatpush1.msra.mxu0 0.0
  %1141 = vmatprep.subr.mxu0 0.0
  %1142 = vmatpush1.msra.mxu0 0.0
  %1143 = vmatprep.subr.mxu0 0.0
  %1144 = vmatpush1.msra.mxu0 0.0
  %1145 = vmatprep.subr.mxu0 0.0
  %1146 = vmatpush1.msra.mxu0 0.0
  %1147 = vmatprep.subr.mxu0 0.0
  %1148 = vmatpush1.msra.mxu0 0.0
  %1149 = vmatprep.subr.mxu0 0.0
  %1150 = vmatpush1.msra.mxu0 0.0
  %1151 = vmatprep.subr.mxu0 0.0
  %1152 = vmatpush1.msra.mxu0 0.0
  %1153 = vmatprep.subr.mxu0 0.0
  %1154 = vmatpush1.msra.mxu0 0.0
  %1155 = vmatprep.subr.mxu0 0.0
  %1156 = vmatpush1.msra.mxu0 0.0
  %1157 = vmatprep.subr.mxu0 0.0
  %1158 = vmatpush1.msra.mxu0 0.0
  %1159 = vmatprep.subr.mxu0 0.0
  %1160 = vmatpush1.msra.mxu0 0.0
  %1161 = vmatprep.subr.mxu0 0.0
  %1162 = vmatpush1.msra.mxu0 0.0
  %1163 = vmatprep.subr.mxu0 0.0
  %1164 = vmatpush1.msra.mxu0 0.0
  %1165 = vmatprep.subr.mxu0 0.0
  %1166 = vmatpush1.msra.mxu0 0.0
  %1167 = vmatprep.subr.mxu0 0.0
  %1168 = vmatpush1.msra.mxu0 0.0
  %1169 = vmatprep.subr.mxu0 0.0
  %1170 = vmatpush1.msra.mxu0 0.0
  %1171 = vmatprep.subr.mxu0 0.0
  %1172 = vmatpush1.msra.mxu0 0.0
  %1173 = vmatprep.subr.mxu0 0.0
  %1174 = vmatpush1.msra.mxu0 0.0
  %1175 = vmatprep.subr.mxu0 0.0
  %1176 = vmatpush1.msra.mxu0 0.0
  %1177 = vmatprep.subr.mxu0 0.0
  %1178 = vmatpush1.msra.mxu0 0.0
  %1179 = vmatprep.subr.mxu0 0.0
  %1180 = vmatpush1.msra.mxu0 0.0
  %1181 = vmatprep.subr.mxu0 0.0
  %1182 = vmatpush1.msra.mxu0 0.0
  %1183 = vmatprep.subr.mxu0 0.0
  %1184 = vmatpush1.msra.mxu0 0.0
  %1185 = vmatprep.subr.mxu0 0.0
  %1186 = vmatpush1.msra.mxu0 0.0
  %1187 = vmatprep.subr.mxu0 0.0
  %1188 = vmatpush1.msra.mxu0 0.0
  %1189 = vmatprep.subr.mxu0 0.0
  %1190 = vmatpush1.msra.mxu0 0.0
  %1191 = vmatprep.subr.mxu0 0.0
  %1192 = vmatpush1.msra.mxu0 0.0
  %1193 = vmatprep.mubr.f32.mxu0 0.0
  %1194 = vmatmul.mubr.f32.gmra.mrb[0].mxu0 %v1127
  %v1195 = vpop.f32.mrb[0].mxu0
  %v1196 = vadd.f32 %v1122, %v1195
  %v1197 = vpop.f32.mrb[0].mxu0
  %1198 = vdwg.mxu0
  %v1200 = vcombine.high %v1196, %v1196
  %v1202 = vunpack.c.l.s4 1966171168
  %v1203 = vunpack.c.0.s8 %v1202
  %v1204 = vlaneseq
  %v1205 = vshrl.u32 %v1204, 7
  %v1206 = vsub.s32 %v1203, %v1205
  %v1207 = vrot.slane %v1196, %v1206
  %v1209 = vunpack.c.l.s4 1966171168
  %v1210 = vunpack.c.0.s8 %v1209
  %v1211 = vlaneseq
  %v1212 = vshrl.u32 %v1211, 7
  %v1213 = vsub.s32 %v1210, %v1212
  %v1214 = vrot.slane %v1200, %v1213
  %v1215 = vcombine.high %v1207, %v1207
  %v1216 = vcombine.high %v1214, %v1214
  %v1218 = vunpack.c.l.s4 1966171168
  %v1219 = vunpack.c.0.s8 %v1218
  %v1220 = vlaneseq
  %v1221 = vshrl.u32 %v1220, 7
  %v1222 = vsub.s32 %v1219, %v1221
  %v1223 = vrot.slane %v1207, %v1222
  %v1225 = vunpack.c.l.s4 1966171168
  %v1226 = vunpack.c.0.s8 %v1225
  %v1227 = vlaneseq
  %v1228 = vshrl.u32 %v1227, 7
  %v1229 = vsub.s32 %v1226, %v1228
  %v1230 = vrot.slane %v1214, %v1229
  %v1232 = vunpack.c.l.s4 1966171168
  %v1233 = vunpack.c.0.s8 %v1232
  %v1234 = vlaneseq
  %v1235 = vshrl.u32 %v1234, 7
  %v1236 = vsub.s32 %v1233, %v1235
  %v1237 = vrot.slane %v1215, %v1236
  %v1239 = vunpack.c.l.s4 1966171168
  %v1240 = vunpack.c.0.s8 %v1239
  %v1241 = vlaneseq
  %v1242 = vshrl.u32 %v1241, 7
  %v1243 = vsub.s32 %v1240, %v1242
  %v1244 = vrot.slane %v1216, %v1243
  %v1245 = vcombine.high %v1223, %v1223
  %v1246 = vcombine.high %v1230, %v1230
  %v1247 = vcombine.high %v1237, %v1237
  %v1248 = vcombine.high %v1244, %v1244
  %vm1257 = vcmask 253952
  %1258 = vst.msk [vmem:[%s12] sm:$0x1] %vm1257, %v1223
  %1259 = vst.msk [vmem:[%s12 + $0x8] sm:$0x1] %vm1257, %v1237
  %1260 = vst.msk [vmem:[%s12 + $0x10] sm:$0x1] %vm1257, %v1245
  %1261 = vst.msk [vmem:[%s12 + $0x18] sm:$0x1] %vm1257, %v1247
  %1262 = vst.msk [vmem:[%s12 + $0x20] sm:$0x1] %vm1257, %v1230
  %1263 = vst.msk [vmem:[%s12 + $0x28] sm:$0x1] %vm1257, %v1244
  %1264 = vst.msk [vmem:[%s12 + $0x30] sm:$0x1] %vm1257, %v1246
  %1265 = vst.msk [vmem:[%s12 + $0x38] sm:$0x1] %vm1257, %v1248
  %v1266 = vlaneseq
  %v1267 = vshrl.u32 %v1266, 7
  %v1268 = vsub.s32 %v610, %v1267
  %v1269 = vrot.slane %v855, %v1268
  %v1270 = vlaneseq
  %v1271 = vshrl.u32 %v1270, 7
  %v1272 = vsub.s32 %v610, %v1271
  %v1273 = vrot.slane %v860, %v1272
  %v1274 = vlaneseq
  %v1275 = vshrl.u32 %v1274, 7
  %v1276 = vsub.s32 %v610, %v1275
  %v1277 = vrot.slane %v865, %v1276
  %v1278 = vlaneseq
  %v1279 = vshrl.u32 %v1278, 7
  %v1280 = vsub.s32 %v610, %v1279
  %v1281 = vrot.slane %v870, %v1280
  %v1282 = vlaneseq
  %v1283 = vshrl.u32 %v1282, 7
  %v1284 = vsub.s32 %v610, %v1283
  %v1285 = vrot.slane %v875, %v1284
  %v1286 = vlaneseq
  %v1287 = vshrl.u32 %v1286, 7
  %v1288 = vsub.s32 %v610, %v1287
  %v1289 = vrot.slane %v880, %v1288
  %v1290 = vlaneseq
  %v1291 = vshrl.u32 %v1290, 7
  %v1292 = vsub.s32 %v610, %v1291
  %v1293 = vrot.slane %v885, %v1292
  %v1294 = vlaneseq
  %v1295 = vshrl.u32 %v1294, 7
  %v1296 = vsub.s32 %v610, %v1295
  %v1297 = vrot.slane %v890, %v1296
  %vm1306 = vcmask 57344
  %1307 = vst.msk [vmem:[%s13] sm:$0x1] %vm1306, %v1269
  %1308 = vst.msk [vmem:[%s13 + $0x8] sm:$0x1] %vm1306, %v1273
  %1309 = vst.msk [vmem:[%s13 + $0x10] sm:$0x1] %vm1306, %v1277
  %1310 = vst.msk [vmem:[%s13 + $0x18] sm:$0x1] %vm1306, %v1281
  %1311 = vst.msk [vmem:[%s13 + $0x20] sm:$0x1] %vm1306, %v1285
  %1312 = vst.msk [vmem:[%s13 + $0x28] sm:$0x1] %vm1306, %v1289
  %1313 = vst.msk [vmem:[%s13 + $0x30] sm:$0x1] %vm1306, %v1293
  %1314 = vst.msk [vmem:[%s13 + $0x38] sm:$0x1] %vm1306, %v1297
  %1315 = vmatprep.subr.mxu0 0.0
  %1316 = vmatpush1.msra.mxu0 %v362
  %1317 = vmatprep.subr.mxu0 0.0
  %1318 = vmatpush1.msra.mxu0 %v363
  %1319 = vmatprep.subr.mxu0 0.0
  %1320 = vmatpush1.msra.mxu0 %v364
  %1321 = vmatprep.subr.mxu0 0.0
  %1322 = vmatpush1.msra.mxu0 %v365
  %1323 = vmatprep.subr.mxu0 0.0
  %1324 = vmatpush1.msra.mxu0 0.0
  %1325 = vmatprep.subr.mxu0 0.0
  %1326 = vmatpush1.msra.mxu0 0.0
  %1327 = vmatprep.subr.mxu0 0.0
  %1328 = vmatpush1.msra.mxu0 0.0
  %1329 = vmatprep.subr.mxu0 0.0
  %1330 = vmatpush1.msra.mxu0 0.0
  %1331 = vmatprep.subr.mxu0 0.0
  %1332 = vmatpush1.msra.mxu0 0.0
  %1333 = vmatprep.subr.mxu0 0.0
  %1334 = vmatpush1.msra.mxu0 0.0
  %1335 = vmatprep.subr.mxu0 0.0
  %1336 = vmatpush1.msra.mxu0 0.0
  %1337 = vmatprep.subr.mxu0 0.0
  %1338 = vmatpush1.msra.mxu0 0.0
  %1339 = vmatprep.subr.mxu0 0.0
  %1340 = vmatpush1.msra.mxu0 0.0
  %1341 = vmatprep.subr.mxu0 0.0
  %1342 = vmatpush1.msra.mxu0 0.0
  %1343 = vmatprep.subr.mxu0 0.0
  %1344 = vmatpush1.msra.mxu0 0.0
  %1345 = vmatprep.subr.mxu0 0.0
  %1346 = vmatpush1.msra.mxu0 0.0
  %1347 = vmatprep.subr.mxu0 0.0
  %1348 = vmatpush1.msra.mxu0 0.0
  %1349 = vmatprep.subr.mxu0 0.0
  %1350 = vmatpush1.msra.mxu0 0.0
  %1351 = vmatprep.subr.mxu0 0.0
  %1352 = vmatpush1.msra.mxu0 0.0
  %1353 = vmatprep.subr.mxu0 0.0
  %1354 = vmatpush1.msra.mxu0 0.0
  %1355 = vmatprep.subr.mxu0 0.0
  %1356 = vmatpush1.msra.mxu0 0.0
  %1357 = vmatprep.subr.mxu0 0.0
  %1358 = vmatpush1.msra.mxu0 0.0
  %1359 = vmatprep.subr.mxu0 0.0
  %1360 = vmatpush1.msra.mxu0 0.0
  %1361 = vmatprep.subr.mxu0 0.0
  %1362 = vmatpush1.msra.mxu0 0.0
  %1363 = vmatprep.subr.mxu0 0.0
  %1364 = vmatpush1.msra.mxu0 0.0
  %1365 = vmatprep.subr.mxu0 0.0
  %1366 = vmatpush1.msra.mxu0 0.0
  %1367 = vmatprep.subr.mxu0 0.0
  %1368 = vmatpush1.msra.mxu0 0.0
  %1369 = vmatprep.subr.mxu0 0.0
  %1370 = vmatpush1.msra.mxu0 0.0
  %1371 = vmatprep.subr.mxu0 0.0
  %1372 = vmatpush1.msra.mxu0 0.0
  %1373 = vmatprep.subr.mxu0 0.0
  %1374 = vmatpush1.msra.mxu0 0.0
  %1375 = vmatprep.subr.mxu0 0.0
  %1376 = vmatpush1.msra.mxu0 0.0
  %1377 = vmatprep.subr.mxu0 0.0
  %1378 = vmatpush1.msra.mxu0 0.0
  %1379 = vmatprep.mubr.f32.mxu0 0.0
  %1380 = vmatmul.mubr.f32.gmra.mrb[0].mxu0 %v1127
  %v1381 = vpop.f32.mrb[0].mxu0
  %v1382 = vadd.f32 0.0, %v1381
  %v1383 = vpop.f32.mrb[0].mxu0
  %1384 = vdwg.mxu0
  %v1386 = vcombine.high %v1382, %v1382
  %v1388 = vunpack.c.l.s4 1966171168
  %v1389 = vunpack.c.0.s8 %v1388
  %v1390 = vlaneseq
  %v1391 = vshrl.u32 %v1390, 7
  %v1392 = vsub.s32 %v1389, %v1391
  %v1393 = vrot.slane %v1382, %v1392
  %v1395 = vunpack.c.l.s4 1966171168
  %v1396 = vunpack.c.0.s8 %v1395
  %v1397 = vlaneseq
  %v1398 = vshrl.u32 %v1397, 7
  %v1399 = vsub.s32 %v1396, %v1398
  %v1400 = vrot.slane %v1386, %v1399
  %v1401 = vcombine.high %v1393, %v1393
  %v1402 = vcombine.high %v1400, %v1400
  %v1404 = vunpack.c.l.s4 1966171168
  %v1405 = vunpack.c.0.s8 %v1404
  %v1406 = vlaneseq
  %v1407 = vshrl.u32 %v1406, 7
  %v1408 = vsub.s32 %v1405, %v1407
  %v1409 = vrot.slane %v1393, %v1408
  %v1411 = vunpack.c.l.s4 1966171168
  %v1412 = vunpack.c.0.s8 %v1411
  %v1413 = vlaneseq
  %v1414 = vshrl.u32 %v1413, 7
  %v1415 = vsub.s32 %v1412, %v1414
  %v1416 = vrot.slane %v1400, %v1415
  %v1418 = vunpack.c.l.s4 1966171168
  %v1419 = vunpack.c.0.s8 %v1418
  %v1420 = vlaneseq
  %v1421 = vshrl.u32 %v1420, 7
  %v1422 = vsub.s32 %v1419, %v1421
  %v1423 = vrot.slane %v1401, %v1422
  %v1425 = vunpack.c.l.s4 1966171168
  %v1426 = vunpack.c.0.s8 %v1425
  %v1427 = vlaneseq
  %v1428 = vshrl.u32 %v1427, 7
  %v1429 = vsub.s32 %v1426, %v1428
  %v1430 = vrot.slane %v1402, %v1429
  %v1431 = vcombine.high %v1409, %v1409
  %v1432 = vcombine.high %v1416, %v1416
  %v1433 = vcombine.high %v1423, %v1423
  %v1434 = vcombine.high %v1430, %v1430
  %v1435 = vlaneseq
  %v1436 = vshrl.u32 %v1435, 7
  %v1437 = vsub.s32 0, %v1436
  %v1438 = vrot.slane %v1409, %v1437
  %v1439 = vlaneseq
  %v1440 = vshrl.u32 %v1439, 7
  %v1441 = vsub.s32 0, %v1440
  %v1442 = vrot.slane %v1423, %v1441
  %v1443 = vlaneseq
  %v1444 = vshrl.u32 %v1443, 7
  %v1445 = vsub.s32 0, %v1444
  %v1446 = vrot.slane %v1431, %v1445
  %v1447 = vlaneseq
  %v1448 = vshrl.u32 %v1447, 7
  %v1449 = vsub.s32 0, %v1448
  %v1450 = vrot.slane %v1433, %v1449
  %v1451 = vlaneseq
  %v1452 = vshrl.u32 %v1451, 7
  %v1453 = vsub.s32 0, %v1452
  %v1454 = vrot.slane %v1416, %v1453
  %v1455 = vlaneseq
  %v1456 = vshrl.u32 %v1455, 7
  %v1457 = vsub.s32 0, %v1456
  %v1458 = vrot.slane %v1430, %v1457
  %v1459 = vlaneseq
  %v1460 = vshrl.u32 %v1459, 7
  %v1461 = vsub.s32 0, %v1460
  %v1462 = vrot.slane %v1432, %v1461
  %v1463 = vlaneseq
  %v1464 = vshrl.u32 %v1463, 7
  %v1465 = vsub.s32 0, %v1464
  %v1466 = vrot.slane %v1434, %v1465
  %v1475 = vadd.f32 %v154, %v1438
  %v1476 = vadd.f32 %v159, %v1442
  %v1477 = vadd.f32 %v164, %v1446
  %v1478 = vadd.f32 %v169, %v1450
  %v1479 = vadd.f32 %v174, %v1454
  %v1480 = vadd.f32 %v179, %v1458
  %v1481 = vadd.f32 %v184, %v1462
  %v1482 = vadd.f32 %v189, %v1466
  %v1483 = vtanh.pop %v1475
  %v1484 = vtanh.pop %v1476
  %v1485 = vtanh.pop %v1477
  %v1486 = vtanh.pop %v1478
  %v1487 = vtanh.pop %v1479
  %v1488 = vtanh.pop %v1480
  %v1489 = vtanh.pop %v1481
  %v1490 = vtanh.pop %v1482
  %v1491 = vmul.f32 %v1483, %v566
  %v1492 = vmul.f32 %v1484, %v566
  %v1493 = vmul.f32 %v1485, %v566
  %v1494 = vmul.f32 %v1486, %v566
  %v1495 = vmul.f32 %v1487, %v566
  %v1496 = vmul.f32 %v1488, %v566
  %v1497 = vmul.f32 %v1489, %v566
  %v1498 = vmul.f32 %v1490, %v566
  %v1499 = vsel %vm576, %v1491, 0.0
  %1500 = vadd.xlane.f32.xlu0 %v1499
  %v1501 = vpop.xlane.xlu0 %1500
  %v1502 = vsel %vm576, %v1492, 0.0
  %1503 = vadd.xlane.f32.xlu0 %v1502
  %v1504 = vpop.xlane.xlu0 %1503
  %v1505 = vsel %vm576, %v1493, 0.0
  %1506 = vadd.xlane.f32.xlu0 %v1505
  %v1507 = vpop.xlane.xlu0 %1506
  %v1508 = vsel %vm576, %v1494, 0.0
  %1509 = vadd.xlane.f32.xlu0 %v1508
  %v1510 = vpop.xlane.xlu0 %1509
  %v1511 = vsel %vm576, %v1495, 0.0
  %1512 = vadd.xlane.f32.xlu0 %v1511
  %v1513 = vpop.xlane.xlu0 %1512
  %v1514 = vsel %vm576, %v1496, 0.0
  %1515 = vadd.xlane.f32.xlu0 %v1514
  %v1516 = vpop.xlane.xlu0 %1515
  %v1517 = vsel %vm576, %v1497, 0.0
  %1518 = vadd.xlane.f32.xlu0 %v1517
  %v1519 = vpop.xlane.xlu0 %1518
  %v1520 = vsel %vm576, %v1498, 0.0
  %1521 = vadd.xlane.f32.xlu0 %v1520
  %v1522 = vpop.xlane.xlu0 %1521
  %v1531 = vlaneseq
  %v1532 = vshrl.u32 %v1531, 7
  %v1533 = vsub.s32 %v610, %v1532
  %v1534 = vrot.slane %v1501, %v1533
  %v1535 = vlaneseq
  %v1536 = vshrl.u32 %v1535, 7
  %v1537 = vsub.s32 %v610, %v1536
  %v1538 = vrot.slane %v1504, %v1537
  %v1539 = vlaneseq
  %v1540 = vshrl.u32 %v1539, 7
  %v1541 = vsub.s32 %v610, %v1540
  %v1542 = vrot.slane %v1507, %v1541
  %v1543 = vlaneseq
  %v1544 = vshrl.u32 %v1543, 7
  %v1545 = vsub.s32 %v610, %v1544
  %v1546 = vrot.slane %v1510, %v1545
  %v1547 = vlaneseq
  %v1548 = vshrl.u32 %v1547, 7
  %v1549 = vsub.s32 %v610, %v1548
  %v1550 = vrot.slane %v1513, %v1549
  %v1551 = vlaneseq
  %v1552 = vshrl.u32 %v1551, 7
  %v1553 = vsub.s32 %v610, %v1552
  %v1554 = vrot.slane %v1516, %v1553
  %v1555 = vlaneseq
  %v1556 = vshrl.u32 %v1555, 7
  %v1557 = vsub.s32 %v610, %v1556
  %v1558 = vrot.slane %v1519, %v1557
  %v1559 = vlaneseq
  %v1560 = vshrl.u32 %v1559, 7
  %v1561 = vsub.s32 %v610, %v1560
  %v1562 = vrot.slane %v1522, %v1561
  %v1563 = vsel %vm276, %v1538, %v1534
  %v1564 = vsel %vm278, %v1542, %v1563
  %v1565 = vsel %vm280, %v1546, %v1564
  %v1566 = vsel %vm282, %v1550, %v1565
  %v1567 = vsel %vm284, %v1554, %v1566
  %v1568 = vsel %vm286, %v1558, %v1567
  %v1569 = vsel %vm288, %v1562, %v1568
  %v1571 = vsel %vm651, %v1569, -inf
  %1572 = vmax.xlane.f32.xlu0 %v1571
  %v1573 = vpop.xlane.xlu0 %1572
  %v1575 = vlaneseq
  %v1576 = vshrl.u32 %v1575, 7
  %v1577 = vsub.s32 0, %v1576
  %v1578 = vrot.slane %v1573, %v1577
  %v1579 = vlaneseq
  %v1580 = vshrl.u32 %v1579, 7
  %v1581 = vsub.s32 1, %v1580
  %v1582 = vrot.slane %v1573, %v1581
  %v1583 = vlaneseq
  %v1584 = vshrl.u32 %v1583, 7
  %v1585 = vsub.s32 2, %v1584
  %v1586 = vrot.slane %v1573, %v1585
  %v1587 = vlaneseq
  %v1588 = vshrl.u32 %v1587, 7
  %v1589 = vsub.s32 3, %v1588
  %v1590 = vrot.slane %v1573, %v1589
  %v1591 = vlaneseq
  %v1592 = vshrl.u32 %v1591, 7
  %v1593 = vsub.s32 4, %v1592
  %v1594 = vrot.slane %v1573, %v1593
  %v1595 = vlaneseq
  %v1596 = vshrl.u32 %v1595, 7
  %v1597 = vsub.s32 5, %v1596
  %v1598 = vrot.slane %v1573, %v1597
  %v1599 = vlaneseq
  %v1600 = vshrl.u32 %v1599, 7
  %v1601 = vsub.s32 6, %v1600
  %v1602 = vrot.slane %v1573, %v1601
  %v1603 = vlaneseq
  %v1604 = vshrl.u32 %v1603, 7
  %v1605 = vsub.s32 7, %v1604
  %v1606 = vrot.slane %v1573, %v1605
  %v1615 = vsub.f32 %v1501, %v1578
  %v1616 = vsub.f32 %v1504, %v1582
  %v1617 = vsub.f32 %v1507, %v1586
  %v1618 = vsub.f32 %v1510, %v1590
  %v1619 = vsub.f32 %v1513, %v1594
  %v1620 = vsub.f32 %v1516, %v1598
  %v1621 = vsub.f32 %v1519, %v1602
  %v1622 = vsub.f32 %v1522, %v1606
  %v1623 = vmul.f32 %v1615, 1.442695
  %v1624 = vpow.pop %v1623
  %v1625 = vmul.f32 %v1616, 1.442695
  %v1626 = vpow.pop %v1625
  %v1627 = vmul.f32 %v1617, 1.442695
  %v1628 = vpow.pop %v1627
  %v1629 = vmul.f32 %v1618, 1.442695
  %v1630 = vpow.pop %v1629
  %v1631 = vmul.f32 %v1619, 1.442695
  %v1632 = vpow.pop %v1631
  %v1633 = vmul.f32 %v1620, 1.442695
  %v1634 = vpow.pop %v1633
  %v1635 = vmul.f32 %v1621, 1.442695
  %v1636 = vpow.pop %v1635
  %v1637 = vmul.f32 %v1622, 1.442695
  %v1638 = vpow.pop %v1637
  %1647 = vset.pattern.permute.xlu0 0
  %1648 = vperm.xlu0 %1647, %v1624
  %v1649 = vpop.permute.xlu0 %1648
  %1650 = vset.pattern.permute.xlu0 0
  %1651 = vperm.xlu0 %1650, %v1626
  %v1652 = vpop.permute.xlu0 %1651
  %1653 = vset.pattern.permute.xlu0 0
  %1654 = vperm.xlu0 %1653, %v1628
  %v1655 = vpop.permute.xlu0 %1654
  %1656 = vset.pattern.permute.xlu0 0
  %1657 = vperm.xlu0 %1656, %v1630
  %v1658 = vpop.permute.xlu0 %1657
  %1659 = vset.pattern.permute.xlu0 0
  %1660 = vperm.xlu0 %1659, %v1632
  %v1661 = vpop.permute.xlu0 %1660
  %1662 = vset.pattern.permute.xlu0 0
  %1663 = vperm.xlu0 %1662, %v1634
  %v1664 = vpop.permute.xlu0 %1663
  %1665 = vset.pattern.permute.xlu0 0
  %1666 = vperm.xlu0 %1665, %v1636
  %v1667 = vpop.permute.xlu0 %1666
  %1668 = vset.pattern.permute.xlu0 0
  %1669 = vperm.xlu0 %1668, %v1638
  %v1670 = vpop.permute.xlu0 %1669
  %v1671 = vlaneseq
  %v1672 = vshrl.u32 %v1671, 7
  %v1673 = vsub.s32 %v610, %v1672
  %v1674 = vrot.slane %v1649, %v1673
  %v1675 = vlaneseq
  %v1676 = vshrl.u32 %v1675, 7
  %v1677 = vsub.s32 %v610, %v1676
  %v1678 = vrot.slane %v1652, %v1677
  %v1679 = vlaneseq
  %v1680 = vshrl.u32 %v1679, 7
  %v1681 = vsub.s32 %v610, %v1680
  %v1682 = vrot.slane %v1655, %v1681
  %v1683 = vlaneseq
  %v1684 = vshrl.u32 %v1683, 7
  %v1685 = vsub.s32 %v610, %v1684
  %v1686 = vrot.slane %v1658, %v1685
  %v1687 = vlaneseq
  %v1688 = vshrl.u32 %v1687, 7
  %v1689 = vsub.s32 %v610, %v1688
  %v1690 = vrot.slane %v1661, %v1689
  %v1691 = vlaneseq
  %v1692 = vshrl.u32 %v1691, 7
  %v1693 = vsub.s32 %v610, %v1692
  %v1694 = vrot.slane %v1664, %v1693
  %v1695 = vlaneseq
  %v1696 = vshrl.u32 %v1695, 7
  %v1697 = vsub.s32 %v610, %v1696
  %v1698 = vrot.slane %v1667, %v1697
  %v1699 = vlaneseq
  %v1700 = vshrl.u32 %v1699, 7
  %v1701 = vsub.s32 %v610, %v1700
  %v1702 = vrot.slane %v1670, %v1701
  %v1703 = vsel %vm276, %v1678, %v1674
  %v1704 = vsel %vm278, %v1682, %v1703
  %v1705 = vsel %vm280, %v1686, %v1704
  %v1706 = vsel %vm282, %v1690, %v1705
  %v1707 = vsel %vm284, %v1694, %v1706
  %v1708 = vsel %vm286, %v1698, %v1707
  %v1709 = vsel %vm288, %v1702, %v1708
  %v1711 = vsel %vm651, %v1709, 0.0
  %1712 = vadd.xlane.f32.xlu0 %v1711
  %v1713 = vpop.xlane.xlu0 %1712
  %v1715 = vlaneseq
  %v1716 = vshrl.u32 %v1715, 7
  %v1717 = vsub.s32 0, %v1716
  %v1718 = vrot.slane %v1713, %v1717
  %v1719 = vlaneseq
  %v1720 = vshrl.u32 %v1719, 7
  %v1721 = vsub.s32 1, %v1720
  %v1722 = vrot.slane %v1713, %v1721
  %v1723 = vlaneseq
  %v1724 = vshrl.u32 %v1723, 7
  %v1725 = vsub.s32 2, %v1724
  %v1726 = vrot.slane %v1713, %v1725
  %v1727 = vlaneseq
  %v1728 = vshrl.u32 %v1727, 7
  %v1729 = vsub.s32 3, %v1728
  %v1730 = vrot.slane %v1713, %v1729
  %v1731 = vlaneseq
  %v1732 = vshrl.u32 %v1731, 7
  %v1733 = vsub.s32 4, %v1732
  %v1734 = vrot.slane %v1713, %v1733
  %v1735 = vlaneseq
  %v1736 = vshrl.u32 %v1735, 7
  %v1737 = vsub.s32 5, %v1736
  %v1738 = vrot.slane %v1713, %v1737
  %v1739 = vlaneseq
  %v1740 = vshrl.u32 %v1739, 7
  %v1741 = vsub.s32 6, %v1740
  %v1742 = vrot.slane %v1713, %v1741
  %v1743 = vlaneseq
  %v1744 = vshrl.u32 %v1743, 7
  %v1745 = vsub.s32 7, %v1744
  %v1746 = vrot.slane %v1713, %v1745
  %v1755 = vrcp.pop %v1718
  %v1756 = vmul.f32 %v1624, %v1755
  %v1757 = vrcp.pop %v1722
  %v1758 = vmul.f32 %v1626, %v1757
  %v1759 = vrcp.pop %v1726
  %v1760 = vmul.f32 %v1628, %v1759
  %v1761 = vrcp.pop %v1730
  %v1762 = vmul.f32 %v1630, %v1761
  %v1763 = vrcp.pop %v1734
  %v1764 = vmul.f32 %v1632, %v1763
  %v1765 = vrcp.pop %v1738
  %v1766 = vmul.f32 %v1634, %v1765
  %v1767 = vrcp.pop %v1742
  %v1768 = vmul.f32 %v1636, %v1767
  %v1769 = vrcp.pop %v1746
  %v1770 = vmul.f32 %v1638, %v1769
  %1772 = vset.pattern.permute.xlu0 0
  %1773 = vperm.xlu0 %1772, %v1756
  %v1774 = vpop.permute.xlu0 %1773
  %1777 = vset.pattern.permute.xlu0 0
  %1778 = vperm.xlu0 %1777, %v1758
  %v1779 = vpop.permute.xlu0 %1778
  %1782 = vset.pattern.permute.xlu0 0
  %1783 = vperm.xlu0 %1782, %v1760
  %v1784 = vpop.permute.xlu0 %1783
  %1787 = vset.pattern.permute.xlu0 0
  %1788 = vperm.xlu0 %1787, %v1762
  %v1789 = vpop.permute.xlu0 %1788
  %1792 = vset.pattern.permute.xlu0 0
  %1793 = vperm.xlu0 %1792, %v1764
  %v1794 = vpop.permute.xlu0 %1793
  %1797 = vset.pattern.permute.xlu0 0
  %1798 = vperm.xlu0 %1797, %v1766
  %v1799 = vpop.permute.xlu0 %1798
  %1802 = vset.pattern.permute.xlu0 0
  %1803 = vperm.xlu0 %1802, %v1768
  %v1804 = vpop.permute.xlu0 %1803
  %1807 = vset.pattern.permute.xlu0 0
  %1808 = vperm.xlu0 %1807, %v1770
  %v1809 = vpop.permute.xlu0 %1808
  %v1811 = vmul.f32 %v43, %v1774
  %v1812 = vmul.f32 %v44, %v1779
  %v1813 = vmul.f32 %v45, %v1784
  %v1814 = vmul.f32 %v46, %v1789
  %v1815 = vmul.f32 %v47, %v1794
  %v1816 = vmul.f32 %v48, %v1799
  %v1817 = vmul.f32 %v49, %v1804
  %v1818 = vmul.f32 %v50, %v1809
  %v1819 = vsel %vm62, %v1811, 0.0
  %v1820 = vrot.slane %v1819, 4
  %v1821 = vadd.f32 %v1819, %v1820
  %v1822 = vrot.slane %v1821, 2
  %v1823 = vadd.f32 %v1821, %v1822
  %v1824 = vrot.slane %v1823, 1
  %v1825 = vadd.f32 %v1823, %v1824
  %v1826 = vsel %vm62, %v1812, 0.0
  %v1827 = vrot.slane %v1826, 4
  %v1828 = vadd.f32 %v1826, %v1827
  %v1829 = vrot.slane %v1828, 2
  %v1830 = vadd.f32 %v1828, %v1829
  %v1831 = vrot.slane %v1830, 1
  %v1832 = vadd.f32 %v1830, %v1831
  %v1833 = vsel %vm62, %v1813, 0.0
  %v1834 = vrot.slane %v1833, 4
  %v1835 = vadd.f32 %v1833, %v1834
  %v1836 = vrot.slane %v1835, 2
  %v1837 = vadd.f32 %v1835, %v1836
  %v1838 = vrot.slane %v1837, 1
  %v1839 = vadd.f32 %v1837, %v1838
  %v1840 = vsel %vm62, %v1814, 0.0
  %v1841 = vrot.slane %v1840, 4
  %v1842 = vadd.f32 %v1840, %v1841
  %v1843 = vrot.slane %v1842, 2
  %v1844 = vadd.f32 %v1842, %v1843
  %v1845 = vrot.slane %v1844, 1
  %v1846 = vadd.f32 %v1844, %v1845
  %v1847 = vsel %vm62, %v1815, 0.0
  %v1848 = vrot.slane %v1847, 4
  %v1849 = vadd.f32 %v1847, %v1848
  %v1850 = vrot.slane %v1849, 2
  %v1851 = vadd.f32 %v1849, %v1850
  %v1852 = vrot.slane %v1851, 1
  %v1853 = vadd.f32 %v1851, %v1852
  %v1854 = vsel %vm62, %v1816, 0.0
  %v1855 = vrot.slane %v1854, 4
  %v1856 = vadd.f32 %v1854, %v1855
  %v1857 = vrot.slane %v1856, 2
  %v1858 = vadd.f32 %v1856, %v1857
  %v1859 = vrot.slane %v1858, 1
  %v1860 = vadd.f32 %v1858, %v1859
  %v1861 = vsel %vm62, %v1817, 0.0
  %v1862 = vrot.slane %v1861, 4
  %v1863 = vadd.f32 %v1861, %v1862
  %v1864 = vrot.slane %v1863, 2
  %v1865 = vadd.f32 %v1863, %v1864
  %v1866 = vrot.slane %v1865, 1
  %v1867 = vadd.f32 %v1865, %v1866
  %v1868 = vsel %vm62, %v1818, 0.0
  %v1869 = vrot.slane %v1868, 4
  %v1870 = vadd.f32 %v1868, %v1869
  %v1871 = vrot.slane %v1870, 2
  %v1872 = vadd.f32 %v1870, %v1871
  %v1873 = vrot.slane %v1872, 1
  %v1874 = vadd.f32 %v1872, %v1873
  %v1875 = vld [vmem:[%s0 + $0x1] sm:$0x1]
  %v1876 = vld [vmem:[%s0 + $0x9] sm:$0x1]
  %v1877 = vld [vmem:[%s0 + $0x11] sm:$0x1]
  %v1878 = vld [vmem:[%s0 + $0x19] sm:$0x1]
  %v1879 = vld [vmem:[%s0 + $0x21] sm:$0x1]
  %v1880 = vld [vmem:[%s0 + $0x29] sm:$0x1]
  %v1881 = vld [vmem:[%s0 + $0x31] sm:$0x1]
  %v1882 = vld [vmem:[%s0 + $0x39] sm:$0x1]
  %v1891 = vrot.slane %v1876, 7
  %v1892 = vsel %vm276, %v1891, %v1875
  %v1893 = vrot.slane %v1877, 6
  %v1894 = vsel %vm278, %v1893, %v1892
  %v1895 = vrot.slane %v1878, 5
  %v1896 = vsel %vm280, %v1895, %v1894
  %v1897 = vrot.slane %v1879, 4
  %v1898 = vsel %vm282, %v1897, %v1896
  %v1899 = vrot.slane %v1880, 3
  %v1900 = vsel %vm284, %v1899, %v1898
  %v1901 = vrot.slane %v1881, 2
  %v1902 = vsel %vm286, %v1901, %v1900
  %v1903 = vrot.slane %v1882, 1
  %v1904 = vsel %vm288, %v1903, %v1902
  %1906 = vst.msk [vmem:[#allocation2] sm:$0xff] %vm576, %v1904
  %v1915 = vsel %vm276, %v1832, %v1825
  %v1916 = vsel %vm278, %v1839, %v1915
  %v1917 = vsel %vm280, %v1846, %v1916
  %v1918 = vsel %vm282, %v1853, %v1917
  %v1919 = vsel %vm284, %v1860, %v1918
  %v1920 = vsel %vm286, %v1867, %v1919
  %v1921 = vsel %vm288, %v1874, %v1920
  %1922 = vrot.lane.b32.xlu0 %v1921, 16
  %v1923 = vpop.permute.xlu0 %1922
  %1925 = vst.msk [vmem:[#allocation2] sm:$0xff] %vm1006, %v1923
  %1926 = vrot.lane.b32.xlu0 %v1117, 80
  %v1927 = vpop.permute.xlu0 %1926
  %1929 = vst.msk [vmem:[#allocation2] sm:$0xff] %vm1011, %v1927
  %v1930 = vld [vmem:[#allocation2] sm:$0xff]
  %v1932 = vsel %vm1020, %v1930, 0
  %1934 = vmatprep.subr.mxu0 0.0
  %1935 = vmatpush1.msra.mxu0 %v367
  %1936 = vmatprep.subr.mxu0 0.0
  %1937 = vmatpush1.msra.mxu0 %v368
  %1938 = vmatprep.subr.mxu0 0.0
  %1939 = vmatpush1.msra.mxu0 %v369
  %1940 = vmatprep.subr.mxu0 0.0
  %1941 = vmatpush1.msra.mxu0 %v370
  %1942 = vmatprep.subr.mxu0 0.0
  %1943 = vmatpush1.msra.mxu0 %v371
  %1944 = vmatprep.subr.mxu0 0.0
  %1945 = vmatpush1.msra.mxu0 %v372
  %1946 = vmatprep.subr.mxu0 0.0
  %1947 = vmatpush1.msra.mxu0 %v373
  %1948 = vmatprep.subr.mxu0 0.0
  %1949 = vmatpush1.msra.mxu0 %v374
  %1950 = vmatprep.subr.mxu0 0.0
  %1951 = vmatpush1.msra.mxu0 %v375
  %1952 = vmatprep.subr.mxu0 0.0
  %1953 = vmatpush1.msra.mxu0 %v376
  %1954 = vmatprep.subr.mxu0 0.0
  %1955 = vmatpush1.msra.mxu0 0.0
  %1956 = vmatprep.subr.mxu0 0.0
  %1957 = vmatpush1.msra.mxu0 0.0
  %1958 = vmatprep.subr.mxu0 0.0
  %1959 = vmatpush1.msra.mxu0 0.0
  %1960 = vmatprep.subr.mxu0 0.0
  %1961 = vmatpush1.msra.mxu0 0.0
  %1962 = vmatprep.subr.mxu0 0.0
  %1963 = vmatpush1.msra.mxu0 0.0
  %1964 = vmatprep.subr.mxu0 0.0
  %1965 = vmatpush1.msra.mxu0 0.0
  %1966 = vmatprep.subr.mxu0 0.0
  %1967 = vmatpush1.msra.mxu0 0.0
  %1968 = vmatprep.subr.mxu0 0.0
  %1969 = vmatpush1.msra.mxu0 0.0
  %1970 = vmatprep.subr.mxu0 0.0
  %1971 = vmatpush1.msra.mxu0 0.0
  %1972 = vmatprep.subr.mxu0 0.0
  %1973 = vmatpush1.msra.mxu0 0.0
  %1974 = vmatprep.subr.mxu0 0.0
  %1975 = vmatpush1.msra.mxu0 0.0
  %1976 = vmatprep.subr.mxu0 0.0
  %1977 = vmatpush1.msra.mxu0 0.0
  %1978 = vmatprep.subr.mxu0 0.0
  %1979 = vmatpush1.msra.mxu0 0.0
  %1980 = vmatprep.subr.mxu0 0.0
  %1981 = vmatpush1.msra.mxu0 0.0
  %1982 = vmatprep.subr.mxu0 0.0
  %1983 = vmatpush1.msra.mxu0 0.0
  %1984 = vmatprep.subr.mxu0 0.0
  %1985 = vmatpush1.msra.mxu0 0.0
  %1986 = vmatprep.subr.mxu0 0.0
  %1987 = vmatpush1.msra.mxu0 0.0
  %1988 = vmatprep.subr.mxu0 0.0
  %1989 = vmatpush1.msra.mxu0 0.0
  %1990 = vmatprep.subr.mxu0 0.0
  %1991 = vmatpush1.msra.mxu0 0.0
  %1992 = vmatprep.subr.mxu0 0.0
  %1993 = vmatpush1.msra.mxu0 0.0
  %1994 = vmatprep.subr.mxu0 0.0
  %1995 = vmatpush1.msra.mxu0 0.0
  %1996 = vmatprep.subr.mxu0 0.0
  %1997 = vmatpush1.msra.mxu0 0.0
  %1998 = vmatprep.mubr.f32.mxu0 0.0
  %1999 = vmatmul.mubr.f32.gmra.mrb[0].mxu0 %v1932
  %v2000 = vpop.f32.mrb[0].mxu0
  %v2001 = vadd.f32 %v1018, %v2000
  %v2002 = vpop.f32.mrb[0].mxu0
  %2003 = vdwg.mxu0
  %v2004 = vxor.u32 %v2001, 2147483648
  %v2005 = vmul.f32 %v2004, 1.442695
  %v2006 = vpow.pop %v2005
  %v2007 = vadd.f32 %v2006, 1.0
  %v2008 = vrcp.pop %v2007
  %v2009 = vmul.f32 1.0, %v2008
  %v2010 = vtanh.pop %v2001
  %v2011 = vmul.f32 %v2009, %v1111
  %2013 = vrot.lane.b32.xlu0 %v2010, 64
  %v2014 = vpop.permute.xlu0 %2013
  %v2016 = vmul.f32 %v2009, %v2014
  %2018 = vrot.lane.b32.xlu0 %v2016, 32
  %v2019 = vpop.permute.xlu0 %2018
  %v2021 = vadd.f32 %v2011, %v2019
  %v2022 = vtanh.pop %v2021
  %2024 = vrot.lane.b32.xlu0 %v2022, 64
  %v2025 = vpop.permute.xlu0 %2024
  %v2027 = vmul.f32 %v2009, %v2025
  %2029 = vrot.lane.b32.xlu0 %v2027, 32
  %v2030 = vpop.permute.xlu0 %2029
  %v2031 = vsel %vm62, %v2030, 0
  %2033 = vmatprep.subr.mxu0 0.0
  %2034 = vmatpush1.msra.mxu0 %v378
  %2035 = vmatprep.subr.mxu0 0.0
  %2036 = vmatpush1.msra.mxu0 %v379
  %2037 = vmatprep.subr.mxu0 0.0
  %2038 = vmatpush1.msra.mxu0 %v380
  %2039 = vmatprep.subr.mxu0 0.0
  %2040 = vmatpush1.msra.mxu0 %v381
  %2041 = vmatprep.subr.mxu0 0.0
  %2042 = vmatpush1.msra.mxu0 0.0
  %2043 = vmatprep.subr.mxu0 0.0
  %2044 = vmatpush1.msra.mxu0 0.0
  %2045 = vmatprep.subr.mxu0 0.0
  %2046 = vmatpush1.msra.mxu0 0.0
  %2047 = vmatprep.subr.mxu0 0.0
  %2048 = vmatpush1.msra.mxu0 0.0
  %2049 = vmatprep.subr.mxu0 0.0
  %2050 = vmatpush1.msra.mxu0 0.0
  %2051 = vmatprep.subr.mxu0 0.0
  %2052 = vmatpush1.msra.mxu0 0.0
  %2053 = vmatprep.subr.mxu0 0.0
  %2054 = vmatpush1.msra.mxu0 0.0
  %2055 = vmatprep.subr.mxu0 0.0
  %2056 = vmatpush1.msra.mxu0 0.0
  %2057 = vmatprep.subr.mxu0 0.0
  %2058 = vmatpush1.msra.mxu0 0.0
  %2059 = vmatprep.subr.mxu0 0.0
  %2060 = vmatpush1.msra.mxu0 0.0
  %2061 = vmatprep.subr.mxu0 0.0
  %2062 = vmatpush1.msra.mxu0 0.0
  %2063 = vmatprep.subr.mxu0 0.0
  %2064 = vmatpush1.msra.mxu0 0.0
  %2065 = vmatprep.subr.mxu0 0.0
  %2066 = vmatpush1.msra.mxu0 0.0
  %2067 = vmatprep.subr.mxu0 0.0
  %2068 = vmatpush1.msra.mxu0 0.0
  %2069 = vmatprep.subr.mxu0 0.0
  %2070 = vmatpush1.msra.mxu0 0.0
  %2071 = vmatprep.subr.mxu0 0.0
  %2072 = vmatpush1.msra.mxu0 0.0
  %2073 = vmatprep.subr.mxu0 0.0
  %2074 = vmatpush1.msra.mxu0 0.0
  %2075 = vmatprep.subr.mxu0 0.0
  %2076 = vmatpush1.msra.mxu0 0.0
  %2077 = vmatprep.subr.mxu0 0.0
  %2078 = vmatpush1.msra.mxu0 0.0
  %2079 = vmatprep.subr.mxu0 0.0
  %2080 = vmatpush1.msra.mxu0 0.0
  %2081 = vmatprep.subr.mxu0 0.0
  %2082 = vmatpush1.msra.mxu0 0.0
  %2083 = vmatprep.subr.mxu0 0.0
  %2084 = vmatpush1.msra.mxu0 0.0
  %2085 = vmatprep.subr.mxu0 0.0
  %2086 = vmatpush1.msra.mxu0 0.0
  %2087 = vmatprep.subr.mxu0 0.0
  %2088 = vmatpush1.msra.mxu0 0.0
  %2089 = vmatprep.subr.mxu0 0.0
  %2090 = vmatpush1.msra.mxu0 0.0
  %2091 = vmatprep.subr.mxu0 0.0
  %2092 = vmatpush1.msra.mxu0 0.0
  %2093 = vmatprep.subr.mxu0 0.0
  %2094 = vmatpush1.msra.mxu0 0.0
  %2095 = vmatprep.subr.mxu0 0.0
  %2096 = vmatpush1.msra.mxu0 0.0
  %2097 = vmatprep.mubr.f32.mxu0 0.0
  %2098 = vmatmul.mubr.f32.gmra.mrb[0].mxu0 %v2031
  %v2099 = vpop.f32.mrb[0].mxu0
  %v2100 = vadd.f32 %v1122, %v2099
  %v2101 = vpop.f32.mrb[0].mxu0
  %2102 = vdwg.mxu0
  %v2104 = vcombine.high %v2100, %v2100
  %v2106 = vunpack.c.l.s4 1966171168
  %v2107 = vunpack.c.0.s8 %v2106
  %v2108 = vlaneseq
  %v2109 = vshrl.u32 %v2108, 7
  %v2110 = vsub.s32 %v2107, %v2109
  %v2111 = vrot.slane %v2100, %v2110
  %v2113 = vunpack.c.l.s4 1966171168
  %v2114 = vunpack.c.0.s8 %v2113
  %v2115 = vlaneseq
  %v2116 = vshrl.u32 %v2115, 7
  %v2117 = vsub.s32 %v2114, %v2116
  %v2118 = vrot.slane %v2104, %v2117
  %v2119 = vcombine.high %v2111, %v2111
  %v2120 = vcombine.high %v2118, %v2118
  %v2122 = vunpack.c.l.s4 1966171168
  %v2123 = vunpack.c.0.s8 %v2122
  %v2124 = vlaneseq
  %v2125 = vshrl.u32 %v2124, 7
  %v2126 = vsub.s32 %v2123, %v2125
  %v2127 = vrot.slane %v2111, %v2126
  %v2129 = vunpack.c.l.s4 1966171168
  %v2130 = vunpack.c.0.s8 %v2129
  %v2131 = vlaneseq
  %v2132 = vshrl.u32 %v2131, 7
  %v2133 = vsub.s32 %v2130, %v2132
  %v2134 = vrot.slane %v2118, %v2133
  %v2136 = vunpack.c.l.s4 1966171168
  %v2137 = vunpack.c.0.s8 %v2136
  %v2138 = vlaneseq
  %v2139 = vshrl.u32 %v2138, 7
  %v2140 = vsub.s32 %v2137, %v2139
  %v2141 = vrot.slane %v2119, %v2140
  %v2143 = vunpack.c.l.s4 1966171168
  %v2144 = vunpack.c.0.s8 %v2143
  %v2145 = vlaneseq
  %v2146 = vshrl.u32 %v2145, 7
  %v2147 = vsub.s32 %v2144, %v2146
  %v2148 = vrot.slane %v2120, %v2147
  %v2149 = vcombine.high %v2127, %v2127
  %v2150 = vcombine.high %v2134, %v2134
  %v2151 = vcombine.high %v2141, %v2141
  %v2152 = vcombine.high %v2148, %v2148
  %2161 = vst.msk [vmem:[%s12 + $0x1] sm:$0x1] %vm1257, %v2127
  %2162 = vst.msk [vmem:[%s12 + $0x9] sm:$0x1] %vm1257, %v2141
  %2163 = vst.msk [vmem:[%s12 + $0x11] sm:$0x1] %vm1257, %v2149
  %2164 = vst.msk [vmem:[%s12 + $0x19] sm:$0x1] %vm1257, %v2151
  %2165 = vst.msk [vmem:[%s12 + $0x21] sm:$0x1] %vm1257, %v2134
  %2166 = vst.msk [vmem:[%s12 + $0x29] sm:$0x1] %vm1257, %v2148
  %2167 = vst.msk [vmem:[%s12 + $0x31] sm:$0x1] %vm1257, %v2150
  %2168 = vst.msk [vmem:[%s12 + $0x39] sm:$0x1] %vm1257, %v2152
  %v2169 = vlaneseq
  %v2170 = vshrl.u32 %v2169, 7
  %v2171 = vsub.s32 %v610, %v2170
  %v2172 = vrot.slane %v1774, %v2171
  %v2173 = vlaneseq
  %v2174 = vshrl.u32 %v2173, 7
  %v2175 = vsub.s32 %v610, %v2174
  %v2176 = vrot.slane %v1779, %v2175
  %v2177 = vlaneseq
  %v2178 = vshrl.u32 %v2177, 7
  %v2179 = vsub.s32 %v610, %v2178
  %v2180 = vrot.slane %v1784, %v2179
  %v2181 = vlaneseq
  %v2182 = vshrl.u32 %v2181, 7
  %v2183 = vsub.s32 %v610, %v2182
  %v2184 = vrot.slane %v1789, %v2183
  %v2185 = vlaneseq
  %v2186 = vshrl.u32 %v2185, 7
  %v2187 = vsub.s32 %v610, %v2186
  %v2188 = vrot.slane %v1794, %v2187
  %v2189 = vlaneseq
  %v2190 = vshrl.u32 %v2189, 7
  %v2191 = vsub.s32 %v610, %v2190
  %v2192 = vrot.slane %v1799, %v2191
  %v2193 = vlaneseq
  %v2194 = vshrl.u32 %v2193, 7
  %v2195 = vsub.s32 %v610, %v2194
  %v2196 = vrot.slane %v1804, %v2195
  %v2197 = vlaneseq
  %v2198 = vshrl.u32 %v2197, 7
  %v2199 = vsub.s32 %v610, %v2198
  %v2200 = vrot.slane %v1809, %v2199
  %2209 = vst.msk [vmem:[%s13 + $0x1] sm:$0x1] %vm1306, %v2172
  %2210 = vst.msk [vmem:[%s13 + $0x9] sm:$0x1] %vm1306, %v2176
  %2211 = vst.msk [vmem:[%s13 + $0x11] sm:$0x1] %vm1306, %v2180
  %2212 = vst.msk [vmem:[%s13 + $0x19] sm:$0x1] %vm1306, %v2184
  %2213 = vst.msk [vmem:[%s13 + $0x21] sm:$0x1] %vm1306, %v2188
  %2214 = vst.msk [vmem:[%s13 + $0x29] sm:$0x1] %vm1306, %v2192
  %2215 = vst.msk [vmem:[%s13 + $0x31] sm:$0x1] %vm1306, %v2196
  %2216 = vst.msk [vmem:[%s13 + $0x39] sm:$0x1] %vm1306, %v2200
  %2217 = vmatprep.subr.mxu0 0.0
  %2218 = vmatpush1.msra.mxu0 %v362
  %2219 = vmatprep.subr.mxu0 0.0
  %2220 = vmatpush1.msra.mxu0 %v363
  %2221 = vmatprep.subr.mxu0 0.0
  %2222 = vmatpush1.msra.mxu0 %v364
  %2223 = vmatprep.subr.mxu0 0.0
  %2224 = vmatpush1.msra.mxu0 %v365
  %2225 = vmatprep.subr.mxu0 0.0
  %2226 = vmatpush1.msra.mxu0 0.0
  %2227 = vmatprep.subr.mxu0 0.0
  %2228 = vmatpush1.msra.mxu0 0.0
  %2229 = vmatprep.subr.mxu0 0.0
  %2230 = vmatpush1.msra.mxu0 0.0
  %2231 = vmatprep.subr.mxu0 0.0
  %2232 = vmatpush1.msra.mxu0 0.0
  %2233 = vmatprep.subr.mxu0 0.0
  %2234 = vmatpush1.msra.mxu0 0.0
  %2235 = vmatprep.subr.mxu0 0.0
  %2236 = vmatpush1.msra.mxu0 0.0
  %2237 = vmatprep.subr.mxu0 0.0
  %2238 = vmatpush1.msra.mxu0 0.0
  %2239 = vmatprep.subr.mxu0 0.0
  %2240 = vmatpush1.msra.mxu0 0.0
  %2241 = vmatprep.subr.mxu0 0.0
  %2242 = vmatpush1.msra.mxu0 0.0
  %2243 = vmatprep.subr.mxu0 0.0
  %2244 = vmatpush1.msra.mxu0 0.0
  %2245 = vmatprep.subr.mxu0 0.0
  %2246 = vmatpush1.msra.mxu0 0.0
  %2247 = vmatprep.subr.mxu0 0.0
  %2248 = vmatpush1.msra.mxu0 0.0
  %2249 = vmatprep.subr.mxu0 0.0
  %2250 = vmatpush1.msra.mxu0 0.0
  %2251 = vmatprep.subr.mxu0 0.0
  %2252 = vmatpush1.msra.mxu0 0.0
  %2253 = vmatprep.subr.mxu0 0.0
  %2254 = vmatpush1.msra.mxu0 0.0
  %2255 = vmatprep.subr.mxu0 0.0
  %2256 = vmatpush1.msra.mxu0 0.0
  %2257 = vmatprep.subr.mxu0 0.0
  %2258 = vmatpush1.msra.mxu0 0.0
  %2259 = vmatprep.subr.mxu0 0.0
  %2260 = vmatpush1.msra.mxu0 0.0
  %2261 = vmatprep.subr.mxu0 0.0
  %2262 = vmatpush1.msra.mxu0 0.0
  %2263 = vmatprep.subr.mxu0 0.0
  %2264 = vmatpush1.msra.mxu0 0.0
  %2265 = vmatprep.subr.mxu0 0.0
  %2266 = vmatpush1.msra.mxu0 0.0
  %2267 = vmatprep.subr.mxu0 0.0
  %2268 = vmatpush1.msra.mxu0 0.0
  %2269 = vmatprep.subr.mxu0 0.0
  %2270 = vmatpush1.msra.mxu0 0.0
  %2271 = vmatprep.subr.mxu0 0.0
  %2272 = vmatpush1.msra.mxu0 0.0
  %2273 = vmatprep.subr.mxu0 0.0
  %2274 = vmatpush1.msra.mxu0 0.0
  %2275 = vmatprep.subr.mxu0 0.0
  %2276 = vmatpush1.msra.mxu0 0.0
  %2277 = vmatprep.subr.mxu0 0.0
  %2278 = vmatpush1.msra.mxu0 0.0
  %2279 = vmatprep.subr.mxu0 0.0
  %2280 = vmatpush1.msra.mxu0 0.0
  %2281 = vmatprep.mubr.f32.mxu0 0.0
  %2282 = vmatmul.mubr.f32.gmra.mrb[0].mxu0 %v2031
  %v2283 = vpop.f32.mrb[0].mxu0
  %v2284 = vadd.f32 0.0, %v2283
  %v2285 = vpop.f32.mrb[0].mxu0
  %2286 = vdwg.mxu0
  %v2288 = vcombine.high %v2284, %v2284
  %v2290 = vunpack.c.l.s4 1966171168
  %v2291 = vunpack.c.0.s8 %v2290
  %v2292 = vlaneseq
  %v2293 = vshrl.u32 %v2292, 7
  %v2294 = vsub.s32 %v2291, %v2293
  %v2295 = vrot.slane %v2284, %v2294
  %v2297 = vunpack.c.l.s4 1966171168
  %v2298 = vunpack.c.0.s8 %v2297
  %v2299 = vlaneseq
  %v2300 = vshrl.u32 %v2299, 7
  %v2301 = vsub.s32 %v2298, %v2300
  %v2302 = vrot.slane %v2288, %v2301
  %v2303 = vcombine.high %v2295, %v2295
  %v2304 = vcombine.high %v2302, %v2302
  %v2306 = vunpack.c.l.s4 1966171168
  %v2307 = vunpack.c.0.s8 %v2306
  %v2308 = vlaneseq
  %v2309 = vshrl.u32 %v2308, 7
  %v2310 = vsub.s32 %v2307, %v2309
  %v2311 = vrot.slane %v2295, %v2310
  %v2313 = vunpack.c.l.s4 1966171168
  %v2314 = vunpack.c.0.s8 %v2313
  %v2315 = vlaneseq
  %v2316 = vshrl.u32 %v2315, 7
  %v2317 = vsub.s32 %v2314, %v2316
  %v2318 = vrot.slane %v2302, %v2317
  %v2320 = vunpack.c.l.s4 1966171168
  %v2321 = vunpack.c.0.s8 %v2320
  %v2322 = vlaneseq
  %v2323 = vshrl.u32 %v2322, 7
  %v2324 = vsub.s32 %v2321, %v2323
  %v2325 = vrot.slane %v2303, %v2324
  %v2327 = vunpack.c.l.s4 1966171168
  %v2328 = vunpack.c.0.s8 %v2327
  %v2329 = vlaneseq
  %v2330 = vshrl.u32 %v2329, 7
  %v2331 = vsub.s32 %v2328, %v2330
  %v2332 = vrot.slane %v2304, %v2331
  %v2333 = vcombine.high %v2311, %v2311
  %v2334 = vcombine.high %v2318, %v2318
  %v2335 = vcombine.high %v2325, %v2325
  %v2336 = vcombine.high %v2332, %v2332
  %v2337 = vlaneseq
  %v2338 = vshrl.u32 %v2337, 7
  %v2339 = vsub.s32 0, %v2338
  %v2340 = vrot.slane %v2311, %v2339
  %v2341 = vlaneseq
  %v2342 = vshrl.u32 %v2341, 7
  %v2343 = vsub.s32 0, %v2342
  %v2344 = vrot.slane %v2325, %v2343
  %v2345 = vlaneseq
  %v2346 = vshrl.u32 %v2345, 7
  %v2347 = vsub.s32 0, %v2346
  %v2348 = vrot.slane %v2333, %v2347
  %v2349 = vlaneseq
  %v2350 = vshrl.u32 %v2349, 7
  %v2351 = vsub.s32 0, %v2350
  %v2352 = vrot.slane %v2335, %v2351
  %v2353 = vlaneseq
  %v2354 = vshrl.u32 %v2353, 7
  %v2355 = vsub.s32 0, %v2354
  %v2356 = vrot.slane %v2318, %v2355
  %v2357 = vlaneseq
  %v2358 = vshrl.u32 %v2357, 7
  %v2359 = vsub.s32 0, %v2358
  %v2360 = vrot.slane %v2332, %v2359
  %v2361 = vlaneseq
  %v2362 = vshrl.u32 %v2361, 7
  %v2363 = vsub.s32 0, %v2362
  %v2364 = vrot.slane %v2334, %v2363
  %v2365 = vlaneseq
  %v2366 = vshrl.u32 %v2365, 7
  %v2367 = vsub.s32 0, %v2366
  %v2368 = vrot.slane %v2336, %v2367
  %v2377 = vadd.f32 %v154, %v2340
  %v2378 = vadd.f32 %v159, %v2344
  %v2379 = vadd.f32 %v164, %v2348
  %v2380 = vadd.f32 %v169, %v2352
  %v2381 = vadd.f32 %v174, %v2356
  %v2382 = vadd.f32 %v179, %v2360
  %v2383 = vadd.f32 %v184, %v2364
  %v2384 = vadd.f32 %v189, %v2368
  %v2385 = vtanh.pop %v2377
  %v2386 = vtanh.pop %v2378
  %v2387 = vtanh.pop %v2379
  %v2388 = vtanh.pop %v2380
  %v2389 = vtanh.pop %v2381
  %v2390 = vtanh.pop %v2382
  %v2391 = vtanh.pop %v2383
  %v2392 = vtanh.pop %v2384
  %v2393 = vmul.f32 %v2385, %v566
  %v2394 = vmul.f32 %v2386, %v566
  %v2395 = vmul.f32 %v2387, %v566
  %v2396 = vmul.f32 %v2388, %v566
  %v2397 = vmul.f32 %v2389, %v566
  %v2398 = vmul.f32 %v2390, %v566
  %v2399 = vmul.f32 %v2391, %v566
  %v2400 = vmul.f32 %v2392, %v566
  %v2401 = vsel %vm576, %v2393, 0.0
  %2402 = vadd.xlane.f32.xlu0 %v2401
  %v2403 = vpop.xlane.xlu0 %2402
  %v2404 = vsel %vm576, %v2394, 0.0
  %2405 = vadd.xlane.f32.xlu0 %v2404
  %v2406 = vpop.xlane.xlu0 %2405
  %v2407 = vsel %vm576, %v2395, 0.0
  %2408 = vadd.xlane.f32.xlu0 %v2407
  %v2409 = vpop.xlane.xlu0 %2408
  %v2410 = vsel %vm576, %v2396, 0.0
  %2411 = vadd.xlane.f32.xlu0 %v2410
  %v2412 = vpop.xlane.xlu0 %2411
  %v2413 = vsel %vm576, %v2397, 0.0
  %2414 = vadd.xlane.f32.xlu0 %v2413
  %v2415 = vpop.xlane.xlu0 %2414
  %v2416 = vsel %vm576, %v2398, 0.0
  %2417 = vadd.xlane.f32.xlu0 %v2416
  %v2418 = vpop.xlane.xlu0 %2417
  %v2419 = vsel %vm576, %v2399, 0.0
  %2420 = vadd.xlane.f32.xlu0 %v2419
  %v2421 = vpop.xlane.xlu0 %2420
  %v2422 = vsel %vm576, %v2400, 0.0
  %2423 = vadd.xlane.f32.xlu0 %v2422
  %v2424 = vpop.xlane.xlu0 %2423
  %v2433 = vlaneseq
  %v2434 = vshrl.u32 %v2433, 7
  %v2435 = vsub.s32 %v610, %v2434
  %v2436 = vrot.slane %v2403, %v2435
  %v2437 = vlaneseq
  %v2438 = vshrl.u32 %v2437, 7
  %v2439 = vsub.s32 %v610, %v2438
  %v2440 = vrot.slane %v2406, %v2439
  %v2441 = vlaneseq
  %v2442 = vshrl.u32 %v2441, 7
  %v2443 = vsub.s32 %v610, %v2442
  %v2444 = vrot.slane %v2409, %v2443
  %v2445 = vlaneseq
  %v2446 = vshrl.u32 %v2445, 7
  %v2447 = vsub.s32 %v610, %v2446
  %v2448 = vrot.slane %v2412, %v2447
  %v2449 = vlaneseq
  %v2450 = vshrl.u32 %v2449, 7
  %v2451 = vsub.s32 %v610, %v2450
  %v2452 = vrot.slane %v2415, %v2451
  %v2453 = vlaneseq
  %v2454 = vshrl.u32 %v2453, 7
  %v2455 = vsub.s32 %v610, %v2454
  %v2456 = vrot.slane %v2418, %v2455
  %v2457 = vlaneseq
  %v2458 = vshrl.u32 %v2457, 7
  %v2459 = vsub.s32 %v610, %v2458
  %v2460 = vrot.slane %v2421, %v2459
  %v2461 = vlaneseq
  %v2462 = vshrl.u32 %v2461, 7
  %v2463 = vsub.s32 %v610, %v2462
  %v2464 = vrot.slane %v2424, %v2463
  %v2465 = vsel %vm276, %v2440, %v2436
  %v2466 = vsel %vm278, %v2444, %v2465
  %v2467 = vsel %vm280, %v2448, %v2466
  %v2468 = vsel %vm282, %v2452, %v2467
  %v2469 = vsel %vm284, %v2456, %v2468
  %v2470 = vsel %vm286, %v2460, %v2469
  %v2471 = vsel %vm288, %v2464, %v2470
  %v2473 = vsel %vm651, %v2471, -inf
  %2474 = vmax.xlane.f32.xlu0 %v2473
  %v2475 = vpop.xlane.xlu0 %2474
  %v2477 = vlaneseq
  %v2478 = vshrl.u32 %v2477, 7
  %v2479 = vsub.s32 0, %v2478
  %v2480 = vrot.slane %v2475, %v2479
  %v2481 = vlaneseq
  %v2482 = vshrl.u32 %v2481, 7
  %v2483 = vsub.s32 1, %v2482
  %v2484 = vrot.slane %v2475, %v2483
  %v2485 = vlaneseq
  %v2486 = vshrl.u32 %v2485, 7
  %v2487 = vsub.s32 2, %v2486
  %v2488 = vrot.slane %v2475, %v2487
  %v2489 = vlaneseq
  %v2490 = vshrl.u32 %v2489, 7
  %v2491 = vsub.s32 3, %v2490
  %v2492 = vrot.slane %v2475, %v2491
  %v2493 = vlaneseq
  %v2494 = vshrl.u32 %v2493, 7
  %v2495 = vsub.s32 4, %v2494
  %v2496 = vrot.slane %v2475, %v2495
  %v2497 = vlaneseq
  %v2498 = vshrl.u32 %v2497, 7
  %v2499 = vsub.s32 5, %v2498
  %v2500 = vrot.slane %v2475, %v2499
  %v2501 = vlaneseq
  %v2502 = vshrl.u32 %v2501, 7
  %v2503 = vsub.s32 6, %v2502
  %v2504 = vrot.slane %v2475, %v2503
  %v2505 = vlaneseq
  %v2506 = vshrl.u32 %v2505, 7
  %v2507 = vsub.s32 7, %v2506
  %v2508 = vrot.slane %v2475, %v2507
  %v2517 = vsub.f32 %v2403, %v2480
  %v2518 = vsub.f32 %v2406, %v2484
  %v2519 = vsub.f32 %v2409, %v2488
  %v2520 = vsub.f32 %v2412, %v2492
  %v2521 = vsub.f32 %v2415, %v2496
  %v2522 = vsub.f32 %v2418, %v2500
  %v2523 = vsub.f32 %v2421, %v2504
  %v2524 = vsub.f32 %v2424, %v2508
  %v2525 = vmul.f32 %v2517, 1.442695
  %v2526 = vpow.pop %v2525
  %v2527 = vmul.f32 %v2518, 1.442695
  %v2528 = vpow.pop %v2527
  %v2529 = vmul.f32 %v2519, 1.442695
  %v2530 = vpow.pop %v2529
  %v2531 = vmul.f32 %v2520, 1.442695
  %v2532 = vpow.pop %v2531
  %v2533 = vmul.f32 %v2521, 1.442695
  %v2534 = vpow.pop %v2533
  %v2535 = vmul.f32 %v2522, 1.442695
  %v2536 = vpow.pop %v2535
  %v2537 = vmul.f32 %v2523, 1.442695
  %v2538 = vpow.pop %v2537
  %v2539 = vmul.f32 %v2524, 1.442695
  %v2540 = vpow.pop %v2539
  %2549 = vset.pattern.permute.xlu0 0
  %2550 = vperm.xlu0 %2549, %v2526
  %v2551 = vpop.permute.xlu0 %2550
  %2552 = vset.pattern.permute.xlu0 0
  %2553 = vperm.xlu0 %2552, %v2528
  %v2554 = vpop.permute.xlu0 %2553
  %2555 = vset.pattern.permute.xlu0 0
  %2556 = vperm.xlu0 %2555, %v2530
  %v2557 = vpop.permute.xlu0 %2556
  %2558 = vset.pattern.permute.xlu0 0
  %2559 = vperm.xlu0 %2558, %v2532
  %v2560 = vpop.permute.xlu0 %2559
  %2561 = vset.pattern.permute.xlu0 0
  %2562 = vperm.xlu0 %2561, %v2534
  %v2563 = vpop.permute.xlu0 %2562
  %2564 = vset.pattern.permute.xlu0 0
  %2565 = vperm.xlu0 %2564, %v2536
  %v2566 = vpop.permute.xlu0 %2565
  %2567 = vset.pattern.permute.xlu0 0
  %2568 = vperm.xlu0 %2567, %v2538
  %v2569 = vpop.permute.xlu0 %2568
  %2570 = vset.pattern.permute.xlu0 0
  %2571 = vperm.xlu0 %2570, %v2540
  %v2572 = vpop.permute.xlu0 %2571
  %v2573 = vlaneseq
  %v2574 = vshrl.u32 %v2573, 7
  %v2575 = vsub.s32 %v610, %v2574
  %v2576 = vrot.slane %v2551, %v2575
  %v2577 = vlaneseq
  %v2578 = vshrl.u32 %v2577, 7
  %v2579 = vsub.s32 %v610, %v2578
  %v2580 = vrot.slane %v2554, %v2579
  %v2581 = vlaneseq
  %v2582 = vshrl.u32 %v2581, 7
  %v2583 = vsub.s32 %v610, %v2582
  %v2584 = vrot.slane %v2557, %v2583
  %v2585 = vlaneseq
  %v2586 = vshrl.u32 %v2585, 7
  %v2587 = vsub.s32 %v610, %v2586
  %v2588 = vrot.slane %v2560, %v2587
  %v2589 = vlaneseq
  %v2590 = vshrl.u32 %v2589, 7
  %v2591 = vsub.s32 %v610, %v2590
  %v2592 = vrot.slane %v2563, %v2591
  %v2593 = vlaneseq
  %v2594 = vshrl.u32 %v2593, 7
  %v2595 = vsub.s32 %v610, %v2594
  %v2596 = vrot.slane %v2566, %v2595
  %v2597 = vlaneseq
  %v2598 = vshrl.u32 %v2597, 7
  %v2599 = vsub.s32 %v610, %v2598
  %v2600 = vrot.slane %v2569, %v2599
  %v2601 = vlaneseq
  %v2602 = vshrl.u32 %v2601, 7
  %v2603 = vsub.s32 %v610, %v2602
  %v2604 = vrot.slane %v2572, %v2603
  %v2605 = vsel %vm276, %v2580, %v2576
  %v2606 = vsel %vm278, %v2584, %v2605
  %v2607 = vsel %vm280, %v2588, %v2606
  %v2608 = vsel %vm282, %v2592, %v2607
  %v2609 = vsel %vm284, %v2596, %v2608
  %v2610 = vsel %vm286, %v2600, %v2609
  %v2611 = vsel %vm288, %v2604, %v2610
  %v2613 = vsel %vm651, %v2611, 0.0
  %2614 = vadd.xlane.f32.xlu0 %v2613
  %v2615 = vpop.xlane.xlu0 %2614
  %v2617 = vlaneseq
  %v2618 = vshrl.u32 %v2617, 7
  %v2619 = vsub.s32 0, %v2618
  %v2620 = vrot.slane %v2615, %v2619
  %v2621 = vlaneseq
  %v2622 = vshrl.u32 %v2621, 7
  %v2623 = vsub.s32 1, %v2622
  %v2624 = vrot.slane %v2615, %v2623
  %v2625 = vlaneseq
  %v2626 = vshrl.u32 %v2625, 7
  %v2627 = vsub.s32 2, %v2626
  %v2628 = vrot.slane %v2615, %v2627
  %v2629 = vlaneseq
  %v2630 = vshrl.u32 %v2629, 7
  %v2631 = vsub.s32 3, %v2630
  %v2632 = vrot.slane %v2615, %v2631
  %v2633 = vlaneseq
  %v2634 = vshrl.u32 %v2633, 7
  %v2635 = vsub.s32 4, %v2634
  %v2636 = vrot.slane %v2615, %v2635
  %v2637 = vlaneseq
  %v2638 = vshrl.u32 %v2637, 7
  %v2639 = vsub.s32 5, %v2638
  %v2640 = vrot.slane %v2615, %v2639
  %v2641 = vlaneseq
  %v2642 = vshrl.u32 %v2641, 7
  %v2643 = vsub.s32 6, %v2642
  %v2644 = vrot.slane %v2615, %v2643
  %v2645 = vlaneseq
  %v2646 = vshrl.u32 %v2645, 7
  %v2647 = vsub.s32 7, %v2646
  %v2648 = vrot.slane %v2615, %v2647
  %v2657 = vrcp.pop %v2620
  %v2658 = vmul.f32 %v2526, %v2657
  %v2659 = vrcp.pop %v2624
  %v2660 = vmul.f32 %v2528, %v2659
  %v2661 = vrcp.pop %v2628
  %v2662 = vmul.f32 %v2530, %v2661
  %v2663 = vrcp.pop %v2632
  %v2664 = vmul.f32 %v2532, %v2663
  %v2665 = vrcp.pop %v2636
  %v2666 = vmul.f32 %v2534, %v2665
  %v2667 = vrcp.pop %v2640
  %v2668 = vmul.f32 %v2536, %v2667
  %v2669 = vrcp.pop %v2644
  %v2670 = vmul.f32 %v2538, %v2669
  %v2671 = vrcp.pop %v2648
  %v2672 = vmul.f32 %v2540, %v2671
  %2674 = vset.pattern.permute.xlu0 0
  %2675 = vperm.xlu0 %2674, %v2658
  %v2676 = vpop.permute.xlu0 %2675
  %2679 = vset.pattern.permute.xlu0 0
  %2680 = vperm.xlu0 %2679, %v2660
  %v2681 = vpop.permute.xlu0 %2680
  %2684 = vset.pattern.permute.xlu0 0
  %2685 = vperm.xlu0 %2684, %v2662
  %v2686 = vpop.permute.xlu0 %2685
  %2689 = vset.pattern.permute.xlu0 0
  %2690 = vperm.xlu0 %2689, %v2664
  %v2691 = vpop.permute.xlu0 %2690
  %2694 = vset.pattern.permute.xlu0 0
  %2695 = vperm.xlu0 %2694, %v2666
  %v2696 = vpop.permute.xlu0 %2695
  %2699 = vset.pattern.permute.xlu0 0
  %2700 = vperm.xlu0 %2699, %v2668
  %v2701 = vpop.permute.xlu0 %2700
  %2704 = vset.pattern.permute.xlu0 0
  %2705 = vperm.xlu0 %2704, %v2670
  %v2706 = vpop.permute.xlu0 %2705
  %2709 = vset.pattern.permute.xlu0 0
  %2710 = vperm.xlu0 %2709, %v2672
  %v2711 = vpop.permute.xlu0 %2710
  %v2713 = vmul.f32 %v43, %v2676
  %v2714 = vmul.f32 %v44, %v2681
  %v2715 = vmul.f32 %v45, %v2686
  %v2716 = vmul.f32 %v46, %v2691
  %v2717 = vmul.f32 %v47, %v2696
  %v2718 = vmul.f32 %v48, %v2701
  %v2719 = vmul.f32 %v49, %v2706
  %v2720 = vmul.f32 %v50, %v2711
  %v2721 = vsel %vm62, %v2713, 0.0
  %v2722 = vrot.slane %v2721, 4
  %v2723 = vadd.f32 %v2721, %v2722
  %v2724 = vrot.slane %v2723, 2
  %v2725 = vadd.f32 %v2723, %v2724
  %v2726 = vrot.slane %v2725, 1
  %v2727 = vadd.f32 %v2725, %v2726
  %v2728 = vsel %vm62, %v2714, 0.0
  %v2729 = vrot.slane %v2728, 4
  %v2730 = vadd.f32 %v2728, %v2729
  %v2731 = vrot.slane %v2730, 2
  %v2732 = vadd.f32 %v2730, %v2731
  %v2733 = vrot.slane %v2732, 1
  %v2734 = vadd.f32 %v2732, %v2733
  %v2735 = vsel %vm62, %v2715, 0.0
  %v2736 = vrot.slane %v2735, 4
  %v2737 = vadd.f32 %v2735, %v2736
  %v2738 = vrot.slane %v2737, 2
  %v2739 = vadd.f32 %v2737, %v2738
  %v2740 = vrot.slane %v2739, 1
  %v2741 = vadd.f32 %v2739, %v2740
  %v2742 = vsel %vm62, %v2716, 0.0
  %v2743 = vrot.slane %v2742, 4
  %v2744 = vadd.f32 %v2742, %v2743
  %v2745 = vrot.slane %v2744, 2
  %v2746 = vadd.f32 %v2744, %v2745
  %v2747 = vrot.slane %v2746, 1
  %v2748 = vadd.f32 %v2746, %v2747
  %v2749 = vsel %vm62, %v2717, 0.0
  %v2750 = vrot.slane %v2749, 4
  %v2751 = vadd.f32 %v2749, %v2750
  %v2752 = vrot.slane %v2751, 2
  %v2753 = vadd.f32 %v2751, %v2752
  %v2754 = vrot.slane %v2753, 1
  %v2755 = vadd.f32 %v2753, %v2754
  %v2756 = vsel %vm62, %v2718, 0.0
  %v2757 = vrot.slane %v2756, 4
  %v2758 = vadd.f32 %v2756, %v2757
  %v2759 = vrot.slane %v2758, 2
  %v2760 = vadd.f32 %v2758, %v2759
  %v2761 = vrot.slane %v2760, 1
  %v2762 = vadd.f32 %v2760, %v2761
  %v2763 = vsel %vm62, %v2719, 0.0
  %v2764 = vrot.slane %v2763, 4
  %v2765 = vadd.f32 %v2763, %v2764
  %v2766 = vrot.slane %v2765, 2
  %v2767 = vadd.f32 %v2765, %v2766
  %v2768 = vrot.slane %v2767, 1
  %v2769 = vadd.f32 %v2767, %v2768
  %v2770 = vsel %vm62, %v2720, 0.0
  %v2771 = vrot.slane %v2770, 4
  %v2772 = vadd.f32 %v2770, %v2771
  %v2773 = vrot.slane %v2772, 2
  %v2774 = vadd.f32 %v2772, %v2773
  %v2775 = vrot.slane %v2774, 1
  %v2776 = vadd.f32 %v2774, %v2775
  %v2777 = vld [vmem:[%s0 + $0x2] sm:$0x1]
  %v2778 = vld [vmem:[%s0 + $0xa] sm:$0x1]
  %v2779 = vld [vmem:[%s0 + $0x12] sm:$0x1]
  %v2780 = vld [vmem:[%s0 + $0x1a] sm:$0x1]
  %v2781 = vld [vmem:[%s0 + $0x22] sm:$0x1]
  %v2782 = vld [vmem:[%s0 + $0x2a] sm:$0x1]
  %v2783 = vld [vmem:[%s0 + $0x32] sm:$0x1]
  %v2784 = vld [vmem:[%s0 + $0x3a] sm:$0x1]
  %v2793 = vrot.slane %v2778, 7
  %v2794 = vsel %vm276, %v2793, %v2777
  %v2795 = vrot.slane %v2779, 6
  %v2796 = vsel %vm278, %v2795, %v2794
  %v2797 = vrot.slane %v2780, 5
  %v2798 = vsel %vm280, %v2797, %v2796
  %v2799 = vrot.slane %v2781, 4
  %v2800 = vsel %vm282, %v2799, %v2798
  %v2801 = vrot.slane %v2782, 3
  %v2802 = vsel %vm284, %v2801, %v2800
  %v2803 = vrot.slane %v2783, 2
  %v2804 = vsel %vm286, %v2803, %v2802
  %v2805 = vrot.slane %v2784, 1
  %v2806 = vsel %vm288, %v2805, %v2804
  %2808 = vst.msk [vmem:[#allocation2] sm:$0xff] %vm576, %v2806
  %v2817 = vsel %vm276, %v2734, %v2727
  %v2818 = vsel %vm278, %v2741, %v2817
  %v2819 = vsel %vm280, %v2748, %v2818
  %v2820 = vsel %vm282, %v2755, %v2819
  %v2821 = vsel %vm284, %v2762, %v2820
  %v2822 = vsel %vm286, %v2769, %v2821
  %v2823 = vsel %vm288, %v2776, %v2822
  %2824 = vrot.lane.b32.xlu0 %v2823, 16
  %v2825 = vpop.permute.xlu0 %2824
  %2827 = vst.msk [vmem:[#allocation2] sm:$0xff] %vm1006, %v2825
  %2828 = vrot.lane.b32.xlu0 %v2027, 80
  %v2829 = vpop.permute.xlu0 %2828
  %2831 = vst.msk [vmem:[#allocation2] sm:$0xff] %vm1011, %v2829
  %v2832 = vld [vmem:[#allocation2] sm:$0xff]
  %v2834 = vsel %vm1020, %v2832, 0
  %2836 = vmatprep.subr.mxu0 0.0
  %2837 = vmatpush1.msra.mxu0 %v367
  %2838 = vmatprep.subr.mxu0 0.0
  %2839 = vmatpush1.msra.mxu0 %v368
  %2840 = vmatprep.subr.mxu0 0.0
  %2841 = vmatpush1.msra.mxu0 %v369
  %2842 = vmatprep.subr.mxu0 0.0
  %2843 = vmatpush1.msra.mxu0 %v370
  %2844 = vmatprep.subr.mxu0 0.0
  %2845 = vmatpush1.msra.mxu0 %v371
  %2846 = vmatprep.subr.mxu0 0.0
  %2847 = vmatpush1.msra.mxu0 %v372
  %2848 = vmatprep.subr.mxu0 0.0
  %2849 = vmatpush1.msra.mxu0 %v373
  %2850 = vmatprep.subr.mxu0 0.0
  %2851 = vmatpush1.msra.mxu0 %v374
  %2852 = vmatprep.subr.mxu0 0.0
  %2853 = vmatpush1.msra.mxu0 %v375
  %2854 = vmatprep.subr.mxu0 0.0
  %2855 = vmatpush1.msra.mxu0 %v376
  %2856 = vmatprep.subr.mxu0 0.0
  %2857 = vmatpush1.msra.mxu0 0.0
  %2858 = vmatprep.subr.mxu0 0.0
  %2859 = vmatpush1.msra.mxu0 0.0
  %2860 = vmatprep.subr.mxu0 0.0
  %2861 = vmatpush1.msra.mxu0 0.0
  %2862 = vmatprep.subr.mxu0 0.0
  %2863 = vmatpush1.msra.mxu0 0.0
  %2864 = vmatprep.subr.mxu0 0.0
  %2865 = vmatpush1.msra.mxu0 0.0
  %2866 = vmatprep.subr.mxu0 0.0
  %2867 = vmatpush1.msra.mxu0 0.0
  %2868 = vmatprep.subr.mxu0 0.0
  %2869 = vmatpush1.msra.mxu0 0.0
  %2870 = vmatprep.subr.mxu0 0.0
  %2871 = vmatpush1.msra.mxu0 0.0
  %2872 = vmatprep.subr.mxu0 0.0
  %2873 = vmatpush1.msra.mxu0 0.0
  %2874 = vmatprep.subr.mxu0 0.0
  %2875 = vmatpush1.msra.mxu0 0.0
  %2876 = vmatprep.subr.mxu0 0.0
  %2877 = vmatpush1.msra.mxu0 0.0
  %2878 = vmatprep.subr.mxu0 0.0
  %2879 = vmatpush1.msra.mxu0 0.0
  %2880 = vmatprep.subr.mxu0 0.0
  %2881 = vmatpush1.msra.mxu0 0.0
  %2882 = vmatprep.subr.mxu0 0.0
  %2883 = vmatpush1.msra.mxu0 0.0
  %2884 = vmatprep.subr.mxu0 0.0
  %2885 = vmatpush1.msra.mxu0 0.0
  %2886 = vmatprep.subr.mxu0 0.0
  %2887 = vmatpush1.msra.mxu0 0.0
  %2888 = vmatprep.subr.mxu0 0.0
  %2889 = vmatpush1.msra.mxu0 0.0
  %2890 = vmatprep.subr.mxu0 0.0
  %2891 = vmatpush1.msra.mxu0 0.0
  %2892 = vmatprep.subr.mxu0 0.0
  %2893 = vmatpush1.msra.mxu0 0.0
  %2894 = vmatprep.subr.mxu0 0.0
  %2895 = vmatpush1.msra.mxu0 0.0
  %2896 = vmatprep.subr.mxu0 0.0
  %2897 = vmatpush1.msra.mxu0 0.0
  %2898 = vmatprep.subr.mxu0 0.0
  %2899 = vmatpush1.msra.mxu0 0.0
  %2900 = vmatprep.mubr.f32.mxu0 0.0
  %2901 = vmatmul.mubr.f32.gmra.mrb[0].mxu0 %v2834
  %v2902 = vpop.f32.mrb[0].mxu0
  %v2903 = vadd.f32 %v1018, %v2902
  %v2904 = vpop.f32.mrb[0].mxu0
  %2905 = vdwg.mxu0
  %v2906 = vxor.u32 %v2903, 2147483648
  %v2907 = vmul.f32 %v2906, 1.442695
  %v2908 = vpow.pop %v2907
  %v2909 = vadd.f32 %v2908, 1.0
  %v2910 = vrcp.pop %v2909
  %v2911 = vmul.f32 1.0, %v2910
  %v2912 = vtanh.pop %v2903
  %v2913 = vmul.f32 %v2911, %v2021
  %2915 = vrot.lane.b32.xlu0 %v2912, 64
  %v2916 = vpop.permute.xlu0 %2915
  %v2918 = vmul.f32 %v2911, %v2916
  %2920 = vrot.lane.b32.xlu0 %v2918, 32
  %v2921 = vpop.permute.xlu0 %2920
  %v2923 = vadd.f32 %v2913, %v2921
  %v2924 = vtanh.pop %v2923
  %2926 = vrot.lane.b32.xlu0 %v2924, 64
  %v2927 = vpop.permute.xlu0 %2926
  %v2929 = vmul.f32 %v2911, %v2927
  %2931 = vrot.lane.b32.xlu0 %v2929, 32
  %v2932 = vpop.permute.xlu0 %2931
  %v2933 = vsel %vm62, %v2932, 0
  %2935 = vmatprep.subr.mxu0 0.0
  %2936 = vmatpush1.msra.mxu0 %v378
  %2937 = vmatprep.subr.mxu0 0.0
  %2938 = vmatpush1.msra.mxu0 %v379
  %2939 = vmatprep.subr.mxu0 0.0
  %2940 = vmatpush1.msra.mxu0 %v380
  %2941 = vmatprep.subr.mxu0 0.0
  %2942 = vmatpush1.msra.mxu0 %v381
  %2943 = vmatprep.subr.mxu0 0.0
  %2944 = vmatpush1.msra.mxu0 0.0
  %2945 = vmatprep.subr.mxu0 0.0
  %2946 = vmatpush1.msra.mxu0 0.0
  %2947 = vmatprep.subr.mxu0 0.0
  %2948 = vmatpush1.msra.mxu0 0.0
  %2949 = vmatprep.subr.mxu0 0.0
  %2950 = vmatpush1.msra.mxu0 0.0
  %2951 = vmatprep.subr.mxu0 0.0
  %2952 = vmatpush1.msra.mxu0 0.0
  %2953 = vmatprep.subr.mxu0 0.0
  %2954 = vmatpush1.msra.mxu0 0.0
  %2955 = vmatprep.subr.mxu0 0.0
  %2956 = vmatpush1.msra.mxu0 0.0
  %2957 = vmatprep.subr.mxu0 0.0
  %2958 = vmatpush1.msra.mxu0 0.0
  %2959 = vmatprep.subr.mxu0 0.0
  %2960 = vmatpush1.msra.mxu0 0.0
  %2961 = vmatprep.subr.mxu0 0.0
  %2962 = vmatpush1.msra.mxu0 0.0
  %2963 = vmatprep.subr.mxu0 0.0
  %2964 = vmatpush1.msra.mxu0 0.0
  %2965 = vmatprep.subr.mxu0 0.0
  %2966 = vmatpush1.msra.mxu0 0.0
  %2967 = vmatprep.subr.mxu0 0.0
  %2968 = vmatpush1.msra.mxu0 0.0
  %2969 = vmatprep.subr.mxu0 0.0
  %2970 = vmatpush1.msra.mxu0 0.0
  %2971 = vmatprep.subr.mxu0 0.0
  %2972 = vmatpush1.msra.mxu0 0.0
  %2973 = vmatprep.subr.mxu0 0.0
  %2974 = vmatpush1.msra.mxu0 0.0
  %2975 = vmatprep.subr.mxu0 0.0
  %2976 = vmatpush1.msra.mxu0 0.0
  %2977 = vmatprep.subr.mxu0 0.0
  %2978 = vmatpush1.msra.mxu0 0.0
  %2979 = vmatprep.subr.mxu0 0.0
  %2980 = vmatpush1.msra.mxu0 0.0
  %2981 = vmatprep.subr.mxu0 0.0
  %2982 = vmatpush1.msra.mxu0 0.0
  %2983 = vmatprep.subr.mxu0 0.0
  %2984 = vmatpush1.msra.mxu0 0.0
  %2985 = vmatprep.subr.mxu0 0.0
  %2986 = vmatpush1.msra.mxu0 0.0
  %2987 = vmatprep.subr.mxu0 0.0
  %2988 = vmatpush1.msra.mxu0 0.0
  %2989 = vmatprep.subr.mxu0 0.0
  %2990 = vmatpush1.msra.mxu0 0.0
  %2991 = vmatprep.subr.mxu0 0.0
  %2992 = vmatpush1.msra.mxu0 0.0
  %2993 = vmatprep.subr.mxu0 0.0
  %2994 = vmatpush1.msra.mxu0 0.0
  %2995 = vmatprep.subr.mxu0 0.0
  %2996 = vmatpush1.msra.mxu0 0.0
  %2997 = vmatprep.subr.mxu0 0.0
  %2998 = vmatpush1.msra.mxu0 0.0
  %2999 = vmatprep.mubr.f32.mxu0 0.0
  %3000 = vmatmul.mubr.f32.gmra.mrb[0].mxu0 %v2933
  %v3001 = vpop.f32.mrb[0].mxu0
  %v3002 = vadd.f32 %v1122, %v3001
  %v3003 = vpop.f32.mrb[0].mxu0
  %3004 = vdwg.mxu0
  %v3006 = vcombine.high %v3002, %v3002
  %v3008 = vunpack.c.l.s4 1966171168
  %v3009 = vunpack.c.0.s8 %v3008
  %v3010 = vlaneseq
  %v3011 = vshrl.u32 %v3010, 7
  %v3012 = vsub.s32 %v3009, %v3011
  %v3013 = vrot.slane %v3002, %v3012
  %v3015 = vunpack.c.l.s4 1966171168
  %v3016 = vunpack.c.0.s8 %v3015
  %v3017 = vlaneseq
  %v3018 = vshrl.u32 %v3017, 7
  %v3019 = vsub.s32 %v3016, %v3018
  %v3020 = vrot.slane %v3006, %v3019
  %v3021 = vcombine.high %v3013, %v3013
  %v3022 = vcombine.high %v3020, %v3020
  %v3024 = vunpack.c.l.s4 1966171168
  %v3025 = vunpack.c.0.s8 %v3024
  %v3026 = vlaneseq
  %v3027 = vshrl.u32 %v3026, 7
  %v3028 = vsub.s32 %v3025, %v3027
  %v3029 = vrot.slane %v3013, %v3028
  %v3031 = vunpack.c.l.s4 1966171168
  %v3032 = vunpack.c.0.s8 %v3031
  %v3033 = vlaneseq
  %v3034 = vshrl.u32 %v3033, 7
  %v3035 = vsub.s32 %v3032, %v3034
  %v3036 = vrot.slane %v3020, %v3035
  %v3038 = vunpack.c.l.s4 1966171168
  %v3039 = vunpack.c.0.s8 %v3038
  %v3040 = vlaneseq
  %v3041 = vshrl.u32 %v3040, 7
  %v3042 = vsub.s32 %v3039, %v3041
  %v3043 = vrot.slane %v3021, %v3042
  %v3045 = vunpack.c.l.s4 1966171168
  %v3046 = vunpack.c.0.s8 %v3045
  %v3047 = vlaneseq
  %v3048 = vshrl.u32 %v3047, 7
  %v3049 = vsub.s32 %v3046, %v3048
  %v3050 = vrot.slane %v3022, %v3049
  %v3051 = vcombine.high %v3029, %v3029
  %v3052 = vcombine.high %v3036, %v3036
  %v3053 = vcombine.high %v3043, %v3043
  %v3054 = vcombine.high %v3050, %v3050
  %3063 = vst.msk [vmem:[%s12 + $0x2] sm:$0x1] %vm1257, %v3029
  %3064 = vst.msk [vmem:[%s12 + $0xa] sm:$0x1] %vm1257, %v3043
  %3065 = vst.msk [vmem:[%s12 + $0x12] sm:$0x1] %vm1257, %v3051
  %3066 = vst.msk [vmem:[%s12 + $0x1a] sm:$0x1] %vm1257, %v3053
  %3067 = vst.msk [vmem:[%s12 + $0x22] sm:$0x1] %vm1257, %v3036
  %3068 = vst.msk [vmem:[%s12 + $0x2a] sm:$0x1] %vm1257, %v3050
  %3069 = vst.msk [vmem:[%s12 + $0x32] sm:$0x1] %vm1257, %v3052
  %3070 = vst.msk [vmem:[%s12 + $0x3a] sm:$0x1] %vm1257, %v3054
  %v3071 = vlaneseq
  %v3072 = vshrl.u32 %v3071, 7
  %v3073 = vsub.s32 %v610, %v3072
  %v3074 = vrot.slane %v2676, %v3073
  %v3075 = vlaneseq
  %v3076 = vshrl.u32 %v3075, 7
  %v3077 = vsub.s32 %v610, %v3076
  %v3078 = vrot.slane %v2681, %v3077
  %v3079 = vlaneseq
  %v3080 = vshrl.u32 %v3079, 7
  %v3081 = vsub.s32 %v610, %v3080
  %v3082 = vrot.slane %v2686, %v3081
  %v3083 = vlaneseq
  %v3084 = vshrl.u32 %v3083, 7
  %v3085 = vsub.s32 %v610, %v3084
  %v3086 = vrot.slane %v2691, %v3085
  %v3087 = vlaneseq
  %v3088 = vshrl.u32 %v3087, 7
  %v3089 = vsub.s32 %v610, %v3088
  %v3090 = vrot.slane %v2696, %v3089
  %v3091 = vlaneseq
  %v3092 = vshrl.u32 %v3091, 7
  %v3093 = vsub.s32 %v610, %v3092
  %v3094 = vrot.slane %v2701, %v3093
  %v3095 = vlaneseq
  %v3096 = vshrl.u32 %v3095, 7
  %v3097 = vsub.s32 %v610, %v3096
  %v3098 = vrot.slane %v2706, %v3097
  %v3099 = vlaneseq
  %v3100 = vshrl.u32 %v3099, 7
  %v3101 = vsub.s32 %v610, %v3100
  %v3102 = vrot.slane %v2711, %v3101
  %3111 = vst.msk [vmem:[%s13 + $0x2] sm:$0x1] %vm1306, %v3074
  %3112 = vst.msk [vmem:[%s13 + $0xa] sm:$0x1] %vm1306, %v3078
  %3113 = vst.msk [vmem:[%s13 + $0x12] sm:$0x1] %vm1306, %v3082
  %3114 = vst.msk [vmem:[%s13 + $0x1a] sm:$0x1] %vm1306, %v3086
  %3115 = vst.msk [vmem:[%s13 + $0x22] sm:$0x1] %vm1306, %v3090
  %3116 = vst.msk [vmem:[%s13 + $0x2a] sm:$0x1] %vm1306, %v3094
  %3117 = vst.msk [vmem:[%s13 + $0x32] sm:$0x1] %vm1306, %v3098
  %3118 = vst.msk [vmem:[%s13 + $0x3a] sm:$0x1] %vm1306, %v3102
  %3119 = vmatprep.subr.mxu0 0.0
  %3120 = vmatpush1.msra.mxu0 %v362
  %3121 = vmatprep.subr.mxu0 0.0
  %3122 = vmatpush1.msra.mxu0 %v363
  %3123 = vmatprep.subr.mxu0 0.0
  %3124 = vmatpush1.msra.mxu0 %v364
  %3125 = vmatprep.subr.mxu0 0.0
  %3126 = vmatpush1.msra.mxu0 %v365
  %3127 = vmatprep.subr.mxu0 0.0
  %3128 = vmatpush1.msra.mxu0 0.0
  %3129 = vmatprep.subr.mxu0 0.0
  %3130 = vmatpush1.msra.mxu0 0.0
  %3131 = vmatprep.subr.mxu0 0.0
  %3132 = vmatpush1.msra.mxu0 0.0
  %3133 = vmatprep.subr.mxu0 0.0
  %3134 = vmatpush1.msra.mxu0 0.0
  %3135 = vmatprep.subr.mxu0 0.0
  %3136 = vmatpush1.msra.mxu0 0.0
  %3137 = vmatprep.subr.mxu0 0.0
  %3138 = vmatpush1.msra.mxu0 0.0
  %3139 = vmatprep.subr.mxu0 0.0
  %3140 = vmatpush1.msra.mxu0 0.0
  %3141 = vmatprep.subr.mxu0 0.0
  %3142 = vmatpush1.msra.mxu0 0.0
  %3143 = vmatprep.subr.mxu0 0.0
  %3144 = vmatpush1.msra.mxu0 0.0
  %3145 = vmatprep.subr.mxu0 0.0
  %3146 = vmatpush1.msra.mxu0 0.0
  %3147 = vmatprep.subr.mxu0 0.0
  %3148 = vmatpush1.msra.mxu0 0.0
  %3149 = vmatprep.subr.mxu0 0.0
  %3150 = vmatpush1.msra.mxu0 0.0
  %3151 = vmatprep.subr.mxu0 0.0
  %3152 = vmatpush1.msra.mxu0 0.0
  %3153 = vmatprep.subr.mxu0 0.0
  %3154 = vmatpush1.msra.mxu0 0.0
  %3155 = vmatprep.subr.mxu0 0.0
  %3156 = vmatpush1.msra.mxu0 0.0
  %3157 = vmatprep.subr.mxu0 0.0
  %3158 = vmatpush1.msra.mxu0 0.0
  %3159 = vmatprep.subr.mxu0 0.0
  %3160 = vmatpush1.msra.mxu0 0.0
  %3161 = vmatprep.subr.mxu0 0.0
  %3162 = vmatpush1.msra.mxu0 0.0
  %3163 = vmatprep.subr.mxu0 0.0
  %3164 = vmatpush1.msra.mxu0 0.0
  %3165 = vmatprep.subr.mxu0 0.0
  %3166 = vmatpush1.msra.mxu0 0.0
  %3167 = vmatprep.subr.mxu0 0.0
  %3168 = vmatpush1.msra.mxu0 0.0
  %3169 = vmatprep.subr.mxu0 0.0
  %3170 = vmatpush1.msra.mxu0 0.0
  %3171 = vmatprep.subr.mxu0 0.0
  %3172 = vmatpush1.msra.mxu0 0.0
  %3173 = vmatprep.subr.mxu0 0.0
  %3174 = vmatpush1.msra.mxu0 0.0
  %3175 = vmatprep.subr.mxu0 0.0
  %3176 = vmatpush1.msra.mxu0 0.0
  %3177 = vmatprep.subr.mxu0 0.0
  %3178 = vmatpush1.msra.mxu0 0.0
  %3179 = vmatprep.subr.mxu0 0.0
  %3180 = vmatpush1.msra.mxu0 0.0
  %3181 = vmatprep.subr.mxu0 0.0
  %3182 = vmatpush1.msra.mxu0 0.0
  %3183 = vmatprep.mubr.f32.mxu0 0.0
  %3184 = vmatmul.mubr.f32.gmra.mrb[0].mxu0 %v2933
  %v3185 = vpop.f32.mrb[0].mxu0
  %v3186 = vadd.f32 0.0, %v3185
  %v3187 = vpop.f32.mrb[0].mxu0
  %3188 = vdwg.mxu0
  %v3190 = vcombine.high %v3186, %v3186
  %v3192 = vunpack.c.l.s4 1966171168
  %v3193 = vunpack.c.0.s8 %v3192
  %v3194 = vlaneseq
  %v3195 = vshrl.u32 %v3194, 7
  %v3196 = vsub.s32 %v3193, %v3195
  %v3197 = vrot.slane %v3186, %v3196
  %v3199 = vunpack.c.l.s4 1966171168
  %v3200 = vunpack.c.0.s8 %v3199
  %v3201 = vlaneseq
  %v3202 = vshrl.u32 %v3201, 7
  %v3203 = vsub.s32 %v3200, %v3202
  %v3204 = vrot.slane %v3190, %v3203
  %v3205 = vcombine.high %v3197, %v3197
  %v3206 = vcombine.high %v3204, %v3204
  %v3208 = vunpack.c.l.s4 1966171168
  %v3209 = vunpack.c.0.s8 %v3208
  %v3210 = vlaneseq
  %v3211 = vshrl.u32 %v3210, 7
  %v3212 = vsub.s32 %v3209, %v3211
  %v3213 = vrot.slane %v3197, %v3212
  %v3215 = vunpack.c.l.s4 1966171168
  %v3216 = vunpack.c.0.s8 %v3215
  %v3217 = vlaneseq
  %v3218 = vshrl.u32 %v3217, 7
  %v3219 = vsub.s32 %v3216, %v3218
  %v3220 = vrot.slane %v3204, %v3219
  %v3222 = vunpack.c.l.s4 1966171168
  %v3223 = vunpack.c.0.s8 %v3222
  %v3224 = vlaneseq
  %v3225 = vshrl.u32 %v3224, 7
  %v3226 = vsub.s32 %v3223, %v3225
  %v3227 = vrot.slane %v3205, %v3226
  %v3229 = vunpack.c.l.s4 1966171168
  %v3230 = vunpack.c.0.s8 %v3229
  %v3231 = vlaneseq
  %v3232 = vshrl.u32 %v3231, 7
  %v3233 = vsub.s32 %v3230, %v3232
  %v3234 = vrot.slane %v3206, %v3233
  %v3235 = vcombine.high %v3213, %v3213
  %v3236 = vcombine.high %v3220, %v3220
  %v3237 = vcombine.high %v3227, %v3227
  %v3238 = vcombine.high %v3234, %v3234
  %v3239 = vlaneseq
  %v3240 = vshrl.u32 %v3239, 7
  %v3241 = vsub.s32 0, %v3240
  %v3242 = vrot.slane %v3213, %v3241
  %v3243 = vlaneseq
  %v3244 = vshrl.u32 %v3243, 7
  %v3245 = vsub.s32 0, %v3244
  %v3246 = vrot.slane %v3227, %v3245
  %v3247 = vlaneseq
  %v3248 = vshrl.u32 %v3247, 7
  %v3249 = vsub.s32 0, %v3248
  %v3250 = vrot.slane %v3235, %v3249
  %v3251 = vlaneseq
  %v3252 = vshrl.u32 %v3251, 7
  %v3253 = vsub.s32 0, %v3252
  %v3254 = vrot.slane %v3237, %v3253
  %v3255 = vlaneseq
  %v3256 = vshrl.u32 %v3255, 7
  %v3257 = vsub.s32 0, %v3256
  %v3258 = vrot.slane %v3220, %v3257
  %v3259 = vlaneseq
  %v3260 = vshrl.u32 %v3259, 7
  %v3261 = vsub.s32 0, %v3260
  %v3262 = vrot.slane %v3234, %v3261
  %v3263 = vlaneseq
  %v3264 = vshrl.u32 %v3263, 7
  %v3265 = vsub.s32 0, %v3264
  %v3266 = vrot.slane %v3236, %v3265
  %v3267 = vlaneseq
  %v3268 = vshrl.u32 %v3267, 7
  %v3269 = vsub.s32 0, %v3268
  %v3270 = vrot.slane %v3238, %v3269
  %v3279 = vadd.f32 %v154, %v3242
  %v3280 = vadd.f32 %v159, %v3246
  %v3281 = vadd.f32 %v164, %v3250
  %v3282 = vadd.f32 %v169, %v3254
  %v3283 = vadd.f32 %v174, %v3258
  %v3284 = vadd.f32 %v179, %v3262
  %v3285 = vadd.f32 %v184, %v3266
  %v3286 = vadd.f32 %v189, %v3270
  %v3287 = vtanh.pop %v3279
  %v3288 = vtanh.pop %v3280
  %v3289 = vtanh.pop %v3281
  %v3290 = vtanh.pop %v3282
  %v3291 = vtanh.pop %v3283
  %v3292 = vtanh.pop %v3284
  %v3293 = vtanh.pop %v3285
  %v3294 = vtanh.pop %v3286
  %v3295 = vmul.f32 %v3287, %v566
  %v3296 = vmul.f32 %v3288, %v566
  %v3297 = vmul.f32 %v3289, %v566
  %v3298 = vmul.f32 %v3290, %v566
  %v3299 = vmul.f32 %v3291, %v566
  %v3300 = vmul.f32 %v3292, %v566
  %v3301 = vmul.f32 %v3293, %v566
  %v3302 = vmul.f32 %v3294, %v566
  %v3303 = vsel %vm576, %v3295, 0.0
  %3304 = vadd.xlane.f32.xlu0 %v3303
  %v3305 = vpop.xlane.xlu0 %3304
  %v3306 = vsel %vm576, %v3296, 0.0
  %3307 = vadd.xlane.f32.xlu0 %v3306
  %v3308 = vpop.xlane.xlu0 %3307
  %v3309 = vsel %vm576, %v3297, 0.0
  %3310 = vadd.xlane.f32.xlu0 %v3309
  %v3311 = vpop.xlane.xlu0 %3310
  %v3312 = vsel %vm576, %v3298, 0.0
  %3313 = vadd.xlane.f32.xlu0 %v3312
  %v3314 = vpop.xlane.xlu0 %3313
  %v3315 = vsel %vm576, %v3299, 0.0
  %3316 = vadd.xlane.f32.xlu0 %v3315
  %v3317 = vpop.xlane.xlu0 %3316
  %v3318 = vsel %vm576, %v3300, 0.0
  %3319 = vadd.xlane.f32.xlu0 %v3318
  %v3320 = vpop.xlane.xlu0 %3319
  %v3321 = vsel %vm576, %v3301, 0.0
  %3322 = vadd.xlane.f32.xlu0 %v3321
  %v3323 = vpop.xlane.xlu0 %3322
  %v3324 = vsel %vm576, %v3302, 0.0
  %3325 = vadd.xlane.f32.xlu0 %v3324
  %v3326 = vpop.xlane.xlu0 %3325
  %v3335 = vlaneseq
  %v3336 = vshrl.u32 %v3335, 7
  %v3337 = vsub.s32 %v610, %v3336
  %v3338 = vrot.slane %v3305, %v3337
  %v3339 = vlaneseq
  %v3340 = vshrl.u32 %v3339, 7
  %v3341 = vsub.s32 %v610, %v3340
  %v3342 = vrot.slane %v3308, %v3341
  %v3343 = vlaneseq
  %v3344 = vshrl.u32 %v3343, 7
  %v3345 = vsub.s32 %v610, %v3344
  %v3346 = vrot.slane %v3311, %v3345
  %v3347 = vlaneseq
  %v3348 = vshrl.u32 %v3347, 7
  %v3349 = vsub.s32 %v610, %v3348
  %v3350 = vrot.slane %v3314, %v3349
  %v3351 = vlaneseq
  %v3352 = vshrl.u32 %v3351, 7
  %v3353 = vsub.s32 %v610, %v3352
  %v3354 = vrot.slane %v3317, %v3353
  %v3355 = vlaneseq
  %v3356 = vshrl.u32 %v3355, 7
  %v3357 = vsub.s32 %v610, %v3356
  %v3358 = vrot.slane %v3320, %v3357
  %v3359 = vlaneseq
  %v3360 = vshrl.u32 %v3359, 7
  %v3361 = vsub.s32 %v610, %v3360
  %v3362 = vrot.slane %v3323, %v3361
  %v3363 = vlaneseq
  %v3364 = vshrl.u32 %v3363, 7
  %v3365 = vsub.s32 %v610, %v3364
  %v3366 = vrot.slane %v3326, %v3365
  %v3367 = vsel %vm276, %v3342, %v3338
  %v3368 = vsel %vm278, %v3346, %v3367
  %v3369 = vsel %vm280, %v3350, %v3368
  %v3370 = vsel %vm282, %v3354, %v3369
  %v3371 = vsel %vm284, %v3358, %v3370
  %v3372 = vsel %vm286, %v3362, %v3371
  %v3373 = vsel %vm288, %v3366, %v3372
  %v3375 = vsel %vm651, %v3373, -inf
  %3376 = vmax.xlane.f32.xlu0 %v3375
  %v3377 = vpop.xlane.xlu0 %3376
  %v3379 = vlaneseq
  %v3380 = vshrl.u32 %v3379, 7
  %v3381 = vsub.s32 0, %v3380
  %v3382 = vrot.slane %v3377, %v3381
  %v3383 = vlaneseq
  %v3384 = vshrl.u32 %v3383, 7
  %v3385 = vsub.s32 1, %v3384
  %v3386 = vrot.slane %v3377, %v3385
  %v3387 = vlaneseq
  %v3388 = vshrl.u32 %v3387, 7
  %v3389 = vsub.s32 2, %v3388
  %v3390 = vrot.slane %v3377, %v3389
  %v3391 = vlaneseq
  %v3392 = vshrl.u32 %v3391, 7
  %v3393 = vsub.s32 3, %v3392
  %v3394 = vrot.slane %v3377, %v3393
  %v3395 = vlaneseq
  %v3396 = vshrl.u32 %v3395, 7
  %v3397 = vsub.s32 4, %v3396
  %v3398 = vrot.slane %v3377, %v3397
  %v3399 = vlaneseq
  %v3400 = vshrl.u32 %v3399, 7
  %v3401 = vsub.s32 5, %v3400
  %v3402 = vrot.slane %v3377, %v3401
  %v3403 = vlaneseq
  %v3404 = vshrl.u32 %v3403, 7
  %v3405 = vsub.s32 6, %v3404
  %v3406 = vrot.slane %v3377, %v3405
  %v3407 = vlaneseq
  %v3408 = vshrl.u32 %v3407, 7
  %v3409 = vsub.s32 7, %v3408
  %v3410 = vrot.slane %v3377, %v3409
  %v3419 = vsub.f32 %v3305, %v3382
  %v3420 = vsub.f32 %v3308, %v3386
  %v3421 = vsub.f32 %v3311, %v3390
  %v3422 = vsub.f32 %v3314, %v3394
  %v3423 = vsub.f32 %v3317, %v3398
  %v3424 = vsub.f32 %v3320, %v3402
  %v3425 = vsub.f32 %v3323, %v3406
  %v3426 = vsub.f32 %v3326, %v3410
  %v3427 = vmul.f32 %v3419, 1.442695
  %v3428 = vpow.pop %v3427
  %v3429 = vmul.f32 %v3420, 1.442695
  %v3430 = vpow.pop %v3429
  %v3431 = vmul.f32 %v3421, 1.442695
  %v3432 = vpow.pop %v3431
  %v3433 = vmul.f32 %v3422, 1.442695
  %v3434 = vpow.pop %v3433
  %v3435 = vmul.f32 %v3423, 1.442695
  %v3436 = vpow.pop %v3435
  %v3437 = vmul.f32 %v3424, 1.442695
  %v3438 = vpow.pop %v3437
  %v3439 = vmul.f32 %v3425, 1.442695
  %v3440 = vpow.pop %v3439
  %v3441 = vmul.f32 %v3426, 1.442695
  %v3442 = vpow.pop %v3441
  %3451 = vset.pattern.permute.xlu0 0
  %3452 = vperm.xlu0 %3451, %v3428
  %v3453 = vpop.permute.xlu0 %3452
  %3454 = vset.pattern.permute.xlu0 0
  %3455 = vperm.xlu0 %3454, %v3430
  %v3456 = vpop.permute.xlu0 %3455
  %3457 = vset.pattern.permute.xlu0 0
  %3458 = vperm.xlu0 %3457, %v3432
  %v3459 = vpop.permute.xlu0 %3458
  %3460 = vset.pattern.permute.xlu0 0
  %3461 = vperm.xlu0 %3460, %v3434
  %v3462 = vpop.permute.xlu0 %3461
  %3463 = vset.pattern.permute.xlu0 0
  %3464 = vperm.xlu0 %3463, %v3436
  %v3465 = vpop.permute.xlu0 %3464
  %3466 = vset.pattern.permute.xlu0 0
  %3467 = vperm.xlu0 %3466, %v3438
  %v3468 = vpop.permute.xlu0 %3467
  %3469 = vset.pattern.permute.xlu0 0
  %3470 = vperm.xlu0 %3469, %v3440
  %v3471 = vpop.permute.xlu0 %3470
  %3472 = vset.pattern.permute.xlu0 0
  %3473 = vperm.xlu0 %3472, %v3442
  %v3474 = vpop.permute.xlu0 %3473
  %v3475 = vlaneseq
  %v3476 = vshrl.u32 %v3475, 7
  %v3477 = vsub.s32 %v610, %v3476
  %v3478 = vrot.slane %v3453, %v3477
  %v3479 = vlaneseq
  %v3480 = vshrl.u32 %v3479, 7
  %v3481 = vsub.s32 %v610, %v3480
  %v3482 = vrot.slane %v3456, %v3481
  %v3483 = vlaneseq
  %v3484 = vshrl.u32 %v3483, 7
  %v3485 = vsub.s32 %v610, %v3484
  %v3486 = vrot.slane %v3459, %v3485
  %v3487 = vlaneseq
  %v3488 = vshrl.u32 %v3487, 7
  %v3489 = vsub.s32 %v610, %v3488
  %v3490 = vrot.slane %v3462, %v3489
  %v3491 = vlaneseq
  %v3492 = vshrl.u32 %v3491, 7
  %v3493 = vsub.s32 %v610, %v3492
  %v3494 = vrot.slane %v3465, %v3493
  %v3495 = vlaneseq
  %v3496 = vshrl.u32 %v3495, 7
  %v3497 = vsub.s32 %v610, %v3496
  %v3498 = vrot.slane %v3468, %v3497
  %v3499 = vlaneseq
  %v3500 = vshrl.u32 %v3499, 7
  %v3501 = vsub.s32 %v610, %v3500
  %v3502 = vrot.slane %v3471, %v3501
  %v3503 = vlaneseq
  %v3504 = vshrl.u32 %v3503, 7
  %v3505 = vsub.s32 %v610, %v3504
  %v3506 = vrot.slane %v3474, %v3505
  %v3507 = vsel %vm276, %v3482, %v3478
  %v3508 = vsel %vm278, %v3486, %v3507
  %v3509 = vsel %vm280, %v3490, %v3508
  %v3510 = vsel %vm282, %v3494, %v3509
  %v3511 = vsel %vm284, %v3498, %v3510
  %v3512 = vsel %vm286, %v3502, %v3511
  %v3513 = vsel %vm288, %v3506, %v3512
  %v3515 = vsel %vm651, %v3513, 0.0
  %3516 = vadd.xlane.f32.xlu0 %v3515
  %v3517 = vpop.xlane.xlu0 %3516
  %v3519 = vlaneseq
  %v3520 = vshrl.u32 %v3519, 7
  %v3521 = vsub.s32 0, %v3520
  %v3522 = vrot.slane %v3517, %v3521
  %v3523 = vlaneseq
  %v3524 = vshrl.u32 %v3523, 7
  %v3525 = vsub.s32 1, %v3524
  %v3526 = vrot.slane %v3517, %v3525
  %v3527 = vlaneseq
  %v3528 = vshrl.u32 %v3527, 7
  %v3529 = vsub.s32 2, %v3528
  %v3530 = vrot.slane %v3517, %v3529
  %v3531 = vlaneseq
  %v3532 = vshrl.u32 %v3531, 7
  %v3533 = vsub.s32 3, %v3532
  %v3534 = vrot.slane %v3517, %v3533
  %v3535 = vlaneseq
  %v3536 = vshrl.u32 %v3535, 7
  %v3537 = vsub.s32 4, %v3536
  %v3538 = vrot.slane %v3517, %v3537
  %v3539 = vlaneseq
  %v3540 = vshrl.u32 %v3539, 7
  %v3541 = vsub.s32 5, %v3540
  %v3542 = vrot.slane %v3517, %v3541
  %v3543 = vlaneseq
  %v3544 = vshrl.u32 %v3543, 7
  %v3545 = vsub.s32 6, %v3544
  %v3546 = vrot.slane %v3517, %v3545
  %v3547 = vlaneseq
  %v3548 = vshrl.u32 %v3547, 7
  %v3549 = vsub.s32 7, %v3548
  %v3550 = vrot.slane %v3517, %v3549
  %v3559 = vrcp.pop %v3522
  %v3560 = vmul.f32 %v3428, %v3559
  %v3561 = vrcp.pop %v3526
  %v3562 = vmul.f32 %v3430, %v3561
  %v3563 = vrcp.pop %v3530
  %v3564 = vmul.f32 %v3432, %v3563
  %v3565 = vrcp.pop %v3534
  %v3566 = vmul.f32 %v3434, %v3565
  %v3567 = vrcp.pop %v3538
  %v3568 = vmul.f32 %v3436, %v3567
  %v3569 = vrcp.pop %v3542
  %v3570 = vmul.f32 %v3438, %v3569
  %v3571 = vrcp.pop %v3546
  %v3572 = vmul.f32 %v3440, %v3571
  %v3573 = vrcp.pop %v3550
  %v3574 = vmul.f32 %v3442, %v3573
  %3576 = vset.pattern.permute.xlu0 0
  %3577 = vperm.xlu0 %3576, %v3560
  %v3578 = vpop.permute.xlu0 %3577
  %3581 = vset.pattern.permute.xlu0 0
  %3582 = vperm.xlu0 %3581, %v3562
  %v3583 = vpop.permute.xlu0 %3582
  %3586 = vset.pattern.permute.xlu0 0
  %3587 = vperm.xlu0 %3586, %v3564
  %v3588 = vpop.permute.xlu0 %3587
  %3591 = vset.pattern.permute.xlu0 0
  %3592 = vperm.xlu0 %3591, %v3566
  %v3593 = vpop.permute.xlu0 %3592
  %3596 = vset.pattern.permute.xlu0 0
  %3597 = vperm.xlu0 %3596, %v3568
  %v3598 = vpop.permute.xlu0 %3597
  %3601 = vset.pattern.permute.xlu0 0
  %3602 = vperm.xlu0 %3601, %v3570
  %v3603 = vpop.permute.xlu0 %3602
  %3606 = vset.pattern.permute.xlu0 0
  %3607 = vperm.xlu0 %3606, %v3572
  %v3608 = vpop.permute.xlu0 %3607
  %3611 = vset.pattern.permute.xlu0 0
  %3612 = vperm.xlu0 %3611, %v3574
  %v3613 = vpop.permute.xlu0 %3612
  %v3615 = vmul.f32 %v43, %v3578
  %v3616 = vmul.f32 %v44, %v3583
  %v3617 = vmul.f32 %v45, %v3588
  %v3618 = vmul.f32 %v46, %v3593
  %v3619 = vmul.f32 %v47, %v3598
  %v3620 = vmul.f32 %v48, %v3603
  %v3621 = vmul.f32 %v49, %v3608
  %v3622 = vmul.f32 %v50, %v3613
  %v3623 = vsel %vm62, %v3615, 0.0
  %v3624 = vrot.slane %v3623, 4
  %v3625 = vadd.f32 %v3623, %v3624
  %v3626 = vrot.slane %v3625, 2
  %v3627 = vadd.f32 %v3625, %v3626
  %v3628 = vrot.slane %v3627, 1
  %v3629 = vadd.f32 %v3627, %v3628
  %v3630 = vsel %vm62, %v3616, 0.0
  %v3631 = vrot.slane %v3630, 4
  %v3632 = vadd.f32 %v3630, %v3631
  %v3633 = vrot.slane %v3632, 2
  %v3634 = vadd.f32 %v3632, %v3633
  %v3635 = vrot.slane %v3634, 1
  %v3636 = vadd.f32 %v3634, %v3635
  %v3637 = vsel %vm62, %v3617, 0.0
  %v3638 = vrot.slane %v3637, 4
  %v3639 = vadd.f32 %v3637, %v3638
  %v3640 = vrot.slane %v3639, 2
  %v3641 = vadd.f32 %v3639, %v3640
  %v3642 = vrot.slane %v3641, 1
  %v3643 = vadd.f32 %v3641, %v3642
  %v3644 = vsel %vm62, %v3618, 0.0
  %v3645 = vrot.slane %v3644, 4
  %v3646 = vadd.f32 %v3644, %v3645
  %v3647 = vrot.slane %v3646, 2
  %v3648 = vadd.f32 %v3646, %v3647
  %v3649 = vrot.slane %v3648, 1
  %v3650 = vadd.f32 %v3648, %v3649
  %v3651 = vsel %vm62, %v3619, 0.0
  %v3652 = vrot.slane %v3651, 4
  %v3653 = vadd.f32 %v3651, %v3652
  %v3654 = vrot.slane %v3653, 2
  %v3655 = vadd.f32 %v3653, %v3654
  %v3656 = vrot.slane %v3655, 1
  %v3657 = vadd.f32 %v3655, %v3656
  %v3658 = vsel %vm62, %v3620, 0.0
  %v3659 = vrot.slane %v3658, 4
  %v3660 = vadd.f32 %v3658, %v3659
  %v3661 = vrot.slane %v3660, 2
  %v3662 = vadd.f32 %v3660, %v3661
  %v3663 = vrot.slane %v3662, 1
  %v3664 = vadd.f32 %v3662, %v3663
  %v3665 = vsel %vm62, %v3621, 0.0
  %v3666 = vrot.slane %v3665, 4
  %v3667 = vadd.f32 %v3665, %v3666
  %v3668 = vrot.slane %v3667, 2
  %v3669 = vadd.f32 %v3667, %v3668
  %v3670 = vrot.slane %v3669, 1
  %v3671 = vadd.f32 %v3669, %v3670
  %v3672 = vsel %vm62, %v3622, 0.0
  %v3673 = vrot.slane %v3672, 4
  %v3674 = vadd.f32 %v3672, %v3673
  %v3675 = vrot.slane %v3674, 2
  %v3676 = vadd.f32 %v3674, %v3675
  %v3677 = vrot.slane %v3676, 1
  %v3678 = vadd.f32 %v3676, %v3677
  %v3679 = vld [vmem:[%s0 + $0x3] sm:$0x1]
  %v3680 = vld [vmem:[%s0 + $0xb] sm:$0x1]
  %v3681 = vld [vmem:[%s0 + $0x13] sm:$0x1]
  %v3682 = vld [vmem:[%s0 + $0x1b] sm:$0x1]
  %v3683 = vld [vmem:[%s0 + $0x23] sm:$0x1]
  %v3684 = vld [vmem:[%s0 + $0x2b] sm:$0x1]
  %v3685 = vld [vmem:[%s0 + $0x33] sm:$0x1]
  %v3686 = vld [vmem:[%s0 + $0x3b] sm:$0x1]
  %v3695 = vrot.slane %v3680, 7
  %v3696 = vsel %vm276, %v3695, %v3679
  %v3697 = vrot.slane %v3681, 6
  %v3698 = vsel %vm278, %v3697, %v3696
  %v3699 = vrot.slane %v3682, 5
  %v3700 = vsel %vm280, %v3699, %v3698
  %v3701 = vrot.slane %v3683, 4
  %v3702 = vsel %vm282, %v3701, %v3700
  %v3703 = vrot.slane %v3684, 3
  %v3704 = vsel %vm284, %v3703, %v3702
  %v3705 = vrot.slane %v3685, 2
  %v3706 = vsel %vm286, %v3705, %v3704
  %v3707 = vrot.slane %v3686, 1
  %v3708 = vsel %vm288, %v3707, %v3706
  %3710 = vst.msk [vmem:[#allocation2] sm:$0xff] %vm576, %v3708
  %v3719 = vsel %vm276, %v3636, %v3629
  %v3720 = vsel %vm278, %v3643, %v3719
  %v3721 = vsel %vm280, %v3650, %v3720
  %v3722 = vsel %vm282, %v3657, %v3721
  %v3723 = vsel %vm284, %v3664, %v3722
  %v3724 = vsel %vm286, %v3671, %v3723
  %v3725 = vsel %vm288, %v3678, %v3724
  %3726 = vrot.lane.b32.xlu0 %v3725, 16
  %v3727 = vpop.permute.xlu0 %3726
  %3729 = vst.msk [vmem:[#allocation2] sm:$0xff] %vm1006, %v3727
  %3730 = vrot.lane.b32.xlu0 %v2929, 80
  %v3731 = vpop.permute.xlu0 %3730
  %3733 = vst.msk [vmem:[#allocation2] sm:$0xff] %vm1011, %v3731
  %v3734 = vld [vmem:[#allocation2] sm:$0xff]
  %v3736 = vsel %vm1020, %v3734, 0
  %3738 = vmatprep.subr.mxu0 0.0
  %3739 = vmatpush1.msra.mxu0 %v367
  %3740 = vmatprep.subr.mxu0 0.0
  %3741 = vmatpush1.msra.mxu0 %v368
  %3742 = vmatprep.subr.mxu0 0.0
  %3743 = vmatpush1.msra.mxu0 %v369
  %3744 = vmatprep.subr.mxu0 0.0
  %3745 = vmatpush1.msra.mxu0 %v370
  %3746 = vmatprep.subr.mxu0 0.0
  %3747 = vmatpush1.msra.mxu0 %v371
  %3748 = vmatprep.subr.mxu0 0.0
  %3749 = vmatpush1.msra.mxu0 %v372
  %3750 = vmatprep.subr.mxu0 0.0
  %3751 = vmatpush1.msra.mxu0 %v373
  %3752 = vmatprep.subr.mxu0 0.0
  %3753 = vmatpush1.msra.mxu0 %v374
  %3754 = vmatprep.subr.mxu0 0.0
  %3755 = vmatpush1.msra.mxu0 %v375
  %3756 = vmatprep.subr.mxu0 0.0
  %3757 = vmatpush1.msra.mxu0 %v376
  %3758 = vmatprep.subr.mxu0 0.0
  %3759 = vmatpush1.msra.mxu0 0.0
  %3760 = vmatprep.subr.mxu0 0.0
  %3761 = vmatpush1.msra.mxu0 0.0
  %3762 = vmatprep.subr.mxu0 0.0
  %3763 = vmatpush1.msra.mxu0 0.0
  %3764 = vmatprep.subr.mxu0 0.0
  %3765 = vmatpush1.msra.mxu0 0.0
  %3766 = vmatprep.subr.mxu0 0.0
  %3767 = vmatpush1.msra.mxu0 0.0
  %3768 = vmatprep.subr.mxu0 0.0
  %3769 = vmatpush1.msra.mxu0 0.0
  %3770 = vmatprep.subr.mxu0 0.0
  %3771 = vmatpush1.msra.mxu0 0.0
  %3772 = vmatprep.subr.mxu0 0.0
  %3773 = vmatpush1.msra.mxu0 0.0
  %3774 = vmatprep.subr.mxu0 0.0
  %3775 = vmatpush1.msra.mxu0 0.0
  %3776 = vmatprep.subr.mxu0 0.0
  %3777 = vmatpush1.msra.mxu0 0.0
  %3778 = vmatprep.subr.mxu0 0.0
  %3779 = vmatpush1.msra.mxu0 0.0
  %3780 = vmatprep.subr.mxu0 0.0
  %3781 = vmatpush1.msra.mxu0 0.0
  %3782 = vmatprep.subr.mxu0 0.0
  %3783 = vmatpush1.msra.mxu0 0.0
  %3784 = vmatprep.subr.mxu0 0.0
  %3785 = vmatpush1.msra.mxu0 0.0
  %3786 = vmatprep.subr.mxu0 0.0
  %3787 = vmatpush1.msra.mxu0 0.0
  %3788 = vmatprep.subr.mxu0 0.0
  %3789 = vmatpush1.msra.mxu0 0.0
  %3790 = vmatprep.subr.mxu0 0.0
  %3791 = vmatpush1.msra.mxu0 0.0
  %3792 = vmatprep.subr.mxu0 0.0
  %3793 = vmatpush1.msra.mxu0 0.0
  %3794 = vmatprep.subr.mxu0 0.0
  %3795 = vmatpush1.msra.mxu0 0.0
  %3796 = vmatprep.subr.mxu0 0.0
  %3797 = vmatpush1.msra.mxu0 0.0
  %3798 = vmatprep.subr.mxu0 0.0
  %3799 = vmatpush1.msra.mxu0 0.0
  %3800 = vmatprep.subr.mxu0 0.0
  %3801 = vmatpush1.msra.mxu0 0.0
  %3802 = vmatprep.mubr.f32.mxu0 0.0
  %3803 = vmatmul.mubr.f32.gmra.mrb[0].mxu0 %v3736
  %v3804 = vpop.f32.mrb[0].mxu0
  %v3805 = vadd.f32 %v1018, %v3804
  %v3806 = vpop.f32.mrb[0].mxu0
  %3807 = vdwg.mxu0
  %v3808 = vxor.u32 %v3805, 2147483648
  %v3809 = vmul.f32 %v3808, 1.442695
  %v3810 = vpow.pop %v3809
  %v3811 = vadd.f32 %v3810, 1.0
  %v3812 = vrcp.pop %v3811
  %v3813 = vmul.f32 1.0, %v3812
  %v3814 = vtanh.pop %v3805
  %v3815 = vmul.f32 %v3813, %v2923
  %3817 = vrot.lane.b32.xlu0 %v3814, 64
  %v3818 = vpop.permute.xlu0 %3817
  %v3820 = vmul.f32 %v3813, %v3818
  %3822 = vrot.lane.b32.xlu0 %v3820, 32
  %v3823 = vpop.permute.xlu0 %3822
  %v3825 = vadd.f32 %v3815, %v3823
  %v3826 = vtanh.pop %v3825
  %3828 = vrot.lane.b32.xlu0 %v3826, 64
  %v3829 = vpop.permute.xlu0 %3828
  %v3831 = vmul.f32 %v3813, %v3829
  %3833 = vrot.lane.b32.xlu0 %v3831, 32
  %v3834 = vpop.permute.xlu0 %3833
  %v3835 = vsel %vm62, %v3834, 0
  %3837 = vmatprep.subr.mxu0 0.0
  %3838 = vmatpush1.msra.mxu0 %v378
  %3839 = vmatprep.subr.mxu0 0.0
  %3840 = vmatpush1.msra.mxu0 %v379
  %3841 = vmatprep.subr.mxu0 0.0
  %3842 = vmatpush1.msra.mxu0 %v380
  %3843 = vmatprep.subr.mxu0 0.0
  %3844 = vmatpush1.msra.mxu0 %v381
  %3845 = vmatprep.subr.mxu0 0.0
  %3846 = vmatpush1.msra.mxu0 0.0
  %3847 = vmatprep.subr.mxu0 0.0
  %3848 = vmatpush1.msra.mxu0 0.0
  %3849 = vmatprep.subr.mxu0 0.0
  %3850 = vmatpush1.msra.mxu0 0.0
  %3851 = vmatprep.subr.mxu0 0.0
  %3852 = vmatpush1.msra.mxu0 0.0
  %3853 = vmatprep.subr.mxu0 0.0
  %3854 = vmatpush1.msra.mxu0 0.0
  %3855 = vmatprep.subr.mxu0 0.0
  %3856 = vmatpush1.msra.mxu0 0.0
  %3857 = vmatprep.subr.mxu0 0.0
  %3858 = vmatpush1.msra.mxu0 0.0
  %3859 = vmatprep.subr.mxu0 0.0
  %3860 = vmatpush1.msra.mxu0 0.0
  %3861 = vmatprep.subr.mxu0 0.0
  %3862 = vmatpush1.msra.mxu0 0.0
  %3863 = vmatprep.subr.mxu0 0.0
  %3864 = vmatpush1.msra.mxu0 0.0
  %3865 = vmatprep.subr.mxu0 0.0
  %3866 = vmatpush1.msra.mxu0 0.0
  %3867 = vmatprep.subr.mxu0 0.0
  %3868 = vmatpush1.msra.mxu0 0.0
  %3869 = vmatprep.subr.mxu0 0.0
  %3870 = vmatpush1.msra.mxu0 0.0
  %3871 = vmatprep.subr.mxu0 0.0
  %3872 = vmatpush1.msra.mxu0 0.0
  %3873 = vmatprep.subr.mxu0 0.0
  %3874 = vmatpush1.msra.mxu0 0.0
  %3875 = vmatprep.subr.mxu0 0.0
  %3876 = vmatpush1.msra.mxu0 0.0
  %3877 = vmatprep.subr.mxu0 0.0
  %3878 = vmatpush1.msra.mxu0 0.0
  %3879 = vmatprep.subr.mxu0 0.0
  %3880 = vmatpush1.msra.mxu0 0.0
  %3881 = vmatprep.subr.mxu0 0.0
  %3882 = vmatpush1.msra.mxu0 0.0
  %3883 = vmatprep.subr.mxu0 0.0
  %3884 = vmatpush1.msra.mxu0 0.0
  %3885 = vmatprep.subr.mxu0 0.0
  %3886 = vmatpush1.msra.mxu0 0.0
  %3887 = vmatprep.subr.mxu0 0.0
  %3888 = vmatpush1.msra.mxu0 0.0
  %3889 = vmatprep.subr.mxu0 0.0
  %3890 = vmatpush1.msra.mxu0 0.0
  %3891 = vmatprep.subr.mxu0 0.0
  %3892 = vmatpush1.msra.mxu0 0.0
  %3893 = vmatprep.subr.mxu0 0.0
  %3894 = vmatpush1.msra.mxu0 0.0
  %3895 = vmatprep.subr.mxu0 0.0
  %3896 = vmatpush1.msra.mxu0 0.0
  %3897 = vmatprep.subr.mxu0 0.0
  %3898 = vmatpush1.msra.mxu0 0.0
  %3899 = vmatprep.subr.mxu0 0.0
  %3900 = vmatpush1.msra.mxu0 0.0
  %3901 = vmatprep.mubr.f32.mxu0 0.0
  %3902 = vmatmul.mubr.f32.gmra.mrb[0].mxu0 %v3835
  %v3903 = vpop.f32.mrb[0].mxu0
  %v3904 = vadd.f32 %v1122, %v3903
  %v3905 = vpop.f32.mrb[0].mxu0
  %3906 = vdwg.mxu0
  %v3908 = vcombine.high %v3904, %v3904
  %v3910 = vunpack.c.l.s4 1966171168
  %v3911 = vunpack.c.0.s8 %v3910
  %v3912 = vlaneseq
  %v3913 = vshrl.u32 %v3912, 7
  %v3914 = vsub.s32 %v3911, %v3913
  %v3915 = vrot.slane %v3904, %v3914
  %v3917 = vunpack.c.l.s4 1966171168
  %v3918 = vunpack.c.0.s8 %v3917
  %v3919 = vlaneseq
  %v3920 = vshrl.u32 %v3919, 7
  %v3921 = vsub.s32 %v3918, %v3920
  %v3922 = vrot.slane %v3908, %v3921
  %v3923 = vcombine.high %v3915, %v3915
  %v3924 = vcombine.high %v3922, %v3922
  %v3926 = vunpack.c.l.s4 1966171168
  %v3927 = vunpack.c.0.s8 %v3926
  %v3928 = vlaneseq
  %v3929 = vshrl.u32 %v3928, 7
  %v3930 = vsub.s32 %v3927, %v3929
  %v3931 = vrot.slane %v3915, %v3930
  %v3933 = vunpack.c.l.s4 1966171168
  %v3934 = vunpack.c.0.s8 %v3933
  %v3935 = vlaneseq
  %v3936 = vshrl.u32 %v3935, 7
  %v3937 = vsub.s32 %v3934, %v3936
  %v3938 = vrot.slane %v3922, %v3937
  %v3940 = vunpack.c.l.s4 1966171168
  %v3941 = vunpack.c.0.s8 %v3940
  %v3942 = vlaneseq
  %v3943 = vshrl.u32 %v3942, 7
  %v3944 = vsub.s32 %v3941, %v3943
  %v3945 = vrot.slane %v3923, %v3944
  %v3947 = vunpack.c.l.s4 1966171168
  %v3948 = vunpack.c.0.s8 %v3947
  %v3949 = vlaneseq
  %v3950 = vshrl.u32 %v3949, 7
  %v3951 = vsub.s32 %v3948, %v3950
  %v3952 = vrot.slane %v3924, %v3951
  %v3953 = vcombine.high %v3931, %v3931
  %v3954 = vcombine.high %v3938, %v3938
  %v3955 = vcombine.high %v3945, %v3945
  %v3956 = vcombine.high %v3952, %v3952
  %3965 = vst.msk [vmem:[%s12 + $0x3] sm:$0x1] %vm1257, %v3931
  %3966 = vst.msk [vmem:[%s12 + $0xb] sm:$0x1] %vm1257, %v3945
  %3967 = vst.msk [vmem:[%s12 + $0x13] sm:$0x1] %vm1257, %v3953
  %3968 = vst.msk [vmem:[%s12 + $0x1b] sm:$0x1] %vm1257, %v3955
  %3969 = vst.msk [vmem:[%s12 + $0x23] sm:$0x1] %vm1257, %v3938
  %3970 = vst.msk [vmem:[%s12 + $0x2b] sm:$0x1] %vm1257, %v3952
  %3971 = vst.msk [vmem:[%s12 + $0x33] sm:$0x1] %vm1257, %v3954
  %3972 = vst.msk [vmem:[%s12 + $0x3b] sm:$0x1] %vm1257, %v3956
  %v3973 = vlaneseq
  %v3974 = vshrl.u32 %v3973, 7
  %v3975 = vsub.s32 %v610, %v3974
  %v3976 = vrot.slane %v3578, %v3975
  %v3977 = vlaneseq
  %v3978 = vshrl.u32 %v3977, 7
  %v3979 = vsub.s32 %v610, %v3978
  %v3980 = vrot.slane %v3583, %v3979
  %v3981 = vlaneseq
  %v3982 = vshrl.u32 %v3981, 7
  %v3983 = vsub.s32 %v610, %v3982
  %v3984 = vrot.slane %v3588, %v3983
  %v3985 = vlaneseq
  %v3986 = vshrl.u32 %v3985, 7
  %v3987 = vsub.s32 %v610, %v3986
  %v3988 = vrot.slane %v3593, %v3987
  %v3989 = vlaneseq
  %v3990 = vshrl.u32 %v3989, 7
  %v3991 = vsub.s32 %v610, %v3990
  %v3992 = vrot.slane %v3598, %v3991
  %v3993 = vlaneseq
  %v3994 = vshrl.u32 %v3993, 7
  %v3995 = vsub.s32 %v610, %v3994
  %v3996 = vrot.slane %v3603, %v3995
  %v3997 = vlaneseq
  %v3998 = vshrl.u32 %v3997, 7
  %v3999 = vsub.s32 %v610, %v3998
  %v4000 = vrot.slane %v3608, %v3999
  %v4001 = vlaneseq
  %v4002 = vshrl.u32 %v4001, 7
  %v4003 = vsub.s32 %v610, %v4002
  %v4004 = vrot.slane %v3613, %v4003
  %4013 = vst.msk [vmem:[%s13 + $0x3] sm:$0x1] %vm1306, %v3976
  %4014 = vst.msk [vmem:[%s13 + $0xb] sm:$0x1] %vm1306, %v3980
  %4015 = vst.msk [vmem:[%s13 + $0x13] sm:$0x1] %vm1306, %v3984
  %4016 = vst.msk [vmem:[%s13 + $0x1b] sm:$0x1] %vm1306, %v3988
  %4017 = vst.msk [vmem:[%s13 + $0x23] sm:$0x1] %vm1306, %v3992
  %4018 = vst.msk [vmem:[%s13 + $0x2b] sm:$0x1] %vm1306, %v3996
  %4019 = vst.msk [vmem:[%s13 + $0x33] sm:$0x1] %vm1306, %v4000
  %4020 = vst.msk [vmem:[%s13 + $0x3b] sm:$0x1] %vm1306, %v4004
  %4021 = vmatprep.subr.mxu0 0.0
  %4022 = vmatpush1.msra.mxu0 %v362
  %4023 = vmatprep.subr.mxu0 0.0
  %4024 = vmatpush1.msra.mxu0 %v363
  %4025 = vmatprep.subr.mxu0 0.0
  %4026 = vmatpush1.msra.mxu0 %v364
  %4027 = vmatprep.subr.mxu0 0.0
  %4028 = vmatpush1.msra.mxu0 %v365
  %4029 = vmatprep.subr.mxu0 0.0
  %4030 = vmatpush1.msra.mxu0 0.0
  %4031 = vmatprep.subr.mxu0 0.0
  %4032 = vmatpush1.msra.mxu0 0.0
  %4033 = vmatprep.subr.mxu0 0.0
  %4034 = vmatpush1.msra.mxu0 0.0
  %4035 = vmatprep.subr.mxu0 0.0
  %4036 = vmatpush1.msra.mxu0 0.0
  %4037 = vmatprep.subr.mxu0 0.0
  %4038 = vmatpush1.msra.mxu0 0.0
  %4039 = vmatprep.subr.mxu0 0.0
  %4040 = vmatpush1.msra.mxu0 0.0
  %4041 = vmatprep.subr.mxu0 0.0
  %4042 = vmatpush1.msra.mxu0 0.0
  %4043 = vmatprep.subr.mxu0 0.0
  %4044 = vmatpush1.msra.mxu0 0.0
  %4045 = vmatprep.subr.mxu0 0.0
  %4046 = vmatpush1.msra.mxu0 0.0
  %4047 = vmatprep.subr.mxu0 0.0
  %4048 = vmatpush1.msra.mxu0 0.0
  %4049 = vmatprep.subr.mxu0 0.0
  %4050 = vmatpush1.msra.mxu0 0.0
  %4051 = vmatprep.subr.mxu0 0.0
  %4052 = vmatpush1.msra.mxu0 0.0
  %4053 = vmatprep.subr.mxu0 0.0
  %4054 = vmatpush1.msra.mxu0 0.0
  %4055 = vmatprep.subr.mxu0 0.0
  %4056 = vmatpush1.msra.mxu0 0.0
  %4057 = vmatprep.subr.mxu0 0.0
  %4058 = vmatpush1.msra.mxu0 0.0
  %4059 = vmatprep.subr.mxu0 0.0
  %4060 = vmatpush1.msra.mxu0 0.0
  %4061 = vmatprep.subr.mxu0 0.0
  %4062 = vmatpush1.msra.mxu0 0.0
  %4063 = vmatprep.subr.mxu0 0.0
  %4064 = vmatpush1.msra.mxu0 0.0
  %4065 = vmatprep.subr.mxu0 0.0
  %4066 = vmatpush1.msra.mxu0 0.0
  %4067 = vmatprep.subr.mxu0 0.0
  %4068 = vmatpush1.msra.mxu0 0.0
  %4069 = vmatprep.subr.mxu0 0.0
  %4070 = vmatpush1.msra.mxu0 0.0
  %4071 = vmatprep.subr.mxu0 0.0
  %4072 = vmatpush1.msra.mxu0 0.0
  %4073 = vmatprep.subr.mxu0 0.0
  %4074 = vmatpush1.msra.mxu0 0.0
  %4075 = vmatprep.subr.mxu0 0.0
  %4076 = vmatpush1.msra.mxu0 0.0
  %4077 = vmatprep.subr.mxu0 0.0
  %4078 = vmatpush1.msra.mxu0 0.0
  %4079 = vmatprep.subr.mxu0 0.0
  %4080 = vmatpush1.msra.mxu0 0.0
  %4081 = vmatprep.subr.mxu0 0.0
  %4082 = vmatpush1.msra.mxu0 0.0
  %4083 = vmatprep.subr.mxu0 0.0
  %4084 = vmatpush1.msra.mxu0 0.0
  %4085 = vmatprep.mubr.f32.mxu0 0.0
  %4086 = vmatmul.mubr.f32.gmra.mrb[0].mxu0 %v3835
  %v4087 = vpop.f32.mrb[0].mxu0
  %v4088 = vadd.f32 0.0, %v4087
  %v4089 = vpop.f32.mrb[0].mxu0
  %4090 = vdwg.mxu0
  %v4092 = vcombine.high %v4088, %v4088
  %v4094 = vunpack.c.l.s4 1966171168
  %v4095 = vunpack.c.0.s8 %v4094
  %v4096 = vlaneseq
  %v4097 = vshrl.u32 %v4096, 7
  %v4098 = vsub.s32 %v4095, %v4097
  %v4099 = vrot.slane %v4088, %v4098
  %v4101 = vunpack.c.l.s4 1966171168
  %v4102 = vunpack.c.0.s8 %v4101
  %v4103 = vlaneseq
  %v4104 = vshrl.u32 %v4103, 7
  %v4105 = vsub.s32 %v4102, %v4104
  %v4106 = vrot.slane %v4092, %v4105
  %v4107 = vcombine.high %v4099, %v4099
  %v4108 = vcombine.high %v4106, %v4106
  %v4110 = vunpack.c.l.s4 1966171168
  %v4111 = vunpack.c.0.s8 %v4110
  %v4112 = vlaneseq
  %v4113 = vshrl.u32 %v4112, 7
  %v4114 = vsub.s32 %v4111, %v4113
  %v4115 = vrot.slane %v4099, %v4114
  %v4117 = vunpack.c.l.s4 1966171168
  %v4118 = vunpack.c.0.s8 %v4117
  %v4119 = vlaneseq
  %v4120 = vshrl.u32 %v4119, 7
  %v4121 = vsub.s32 %v4118, %v4120
  %v4122 = vrot.slane %v4106, %v4121
  %v4124 = vunpack.c.l.s4 1966171168
  %v4125 = vunpack.c.0.s8 %v4124
  %v4126 = vlaneseq
  %v4127 = vshrl.u32 %v4126, 7
  %v4128 = vsub.s32 %v4125, %v4127
  %v4129 = vrot.slane %v4107, %v4128
  %v4131 = vunpack.c.l.s4 1966171168
  %v4132 = vunpack.c.0.s8 %v4131
  %v4133 = vlaneseq
  %v4134 = vshrl.u32 %v4133, 7
  %v4135 = vsub.s32 %v4132, %v4134
  %v4136 = vrot.slane %v4108, %v4135
  %v4137 = vcombine.high %v4115, %v4115
  %v4138 = vcombine.high %v4122, %v4122
  %v4139 = vcombine.high %v4129, %v4129
  %v4140 = vcombine.high %v4136, %v4136
  %v4141 = vlaneseq
  %v4142 = vshrl.u32 %v4141, 7
  %v4143 = vsub.s32 0, %v4142
  %v4144 = vrot.slane %v4115, %v4143
  %v4145 = vlaneseq
  %v4146 = vshrl.u32 %v4145, 7
  %v4147 = vsub.s32 0, %v4146
  %v4148 = vrot.slane %v4129, %v4147
  %v4149 = vlaneseq
  %v4150 = vshrl.u32 %v4149, 7
  %v4151 = vsub.s32 0, %v4150
  %v4152 = vrot.slane %v4137, %v4151
  %v4153 = vlaneseq
  %v4154 = vshrl.u32 %v4153, 7
  %v4155 = vsub.s32 0, %v4154
  %v4156 = vrot.slane %v4139, %v4155
  %v4157 = vlaneseq
  %v4158 = vshrl.u32 %v4157, 7
  %v4159 = vsub.s32 0, %v4158
  %v4160 = vrot.slane %v4122, %v4159
  %v4161 = vlaneseq
  %v4162 = vshrl.u32 %v4161, 7
  %v4163 = vsub.s32 0, %v4162
  %v4164 = vrot.slane %v4136, %v4163
  %v4165 = vlaneseq
  %v4166 = vshrl.u32 %v4165, 7
  %v4167 = vsub.s32 0, %v4166
  %v4168 = vrot.slane %v4138, %v4167
  %v4169 = vlaneseq
  %v4170 = vshrl.u32 %v4169, 7
  %v4171 = vsub.s32 0, %v4170
  %v4172 = vrot.slane %v4140, %v4171
  %v4181 = vadd.f32 %v154, %v4144
  %v4182 = vadd.f32 %v159, %v4148
  %v4183 = vadd.f32 %v164, %v4152
  %v4184 = vadd.f32 %v169, %v4156
  %v4185 = vadd.f32 %v174, %v4160
  %v4186 = vadd.f32 %v179, %v4164
  %v4187 = vadd.f32 %v184, %v4168
  %v4188 = vadd.f32 %v189, %v4172
  %v4189 = vtanh.pop %v4181
  %v4190 = vtanh.pop %v4182
  %v4191 = vtanh.pop %v4183
  %v4192 = vtanh.pop %v4184
  %v4193 = vtanh.pop %v4185
  %v4194 = vtanh.pop %v4186
  %v4195 = vtanh.pop %v4187
  %v4196 = vtanh.pop %v4188
  %v4197 = vmul.f32 %v4189, %v566
  %v4198 = vmul.f32 %v4190, %v566
  %v4199 = vmul.f32 %v4191, %v566
  %v4200 = vmul.f32 %v4192, %v566
  %v4201 = vmul.f32 %v4193, %v566
  %v4202 = vmul.f32 %v4194, %v566
  %v4203 = vmul.f32 %v4195, %v566
  %v4204 = vmul.f32 %v4196, %v566
  %v4205 = vsel %vm576, %v4197, 0.0
  %4206 = vadd.xlane.f32.xlu0 %v4205
  %v4207 = vpop.xlane.xlu0 %4206
  %v4208 = vsel %vm576, %v4198, 0.0
  %4209 = vadd.xlane.f32.xlu0 %v4208
  %v4210 = vpop.xlane.xlu0 %4209
  %v4211 = vsel %vm576, %v4199, 0.0
  %4212 = vadd.xlane.f32.xlu0 %v4211
  %v4213 = vpop.xlane.xlu0 %4212
  %v4214 = vsel %vm576, %v4200, 0.0
  %4215 = vadd.xlane.f32.xlu0 %v4214
  %v4216 = vpop.xlane.xlu0 %4215
  %v4217 = vsel %vm576, %v4201, 0.0
  %4218 = vadd.xlane.f32.xlu0 %v4217
  %v4219 = vpop.xlane.xlu0 %4218
  %v4220 = vsel %vm576, %v4202, 0.0
  %4221 = vadd.xlane.f32.xlu0 %v4220
  %v4222 = vpop.xlane.xlu0 %4221
  %v4223 = vsel %vm576, %v4203, 0.0
  %4224 = vadd.xlane.f32.xlu0 %v4223
  %v4225 = vpop.xlane.xlu0 %4224
  %v4226 = vsel %vm576, %v4204, 0.0
  %4227 = vadd.xlane.f32.xlu0 %v4226
  %v4228 = vpop.xlane.xlu0 %4227
  %v4237 = vlaneseq
  %v4238 = vshrl.u32 %v4237, 7
  %v4239 = vsub.s32 %v610, %v4238
  %v4240 = vrot.slane %v4207, %v4239
  %v4241 = vlaneseq
  %v4242 = vshrl.u32 %v4241, 7
  %v4243 = vsub.s32 %v610, %v4242
  %v4244 = vrot.slane %v4210, %v4243
  %v4245 = vlaneseq
  %v4246 = vshrl.u32 %v4245, 7
  %v4247 = vsub.s32 %v610, %v4246
  %v4248 = vrot.slane %v4213, %v4247
  %v4249 = vlaneseq
  %v4250 = vshrl.u32 %v4249, 7
  %v4251 = vsub.s32 %v610, %v4250
  %v4252 = vrot.slane %v4216, %v4251
  %v4253 = vlaneseq
  %v4254 = vshrl.u32 %v4253, 7
  %v4255 = vsub.s32 %v610, %v4254
  %v4256 = vrot.slane %v4219, %v4255
  %v4257 = vlaneseq
  %v4258 = vshrl.u32 %v4257, 7
  %v4259 = vsub.s32 %v610, %v4258
  %v4260 = vrot.slane %v4222, %v4259
  %v4261 = vlaneseq
  %v4262 = vshrl.u32 %v4261, 7
  %v4263 = vsub.s32 %v610, %v4262
  %v4264 = vrot.slane %v4225, %v4263
  %v4265 = vlaneseq
  %v4266 = vshrl.u32 %v4265, 7
  %v4267 = vsub.s32 %v610, %v4266
  %v4268 = vrot.slane %v4228, %v4267
  %v4269 = vsel %vm276, %v4244, %v4240
  %v4270 = vsel %vm278, %v4248, %v4269
  %v4271 = vsel %vm280, %v4252, %v4270
  %v4272 = vsel %vm282, %v4256, %v4271
  %v4273 = vsel %vm284, %v4260, %v4272
  %v4274 = vsel %vm286, %v4264, %v4273
  %v4275 = vsel %vm288, %v4268, %v4274
  %v4277 = vsel %vm651, %v4275, -inf
  %4278 = vmax.xlane.f32.xlu0 %v4277
  %v4279 = vpop.xlane.xlu0 %4278
  %v4281 = vlaneseq
  %v4282 = vshrl.u32 %v4281, 7
  %v4283 = vsub.s32 0, %v4282
  %v4284 = vrot.slane %v4279, %v4283
  %v4285 = vlaneseq
  %v4286 = vshrl.u32 %v4285, 7
  %v4287 = vsub.s32 1, %v4286
  %v4288 = vrot.slane %v4279, %v4287
  %v4289 = vlaneseq
  %v4290 = vshrl.u32 %v4289, 7
  %v4291 = vsub.s32 2, %v4290
  %v4292 = vrot.slane %v4279, %v4291
  %v4293 = vlaneseq
  %v4294 = vshrl.u32 %v4293, 7
  %v4295 = vsub.s32 3, %v4294
  %v4296 = vrot.slane %v4279, %v4295
  %v4297 = vlaneseq
  %v4298 = vshrl.u32 %v4297, 7
  %v4299 = vsub.s32 4, %v4298
  %v4300 = vrot.slane %v4279, %v4299
  %v4301 = vlaneseq
  %v4302 = vshrl.u32 %v4301, 7
  %v4303 = vsub.s32 5, %v4302
  %v4304 = vrot.slane %v4279, %v4303
  %v4305 = vlaneseq
  %v4306 = vshrl.u32 %v4305, 7
  %v4307 = vsub.s32 6, %v4306
  %v4308 = vrot.slane %v4279, %v4307
  %v4309 = vlaneseq
  %v4310 = vshrl.u32 %v4309, 7
  %v4311 = vsub.s32 7, %v4310
  %v4312 = vrot.slane %v4279, %v4311
  %v4321 = vsub.f32 %v4207, %v4284
  %v4322 = vsub.f32 %v4210, %v4288
  %v4323 = vsub.f32 %v4213, %v4292
  %v4324 = vsub.f32 %v4216, %v4296
  %v4325 = vsub.f32 %v4219, %v4300
  %v4326 = vsub.f32 %v4222, %v4304
  %v4327 = vsub.f32 %v4225, %v4308
  %v4328 = vsub.f32 %v4228, %v4312
  %v4329 = vmul.f32 %v4321, 1.442695
  %v4330 = vpow.pop %v4329
  %v4331 = vmul.f32 %v4322, 1.442695
  %v4332 = vpow.pop %v4331
  %v4333 = vmul.f32 %v4323, 1.442695
  %v4334 = vpow.pop %v4333
  %v4335 = vmul.f32 %v4324, 1.442695
  %v4336 = vpow.pop %v4335
  %v4337 = vmul.f32 %v4325, 1.442695
  %v4338 = vpow.pop %v4337
  %v4339 = vmul.f32 %v4326, 1.442695
  %v4340 = vpow.pop %v4339
  %v4341 = vmul.f32 %v4327, 1.442695
  %v4342 = vpow.pop %v4341
  %v4343 = vmul.f32 %v4328, 1.442695
  %v4344 = vpow.pop %v4343
  %4353 = vset.pattern.permute.xlu0 0
  %4354 = vperm.xlu0 %4353, %v4330
  %v4355 = vpop.permute.xlu0 %4354
  %4356 = vset.pattern.permute.xlu0 0
  %4357 = vperm.xlu0 %4356, %v4332
  %v4358 = vpop.permute.xlu0 %4357
  %4359 = vset.pattern.permute.xlu0 0
  %4360 = vperm.xlu0 %4359, %v4334
  %v4361 = vpop.permute.xlu0 %4360
  %4362 = vset.pattern.permute.xlu0 0
  %4363 = vperm.xlu0 %4362, %v4336
  %v4364 = vpop.permute.xlu0 %4363
  %4365 = vset.pattern.permute.xlu0 0
  %4366 = vperm.xlu0 %4365, %v4338
  %v4367 = vpop.permute.xlu0 %4366
  %4368 = vset.pattern.permute.xlu0 0
  %4369 = vperm.xlu0 %4368, %v4340
  %v4370 = vpop.permute.xlu0 %4369
  %4371 = vset.pattern.permute.xlu0 0
  %4372 = vperm.xlu0 %4371, %v4342
  %v4373 = vpop.permute.xlu0 %4372
  %4374 = vset.pattern.permute.xlu0 0
  %4375 = vperm.xlu0 %4374, %v4344
  %v4376 = vpop.permute.xlu0 %4375
  %v4377 = vlaneseq
  %v4378 = vshrl.u32 %v4377, 7
  %v4379 = vsub.s32 %v610, %v4378
  %v4380 = vrot.slane %v4355, %v4379
  %v4381 = vlaneseq
  %v4382 = vshrl.u32 %v4381, 7
  %v4383 = vsub.s32 %v610, %v4382
  %v4384 = vrot.slane %v4358, %v4383
  %v4385 = vlaneseq
  %v4386 = vshrl.u32 %v4385, 7
  %v4387 = vsub.s32 %v610, %v4386
  %v4388 = vrot.slane %v4361, %v4387
  %v4389 = vlaneseq
  %v4390 = vshrl.u32 %v4389, 7
  %v4391 = vsub.s32 %v610, %v4390
  %v4392 = vrot.slane %v4364, %v4391
  %v4393 = vlaneseq
  %v4394 = vshrl.u32 %v4393, 7
  %v4395 = vsub.s32 %v610, %v4394
  %v4396 = vrot.slane %v4367, %v4395
  %v4397 = vlaneseq
  %v4398 = vshrl.u32 %v4397, 7
  %v4399 = vsub.s32 %v610, %v4398
  %v4400 = vrot.slane %v4370, %v4399
  %v4401 = vlaneseq
  %v4402 = vshrl.u32 %v4401, 7
  %v4403 = vsub.s32 %v610, %v4402
  %v4404 = vrot.slane %v4373, %v4403
  %v4405 = vlaneseq
  %v4406 = vshrl.u32 %v4405, 7
  %v4407 = vsub.s32 %v610, %v4406
  %v4408 = vrot.slane %v4376, %v4407
  %v4409 = vsel %vm276, %v4384, %v4380
  %v4410 = vsel %vm278, %v4388, %v4409
  %v4411 = vsel %vm280, %v4392, %v4410
  %v4412 = vsel %vm282, %v4396, %v4411
  %v4413 = vsel %vm284, %v4400, %v4412
  %v4414 = vsel %vm286, %v4404, %v4413
  %v4415 = vsel %vm288, %v4408, %v4414
  %v4417 = vsel %vm651, %v4415, 0.0
  %4418 = vadd.xlane.f32.xlu0 %v4417
  %v4419 = vpop.xlane.xlu0 %4418
  %v4421 = vlaneseq
  %v4422 = vshrl.u32 %v4421, 7
  %v4423 = vsub.s32 0, %v4422
  %v4424 = vrot.slane %v4419, %v4423
  %v4425 = vlaneseq
  %v4426 = vshrl.u32 %v4425, 7
  %v4427 = vsub.s32 1, %v4426
  %v4428 = vrot.slane %v4419, %v4427
  %v4429 = vlaneseq
  %v4430 = vshrl.u32 %v4429, 7
  %v4431 = vsub.s32 2, %v4430
  %v4432 = vrot.slane %v4419, %v4431
  %v4433 = vlaneseq
  %v4434 = vshrl.u32 %v4433, 7
  %v4435 = vsub.s32 3, %v4434
  %v4436 = vrot.slane %v4419, %v4435
  %v4437 = vlaneseq
  %v4438 = vshrl.u32 %v4437, 7
  %v4439 = vsub.s32 4, %v4438
  %v4440 = vrot.slane %v4419, %v4439
  %v4441 = vlaneseq
  %v4442 = vshrl.u32 %v4441, 7
  %v4443 = vsub.s32 5, %v4442
  %v4444 = vrot.slane %v4419, %v4443
  %v4445 = vlaneseq
  %v4446 = vshrl.u32 %v4445, 7
  %v4447 = vsub.s32 6, %v4446
  %v4448 = vrot.slane %v4419, %v4447
  %v4449 = vlaneseq
  %v4450 = vshrl.u32 %v4449, 7
  %v4451 = vsub.s32 7, %v4450
  %v4452 = vrot.slane %v4419, %v4451
  %v4461 = vrcp.pop %v4424
  %v4462 = vmul.f32 %v4330, %v4461
  %v4463 = vrcp.pop %v4428
  %v4464 = vmul.f32 %v4332, %v4463
  %v4465 = vrcp.pop %v4432
  %v4466 = vmul.f32 %v4334, %v4465
  %v4467 = vrcp.pop %v4436
  %v4468 = vmul.f32 %v4336, %v4467
  %v4469 = vrcp.pop %v4440
  %v4470 = vmul.f32 %v4338, %v4469
  %v4471 = vrcp.pop %v4444
  %v4472 = vmul.f32 %v4340, %v4471
  %v4473 = vrcp.pop %v4448
  %v4474 = vmul.f32 %v4342, %v4473
  %v4475 = vrcp.pop %v4452
  %v4476 = vmul.f32 %v4344, %v4475
  %4478 = vset.pattern.permute.xlu0 0
  %4479 = vperm.xlu0 %4478, %v4462
  %v4480 = vpop.permute.xlu0 %4479
  %4483 = vset.pattern.permute.xlu0 0
  %4484 = vperm.xlu0 %4483, %v4464
  %v4485 = vpop.permute.xlu0 %4484
  %4488 = vset.pattern.permute.xlu0 0
  %4489 = vperm.xlu0 %4488, %v4466
  %v4490 = vpop.permute.xlu0 %4489
  %4493 = vset.pattern.permute.xlu0 0
  %4494 = vperm.xlu0 %4493, %v4468
  %v4495 = vpop.permute.xlu0 %4494
  %4498 = vset.pattern.permute.xlu0 0
  %4499 = vperm.xlu0 %4498, %v4470
  %v4500 = vpop.permute.xlu0 %4499
  %4503 = vset.pattern.permute.xlu0 0
  %4504 = vperm.xlu0 %4503, %v4472
  %v4505 = vpop.permute.xlu0 %4504
  %4508 = vset.pattern.permute.xlu0 0
  %4509 = vperm.xlu0 %4508, %v4474
  %v4510 = vpop.permute.xlu0 %4509
  %4513 = vset.pattern.permute.xlu0 0
  %4514 = vperm.xlu0 %4513, %v4476
  %v4515 = vpop.permute.xlu0 %4514
  %v4517 = vmul.f32 %v43, %v4480
  %v4518 = vmul.f32 %v44, %v4485
  %v4519 = vmul.f32 %v45, %v4490
  %v4520 = vmul.f32 %v46, %v4495
  %v4521 = vmul.f32 %v47, %v4500
  %v4522 = vmul.f32 %v48, %v4505
  %v4523 = vmul.f32 %v49, %v4510
  %v4524 = vmul.f32 %v50, %v4515
  %v4525 = vsel %vm62, %v4517, 0.0
  %v4526 = vrot.slane %v4525, 4
  %v4527 = vadd.f32 %v4525, %v4526
  %v4528 = vrot.slane %v4527, 2
  %v4529 = vadd.f32 %v4527, %v4528
  %v4530 = vrot.slane %v4529, 1
  %v4531 = vadd.f32 %v4529, %v4530
  %v4532 = vsel %vm62, %v4518, 0.0
  %v4533 = vrot.slane %v4532, 4
  %v4534 = vadd.f32 %v4532, %v4533
  %v4535 = vrot.slane %v4534, 2
  %v4536 = vadd.f32 %v4534, %v4535
  %v4537 = vrot.slane %v4536, 1
  %v4538 = vadd.f32 %v4536, %v4537
  %v4539 = vsel %vm62, %v4519, 0.0
  %v4540 = vrot.slane %v4539, 4
  %v4541 = vadd.f32 %v4539, %v4540
  %v4542 = vrot.slane %v4541, 2
  %v4543 = vadd.f32 %v4541, %v4542
  %v4544 = vrot.slane %v4543, 1
  %v4545 = vadd.f32 %v4543, %v4544
  %v4546 = vsel %vm62, %v4520, 0.0
  %v4547 = vrot.slane %v4546, 4
  %v4548 = vadd.f32 %v4546, %v4547
  %v4549 = vrot.slane %v4548, 2
  %v4550 = vadd.f32 %v4548, %v4549
  %v4551 = vrot.slane %v4550, 1
  %v4552 = vadd.f32 %v4550, %v4551
  %v4553 = vsel %vm62, %v4521, 0.0
  %v4554 = vrot.slane %v4553, 4
  %v4555 = vadd.f32 %v4553, %v4554
  %v4556 = vrot.slane %v4555, 2
  %v4557 = vadd.f32 %v4555, %v4556
  %v4558 = vrot.slane %v4557, 1
  %v4559 = vadd.f32 %v4557, %v4558
  %v4560 = vsel %vm62, %v4522, 0.0
  %v4561 = vrot.slane %v4560, 4
  %v4562 = vadd.f32 %v4560, %v4561
  %v4563 = vrot.slane %v4562, 2
  %v4564 = vadd.f32 %v4562, %v4563
  %v4565 = vrot.slane %v4564, 1
  %v4566 = vadd.f32 %v4564, %v4565
  %v4567 = vsel %vm62, %v4523, 0.0
  %v4568 = vrot.slane %v4567, 4
  %v4569 = vadd.f32 %v4567, %v4568
  %v4570 = vrot.slane %v4569, 2
  %v4571 = vadd.f32 %v4569, %v4570
  %v4572 = vrot.slane %v4571, 1
  %v4573 = vadd.f32 %v4571, %v4572
  %v4574 = vsel %vm62, %v4524, 0.0
  %v4575 = vrot.slane %v4574, 4
  %v4576 = vadd.f32 %v4574, %v4575
  %v4577 = vrot.slane %v4576, 2
  %v4578 = vadd.f32 %v4576, %v4577
  %v4579 = vrot.slane %v4578, 1
  %v4580 = vadd.f32 %v4578, %v4579
  %v4581 = vld [vmem:[%s0 + $0x4] sm:$0x1]
  %v4582 = vld [vmem:[%s0 + $0xc] sm:$0x1]
  %v4583 = vld [vmem:[%s0 + $0x14] sm:$0x1]
  %v4584 = vld [vmem:[%s0 + $0x1c] sm:$0x1]
  %v4585 = vld [vmem:[%s0 + $0x24] sm:$0x1]
  %v4586 = vld [vmem:[%s0 + $0x2c] sm:$0x1]
  %v4587 = vld [vmem:[%s0 + $0x34] sm:$0x1]
  %v4588 = vld [vmem:[%s0 + $0x3c] sm:$0x1]
  %v4597 = vrot.slane %v4582, 7
  %v4598 = vsel %vm276, %v4597, %v4581
  %v4599 = vrot.slane %v4583, 6
  %v4600 = vsel %vm278, %v4599, %v4598
  %v4601 = vrot.slane %v4584, 5
  %v4602 = vsel %vm280, %v4601, %v4600
  %v4603 = vrot.slane %v4585, 4
  %v4604 = vsel %vm282, %v4603, %v4602
  %v4605 = vrot.slane %v4586, 3
  %v4606 = vsel %vm284, %v4605, %v4604
  %v4607 = vrot.slane %v4587, 2
  %v4608 = vsel %vm286, %v4607, %v4606
  %v4609 = vrot.slane %v4588, 1
  %v4610 = vsel %vm288, %v4609, %v4608
  %4612 = vst.msk [vmem:[#allocation2] sm:$0xff] %vm576, %v4610
  %v4621 = vsel %vm276, %v4538, %v4531
  %v4622 = vsel %vm278, %v4545, %v4621
  %v4623 = vsel %vm280, %v4552, %v4622
  %v4624 = vsel %vm282, %v4559, %v4623
  %v4625 = vsel %vm284, %v4566, %v4624
  %v4626 = vsel %vm286, %v4573, %v4625
  %v4627 = vsel %vm288, %v4580, %v4626
  %4628 = vrot.lane.b32.xlu0 %v4627, 16
  %v4629 = vpop.permute.xlu0 %4628
  %4631 = vst.msk [vmem:[#allocation2] sm:$0xff] %vm1006, %v4629
  %4632 = vrot.lane.b32.xlu0 %v3831, 80
  %v4633 = vpop.permute.xlu0 %4632
  %4635 = vst.msk [vmem:[#allocation2] sm:$0xff] %vm1011, %v4633
  %v4636 = vld [vmem:[#allocation2] sm:$0xff]
  %v4638 = vsel %vm1020, %v4636, 0
  %4640 = vmatprep.subr.mxu0 0.0
  %4641 = vmatpush1.msra.mxu0 %v367
  %4642 = vmatprep.subr.mxu0 0.0
  %4643 = vmatpush1.msra.mxu0 %v368
  %4644 = vmatprep.subr.mxu0 0.0
  %4645 = vmatpush1.msra.mxu0 %v369
  %4646 = vmatprep.subr.mxu0 0.0
  %4647 = vmatpush1.msra.mxu0 %v370
  %4648 = vmatprep.subr.mxu0 0.0
  %4649 = vmatpush1.msra.mxu0 %v371
  %4650 = vmatprep.subr.mxu0 0.0
  %4651 = vmatpush1.msra.mxu0 %v372
  %4652 = vmatprep.subr.mxu0 0.0
  %4653 = vmatpush1.msra.mxu0 %v373
  %4654 = vmatprep.subr.mxu0 0.0
  %4655 = vmatpush1.msra.mxu0 %v374
  %4656 = vmatprep.subr.mxu0 0.0
  %4657 = vmatpush1.msra.mxu0 %v375
  %4658 = vmatprep.subr.mxu0 0.0
  %4659 = vmatpush1.msra.mxu0 %v376
  %4660 = vmatprep.subr.mxu0 0.0
  %4661 = vmatpush1.msra.mxu0 0.0
  %4662 = vmatprep.subr.mxu0 0.0
  %4663 = vmatpush1.msra.mxu0 0.0
  %4664 = vmatprep.subr.mxu0 0.0
  %4665 = vmatpush1.msra.mxu0 0.0
  %4666 = vmatprep.subr.mxu0 0.0
  %4667 = vmatpush1.msra.mxu0 0.0
  %4668 = vmatprep.subr.mxu0 0.0
  %4669 = vmatpush1.msra.mxu0 0.0
  %4670 = vmatprep.subr.mxu0 0.0
  %4671 = vmatpush1.msra.mxu0 0.0
  %4672 = vmatprep.subr.mxu0 0.0
  %4673 = vmatpush1.msra.mxu0 0.0
  %4674 = vmatprep.subr.mxu0 0.0
  %4675 = vmatpush1.msra.mxu0 0.0
  %4676 = vmatprep.subr.mxu0 0.0
  %4677 = vmatpush1.msra.mxu0 0.0
  %4678 = vmatprep.subr.mxu0 0.0
  %4679 = vmatpush1.msra.mxu0 0.0
  %4680 = vmatprep.subr.mxu0 0.0
  %4681 = vmatpush1.msra.mxu0 0.0
  %4682 = vmatprep.subr.mxu0 0.0
  %4683 = vmatpush1.msra.mxu0 0.0
  %4684 = vmatprep.subr.mxu0 0.0
  %4685 = vmatpush1.msra.mxu0 0.0
  %4686 = vmatprep.subr.mxu0 0.0
  %4687 = vmatpush1.msra.mxu0 0.0
  %4688 = vmatprep.subr.mxu0 0.0
  %4689 = vmatpush1.msra.mxu0 0.0
  %4690 = vmatprep.subr.mxu0 0.0
  %4691 = vmatpush1.msra.mxu0 0.0
  %4692 = vmatprep.subr.mxu0 0.0
  %4693 = vmatpush1.msra.mxu0 0.0
  %4694 = vmatprep.subr.mxu0 0.0
  %4695 = vmatpush1.msra.mxu0 0.0
  %4696 = vmatprep.subr.mxu0 0.0
  %4697 = vmatpush1.msra.mxu0 0.0
  %4698 = vmatprep.subr.mxu0 0.0
  %4699 = vmatpush1.msra.mxu0 0.0
  %4700 = vmatprep.subr.mxu0 0.0
  %4701 = vmatpush1.msra.mxu0 0.0
  %4702 = vmatprep.subr.mxu0 0.0
  %4703 = vmatpush1.msra.mxu0 0.0
  %4704 = vmatprep.mubr.f32.mxu0 0.0
  %4705 = vmatmul.mubr.f32.gmra.mrb[0].mxu0 %v4638
  %v4706 = vpop.f32.mrb[0].mxu0
  %v4707 = vadd.f32 %v1018, %v4706
  %v4708 = vpop.f32.mrb[0].mxu0
  %4709 = vdwg.mxu0
  %v4710 = vxor.u32 %v4707, 2147483648
  %v4711 = vmul.f32 %v4710, 1.442695
  %v4712 = vpow.pop %v4711
  %v4713 = vadd.f32 %v4712, 1.0
  %v4714 = vrcp.pop %v4713
  %v4715 = vmul.f32 1.0, %v4714
  %v4716 = vtanh.pop %v4707
  %v4717 = vmul.f32 %v4715, %v3825
  %4719 = vrot.lane.b32.xlu0 %v4716, 64
  %v4720 = vpop.permute.xlu0 %4719
  %v4722 = vmul.f32 %v4715, %v4720
  %4724 = vrot.lane.b32.xlu0 %v4722, 32
  %v4725 = vpop.permute.xlu0 %4724
  %v4727 = vadd.f32 %v4717, %v4725
  %v4728 = vtanh.pop %v4727
  %4730 = vrot.lane.b32.xlu0 %v4728, 64
  %v4731 = vpop.permute.xlu0 %4730
  %v4733 = vmul.f32 %v4715, %v4731
  %4735 = vrot.lane.b32.xlu0 %v4733, 32
  %v4736 = vpop.permute.xlu0 %4735
  %v4737 = vsel %vm62, %v4736, 0
  %4739 = vmatprep.subr.mxu0 0.0
  %4740 = vmatpush1.msra.mxu0 %v378
  %4741 = vmatprep.subr.mxu0 0.0
  %4742 = vmatpush1.msra.mxu0 %v379
  %4743 = vmatprep.subr.mxu0 0.0
  %4744 = vmatpush1.msra.mxu0 %v380
  %4745 = vmatprep.subr.mxu0 0.0
  %4746 = vmatpush1.msra.mxu0 %v381
  %4747 = vmatprep.subr.mxu0 0.0
  %4748 = vmatpush1.msra.mxu0 0.0
  %4749 = vmatprep.subr.mxu0 0.0
  %4750 = vmatpush1.msra.mxu0 0.0
  %4751 = vmatprep.subr.mxu0 0.0
  %4752 = vmatpush1.msra.mxu0 0.0
  %4753 = vmatprep.subr.mxu0 0.0
  %4754 = vmatpush1.msra.mxu0 0.0
  %4755 = vmatprep.subr.mxu0 0.0
  %4756 = vmatpush1.msra.mxu0 0.0
  %4757 = vmatprep.subr.mxu0 0.0
  %4758 = vmatpush1.msra.mxu0 0.0
  %4759 = vmatprep.subr.mxu0 0.0
  %4760 = vmatpush1.msra.mxu0 0.0
  %4761 = vmatprep.subr.mxu0 0.0
  %4762 = vmatpush1.msra.mxu0 0.0
  %4763 = vmatprep.subr.mxu0 0.0
  %4764 = vmatpush1.msra.mxu0 0.0
  %4765 = vmatprep.subr.mxu0 0.0
  %4766 = vmatpush1.msra.mxu0 0.0
  %4767 = vmatprep.subr.mxu0 0.0
  %4768 = vmatpush1.msra.mxu0 0.0
  %4769 = vmatprep.subr.mxu0 0.0
  %4770 = vmatpush1.msra.mxu0 0.0
  %4771 = vmatprep.subr.mxu0 0.0
  %4772 = vmatpush1.msra.mxu0 0.0
  %4773 = vmatprep.subr.mxu0 0.0
  %4774 = vmatpush1.msra.mxu0 0.0
  %4775 = vmatprep.subr.mxu0 0.0
  %4776 = vmatpush1.msra.mxu0 0.0
  %4777 = vmatprep.subr.mxu0 0.0
  %4778 = vmatpush1.msra.mxu0 0.0
  %4779 = vmatprep.subr.mxu0 0.0
  %4780 = vmatpush1.msra.mxu0 0.0
  %4781 = vmatprep.subr.mxu0 0.0
  %4782 = vmatpush1.msra.mxu0 0.0
  %4783 = vmatprep.subr.mxu0 0.0
  %4784 = vmatpush1.msra.mxu0 0.0
  %4785 = vmatprep.subr.mxu0 0.0
  %4786 = vmatpush1.msra.mxu0 0.0
  %4787 = vmatprep.subr.mxu0 0.0
  %4788 = vmatpush1.msra.mxu0 0.0
  %4789 = vmatprep.subr.mxu0 0.0
  %4790 = vmatpush1.msra.mxu0 0.0
  %4791 = vmatprep.subr.mxu0 0.0
  %4792 = vmatpush1.msra.mxu0 0.0
  %4793 = vmatprep.subr.mxu0 0.0
  %4794 = vmatpush1.msra.mxu0 0.0
  %4795 = vmatprep.subr.mxu0 0.0
  %4796 = vmatpush1.msra.mxu0 0.0
  %4797 = vmatprep.subr.mxu0 0.0
  %4798 = vmatpush1.msra.mxu0 0.0
  %4799 = vmatprep.subr.mxu0 0.0
  %4800 = vmatpush1.msra.mxu0 0.0
  %4801 = vmatprep.subr.mxu0 0.0
  %4802 = vmatpush1.msra.mxu0 0.0
  %4803 = vmatprep.mubr.f32.mxu0 0.0
  %4804 = vmatmul.mubr.f32.gmra.mrb[0].mxu0 %v4737
  %v4805 = vpop.f32.mrb[0].mxu0
  %v4806 = vadd.f32 %v1122, %v4805
  %v4807 = vpop.f32.mrb[0].mxu0
  %4808 = vdwg.mxu0
  %v4810 = vcombine.high %v4806, %v4806
  %v4812 = vunpack.c.l.s4 1966171168
  %v4813 = vunpack.c.0.s8 %v4812
  %v4814 = vlaneseq
  %v4815 = vshrl.u32 %v4814, 7
  %v4816 = vsub.s32 %v4813, %v4815
  %v4817 = vrot.slane %v4806, %v4816
  %v4819 = vunpack.c.l.s4 1966171168
  %v4820 = vunpack.c.0.s8 %v4819
  %v4821 = vlaneseq
  %v4822 = vshrl.u32 %v4821, 7
  %v4823 = vsub.s32 %v4820, %v4822
  %v4824 = vrot.slane %v4810, %v4823
  %v4825 = vcombine.high %v4817, %v4817
  %v4826 = vcombine.high %v4824, %v4824
  %v4828 = vunpack.c.l.s4 1966171168
  %v4829 = vunpack.c.0.s8 %v4828
  %v4830 = vlaneseq
  %v4831 = vshrl.u32 %v4830, 7
  %v4832 = vsub.s32 %v4829, %v4831
  %v4833 = vrot.slane %v4817, %v4832
  %v4835 = vunpack.c.l.s4 1966171168
  %v4836 = vunpack.c.0.s8 %v4835
  %v4837 = vlaneseq
  %v4838 = vshrl.u32 %v4837, 7
  %v4839 = vsub.s32 %v4836, %v4838
  %v4840 = vrot.slane %v4824, %v4839
  %v4842 = vunpack.c.l.s4 1966171168
  %v4843 = vunpack.c.0.s8 %v4842
  %v4844 = vlaneseq
  %v4845 = vshrl.u32 %v4844, 7
  %v4846 = vsub.s32 %v4843, %v4845
  %v4847 = vrot.slane %v4825, %v4846
  %v4849 = vunpack.c.l.s4 1966171168
  %v4850 = vunpack.c.0.s8 %v4849
  %v4851 = vlaneseq
  %v4852 = vshrl.u32 %v4851, 7
  %v4853 = vsub.s32 %v4850, %v4852
  %v4854 = vrot.slane %v4826, %v4853
  %v4855 = vcombine.high %v4833, %v4833
  %v4856 = vcombine.high %v4840, %v4840
  %v4857 = vcombine.high %v4847, %v4847
  %v4858 = vcombine.high %v4854, %v4854
  %4867 = vst.msk [vmem:[%s12 + $0x4] sm:$0x1] %vm1257, %v4833
  %4868 = vst.msk [vmem:[%s12 + $0xc] sm:$0x1] %vm1257, %v4847
  %4869 = vst.msk [vmem:[%s12 + $0x14] sm:$0x1] %vm1257, %v4855
  %4870 = vst.msk [vmem:[%s12 + $0x1c] sm:$0x1] %vm1257, %v4857
  %4871 = vst.msk [vmem:[%s12 + $0x24] sm:$0x1] %vm1257, %v4840
  %4872 = vst.msk [vmem:[%s12 + $0x2c] sm:$0x1] %vm1257, %v4854
  %4873 = vst.msk [vmem:[%s12 + $0x34] sm:$0x1] %vm1257, %v4856
  %4874 = vst.msk [vmem:[%s12 + $0x3c] sm:$0x1] %vm1257, %v4858
  %v4875 = vlaneseq
  %v4876 = vshrl.u32 %v4875, 7
  %v4877 = vsub.s32 %v610, %v4876
  %v4878 = vrot.slane %v4480, %v4877
  %v4879 = vlaneseq
  %v4880 = vshrl.u32 %v4879, 7
  %v4881 = vsub.s32 %v610, %v4880
  %v4882 = vrot.slane %v4485, %v4881
  %v4883 = vlaneseq
  %v4884 = vshrl.u32 %v4883, 7
  %v4885 = vsub.s32 %v610, %v4884
  %v4886 = vrot.slane %v4490, %v4885
  %v4887 = vlaneseq
  %v4888 = vshrl.u32 %v4887, 7
  %v4889 = vsub.s32 %v610, %v4888
  %v4890 = vrot.slane %v4495, %v4889
  %v4891 = vlaneseq
  %v4892 = vshrl.u32 %v4891, 7
  %v4893 = vsub.s32 %v610, %v4892
  %v4894 = vrot.slane %v4500, %v4893
  %v4895 = vlaneseq
  %v4896 = vshrl.u32 %v4895, 7
  %v4897 = vsub.s32 %v610, %v4896
  %v4898 = vrot.slane %v4505, %v4897
  %v4899 = vlaneseq
  %v4900 = vshrl.u32 %v4899, 7
  %v4901 = vsub.s32 %v610, %v4900
  %v4902 = vrot.slane %v4510, %v4901
  %v4903 = vlaneseq
  %v4904 = vshrl.u32 %v4903, 7
  %v4905 = vsub.s32 %v610, %v4904
  %v4906 = vrot.slane %v4515, %v4905
  %4915 = vst.msk [vmem:[%s13 + $0x4] sm:$0x1] %vm1306, %v4878
  %4916 = vst.msk [vmem:[%s13 + $0xc] sm:$0x1] %vm1306, %v4882
  %4917 = vst.msk [vmem:[%s13 + $0x14] sm:$0x1] %vm1306, %v4886
  %4918 = vst.msk [vmem:[%s13 + $0x1c] sm:$0x1] %vm1306, %v4890
  %4919 = vst.msk [vmem:[%s13 + $0x24] sm:$0x1] %vm1306, %v4894
  %4920 = vst.msk [vmem:[%s13 + $0x2c] sm:$0x1] %vm1306, %v4898
  %4921 = vst.msk [vmem:[%s13 + $0x34] sm:$0x1] %vm1306, %v4902
  %4922 = vst.msk [vmem:[%s13 + $0x3c] sm:$0x1] %vm1306, %v4906
  %4923 = vmatprep.subr.mxu0 0.0
  %4924 = vmatpush1.msra.mxu0 %v362
  %4925 = vmatprep.subr.mxu0 0.0
  %4926 = vmatpush1.msra.mxu0 %v363
  %4927 = vmatprep.subr.mxu0 0.0
  %4928 = vmatpush1.msra.mxu0 %v364
  %4929 = vmatprep.subr.mxu0 0.0
  %4930 = vmatpush1.msra.mxu0 %v365
  %4931 = vmatprep.subr.mxu0 0.0
  %4932 = vmatpush1.msra.mxu0 0.0
  %4933 = vmatprep.subr.mxu0 0.0
  %4934 = vmatpush1.msra.mxu0 0.0
  %4935 = vmatprep.subr.mxu0 0.0
  %4936 = vmatpush1.msra.mxu0 0.0
  %4937 = vmatprep.subr.mxu0 0.0
  %4938 = vmatpush1.msra.mxu0 0.0
  %4939 = vmatprep.subr.mxu0 0.0
  %4940 = vmatpush1.msra.mxu0 0.0
  %4941 = vmatprep.subr.mxu0 0.0
  %4942 = vmatpush1.msra.mxu0 0.0
  %4943 = vmatprep.subr.mxu0 0.0
  %4944 = vmatpush1.msra.mxu0 0.0
  %4945 = vmatprep.subr.mxu0 0.0
  %4946 = vmatpush1.msra.mxu0 0.0
  %4947 = vmatprep.subr.mxu0 0.0
  %4948 = vmatpush1.msra.mxu0 0.0
  %4949 = vmatprep.subr.mxu0 0.0
  %4950 = vmatpush1.msra.mxu0 0.0
  %4951 = vmatprep.subr.mxu0 0.0
  %4952 = vmatpush1.msra.mxu0 0.0
  %4953 = vmatprep.subr.mxu0 0.0
  %4954 = vmatpush1.msra.mxu0 0.0
  %4955 = vmatprep.subr.mxu0 0.0
  %4956 = vmatpush1.msra.mxu0 0.0
  %4957 = vmatprep.subr.mxu0 0.0
  %4958 = vmatpush1.msra.mxu0 0.0
  %4959 = vmatprep.subr.mxu0 0.0
  %4960 = vmatpush1.msra.mxu0 0.0
  %4961 = vmatprep.subr.mxu0 0.0
  %4962 = vmatpush1.msra.mxu0 0.0
  %4963 = vmatprep.subr.mxu0 0.0
  %4964 = vmatpush1.msra.mxu0 0.0
  %4965 = vmatprep.subr.mxu0 0.0
  %4966 = vmatpush1.msra.mxu0 0.0
  %4967 = vmatprep.subr.mxu0 0.0
  %4968 = vmatpush1.msra.mxu0 0.0
  %4969 = vmatprep.subr.mxu0 0.0
  %4970 = vmatpush1.msra.mxu0 0.0
  %4971 = vmatprep.subr.mxu0 0.0
  %4972 = vmatpush1.msra.mxu0 0.0
  %4973 = vmatprep.subr.mxu0 0.0
  %4974 = vmatpush1.msra.mxu0 0.0
  %4975 = vmatprep.subr.mxu0 0.0
  %4976 = vmatpush1.msra.mxu0 0.0
  %4977 = vmatprep.subr.mxu0 0.0
  %4978 = vmatpush1.msra.mxu0 0.0
  %4979 = vmatprep.subr.mxu0 0.0
  %4980 = vmatpush1.msra.mxu0 0.0
  %4981 = vmatprep.subr.mxu0 0.0
  %4982 = vmatpush1.msra.mxu0 0.0
  %4983 = vmatprep.subr.mxu0 0.0
  %4984 = vmatpush1.msra.mxu0 0.0
  %4985 = vmatprep.subr.mxu0 0.0
  %4986 = vmatpush1.msra.mxu0 0.0
  %4987 = vmatprep.mubr.f32.mxu0 0.0
  %4988 = vmatmul.mubr.f32.gmra.mrb[0].mxu0 %v4737
  %v4989 = vpop.f32.mrb[0].mxu0
  %v4990 = vadd.f32 0.0, %v4989
  %v4991 = vpop.f32.mrb[0].mxu0
  %4992 = vdwg.mxu0
  %v4994 = vcombine.high %v4990, %v4990
  %v4996 = vunpack.c.l.s4 1966171168
  %v4997 = vunpack.c.0.s8 %v4996
  %v4998 = vlaneseq
  %v4999 = vshrl.u32 %v4998, 7
  %v5000 = vsub.s32 %v4997, %v4999
  %v5001 = vrot.slane %v4990, %v5000
  %v5003 = vunpack.c.l.s4 1966171168
  %v5004 = vunpack.c.0.s8 %v5003
  %v5005 = vlaneseq
  %v5006 = vshrl.u32 %v5005, 7
  %v5007 = vsub.s32 %v5004, %v5006
  %v5008 = vrot.slane %v4994, %v5007
  %v5009 = vcombine.high %v5001, %v5001
  %v5010 = vcombine.high %v5008, %v5008
  %v5012 = vunpack.c.l.s4 1966171168
  %v5013 = vunpack.c.0.s8 %v5012
  %v5014 = vlaneseq
  %v5015 = vshrl.u32 %v5014, 7
  %v5016 = vsub.s32 %v5013, %v5015
  %v5017 = vrot.slane %v5001, %v5016
  %v5019 = vunpack.c.l.s4 1966171168
  %v5020 = vunpack.c.0.s8 %v5019
  %v5021 = vlaneseq
  %v5022 = vshrl.u32 %v5021, 7
  %v5023 = vsub.s32 %v5020, %v5022
  %v5024 = vrot.slane %v5008, %v5023
  %v5026 = vunpack.c.l.s4 1966171168
  %v5027 = vunpack.c.0.s8 %v5026
  %v5028 = vlaneseq
  %v5029 = vshrl.u32 %v5028, 7
  %v5030 = vsub.s32 %v5027, %v5029
  %v5031 = vrot.slane %v5009, %v5030
  %v5033 = vunpack.c.l.s4 1966171168
  %v5034 = vunpack.c.0.s8 %v5033
  %v5035 = vlaneseq
  %v5036 = vshrl.u32 %v5035, 7
  %v5037 = vsub.s32 %v5034, %v5036
  %v5038 = vrot.slane %v5010, %v5037
  %v5039 = vcombine.high %v5017, %v5017
  %v5040 = vcombine.high %v5024, %v5024
  %v5041 = vcombine.high %v5031, %v5031
  %v5042 = vcombine.high %v5038, %v5038
  %v5043 = vlaneseq
  %v5044 = vshrl.u32 %v5043, 7
  %v5045 = vsub.s32 0, %v5044
  %v5046 = vrot.slane %v5017, %v5045
  %v5047 = vlaneseq
  %v5048 = vshrl.u32 %v5047, 7
  %v5049 = vsub.s32 0, %v5048
  %v5050 = vrot.slane %v5031, %v5049
  %v5051 = vlaneseq
  %v5052 = vshrl.u32 %v5051, 7
  %v5053 = vsub.s32 0, %v5052
  %v5054 = vrot.slane %v5039, %v5053
  %v5055 = vlaneseq
  %v5056 = vshrl.u32 %v5055, 7
  %v5057 = vsub.s32 0, %v5056
  %v5058 = vrot.slane %v5041, %v5057
  %v5059 = vlaneseq
  %v5060 = vshrl.u32 %v5059, 7
  %v5061 = vsub.s32 0, %v5060
  %v5062 = vrot.slane %v5024, %v5061
  %v5063 = vlaneseq
  %v5064 = vshrl.u32 %v5063, 7
  %v5065 = vsub.s32 0, %v5064
  %v5066 = vrot.slane %v5038, %v5065
  %v5067 = vlaneseq
  %v5068 = vshrl.u32 %v5067, 7
  %v5069 = vsub.s32 0, %v5068
  %v5070 = vrot.slane %v5040, %v5069
  %v5071 = vlaneseq
  %v5072 = vshrl.u32 %v5071, 7
  %v5073 = vsub.s32 0, %v5072
  %v5074 = vrot.slane %v5042, %v5073
  %v5083 = vadd.f32 %v154, %v5046
  %v5084 = vadd.f32 %v159, %v5050
  %v5085 = vadd.f32 %v164, %v5054
  %v5086 = vadd.f32 %v169, %v5058
  %v5087 = vadd.f32 %v174, %v5062
  %v5088 = vadd.f32 %v179, %v5066
  %v5089 = vadd.f32 %v184, %v5070
  %v5090 = vadd.f32 %v189, %v5074
  %v5091 = vtanh.pop %v5083
  %v5092 = vtanh.pop %v5084
  %v5093 = vtanh.pop %v5085
  %v5094 = vtanh.pop %v5086
  %v5095 = vtanh.pop %v5087
  %v5096 = vtanh.pop %v5088
  %v5097 = vtanh.pop %v5089
  %v5098 = vtanh.pop %v5090
  %v5099 = vmul.f32 %v5091, %v566
  %v5100 = vmul.f32 %v5092, %v566
  %v5101 = vmul.f32 %v5093, %v566
  %v5102 = vmul.f32 %v5094, %v566
  %v5103 = vmul.f32 %v5095, %v566
  %v5104 = vmul.f32 %v5096, %v566
  %v5105 = vmul.f32 %v5097, %v566
  %v5106 = vmul.f32 %v5098, %v566
  %v5107 = vsel %vm576, %v5099, 0.0
  %5108 = vadd.xlane.f32.xlu0 %v5107
  %v5109 = vpop.xlane.xlu0 %5108
  %v5110 = vsel %vm576, %v5100, 0.0
  %5111 = vadd.xlane.f32.xlu0 %v5110
  %v5112 = vpop.xlane.xlu0 %5111
  %v5113 = vsel %vm576, %v5101, 0.0
  %5114 = vadd.xlane.f32.xlu0 %v5113
  %v5115 = vpop.xlane.xlu0 %5114
  %v5116 = vsel %vm576, %v5102, 0.0
  %5117 = vadd.xlane.f32.xlu0 %v5116
  %v5118 = vpop.xlane.xlu0 %5117
  %v5119 = vsel %vm576, %v5103, 0.0
  %5120 = vadd.xlane.f32.xlu0 %v5119
  %v5121 = vpop.xlane.xlu0 %5120
  %v5122 = vsel %vm576, %v5104, 0.0
  %5123 = vadd.xlane.f32.xlu0 %v5122
  %v5124 = vpop.xlane.xlu0 %5123
  %v5125 = vsel %vm576, %v5105, 0.0
  %5126 = vadd.xlane.f32.xlu0 %v5125
  %v5127 = vpop.xlane.xlu0 %5126
  %v5128 = vsel %vm576, %v5106, 0.0
  %5129 = vadd.xlane.f32.xlu0 %v5128
  %v5130 = vpop.xlane.xlu0 %5129
  %v5139 = vlaneseq
  %v5140 = vshrl.u32 %v5139, 7
  %v5141 = vsub.s32 %v610, %v5140
  %v5142 = vrot.slane %v5109, %v5141
  %v5143 = vlaneseq
  %v5144 = vshrl.u32 %v5143, 7
  %v5145 = vsub.s32 %v610, %v5144
  %v5146 = vrot.slane %v5112, %v5145
  %v5147 = vlaneseq
  %v5148 = vshrl.u32 %v5147, 7
  %v5149 = vsub.s32 %v610, %v5148
  %v5150 = vrot.slane %v5115, %v5149
  %v5151 = vlaneseq
  %v5152 = vshrl.u32 %v5151, 7
  %v5153 = vsub.s32 %v610, %v5152
  %v5154 = vrot.slane %v5118, %v5153
  %v5155 = vlaneseq
  %v5156 = vshrl.u32 %v5155, 7
  %v5157 = vsub.s32 %v610, %v5156
  %v5158 = vrot.slane %v5121, %v5157
  %v5159 = vlaneseq
  %v5160 = vshrl.u32 %v5159, 7
  %v5161 = vsub.s32 %v610, %v5160
  %v5162 = vrot.slane %v5124, %v5161
  %v5163 = vlaneseq
  %v5164 = vshrl.u32 %v5163, 7
  %v5165 = vsub.s32 %v610, %v5164
  %v5166 = vrot.slane %v5127, %v5165
  %v5167 = vlaneseq
  %v5168 = vshrl.u32 %v5167, 7
  %v5169 = vsub.s32 %v610, %v5168
  %v5170 = vrot.slane %v5130, %v5169
  %v5171 = vsel %vm276, %v5146, %v5142
  %v5172 = vsel %vm278, %v5150, %v5171
  %v5173 = vsel %vm280, %v5154, %v5172
  %v5174 = vsel %vm282, %v5158, %v5173
  %v5175 = vsel %vm284, %v5162, %v5174
  %v5176 = vsel %vm286, %v5166, %v5175
  %v5177 = vsel %vm288, %v5170, %v5176
  %v5179 = vsel %vm651, %v5177, -inf
  %5180 = vmax.xlane.f32.xlu0 %v5179
  %v5181 = vpop.xlane.xlu0 %5180
  %v5183 = vlaneseq
  %v5184 = vshrl.u32 %v5183, 7
  %v5185 = vsub.s32 0, %v5184
  %v5186 = vrot.slane %v5181, %v5185
  %v5187 = vlaneseq
  %v5188 = vshrl.u32 %v5187, 7
  %v5189 = vsub.s32 1, %v5188
  %v5190 = vrot.slane %v5181, %v5189
  %v5191 = vlaneseq
  %v5192 = vshrl.u32 %v5191, 7
  %v5193 = vsub.s32 2, %v5192
  %v5194 = vrot.slane %v5181, %v5193
  %v5195 = vlaneseq
  %v5196 = vshrl.u32 %v5195, 7
  %v5197 = vsub.s32 3, %v5196
  %v5198 = vrot.slane %v5181, %v5197
  %v5199 = vlaneseq
  %v5200 = vshrl.u32 %v5199, 7
  %v5201 = vsub.s32 4, %v5200
  %v5202 = vrot.slane %v5181, %v5201
  %v5203 = vlaneseq
  %v5204 = vshrl.u32 %v5203, 7
  %v5205 = vsub.s32 5, %v5204
  %v5206 = vrot.slane %v5181, %v5205
  %v5207 = vlaneseq
  %v5208 = vshrl.u32 %v5207, 7
  %v5209 = vsub.s32 6, %v5208
  %v5210 = vrot.slane %v5181, %v5209
  %v5211 = vlaneseq
  %v5212 = vshrl.u32 %v5211, 7
  %v5213 = vsub.s32 7, %v5212
  %v5214 = vrot.slane %v5181, %v5213
  %v5223 = vsub.f32 %v5109, %v5186
  %v5224 = vsub.f32 %v5112, %v5190
  %v5225 = vsub.f32 %v5115, %v5194
  %v5226 = vsub.f32 %v5118, %v5198
  %v5227 = vsub.f32 %v5121, %v5202
  %v5228 = vsub.f32 %v5124, %v5206
  %v5229 = vsub.f32 %v5127, %v5210
  %v5230 = vsub.f32 %v5130, %v5214
  %v5231 = vmul.f32 %v5223, 1.442695
  %v5232 = vpow.pop %v5231
  %v5233 = vmul.f32 %v5224, 1.442695
  %v5234 = vpow.pop %v5233
  %v5235 = vmul.f32 %v5225, 1.442695
  %v5236 = vpow.pop %v5235
  %v5237 = vmul.f32 %v5226, 1.442695
  %v5238 = vpow.pop %v5237
  %v5239 = vmul.f32 %v5227, 1.442695
  %v5240 = vpow.pop %v5239
  %v5241 = vmul.f32 %v5228, 1.442695
  %v5242 = vpow.pop %v5241
  %v5243 = vmul.f32 %v5229, 1.442695
  %v5244 = vpow.pop %v5243
  %v5245 = vmul.f32 %v5230, 1.442695
  %v5246 = vpow.pop %v5245
  %5255 = vset.pattern.permute.xlu0 0
  %5256 = vperm.xlu0 %5255, %v5232
  %v5257 = vpop.permute.xlu0 %5256
  %5258 = vset.pattern.permute.xlu0 0
  %5259 = vperm.xlu0 %5258, %v5234
  %v5260 = vpop.permute.xlu0 %5259
  %5261 = vset.pattern.permute.xlu0 0
  %5262 = vperm.xlu0 %5261, %v5236
  %v5263 = vpop.permute.xlu0 %5262
  %5264 = vset.pattern.permute.xlu0 0
  %5265 = vperm.xlu0 %5264, %v5238
  %v5266 = vpop.permute.xlu0 %5265
  %5267 = vset.pattern.permute.xlu0 0
  %5268 = vperm.xlu0 %5267, %v5240
  %v5269 = vpop.permute.xlu0 %5268
  %5270 = vset.pattern.permute.xlu0 0
  %5271 = vperm.xlu0 %5270, %v5242
  %v5272 = vpop.permute.xlu0 %5271
  %5273 = vset.pattern.permute.xlu0 0
  %5274 = vperm.xlu0 %5273, %v5244
  %v5275 = vpop.permute.xlu0 %5274
  %5276 = vset.pattern.permute.xlu0 0
  %5277 = vperm.xlu0 %5276, %v5246
  %v5278 = vpop.permute.xlu0 %5277
  %v5279 = vlaneseq
  %v5280 = vshrl.u32 %v5279, 7
  %v5281 = vsub.s32 %v610, %v5280
  %v5282 = vrot.slane %v5257, %v5281
  %v5283 = vlaneseq
  %v5284 = vshrl.u32 %v5283, 7
  %v5285 = vsub.s32 %v610, %v5284
  %v5286 = vrot.slane %v5260, %v5285
  %v5287 = vlaneseq
  %v5288 = vshrl.u32 %v5287, 7
  %v5289 = vsub.s32 %v610, %v5288
  %v5290 = vrot.slane %v5263, %v5289
  %v5291 = vlaneseq
  %v5292 = vshrl.u32 %v5291, 7
  %v5293 = vsub.s32 %v610, %v5292
  %v5294 = vrot.slane %v5266, %v5293
  %v5295 = vlaneseq
  %v5296 = vshrl.u32 %v5295, 7
  %v5297 = vsub.s32 %v610, %v5296
  %v5298 = vrot.slane %v5269, %v5297
  %v5299 = vlaneseq
  %v5300 = vshrl.u32 %v5299, 7
  %v5301 = vsub.s32 %v610, %v5300
  %v5302 = vrot.slane %v5272, %v5301
  %v5303 = vlaneseq
  %v5304 = vshrl.u32 %v5303, 7
  %v5305 = vsub.s32 %v610, %v5304
  %v5306 = vrot.slane %v5275, %v5305
  %v5307 = vlaneseq
  %v5308 = vshrl.u32 %v5307, 7
  %v5309 = vsub.s32 %v610, %v5308
  %v5310 = vrot.slane %v5278, %v5309
  %v5311 = vsel %vm276, %v5286, %v5282
  %v5312 = vsel %vm278, %v5290, %v5311
  %v5313 = vsel %vm280, %v5294, %v5312
  %v5314 = vsel %vm282, %v5298, %v5313
  %v5315 = vsel %vm284, %v5302, %v5314
  %v5316 = vsel %vm286, %v5306, %v5315
  %v5317 = vsel %vm288, %v5310, %v5316
  %v5319 = vsel %vm651, %v5317, 0.0
  %5320 = vadd.xlane.f32.xlu0 %v5319
  %v5321 = vpop.xlane.xlu0 %5320
  %v5323 = vlaneseq
  %v5324 = vshrl.u32 %v5323, 7
  %v5325 = vsub.s32 0, %v5324
  %v5326 = vrot.slane %v5321, %v5325
  %v5327 = vlaneseq
  %v5328 = vshrl.u32 %v5327, 7
  %v5329 = vsub.s32 1, %v5328
  %v5330 = vrot.slane %v5321, %v5329
  %v5331 = vlaneseq
  %v5332 = vshrl.u32 %v5331, 7
  %v5333 = vsub.s32 2, %v5332
  %v5334 = vrot.slane %v5321, %v5333
  %v5335 = vlaneseq
  %v5336 = vshrl.u32 %v5335, 7
  %v5337 = vsub.s32 3, %v5336
  %v5338 = vrot.slane %v5321, %v5337
  %v5339 = vlaneseq
  %v5340 = vshrl.u32 %v5339, 7
  %v5341 = vsub.s32 4, %v5340
  %v5342 = vrot.slane %v5321, %v5341
  %v5343 = vlaneseq
  %v5344 = vshrl.u32 %v5343, 7
  %v5345 = vsub.s32 5, %v5344
  %v5346 = vrot.slane %v5321, %v5345
  %v5347 = vlaneseq
  %v5348 = vshrl.u32 %v5347, 7
  %v5349 = vsub.s32 6, %v5348
  %v5350 = vrot.slane %v5321, %v5349
  %v5351 = vlaneseq
  %v5352 = vshrl.u32 %v5351, 7
  %v5353 = vsub.s32 7, %v5352
  %v5354 = vrot.slane %v5321, %v5353
  %v5363 = vrcp.pop %v5326
  %v5364 = vmul.f32 %v5232, %v5363
  %v5365 = vrcp.pop %v5330
  %v5366 = vmul.f32 %v5234, %v5365
  %v5367 = vrcp.pop %v5334
  %v5368 = vmul.f32 %v5236, %v5367
  %v5369 = vrcp.pop %v5338
  %v5370 = vmul.f32 %v5238, %v5369
  %v5371 = vrcp.pop %v5342
  %v5372 = vmul.f32 %v5240, %v5371
  %v5373 = vrcp.pop %v5346
  %v5374 = vmul.f32 %v5242, %v5373
  %v5375 = vrcp.pop %v5350
  %v5376 = vmul.f32 %v5244, %v5375
  %v5377 = vrcp.pop %v5354
  %v5378 = vmul.f32 %v5246, %v5377
  %5380 = vset.pattern.permute.xlu0 0
  %5381 = vperm.xlu0 %5380, %v5364
  %v5382 = vpop.permute.xlu0 %5381
  %5385 = vset.pattern.permute.xlu0 0
  %5386 = vperm.xlu0 %5385, %v5366
  %v5387 = vpop.permute.xlu0 %5386
  %5390 = vset.pattern.permute.xlu0 0
  %5391 = vperm.xlu0 %5390, %v5368
  %v5392 = vpop.permute.xlu0 %5391
  %5395 = vset.pattern.permute.xlu0 0
  %5396 = vperm.xlu0 %5395, %v5370
  %v5397 = vpop.permute.xlu0 %5396
  %5400 = vset.pattern.permute.xlu0 0
  %5401 = vperm.xlu0 %5400, %v5372
  %v5402 = vpop.permute.xlu0 %5401
  %5405 = vset.pattern.permute.xlu0 0
  %5406 = vperm.xlu0 %5405, %v5374
  %v5407 = vpop.permute.xlu0 %5406
  %5410 = vset.pattern.permute.xlu0 0
  %5411 = vperm.xlu0 %5410, %v5376
  %v5412 = vpop.permute.xlu0 %5411
  %5415 = vset.pattern.permute.xlu0 0
  %5416 = vperm.xlu0 %5415, %v5378
  %v5417 = vpop.permute.xlu0 %5416
  %v5419 = vmul.f32 %v43, %v5382
  %v5420 = vmul.f32 %v44, %v5387
  %v5421 = vmul.f32 %v45, %v5392
  %v5422 = vmul.f32 %v46, %v5397
  %v5423 = vmul.f32 %v47, %v5402
  %v5424 = vmul.f32 %v48, %v5407
  %v5425 = vmul.f32 %v49, %v5412
  %v5426 = vmul.f32 %v50, %v5417
  %v5427 = vsel %vm62, %v5419, 0.0
  %v5428 = vrot.slane %v5427, 4
  %v5429 = vadd.f32 %v5427, %v5428
  %v5430 = vrot.slane %v5429, 2
  %v5431 = vadd.f32 %v5429, %v5430
  %v5432 = vrot.slane %v5431, 1
  %v5433 = vadd.f32 %v5431, %v5432
  %v5434 = vsel %vm62, %v5420, 0.0
  %v5435 = vrot.slane %v5434, 4
  %v5436 = vadd.f32 %v5434, %v5435
  %v5437 = vrot.slane %v5436, 2
  %v5438 = vadd.f32 %v5436, %v5437
  %v5439 = vrot.slane %v5438, 1
  %v5440 = vadd.f32 %v5438, %v5439
  %v5441 = vsel %vm62, %v5421, 0.0
  %v5442 = vrot.slane %v5441, 4
  %v5443 = vadd.f32 %v5441, %v5442
  %v5444 = vrot.slane %v5443, 2
  %v5445 = vadd.f32 %v5443, %v5444
  %v5446 = vrot.slane %v5445, 1
  %v5447 = vadd.f32 %v5445, %v5446
  %v5448 = vsel %vm62, %v5422, 0.0
  %v5449 = vrot.slane %v5448, 4
  %v5450 = vadd.f32 %v5448, %v5449
  %v5451 = vrot.slane %v5450, 2
  %v5452 = vadd.f32 %v5450, %v5451
  %v5453 = vrot.slane %v5452, 1
  %v5454 = vadd.f32 %v5452, %v5453
  %v5455 = vsel %vm62, %v5423, 0.0
  %v5456 = vrot.slane %v5455, 4
  %v5457 = vadd.f32 %v5455, %v5456
  %v5458 = vrot.slane %v5457, 2
  %v5459 = vadd.f32 %v5457, %v5458
  %v5460 = vrot.slane %v5459, 1
  %v5461 = vadd.f32 %v5459, %v5460
  %v5462 = vsel %vm62, %v5424, 0.0
  %v5463 = vrot.slane %v5462, 4
  %v5464 = vadd.f32 %v5462, %v5463
  %v5465 = vrot.slane %v5464, 2
  %v5466 = vadd.f32 %v5464, %v5465
  %v5467 = vrot.slane %v5466, 1
  %v5468 = vadd.f32 %v5466, %v5467
  %v5469 = vsel %vm62, %v5425, 0.0
  %v5470 = vrot.slane %v5469, 4
  %v5471 = vadd.f32 %v5469, %v5470
  %v5472 = vrot.slane %v5471, 2
  %v5473 = vadd.f32 %v5471, %v5472
  %v5474 = vrot.slane %v5473, 1
  %v5475 = vadd.f32 %v5473, %v5474
  %v5476 = vsel %vm62, %v5426, 0.0
  %v5477 = vrot.slane %v5476, 4
  %v5478 = vadd.f32 %v5476, %v5477
  %v5479 = vrot.slane %v5478, 2
  %v5480 = vadd.f32 %v5478, %v5479
  %v5481 = vrot.slane %v5480, 1
  %v5482 = vadd.f32 %v5480, %v5481
  %v5483 = vld [vmem:[%s0 + $0x5] sm:$0x1]
  %v5484 = vld [vmem:[%s0 + $0xd] sm:$0x1]
  %v5485 = vld [vmem:[%s0 + $0x15] sm:$0x1]
  %v5486 = vld [vmem:[%s0 + $0x1d] sm:$0x1]
  %v5487 = vld [vmem:[%s0 + $0x25] sm:$0x1]
  %v5488 = vld [vmem:[%s0 + $0x2d] sm:$0x1]
  %v5489 = vld [vmem:[%s0 + $0x35] sm:$0x1]
  %v5490 = vld [vmem:[%s0 + $0x3d] sm:$0x1]
  %v5499 = vrot.slane %v5484, 7
  %v5500 = vsel %vm276, %v5499, %v5483
  %v5501 = vrot.slane %v5485, 6
  %v5502 = vsel %vm278, %v5501, %v5500
  %v5503 = vrot.slane %v5486, 5
  %v5504 = vsel %vm280, %v5503, %v5502
  %v5505 = vrot.slane %v5487, 4
  %v5506 = vsel %vm282, %v5505, %v5504
  %v5507 = vrot.slane %v5488, 3
  %v5508 = vsel %vm284, %v5507, %v5506
  %v5509 = vrot.slane %v5489, 2
  %v5510 = vsel %vm286, %v5509, %v5508
  %v5511 = vrot.slane %v5490, 1
  %v5512 = vsel %vm288, %v5511, %v5510
  %5514 = vst.msk [vmem:[#allocation2] sm:$0xff] %vm576, %v5512
  %v5523 = vsel %vm276, %v5440, %v5433
  %v5524 = vsel %vm278, %v5447, %v5523
  %v5525 = vsel %vm280, %v5454, %v5524
  %v5526 = vsel %vm282, %v5461, %v5525
  %v5527 = vsel %vm284, %v5468, %v5526
  %v5528 = vsel %vm286, %v5475, %v5527
  %v5529 = vsel %vm288, %v5482, %v5528
  %5530 = vrot.lane.b32.xlu0 %v5529, 16
  %v5531 = vpop.permute.xlu0 %5530
  %5533 = vst.msk [vmem:[#allocation2] sm:$0xff] %vm1006, %v5531
  %5534 = vrot.lane.b32.xlu0 %v4733, 80
  %v5535 = vpop.permute.xlu0 %5534
  %5537 = vst.msk [vmem:[#allocation2] sm:$0xff] %vm1011, %v5535
  %v5538 = vld [vmem:[#allocation2] sm:$0xff]
  %v5540 = vsel %vm1020, %v5538, 0
  %5542 = vmatprep.subr.mxu0 0.0
  %5543 = vmatpush1.msra.mxu0 %v367
  %5544 = vmatprep.subr.mxu0 0.0
  %5545 = vmatpush1.msra.mxu0 %v368
  %5546 = vmatprep.subr.mxu0 0.0
  %5547 = vmatpush1.msra.mxu0 %v369
  %5548 = vmatprep.subr.mxu0 0.0
  %5549 = vmatpush1.msra.mxu0 %v370
  %5550 = vmatprep.subr.mxu0 0.0
  %5551 = vmatpush1.msra.mxu0 %v371
  %5552 = vmatprep.subr.mxu0 0.0
  %5553 = vmatpush1.msra.mxu0 %v372
  %5554 = vmatprep.subr.mxu0 0.0
  %5555 = vmatpush1.msra.mxu0 %v373
  %5556 = vmatprep.subr.mxu0 0.0
  %5557 = vmatpush1.msra.mxu0 %v374
  %5558 = vmatprep.subr.mxu0 0.0
  %5559 = vmatpush1.msra.mxu0 %v375
  %5560 = vmatprep.subr.mxu0 0.0
  %5561 = vmatpush1.msra.mxu0 %v376
  %5562 = vmatprep.subr.mxu0 0.0
  %5563 = vmatpush1.msra.mxu0 0.0
  %5564 = vmatprep.subr.mxu0 0.0
  %5565 = vmatpush1.msra.mxu0 0.0
  %5566 = vmatprep.subr.mxu0 0.0
  %5567 = vmatpush1.msra.mxu0 0.0
  %5568 = vmatprep.subr.mxu0 0.0
  %5569 = vmatpush1.msra.mxu0 0.0
  %5570 = vmatprep.subr.mxu0 0.0
  %5571 = vmatpush1.msra.mxu0 0.0
  %5572 = vmatprep.subr.mxu0 0.0
  %5573 = vmatpush1.msra.mxu0 0.0
  %5574 = vmatprep.subr.mxu0 0.0
  %5575 = vmatpush1.msra.mxu0 0.0
  %5576 = vmatprep.subr.mxu0 0.0
  %5577 = vmatpush1.msra.mxu0 0.0
  %5578 = vmatprep.subr.mxu0 0.0
  %5579 = vmatpush1.msra.mxu0 0.0
  %5580 = vmatprep.subr.mxu0 0.0
  %5581 = vmatpush1.msra.mxu0 0.0
  %5582 = vmatprep.subr.mxu0 0.0
  %5583 = vmatpush1.msra.mxu0 0.0
  %5584 = vmatprep.subr.mxu0 0.0
  %5585 = vmatpush1.msra.mxu0 0.0
  %5586 = vmatprep.subr.mxu0 0.0
  %5587 = vmatpush1.msra.mxu0 0.0
  %5588 = vmatprep.subr.mxu0 0.0
  %5589 = vmatpush1.msra.mxu0 0.0
  %5590 = vmatprep.subr.mxu0 0.0
  %5591 = vmatpush1.msra.mxu0 0.0
  %5592 = vmatprep.subr.mxu0 0.0
  %5593 = vmatpush1.msra.mxu0 0.0
  %5594 = vmatprep.subr.mxu0 0.0
  %5595 = vmatpush1.msra.mxu0 0.0
  %5596 = vmatprep.subr.mxu0 0.0
  %5597 = vmatpush1.msra.mxu0 0.0
  %5598 = vmatprep.subr.mxu0 0.0
  %5599 = vmatpush1.msra.mxu0 0.0
  %5600 = vmatprep.subr.mxu0 0.0
  %5601 = vmatpush1.msra.mxu0 0.0
  %5602 = vmatprep.subr.mxu0 0.0
  %5603 = vmatpush1.msra.mxu0 0.0
  %5604 = vmatprep.subr.mxu0 0.0
  %5605 = vmatpush1.msra.mxu0 0.0
  %5606 = vmatprep.mubr.f32.mxu0 0.0
  %5607 = vmatmul.mubr.f32.gmra.mrb[0].mxu0 %v5540
  %v5608 = vpop.f32.mrb[0].mxu0
  %v5609 = vadd.f32 %v1018, %v5608
  %v5610 = vpop.f32.mrb[0].mxu0
  %5611 = vdwg.mxu0
  %v5612 = vxor.u32 %v5609, 2147483648
  %v5613 = vmul.f32 %v5612, 1.442695
  %v5614 = vpow.pop %v5613
  %v5615 = vadd.f32 %v5614, 1.0
  %v5616 = vrcp.pop %v5615
  %v5617 = vmul.f32 1.0, %v5616
  %v5618 = vtanh.pop %v5609
  %v5619 = vmul.f32 %v5617, %v4727
  %5621 = vrot.lane.b32.xlu0 %v5618, 64
  %v5622 = vpop.permute.xlu0 %5621
  %v5624 = vmul.f32 %v5617, %v5622
  %5626 = vrot.lane.b32.xlu0 %v5624, 32
  %v5627 = vpop.permute.xlu0 %5626
  %v5629 = vadd.f32 %v5619, %v5627
  %v5630 = vtanh.pop %v5629
  %5632 = vrot.lane.b32.xlu0 %v5630, 64
  %v5633 = vpop.permute.xlu0 %5632
  %v5635 = vmul.f32 %v5617, %v5633
  %5637 = vrot.lane.b32.xlu0 %v5635, 32
  %v5638 = vpop.permute.xlu0 %5637
  %v5639 = vsel %vm62, %v5638, 0
  %5641 = vmatprep.subr.mxu0 0.0
  %5642 = vmatpush1.msra.mxu0 %v378
  %5643 = vmatprep.subr.mxu0 0.0
  %5644 = vmatpush1.msra.mxu0 %v379
  %5645 = vmatprep.subr.mxu0 0.0
  %5646 = vmatpush1.msra.mxu0 %v380
  %5647 = vmatprep.subr.mxu0 0.0
  %5648 = vmatpush1.msra.mxu0 %v381
  %5649 = vmatprep.subr.mxu0 0.0
  %5650 = vmatpush1.msra.mxu0 0.0
  %5651 = vmatprep.subr.mxu0 0.0
  %5652 = vmatpush1.msra.mxu0 0.0
  %5653 = vmatprep.subr.mxu0 0.0
  %5654 = vmatpush1.msra.mxu0 0.0
  %5655 = vmatprep.subr.mxu0 0.0
  %5656 = vmatpush1.msra.mxu0 0.0
  %5657 = vmatprep.subr.mxu0 0.0
  %5658 = vmatpush1.msra.mxu0 0.0
  %5659 = vmatprep.subr.mxu0 0.0
  %5660 = vmatpush1.msra.mxu0 0.0
  %5661 = vmatprep.subr.mxu0 0.0
  %5662 = vmatpush1.msra.mxu0 0.0
  %5663 = vmatprep.subr.mxu0 0.0
  %5664 = vmatpush1.msra.mxu0 0.0
  %5665 = vmatprep.subr.mxu0 0.0
  %5666 = vmatpush1.msra.mxu0 0.0
  %5667 = vmatprep.subr.mxu0 0.0
  %5668 = vmatpush1.msra.mxu0 0.0
  %5669 = vmatprep.subr.mxu0 0.0
  %5670 = vmatpush1.msra.mxu0 0.0
  %5671 = vmatprep.subr.mxu0 0.0
  %5672 = vmatpush1.msra.mxu0 0.0
  %5673 = vmatprep.subr.mxu0 0.0
  %5674 = vmatpush1.msra.mxu0 0.0
  %5675 = vmatprep.subr.mxu0 0.0
  %5676 = vmatpush1.msra.mxu0 0.0
  %5677 = vmatprep.subr.mxu0 0.0
  %5678 = vmatpush1.msra.mxu0 0.0
  %5679 = vmatprep.subr.mxu0 0.0
  %5680 = vmatpush1.msra.mxu0 0.0
  %5681 = vmatprep.subr.mxu0 0.0
  %5682 = vmatpush1.msra.mxu0 0.0
  %5683 = vmatprep.subr.mxu0 0.0
  %5684 = vmatpush1.msra.mxu0 0.0
  %5685 = vmatprep.subr.mxu0 0.0
  %5686 = vmatpush1.msra.mxu0 0.0
  %5687 = vmatprep.subr.mxu0 0.0
  %5688 = vmatpush1.msra.mxu0 0.0
  %5689 = vmatprep.subr.mxu0 0.0
  %5690 = vmatpush1.msra.mxu0 0.0
  %5691 = vmatprep.subr.mxu0 0.0
  %5692 = vmatpush1.msra.mxu0 0.0
  %5693 = vmatprep.subr.mxu0 0.0
  %5694 = vmatpush1.msra.mxu0 0.0
  %5695 = vmatprep.subr.mxu0 0.0
  %5696 = vmatpush1.msra.mxu0 0.0
  %5697 = vmatprep.subr.mxu0 0.0
  %5698 = vmatpush1.msra.mxu0 0.0
  %5699 = vmatprep.subr.mxu0 0.0
  %5700 = vmatpush1.msra.mxu0 0.0
  %5701 = vmatprep.subr.mxu0 0.0
  %5702 = vmatpush1.msra.mxu0 0.0
  %5703 = vmatprep.subr.mxu0 0.0
  %5704 = vmatpush1.msra.mxu0 0.0
  %5705 = vmatprep.mubr.f32.mxu0 0.0
  %5706 = vmatmul.mubr.f32.gmra.mrb[0].mxu0 %v5639
  %v5707 = vpop.f32.mrb[0].mxu0
  %v5708 = vadd.f32 %v1122, %v5707
  %v5709 = vpop.f32.mrb[0].mxu0
  %5710 = vdwg.mxu0
  %v5712 = vcombine.high %v5708, %v5708
  %v5714 = vunpack.c.l.s4 1966171168
  %v5715 = vunpack.c.0.s8 %v5714
  %v5716 = vlaneseq
  %v5717 = vshrl.u32 %v5716, 7
  %v5718 = vsub.s32 %v5715, %v5717
  %v5719 = vrot.slane %v5708, %v5718
  %v5721 = vunpack.c.l.s4 1966171168
  %v5722 = vunpack.c.0.s8 %v5721
  %v5723 = vlaneseq
  %v5724 = vshrl.u32 %v5723, 7
  %v5725 = vsub.s32 %v5722, %v5724
  %v5726 = vrot.slane %v5712, %v5725
  %v5727 = vcombine.high %v5719, %v5719
  %v5728 = vcombine.high %v5726, %v5726
  %v5730 = vunpack.c.l.s4 1966171168
  %v5731 = vunpack.c.0.s8 %v5730
  %v5732 = vlaneseq
  %v5733 = vshrl.u32 %v5732, 7
  %v5734 = vsub.s32 %v5731, %v5733
  %v5735 = vrot.slane %v5719, %v5734
  %v5737 = vunpack.c.l.s4 1966171168
  %v5738 = vunpack.c.0.s8 %v5737
  %v5739 = vlaneseq
  %v5740 = vshrl.u32 %v5739, 7
  %v5741 = vsub.s32 %v5738, %v5740
  %v5742 = vrot.slane %v5726, %v5741
  %v5744 = vunpack.c.l.s4 1966171168
  %v5745 = vunpack.c.0.s8 %v5744
  %v5746 = vlaneseq
  %v5747 = vshrl.u32 %v5746, 7
  %v5748 = vsub.s32 %v5745, %v5747
  %v5749 = vrot.slane %v5727, %v5748
  %v5751 = vunpack.c.l.s4 1966171168
  %v5752 = vunpack.c.0.s8 %v5751
  %v5753 = vlaneseq
  %v5754 = vshrl.u32 %v5753, 7
  %v5755 = vsub.s32 %v5752, %v5754
  %v5756 = vrot.slane %v5728, %v5755
  %v5757 = vcombine.high %v5735, %v5735
  %v5758 = vcombine.high %v5742, %v5742
  %v5759 = vcombine.high %v5749, %v5749
  %v5760 = vcombine.high %v5756, %v5756
  %5769 = vst.msk [vmem:[%s12 + $0x5] sm:$0x1] %vm1257, %v5735
  %5770 = vst.msk [vmem:[%s12 + $0xd] sm:$0x1] %vm1257, %v5749
  %5771 = vst.msk [vmem:[%s12 + $0x15] sm:$0x1] %vm1257, %v5757
  %5772 = vst.msk [vmem:[%s12 + $0x1d] sm:$0x1] %vm1257, %v5759
  %5773 = vst.msk [vmem:[%s12 + $0x25] sm:$0x1] %vm1257, %v5742
  %5774 = vst.msk [vmem:[%s12 + $0x2d] sm:$0x1] %vm1257, %v5756
  %5775 = vst.msk [vmem:[%s12 + $0x35] sm:$0x1] %vm1257, %v5758
  %5776 = vst.msk [vmem:[%s12 + $0x3d] sm:$0x1] %vm1257, %v5760
  %v5777 = vlaneseq
  %v5778 = vshrl.u32 %v5777, 7
  %v5779 = vsub.s32 %v610, %v5778
  %v5780 = vrot.slane %v5382, %v5779
  %v5781 = vlaneseq
  %v5782 = vshrl.u32 %v5781, 7
  %v5783 = vsub.s32 %v610, %v5782
  %v5784 = vrot.slane %v5387, %v5783
  %v5785 = vlaneseq
  %v5786 = vshrl.u32 %v5785, 7
  %v5787 = vsub.s32 %v610, %v5786
  %v5788 = vrot.slane %v5392, %v5787
  %v5789 = vlaneseq
  %v5790 = vshrl.u32 %v5789, 7
  %v5791 = vsub.s32 %v610, %v5790
  %v5792 = vrot.slane %v5397, %v5791
  %v5793 = vlaneseq
  %v5794 = vshrl.u32 %v5793, 7
  %v5795 = vsub.s32 %v610, %v5794
  %v5796 = vrot.slane %v5402, %v5795
  %v5797 = vlaneseq
  %v5798 = vshrl.u32 %v5797, 7
  %v5799 = vsub.s32 %v610, %v5798
  %v5800 = vrot.slane %v5407, %v5799
  %v5801 = vlaneseq
  %v5802 = vshrl.u32 %v5801, 7
  %v5803 = vsub.s32 %v610, %v5802
  %v5804 = vrot.slane %v5412, %v5803
  %v5805 = vlaneseq
  %v5806 = vshrl.u32 %v5805, 7
  %v5807 = vsub.s32 %v610, %v5806
  %v5808 = vrot.slane %v5417, %v5807
  %5817 = vst.msk [vmem:[%s13 + $0x5] sm:$0x1] %vm1306, %v5780
  %5818 = vst.msk [vmem:[%s13 + $0xd] sm:$0x1] %vm1306, %v5784
  %5819 = vst.msk [vmem:[%s13 + $0x15] sm:$0x1] %vm1306, %v5788
  %5820 = vst.msk [vmem:[%s13 + $0x1d] sm:$0x1] %vm1306, %v5792
  %5821 = vst.msk [vmem:[%s13 + $0x25] sm:$0x1] %vm1306, %v5796
  %5822 = vst.msk [vmem:[%s13 + $0x2d] sm:$0x1] %vm1306, %v5800
  %5823 = vst.msk [vmem:[%s13 + $0x35] sm:$0x1] %vm1306, %v5804
  %5824 = vst.msk [vmem:[%s13 + $0x3d] sm:$0x1] %vm1306, %v5808
  %5825 = vmatprep.subr.mxu0 0.0
  %5826 = vmatpush1.msra.mxu0 %v362
  %5827 = vmatprep.subr.mxu0 0.0
  %5828 = vmatpush1.msra.mxu0 %v363
  %5829 = vmatprep.subr.mxu0 0.0
  %5830 = vmatpush1.msra.mxu0 %v364
  %5831 = vmatprep.subr.mxu0 0.0
  %5832 = vmatpush1.msra.mxu0 %v365
  %5833 = vmatprep.subr.mxu0 0.0
  %5834 = vmatpush1.msra.mxu0 0.0
  %5835 = vmatprep.subr.mxu0 0.0
  %5836 = vmatpush1.msra.mxu0 0.0
  %5837 = vmatprep.subr.mxu0 0.0
  %5838 = vmatpush1.msra.mxu0 0.0
  %5839 = vmatprep.subr.mxu0 0.0
  %5840 = vmatpush1.msra.mxu0 0.0
  %5841 = vmatprep.subr.mxu0 0.0
  %5842 = vmatpush1.msra.mxu0 0.0
  %5843 = vmatprep.subr.mxu0 0.0
  %5844 = vmatpush1.msra.mxu0 0.0
  %5845 = vmatprep.subr.mxu0 0.0
  %5846 = vmatpush1.msra.mxu0 0.0
  %5847 = vmatprep.subr.mxu0 0.0
  %5848 = vmatpush1.msra.mxu0 0.0
  %5849 = vmatprep.subr.mxu0 0.0
  %5850 = vmatpush1.msra.mxu0 0.0
  %5851 = vmatprep.subr.mxu0 0.0
  %5852 = vmatpush1.msra.mxu0 0.0
  %5853 = vmatprep.subr.mxu0 0.0
  %5854 = vmatpush1.msra.mxu0 0.0
  %5855 = vmatprep.subr.mxu0 0.0
  %5856 = vmatpush1.msra.mxu0 0.0
  %5857 = vmatprep.subr.mxu0 0.0
  %5858 = vmatpush1.msra.mxu0 0.0
  %5859 = vmatprep.subr.mxu0 0.0
  %5860 = vmatpush1.msra.mxu0 0.0
  %5861 = vmatprep.subr.mxu0 0.0
  %5862 = vmatpush1.msra.mxu0 0.0
  %5863 = vmatprep.subr.mxu0 0.0
  %5864 = vmatpush1.msra.mxu0 0.0
  %5865 = vmatprep.subr.mxu0 0.0
  %5866 = vmatpush1.msra.mxu0 0.0
  %5867 = vmatprep.subr.mxu0 0.0
  %5868 = vmatpush1.msra.mxu0 0.0
  %5869 = vmatprep.subr.mxu0 0.0
  %5870 = vmatpush1.msra.mxu0 0.0
  %5871 = vmatprep.subr.mxu0 0.0
  %5872 = vmatpush1.msra.mxu0 0.0
  %5873 = vmatprep.subr.mxu0 0.0
  %5874 = vmatpush1.msra.mxu0 0.0
  %5875 = vmatprep.subr.mxu0 0.0
  %5876 = vmatpush1.msra.mxu0 0.0
  %5877 = vmatprep.subr.mxu0 0.0
  %5878 = vmatpush1.msra.mxu0 0.0
  %5879 = vmatprep.subr.mxu0 0.0
  %5880 = vmatpush1.msra.mxu0 0.0
  %5881 = vmatprep.subr.mxu0 0.0
  %5882 = vmatpush1.msra.mxu0 0.0
  %5883 = vmatprep.subr.mxu0 0.0
  %5884 = vmatpush1.msra.mxu0 0.0
  %5885 = vmatprep.subr.mxu0 0.0
  %5886 = vmatpush1.msra.mxu0 0.0
  %5887 = vmatprep.subr.mxu0 0.0
  %5888 = vmatpush1.msra.mxu0 0.0
  %5889 = vmatprep.mubr.f32.mxu0 0.0
  %5890 = vmatmul.mubr.f32.gmra.mrb[0].mxu0 %v5639
  %v5891 = vpop.f32.mrb[0].mxu0
  %v5892 = vadd.f32 0.0, %v5891
  %v5893 = vpop.f32.mrb[0].mxu0
  %5894 = vdwg.mxu0
  %v5896 = vcombine.high %v5892, %v5892
  %v5898 = vunpack.c.l.s4 1966171168
  %v5899 = vunpack.c.0.s8 %v5898
  %v5900 = vlaneseq
  %v5901 = vshrl.u32 %v5900, 7
  %v5902 = vsub.s32 %v5899, %v5901
  %v5903 = vrot.slane %v5892, %v5902
  %v5905 = vunpack.c.l.s4 1966171168
  %v5906 = vunpack.c.0.s8 %v5905
  %v5907 = vlaneseq
  %v5908 = vshrl.u32 %v5907, 7
  %v5909 = vsub.s32 %v5906, %v5908
  %v5910 = vrot.slane %v5896, %v5909
  %v5911 = vcombine.high %v5903, %v5903
  %v5912 = vcombine.high %v5910, %v5910
  %v5914 = vunpack.c.l.s4 1966171168
  %v5915 = vunpack.c.0.s8 %v5914
  %v5916 = vlaneseq
  %v5917 = vshrl.u32 %v5916, 7
  %v5918 = vsub.s32 %v5915, %v5917
  %v5919 = vrot.slane %v5903, %v5918
  %v5921 = vunpack.c.l.s4 1966171168
  %v5922 = vunpack.c.0.s8 %v5921
  %v5923 = vlaneseq
  %v5924 = vshrl.u32 %v5923, 7
  %v5925 = vsub.s32 %v5922, %v5924
  %v5926 = vrot.slane %v5910, %v5925
  %v5928 = vunpack.c.l.s4 1966171168
  %v5929 = vunpack.c.0.s8 %v5928
  %v5930 = vlaneseq
  %v5931 = vshrl.u32 %v5930, 7
  %v5932 = vsub.s32 %v5929, %v5931
  %v5933 = vrot.slane %v5911, %v5932
  %v5935 = vunpack.c.l.s4 1966171168
  %v5936 = vunpack.c.0.s8 %v5935
  %v5937 = vlaneseq
  %v5938 = vshrl.u32 %v5937, 7
  %v5939 = vsub.s32 %v5936, %v5938
  %v5940 = vrot.slane %v5912, %v5939
  %v5941 = vcombine.high %v5919, %v5919
  %v5942 = vcombine.high %v5926, %v5926
  %v5943 = vcombine.high %v5933, %v5933
  %v5944 = vcombine.high %v5940, %v5940
  %v5945 = vlaneseq
  %v5946 = vshrl.u32 %v5945, 7
  %v5947 = vsub.s32 0, %v5946
  %v5948 = vrot.slane %v5919, %v5947
  %v5949 = vlaneseq
  %v5950 = vshrl.u32 %v5949, 7
  %v5951 = vsub.s32 0, %v5950
  %v5952 = vrot.slane %v5933, %v5951
  %v5953 = vlaneseq
  %v5954 = vshrl.u32 %v5953, 7
  %v5955 = vsub.s32 0, %v5954
  %v5956 = vrot.slane %v5941, %v5955
  %v5957 = vlaneseq
  %v5958 = vshrl.u32 %v5957, 7
  %v5959 = vsub.s32 0, %v5958
  %v5960 = vrot.slane %v5943, %v5959
  %v5961 = vlaneseq
  %v5962 = vshrl.u32 %v5961, 7
  %v5963 = vsub.s32 0, %v5962
  %v5964 = vrot.slane %v5926, %v5963
  %v5965 = vlaneseq
  %v5966 = vshrl.u32 %v5965, 7
  %v5967 = vsub.s32 0, %v5966
  %v5968 = vrot.slane %v5940, %v5967
  %v5969 = vlaneseq
  %v5970 = vshrl.u32 %v5969, 7
  %v5971 = vsub.s32 0, %v5970
  %v5972 = vrot.slane %v5942, %v5971
  %v5973 = vlaneseq
  %v5974 = vshrl.u32 %v5973, 7
  %v5975 = vsub.s32 0, %v5974
  %v5976 = vrot.slane %v5944, %v5975
  %v5985 = vadd.f32 %v154, %v5948
  %v5986 = vadd.f32 %v159, %v5952
  %v5987 = vadd.f32 %v164, %v5956
  %v5988 = vadd.f32 %v169, %v5960
  %v5989 = vadd.f32 %v174, %v5964
  %v5990 = vadd.f32 %v179, %v5968
  %v5991 = vadd.f32 %v184, %v5972
  %v5992 = vadd.f32 %v189, %v5976
  %v5993 = vtanh.pop %v5985
  %v5994 = vtanh.pop %v5986
  %v5995 = vtanh.pop %v5987
  %v5996 = vtanh.pop %v5988
  %v5997 = vtanh.pop %v5989
  %v5998 = vtanh.pop %v5990
  %v5999 = vtanh.pop %v5991
  %v6000 = vtanh.pop %v5992
  %v6001 = vmul.f32 %v5993, %v566
  %v6002 = vmul.f32 %v5994, %v566
  %v6003 = vmul.f32 %v5995, %v566
  %v6004 = vmul.f32 %v5996, %v566
  %v6005 = vmul.f32 %v5997, %v566
  %v6006 = vmul.f32 %v5998, %v566
  %v6007 = vmul.f32 %v5999, %v566
  %v6008 = vmul.f32 %v6000, %v566
  %v6009 = vsel %vm576, %v6001, 0.0
  %6010 = vadd.xlane.f32.xlu0 %v6009
  %v6011 = vpop.xlane.xlu0 %6010
  %v6012 = vsel %vm576, %v6002, 0.0
  %6013 = vadd.xlane.f32.xlu0 %v6012
  %v6014 = vpop.xlane.xlu0 %6013
  %v6015 = vsel %vm576, %v6003, 0.0
  %6016 = vadd.xlane.f32.xlu0 %v6015
  %v6017 = vpop.xlane.xlu0 %6016
  %v6018 = vsel %vm576, %v6004, 0.0
  %6019 = vadd.xlane.f32.xlu0 %v6018
  %v6020 = vpop.xlane.xlu0 %6019
  %v6021 = vsel %vm576, %v6005, 0.0
  %6022 = vadd.xlane.f32.xlu0 %v6021
  %v6023 = vpop.xlane.xlu0 %6022
  %v6024 = vsel %vm576, %v6006, 0.0
  %6025 = vadd.xlane.f32.xlu0 %v6024
  %v6026 = vpop.xlane.xlu0 %6025
  %v6027 = vsel %vm576, %v6007, 0.0
  %6028 = vadd.xlane.f32.xlu0 %v6027
  %v6029 = vpop.xlane.xlu0 %6028
  %v6030 = vsel %vm576, %v6008, 0.0
  %6031 = vadd.xlane.f32.xlu0 %v6030
  %v6032 = vpop.xlane.xlu0 %6031
  %v6041 = vlaneseq
  %v6042 = vshrl.u32 %v6041, 7
  %v6043 = vsub.s32 %v610, %v6042
  %v6044 = vrot.slane %v6011, %v6043
  %v6045 = vlaneseq
  %v6046 = vshrl.u32 %v6045, 7
  %v6047 = vsub.s32 %v610, %v6046
  %v6048 = vrot.slane %v6014, %v6047
  %v6049 = vlaneseq
  %v6050 = vshrl.u32 %v6049, 7
  %v6051 = vsub.s32 %v610, %v6050
  %v6052 = vrot.slane %v6017, %v6051
  %v6053 = vlaneseq
  %v6054 = vshrl.u32 %v6053, 7
  %v6055 = vsub.s32 %v610, %v6054
  %v6056 = vrot.slane %v6020, %v6055
  %v6057 = vlaneseq
  %v6058 = vshrl.u32 %v6057, 7
  %v6059 = vsub.s32 %v610, %v6058
  %v6060 = vrot.slane %v6023, %v6059
  %v6061 = vlaneseq
  %v6062 = vshrl.u32 %v6061, 7
  %v6063 = vsub.s32 %v610, %v6062
  %v6064 = vrot.slane %v6026, %v6063
  %v6065 = vlaneseq
  %v6066 = vshrl.u32 %v6065, 7
  %v6067 = vsub.s32 %v610, %v6066
  %v6068 = vrot.slane %v6029, %v6067
  %v6069 = vlaneseq
  %v6070 = vshrl.u32 %v6069, 7
  %v6071 = vsub.s32 %v610, %v6070
  %v6072 = vrot.slane %v6032, %v6071
  %v6073 = vsel %vm276, %v6048, %v6044
  %v6074 = vsel %vm278, %v6052, %v6073
  %v6075 = vsel %vm280, %v6056, %v6074
  %v6076 = vsel %vm282, %v6060, %v6075
  %v6077 = vsel %vm284, %v6064, %v6076
  %v6078 = vsel %vm286, %v6068, %v6077
  %v6079 = vsel %vm288, %v6072, %v6078
  %v6081 = vsel %vm651, %v6079, -inf
  %6082 = vmax.xlane.f32.xlu0 %v6081
  %v6083 = vpop.xlane.xlu0 %6082
  %v6085 = vlaneseq
  %v6086 = vshrl.u32 %v6085, 7
  %v6087 = vsub.s32 0, %v6086
  %v6088 = vrot.slane %v6083, %v6087
  %v6089 = vlaneseq
  %v6090 = vshrl.u32 %v6089, 7
  %v6091 = vsub.s32 1, %v6090
  %v6092 = vrot.slane %v6083, %v6091
  %v6093 = vlaneseq
  %v6094 = vshrl.u32 %v6093, 7
  %v6095 = vsub.s32 2, %v6094
  %v6096 = vrot.slane %v6083, %v6095
  %v6097 = vlaneseq
  %v6098 = vshrl.u32 %v6097, 7
  %v6099 = vsub.s32 3, %v6098
  %v6100 = vrot.slane %v6083, %v6099
  %v6101 = vlaneseq
  %v6102 = vshrl.u32 %v6101, 7
  %v6103 = vsub.s32 4, %v6102
  %v6104 = vrot.slane %v6083, %v6103
  %v6105 = vlaneseq
  %v6106 = vshrl.u32 %v6105, 7
  %v6107 = vsub.s32 5, %v6106
  %v6108 = vrot.slane %v6083, %v6107
  %v6109 = vlaneseq
  %v6110 = vshrl.u32 %v6109, 7
  %v6111 = vsub.s32 6, %v6110
  %v6112 = vrot.slane %v6083, %v6111
  %v6113 = vlaneseq
  %v6114 = vshrl.u32 %v6113, 7
  %v6115 = vsub.s32 7, %v6114
  %v6116 = vrot.slane %v6083, %v6115
  %v6125 = vsub.f32 %v6011, %v6088
  %v6126 = vsub.f32 %v6014, %v6092
  %v6127 = vsub.f32 %v6017, %v6096
  %v6128 = vsub.f32 %v6020, %v6100
  %v6129 = vsub.f32 %v6023, %v6104
  %v6130 = vsub.f32 %v6026, %v6108
  %v6131 = vsub.f32 %v6029, %v6112
  %v6132 = vsub.f32 %v6032, %v6116
  %v6133 = vmul.f32 %v6125, 1.442695
  %v6134 = vpow.pop %v6133
  %v6135 = vmul.f32 %v6126, 1.442695
  %v6136 = vpow.pop %v6135
  %v6137 = vmul.f32 %v6127, 1.442695
  %v6138 = vpow.pop %v6137
  %v6139 = vmul.f32 %v6128, 1.442695
  %v6140 = vpow.pop %v6139
  %v6141 = vmul.f32 %v6129, 1.442695
  %v6142 = vpow.pop %v6141
  %v6143 = vmul.f32 %v6130, 1.442695
  %v6144 = vpow.pop %v6143
  %v6145 = vmul.f32 %v6131, 1.442695
  %v6146 = vpow.pop %v6145
  %v6147 = vmul.f32 %v6132, 1.442695
  %v6148 = vpow.pop %v6147
  %6157 = vset.pattern.permute.xlu0 0
  %6158 = vperm.xlu0 %6157, %v6134
  %v6159 = vpop.permute.xlu0 %6158
  %6160 = vset.pattern.permute.xlu0 0
  %6161 = vperm.xlu0 %6160, %v6136
  %v6162 = vpop.permute.xlu0 %6161
  %6163 = vset.pattern.permute.xlu0 0
  %6164 = vperm.xlu0 %6163, %v6138
  %v6165 = vpop.permute.xlu0 %6164
  %6166 = vset.pattern.permute.xlu0 0
  %6167 = vperm.xlu0 %6166, %v6140
  %v6168 = vpop.permute.xlu0 %6167
  %6169 = vset.pattern.permute.xlu0 0
  %6170 = vperm.xlu0 %6169, %v6142
  %v6171 = vpop.permute.xlu0 %6170
  %6172 = vset.pattern.permute.xlu0 0
  %6173 = vperm.xlu0 %6172, %v6144
  %v6174 = vpop.permute.xlu0 %6173
  %6175 = vset.pattern.permute.xlu0 0
  %6176 = vperm.xlu0 %6175, %v6146
  %v6177 = vpop.permute.xlu0 %6176
  %6178 = vset.pattern.permute.xlu0 0
  %6179 = vperm.xlu0 %6178, %v6148
  %v6180 = vpop.permute.xlu0 %6179
  %v6181 = vlaneseq
  %v6182 = vshrl.u32 %v6181, 7
  %v6183 = vsub.s32 %v610, %v6182
  %v6184 = vrot.slane %v6159, %v6183
  %v6185 = vlaneseq
  %v6186 = vshrl.u32 %v6185, 7
  %v6187 = vsub.s32 %v610, %v6186
  %v6188 = vrot.slane %v6162, %v6187
  %v6189 = vlaneseq
  %v6190 = vshrl.u32 %v6189, 7
  %v6191 = vsub.s32 %v610, %v6190
  %v6192 = vrot.slane %v6165, %v6191
  %v6193 = vlaneseq
  %v6194 = vshrl.u32 %v6193, 7
  %v6195 = vsub.s32 %v610, %v6194
  %v6196 = vrot.slane %v6168, %v6195
  %v6197 = vlaneseq
  %v6198 = vshrl.u32 %v6197, 7
  %v6199 = vsub.s32 %v610, %v6198
  %v6200 = vrot.slane %v6171, %v6199
  %v6201 = vlaneseq
  %v6202 = vshrl.u32 %v6201, 7
  %v6203 = vsub.s32 %v610, %v6202
  %v6204 = vrot.slane %v6174, %v6203
  %v6205 = vlaneseq
  %v6206 = vshrl.u32 %v6205, 7
  %v6207 = vsub.s32 %v610, %v6206
  %v6208 = vrot.slane %v6177, %v6207
  %v6209 = vlaneseq
  %v6210 = vshrl.u32 %v6209, 7
  %v6211 = vsub.s32 %v610, %v6210
  %v6212 = vrot.slane %v6180, %v6211
  %v6213 = vsel %vm276, %v6188, %v6184
  %v6214 = vsel %vm278, %v6192, %v6213
  %v6215 = vsel %vm280, %v6196, %v6214
  %v6216 = vsel %vm282, %v6200, %v6215
  %v6217 = vsel %vm284, %v6204, %v6216
  %v6218 = vsel %vm286, %v6208, %v6217
  %v6219 = vsel %vm288, %v6212, %v6218
  %v6221 = vsel %vm651, %v6219, 0.0
  %6222 = vadd.xlane.f32.xlu0 %v6221
  %v6223 = vpop.xlane.xlu0 %6222
  %v6225 = vlaneseq
  %v6226 = vshrl.u32 %v6225, 7
  %v6227 = vsub.s32 0, %v6226
  %v6228 = vrot.slane %v6223, %v6227
  %v6229 = vlaneseq
  %v6230 = vshrl.u32 %v6229, 7
  %v6231 = vsub.s32 1, %v6230
  %v6232 = vrot.slane %v6223, %v6231
  %v6233 = vlaneseq
  %v6234 = vshrl.u32 %v6233, 7
  %v6235 = vsub.s32 2, %v6234
  %v6236 = vrot.slane %v6223, %v6235
  %v6237 = vlaneseq
  %v6238 = vshrl.u32 %v6237, 7
  %v6239 = vsub.s32 3, %v6238
  %v6240 = vrot.slane %v6223, %v6239
  %v6241 = vlaneseq
  %v6242 = vshrl.u32 %v6241, 7
  %v6243 = vsub.s32 4, %v6242
  %v6244 = vrot.slane %v6223, %v6243
  %v6245 = vlaneseq
  %v6246 = vshrl.u32 %v6245, 7
  %v6247 = vsub.s32 5, %v6246
  %v6248 = vrot.slane %v6223, %v6247
  %v6249 = vlaneseq
  %v6250 = vshrl.u32 %v6249, 7
  %v6251 = vsub.s32 6, %v6250
  %v6252 = vrot.slane %v6223, %v6251
  %v6253 = vlaneseq
  %v6254 = vshrl.u32 %v6253, 7
  %v6255 = vsub.s32 7, %v6254
  %v6256 = vrot.slane %v6223, %v6255
  %v6265 = vrcp.pop %v6228
  %v6266 = vmul.f32 %v6134, %v6265
  %v6267 = vrcp.pop %v6232
  %v6268 = vmul.f32 %v6136, %v6267
  %v6269 = vrcp.pop %v6236
  %v6270 = vmul.f32 %v6138, %v6269
  %v6271 = vrcp.pop %v6240
  %v6272 = vmul.f32 %v6140, %v6271
  %v6273 = vrcp.pop %v6244
  %v6274 = vmul.f32 %v6142, %v6273
  %v6275 = vrcp.pop %v6248
  %v6276 = vmul.f32 %v6144, %v6275
  %v6277 = vrcp.pop %v6252
  %v6278 = vmul.f32 %v6146, %v6277
  %v6279 = vrcp.pop %v6256
  %v6280 = vmul.f32 %v6148, %v6279
  %6282 = vset.pattern.permute.xlu0 0
  %6283 = vperm.xlu0 %6282, %v6266
  %v6284 = vpop.permute.xlu0 %6283
  %6287 = vset.pattern.permute.xlu0 0
  %6288 = vperm.xlu0 %6287, %v6268
  %v6289 = vpop.permute.xlu0 %6288
  %6292 = vset.pattern.permute.xlu0 0
  %6293 = vperm.xlu0 %6292, %v6270
  %v6294 = vpop.permute.xlu0 %6293
  %6297 = vset.pattern.permute.xlu0 0
  %6298 = vperm.xlu0 %6297, %v6272
  %v6299 = vpop.permute.xlu0 %6298
  %6302 = vset.pattern.permute.xlu0 0
  %6303 = vperm.xlu0 %6302, %v6274
  %v6304 = vpop.permute.xlu0 %6303
  %6307 = vset.pattern.permute.xlu0 0
  %6308 = vperm.xlu0 %6307, %v6276
  %v6309 = vpop.permute.xlu0 %6308
  %6312 = vset.pattern.permute.xlu0 0
  %6313 = vperm.xlu0 %6312, %v6278
  %v6314 = vpop.permute.xlu0 %6313
  %6317 = vset.pattern.permute.xlu0 0
  %6318 = vperm.xlu0 %6317, %v6280
  %v6319 = vpop.permute.xlu0 %6318
  %v6321 = vmul.f32 %v43, %v6284
  %v6322 = vmul.f32 %v44, %v6289
  %v6323 = vmul.f32 %v45, %v6294
  %v6324 = vmul.f32 %v46, %v6299
  %v6325 = vmul.f32 %v47, %v6304
  %v6326 = vmul.f32 %v48, %v6309
  %v6327 = vmul.f32 %v49, %v6314
  %v6328 = vmul.f32 %v50, %v6319
  %v6329 = vsel %vm62, %v6321, 0.0
  %v6330 = vrot.slane %v6329, 4
  %v6331 = vadd.f32 %v6329, %v6330
  %v6332 = vrot.slane %v6331, 2
  %v6333 = vadd.f32 %v6331, %v6332
  %v6334 = vrot.slane %v6333, 1
  %v6335 = vadd.f32 %v6333, %v6334
  %v6336 = vsel %vm62, %v6322, 0.0
  %v6337 = vrot.slane %v6336, 4
  %v6338 = vadd.f32 %v6336, %v6337
  %v6339 = vrot.slane %v6338, 2
  %v6340 = vadd.f32 %v6338, %v6339
  %v6341 = vrot.slane %v6340, 1
  %v6342 = vadd.f32 %v6340, %v6341
  %v6343 = vsel %vm62, %v6323, 0.0
  %v6344 = vrot.slane %v6343, 4
  %v6345 = vadd.f32 %v6343, %v6344
  %v6346 = vrot.slane %v6345, 2
  %v6347 = vadd.f32 %v6345, %v6346
  %v6348 = vrot.slane %v6347, 1
  %v6349 = vadd.f32 %v6347, %v6348
  %v6350 = vsel %vm62, %v6324, 0.0
  %v6351 = vrot.slane %v6350, 4
  %v6352 = vadd.f32 %v6350, %v6351
  %v6353 = vrot.slane %v6352, 2
  %v6354 = vadd.f32 %v6352, %v6353
  %v6355 = vrot.slane %v6354, 1
  %v6356 = vadd.f32 %v6354, %v6355
  %v6357 = vsel %vm62, %v6325, 0.0
  %v6358 = vrot.slane %v6357, 4
  %v6359 = vadd.f32 %v6357, %v6358
  %v6360 = vrot.slane %v6359, 2
  %v6361 = vadd.f32 %v6359, %v6360
  %v6362 = vrot.slane %v6361, 1
  %v6363 = vadd.f32 %v6361, %v6362
  %v6364 = vsel %vm62, %v6326, 0.0
  %v6365 = vrot.slane %v6364, 4
  %v6366 = vadd.f32 %v6364, %v6365
  %v6367 = vrot.slane %v6366, 2
  %v6368 = vadd.f32 %v6366, %v6367
  %v6369 = vrot.slane %v6368, 1
  %v6370 = vadd.f32 %v6368, %v6369
  %v6371 = vsel %vm62, %v6327, 0.0
  %v6372 = vrot.slane %v6371, 4
  %v6373 = vadd.f32 %v6371, %v6372
  %v6374 = vrot.slane %v6373, 2
  %v6375 = vadd.f32 %v6373, %v6374
  %v6376 = vrot.slane %v6375, 1
  %v6377 = vadd.f32 %v6375, %v6376
  %v6378 = vsel %vm62, %v6328, 0.0
  %v6379 = vrot.slane %v6378, 4
  %v6380 = vadd.f32 %v6378, %v6379
  %v6381 = vrot.slane %v6380, 2
  %v6382 = vadd.f32 %v6380, %v6381
  %v6383 = vrot.slane %v6382, 1
  %v6384 = vadd.f32 %v6382, %v6383
  %v6385 = vld [vmem:[%s0 + $0x6] sm:$0x1]
  %v6386 = vld [vmem:[%s0 + $0xe] sm:$0x1]
  %v6387 = vld [vmem:[%s0 + $0x16] sm:$0x1]
  %v6388 = vld [vmem:[%s0 + $0x1e] sm:$0x1]
  %v6389 = vld [vmem:[%s0 + $0x26] sm:$0x1]
  %v6390 = vld [vmem:[%s0 + $0x2e] sm:$0x1]
  %v6391 = vld [vmem:[%s0 + $0x36] sm:$0x1]
  %v6392 = vld [vmem:[%s0 + $0x3e] sm:$0x1]
  %v6401 = vrot.slane %v6386, 7
  %v6402 = vsel %vm276, %v6401, %v6385
  %v6403 = vrot.slane %v6387, 6
  %v6404 = vsel %vm278, %v6403, %v6402
  %v6405 = vrot.slane %v6388, 5
  %v6406 = vsel %vm280, %v6405, %v6404
  %v6407 = vrot.slane %v6389, 4
  %v6408 = vsel %vm282, %v6407, %v6406
  %v6409 = vrot.slane %v6390, 3
  %v6410 = vsel %vm284, %v6409, %v6408
  %v6411 = vrot.slane %v6391, 2
  %v6412 = vsel %vm286, %v6411, %v6410
  %v6413 = vrot.slane %v6392, 1
  %v6414 = vsel %vm288, %v6413, %v6412
  %6416 = vst.msk [vmem:[#allocation2] sm:$0xff] %vm576, %v6414
  %v6425 = vsel %vm276, %v6342, %v6335
  %v6426 = vsel %vm278, %v6349, %v6425
  %v6427 = vsel %vm280, %v6356, %v6426
  %v6428 = vsel %vm282, %v6363, %v6427
  %v6429 = vsel %vm284, %v6370, %v6428
  %v6430 = vsel %vm286, %v6377, %v6429
  %v6431 = vsel %vm288, %v6384, %v6430
  %6432 = vrot.lane.b32.xlu0 %v6431, 16
  %v6433 = vpop.permute.xlu0 %6432
  %6435 = vst.msk [vmem:[#allocation2] sm:$0xff] %vm1006, %v6433
  %6436 = vrot.lane.b32.xlu0 %v5635, 80
  %v6437 = vpop.permute.xlu0 %6436
  %6439 = vst.msk [vmem:[#allocation2] sm:$0xff] %vm1011, %v6437
  %v6440 = vld [vmem:[#allocation2] sm:$0xff]
  %v6442 = vsel %vm1020, %v6440, 0
  %6444 = vmatprep.subr.mxu0 0.0
  %6445 = vmatpush1.msra.mxu0 %v367
  %6446 = vmatprep.subr.mxu0 0.0
  %6447 = vmatpush1.msra.mxu0 %v368
  %6448 = vmatprep.subr.mxu0 0.0
  %6449 = vmatpush1.msra.mxu0 %v369
  %6450 = vmatprep.subr.mxu0 0.0
  %6451 = vmatpush1.msra.mxu0 %v370
  %6452 = vmatprep.subr.mxu0 0.0
  %6453 = vmatpush1.msra.mxu0 %v371
  %6454 = vmatprep.subr.mxu0 0.0
  %6455 = vmatpush1.msra.mxu0 %v372
  %6456 = vmatprep.subr.mxu0 0.0
  %6457 = vmatpush1.msra.mxu0 %v373
  %6458 = vmatprep.subr.mxu0 0.0
  %6459 = vmatpush1.msra.mxu0 %v374
  %6460 = vmatprep.subr.mxu0 0.0
  %6461 = vmatpush1.msra.mxu0 %v375
  %6462 = vmatprep.subr.mxu0 0.0
  %6463 = vmatpush1.msra.mxu0 %v376
  %6464 = vmatprep.subr.mxu0 0.0
  %6465 = vmatpush1.msra.mxu0 0.0
  %6466 = vmatprep.subr.mxu0 0.0
  %6467 = vmatpush1.msra.mxu0 0.0
  %6468 = vmatprep.subr.mxu0 0.0
  %6469 = vmatpush1.msra.mxu0 0.0
  %6470 = vmatprep.subr.mxu0 0.0
  %6471 = vmatpush1.msra.mxu0 0.0
  %6472 = vmatprep.subr.mxu0 0.0
  %6473 = vmatpush1.msra.mxu0 0.0
  %6474 = vmatprep.subr.mxu0 0.0
  %6475 = vmatpush1.msra.mxu0 0.0
  %6476 = vmatprep.subr.mxu0 0.0
  %6477 = vmatpush1.msra.mxu0 0.0
  %6478 = vmatprep.subr.mxu0 0.0
  %6479 = vmatpush1.msra.mxu0 0.0
  %6480 = vmatprep.subr.mxu0 0.0
  %6481 = vmatpush1.msra.mxu0 0.0
  %6482 = vmatprep.subr.mxu0 0.0
  %6483 = vmatpush1.msra.mxu0 0.0
  %6484 = vmatprep.subr.mxu0 0.0
  %6485 = vmatpush1.msra.mxu0 0.0
  %6486 = vmatprep.subr.mxu0 0.0
  %6487 = vmatpush1.msra.mxu0 0.0
  %6488 = vmatprep.subr.mxu0 0.0
  %6489 = vmatpush1.msra.mxu0 0.0
  %6490 = vmatprep.subr.mxu0 0.0
  %6491 = vmatpush1.msra.mxu0 0.0
  %6492 = vmatprep.subr.mxu0 0.0
  %6493 = vmatpush1.msra.mxu0 0.0
  %6494 = vmatprep.subr.mxu0 0.0
  %6495 = vmatpush1.msra.mxu0 0.0
  %6496 = vmatprep.subr.mxu0 0.0
  %6497 = vmatpush1.msra.mxu0 0.0
  %6498 = vmatprep.subr.mxu0 0.0
  %6499 = vmatpush1.msra.mxu0 0.0
  %6500 = vmatprep.subr.mxu0 0.0
  %6501 = vmatpush1.msra.mxu0 0.0
  %6502 = vmatprep.subr.mxu0 0.0
  %6503 = vmatpush1.msra.mxu0 0.0
  %6504 = vmatprep.subr.mxu0 0.0
  %6505 = vmatpush1.msra.mxu0 0.0
  %6506 = vmatprep.subr.mxu0 0.0
  %6507 = vmatpush1.msra.mxu0 0.0
  %6508 = vmatprep.mubr.f32.mxu0 0.0
  %6509 = vmatmul.mubr.f32.gmra.mrb[0].mxu0 %v6442
  %v6510 = vpop.f32.mrb[0].mxu0
  %v6511 = vadd.f32 %v1018, %v6510
  %v6512 = vpop.f32.mrb[0].mxu0
  %6513 = vdwg.mxu0
  %v6514 = vxor.u32 %v6511, 2147483648
  %v6515 = vmul.f32 %v6514, 1.442695
  %v6516 = vpow.pop %v6515
  %v6517 = vadd.f32 %v6516, 1.0
  %v6518 = vrcp.pop %v6517
  %v6519 = vmul.f32 1.0, %v6518
  %v6520 = vtanh.pop %v6511
  %v6521 = vmul.f32 %v6519, %v5629
  %6523 = vrot.lane.b32.xlu0 %v6520, 64
  %v6524 = vpop.permute.xlu0 %6523
  %v6526 = vmul.f32 %v6519, %v6524
  %6528 = vrot.lane.b32.xlu0 %v6526, 32
  %v6529 = vpop.permute.xlu0 %6528
  %v6531 = vadd.f32 %v6521, %v6529
  %v6532 = vtanh.pop %v6531
  %6534 = vrot.lane.b32.xlu0 %v6532, 64
  %v6535 = vpop.permute.xlu0 %6534
  %v6537 = vmul.f32 %v6519, %v6535
  %6539 = vrot.lane.b32.xlu0 %v6537, 32
  %v6540 = vpop.permute.xlu0 %6539
  %v6541 = vsel %vm62, %v6540, 0
  %6543 = vmatprep.subr.mxu0 0.0
  %6544 = vmatpush1.msra.mxu0 %v378
  %6545 = vmatprep.subr.mxu0 0.0
  %6546 = vmatpush1.msra.mxu0 %v379
  %6547 = vmatprep.subr.mxu0 0.0
  %6548 = vmatpush1.msra.mxu0 %v380
  %6549 = vmatprep.subr.mxu0 0.0
  %6550 = vmatpush1.msra.mxu0 %v381
  %6551 = vmatprep.subr.mxu0 0.0
  %6552 = vmatpush1.msra.mxu0 0.0
  %6553 = vmatprep.subr.mxu0 0.0
  %6554 = vmatpush1.msra.mxu0 0.0
  %6555 = vmatprep.subr.mxu0 0.0
  %6556 = vmatpush1.msra.mxu0 0.0
  %6557 = vmatprep.subr.mxu0 0.0
  %6558 = vmatpush1.msra.mxu0 0.0
  %6559 = vmatprep.subr.mxu0 0.0
  %6560 = vmatpush1.msra.mxu0 0.0
  %6561 = vmatprep.subr.mxu0 0.0
  %6562 = vmatpush1.msra.mxu0 0.0
  %6563 = vmatprep.subr.mxu0 0.0
  %6564 = vmatpush1.msra.mxu0 0.0
  %6565 = vmatprep.subr.mxu0 0.0
  %6566 = vmatpush1.msra.mxu0 0.0
  %6567 = vmatprep.subr.mxu0 0.0
  %6568 = vmatpush1.msra.mxu0 0.0
  %6569 = vmatprep.subr.mxu0 0.0
  %6570 = vmatpush1.msra.mxu0 0.0
  %6571 = vmatprep.subr.mxu0 0.0
  %6572 = vmatpush1.msra.mxu0 0.0
  %6573 = vmatprep.subr.mxu0 0.0
  %6574 = vmatpush1.msra.mxu0 0.0
  %6575 = vmatprep.subr.mxu0 0.0
  %6576 = vmatpush1.msra.mxu0 0.0
  %6577 = vmatprep.subr.mxu0 0.0
  %6578 = vmatpush1.msra.mxu0 0.0
  %6579 = vmatprep.subr.mxu0 0.0
  %6580 = vmatpush1.msra.mxu0 0.0
  %6581 = vmatprep.subr.mxu0 0.0
  %6582 = vmatpush1.msra.mxu0 0.0
  %6583 = vmatprep.subr.mxu0 0.0
  %6584 = vmatpush1.msra.mxu0 0.0
  %6585 = vmatprep.subr.mxu0 0.0
  %6586 = vmatpush1.msra.mxu0 0.0
  %6587 = vmatprep.subr.mxu0 0.0
  %6588 = vmatpush1.msra.mxu0 0.0
  %6589 = vmatprep.subr.mxu0 0.0
  %6590 = vmatpush1.msra.mxu0 0.0
  %6591 = vmatprep.subr.mxu0 0.0
  %6592 = vmatpush1.msra.mxu0 0.0
  %6593 = vmatprep.subr.mxu0 0.0
  %6594 = vmatpush1.msra.mxu0 0.0
  %6595 = vmatprep.subr.mxu0 0.0
  %6596 = vmatpush1.msra.mxu0 0.0
  %6597 = vmatprep.subr.mxu0 0.0
  %6598 = vmatpush1.msra.mxu0 0.0
  %6599 = vmatprep.subr.mxu0 0.0
  %6600 = vmatpush1.msra.mxu0 0.0
  %6601 = vmatprep.subr.mxu0 0.0
  %6602 = vmatpush1.msra.mxu0 0.0
  %6603 = vmatprep.subr.mxu0 0.0
  %6604 = vmatpush1.msra.mxu0 0.0
  %6605 = vmatprep.subr.mxu0 0.0
  %6606 = vmatpush1.msra.mxu0 0.0
  %6607 = vmatprep.mubr.f32.mxu0 0.0
  %6608 = vmatmul.mubr.f32.gmra.mrb[0].mxu0 %v6541
  %v6609 = vpop.f32.mrb[0].mxu0
  %v6610 = vadd.f32 %v1122, %v6609
  %v6611 = vpop.f32.mrb[0].mxu0
  %6612 = vdwg.mxu0
  %v6614 = vcombine.high %v6610, %v6610
  %v6616 = vunpack.c.l.s4 1966171168
  %v6617 = vunpack.c.0.s8 %v6616
  %v6618 = vlaneseq
  %v6619 = vshrl.u32 %v6618, 7
  %v6620 = vsub.s32 %v6617, %v6619
  %v6621 = vrot.slane %v6610, %v6620
  %v6623 = vunpack.c.l.s4 1966171168
  %v6624 = vunpack.c.0.s8 %v6623
  %v6625 = vlaneseq
  %v6626 = vshrl.u32 %v6625, 7
  %v6627 = vsub.s32 %v6624, %v6626
  %v6628 = vrot.slane %v6614, %v6627
  %v6629 = vcombine.high %v6621, %v6621
  %v6630 = vcombine.high %v6628, %v6628
  %v6632 = vunpack.c.l.s4 1966171168
  %v6633 = vunpack.c.0.s8 %v6632
  %v6634 = vlaneseq
  %v6635 = vshrl.u32 %v6634, 7
  %v6636 = vsub.s32 %v6633, %v6635
  %v6637 = vrot.slane %v6621, %v6636
  %v6639 = vunpack.c.l.s4 1966171168
  %v6640 = vunpack.c.0.s8 %v6639
  %v6641 = vlaneseq
  %v6642 = vshrl.u32 %v6641, 7
  %v6643 = vsub.s32 %v6640, %v6642
  %v6644 = vrot.slane %v6628, %v6643
  %v6646 = vunpack.c.l.s4 1966171168
  %v6647 = vunpack.c.0.s8 %v6646
  %v6648 = vlaneseq
  %v6649 = vshrl.u32 %v6648, 7
  %v6650 = vsub.s32 %v6647, %v6649
  %v6651 = vrot.slane %v6629, %v6650
  %v6653 = vunpack.c.l.s4 1966171168
  %v6654 = vunpack.c.0.s8 %v6653
  %v6655 = vlaneseq
  %v6656 = vshrl.u32 %v6655, 7
  %v6657 = vsub.s32 %v6654, %v6656
  %v6658 = vrot.slane %v6630, %v6657
  %v6659 = vcombine.high %v6637, %v6637
  %v6660 = vcombine.high %v6644, %v6644
  %v6661 = vcombine.high %v6651, %v6651
  %v6662 = vcombine.high %v6658, %v6658
  %6671 = vst.msk [vmem:[%s12 + $0x6] sm:$0x1] %vm1257, %v6637
  %6672 = vst.msk [vmem:[%s12 + $0xe] sm:$0x1] %vm1257, %v6651
  %6673 = vst.msk [vmem:[%s12 + $0x16] sm:$0x1] %vm1257, %v6659
  %6674 = vst.msk [vmem:[%s12 + $0x1e] sm:$0x1] %vm1257, %v6661
  %6675 = vst.msk [vmem:[%s12 + $0x26] sm:$0x1] %vm1257, %v6644
  %6676 = vst.msk [vmem:[%s12 + $0x2e] sm:$0x1] %vm1257, %v6658
  %6677 = vst.msk [vmem:[%s12 + $0x36] sm:$0x1] %vm1257, %v6660
  %6678 = vst.msk [vmem:[%s12 + $0x3e] sm:$0x1] %vm1257, %v6662
  %v6679 = vlaneseq
  %v6680 = vshrl.u32 %v6679, 7
  %v6681 = vsub.s32 %v610, %v6680
  %v6682 = vrot.slane %v6284, %v6681
  %v6683 = vlaneseq
  %v6684 = vshrl.u32 %v6683, 7
  %v6685 = vsub.s32 %v610, %v6684
  %v6686 = vrot.slane %v6289, %v6685
  %v6687 = vlaneseq
  %v6688 = vshrl.u32 %v6687, 7
  %v6689 = vsub.s32 %v610, %v6688
  %v6690 = vrot.slane %v6294, %v6689
  %v6691 = vlaneseq
  %v6692 = vshrl.u32 %v6691, 7
  %v6693 = vsub.s32 %v610, %v6692
  %v6694 = vrot.slane %v6299, %v6693
  %v6695 = vlaneseq
  %v6696 = vshrl.u32 %v6695, 7
  %v6697 = vsub.s32 %v610, %v6696
  %v6698 = vrot.slane %v6304, %v6697
  %v6699 = vlaneseq
  %v6700 = vshrl.u32 %v6699, 7
  %v6701 = vsub.s32 %v610, %v6700
  %v6702 = vrot.slane %v6309, %v6701
  %v6703 = vlaneseq
  %v6704 = vshrl.u32 %v6703, 7
  %v6705 = vsub.s32 %v610, %v6704
  %v6706 = vrot.slane %v6314, %v6705
  %v6707 = vlaneseq
  %v6708 = vshrl.u32 %v6707, 7
  %v6709 = vsub.s32 %v610, %v6708
  %v6710 = vrot.slane %v6319, %v6709
  %6719 = vst.msk [vmem:[%s13 + $0x6] sm:$0x1] %vm1306, %v6682
  %6720 = vst.msk [vmem:[%s13 + $0xe] sm:$0x1] %vm1306, %v6686
  %6721 = vst.msk [vmem:[%s13 + $0x16] sm:$0x1] %vm1306, %v6690
  %6722 = vst.msk [vmem:[%s13 + $0x1e] sm:$0x1] %vm1306, %v6694
  %6723 = vst.msk [vmem:[%s13 + $0x26] sm:$0x1] %vm1306, %v6698
  %6724 = vst.msk [vmem:[%s13 + $0x2e] sm:$0x1] %vm1306, %v6702
  %6725 = vst.msk [vmem:[%s13 + $0x36] sm:$0x1] %vm1306, %v6706
  %6726 = vst.msk [vmem:[%s13 + $0x3e] sm:$0x1] %vm1306, %v6710
  %6727 = vmatprep.subr.mxu0 0.0
  %6728 = vmatpush1.msra.mxu0 %v362
  %6729 = vmatprep.subr.mxu0 0.0
  %6730 = vmatpush1.msra.mxu0 %v363
  %6731 = vmatprep.subr.mxu0 0.0
  %6732 = vmatpush1.msra.mxu0 %v364
  %6733 = vmatprep.subr.mxu0 0.0
  %6734 = vmatpush1.msra.mxu0 %v365
  %6735 = vmatprep.subr.mxu0 0.0
  %6736 = vmatpush1.msra.mxu0 0.0
  %6737 = vmatprep.subr.mxu0 0.0
  %6738 = vmatpush1.msra.mxu0 0.0
  %6739 = vmatprep.subr.mxu0 0.0
  %6740 = vmatpush1.msra.mxu0 0.0
  %6741 = vmatprep.subr.mxu0 0.0
  %6742 = vmatpush1.msra.mxu0 0.0
  %6743 = vmatprep.subr.mxu0 0.0
  %6744 = vmatpush1.msra.mxu0 0.0
  %6745 = vmatprep.subr.mxu0 0.0
  %6746 = vmatpush1.msra.mxu0 0.0
  %6747 = vmatprep.subr.mxu0 0.0
  %6748 = vmatpush1.msra.mxu0 0.0
  %6749 = vmatprep.subr.mxu0 0.0
  %6750 = vmatpush1.msra.mxu0 0.0
  %6751 = vmatprep.subr.mxu0 0.0
  %6752 = vmatpush1.msra.mxu0 0.0
  %6753 = vmatprep.subr.mxu0 0.0
  %6754 = vmatpush1.msra.mxu0 0.0
  %6755 = vmatprep.subr.mxu0 0.0
  %6756 = vmatpush1.msra.mxu0 0.0
  %6757 = vmatprep.subr.mxu0 0.0
  %6758 = vmatpush1.msra.mxu0 0.0
  %6759 = vmatprep.subr.mxu0 0.0
  %6760 = vmatpush1.msra.mxu0 0.0
  %6761 = vmatprep.subr.mxu0 0.0
  %6762 = vmatpush1.msra.mxu0 0.0
  %6763 = vmatprep.subr.mxu0 0.0
  %6764 = vmatpush1.msra.mxu0 0.0
  %6765 = vmatprep.subr.mxu0 0.0
  %6766 = vmatpush1.msra.mxu0 0.0
  %6767 = vmatprep.subr.mxu0 0.0
  %6768 = vmatpush1.msra.mxu0 0.0
  %6769 = vmatprep.subr.mxu0 0.0
  %6770 = vmatpush1.msra.mxu0 0.0
  %6771 = vmatprep.subr.mxu0 0.0
  %6772 = vmatpush1.msra.mxu0 0.0
  %6773 = vmatprep.subr.mxu0 0.0
  %6774 = vmatpush1.msra.mxu0 0.0
  %6775 = vmatprep.subr.mxu0 0.0
  %6776 = vmatpush1.msra.mxu0 0.0
  %6777 = vmatprep.subr.mxu0 0.0
  %6778 = vmatpush1.msra.mxu0 0.0
  %6779 = vmatprep.subr.mxu0 0.0
  %6780 = vmatpush1.msra.mxu0 0.0
  %6781 = vmatprep.subr.mxu0 0.0
  %6782 = vmatpush1.msra.mxu0 0.0
  %6783 = vmatprep.subr.mxu0 0.0
  %6784 = vmatpush1.msra.mxu0 0.0
  %6785 = vmatprep.subr.mxu0 0.0
  %6786 = vmatpush1.msra.mxu0 0.0
  %6787 = vmatprep.subr.mxu0 0.0
  %6788 = vmatpush1.msra.mxu0 0.0
  %6789 = vmatprep.subr.mxu0 0.0
  %6790 = vmatpush1.msra.mxu0 0.0
  %6791 = vmatprep.mubr.f32.mxu0 0.0
  %6792 = vmatmul.mubr.f32.gmra.mrb[0].mxu0 %v6541
  %v6793 = vpop.f32.mrb[0].mxu0
  %v6794 = vadd.f32 0.0, %v6793
  %v6795 = vpop.f32.mrb[0].mxu0
  %6796 = vdwg.mxu0
  %v6798 = vcombine.high %v6794, %v6794
  %v6800 = vunpack.c.l.s4 1966171168
  %v6801 = vunpack.c.0.s8 %v6800
  %v6802 = vlaneseq
  %v6803 = vshrl.u32 %v6802, 7
  %v6804 = vsub.s32 %v6801, %v6803
  %v6805 = vrot.slane %v6794, %v6804
  %v6807 = vunpack.c.l.s4 1966171168
  %v6808 = vunpack.c.0.s8 %v6807
  %v6809 = vlaneseq
  %v6810 = vshrl.u32 %v6809, 7
  %v6811 = vsub.s32 %v6808, %v6810
  %v6812 = vrot.slane %v6798, %v6811
  %v6813 = vcombine.high %v6805, %v6805
  %v6814 = vcombine.high %v6812, %v6812
  %v6816 = vunpack.c.l.s4 1966171168
  %v6817 = vunpack.c.0.s8 %v6816
  %v6818 = vlaneseq
  %v6819 = vshrl.u32 %v6818, 7
  %v6820 = vsub.s32 %v6817, %v6819
  %v6821 = vrot.slane %v6805, %v6820
  %v6823 = vunpack.c.l.s4 1966171168
  %v6824 = vunpack.c.0.s8 %v6823
  %v6825 = vlaneseq
  %v6826 = vshrl.u32 %v6825, 7
  %v6827 = vsub.s32 %v6824, %v6826
  %v6828 = vrot.slane %v6812, %v6827
  %v6830 = vunpack.c.l.s4 1966171168
  %v6831 = vunpack.c.0.s8 %v6830
  %v6832 = vlaneseq
  %v6833 = vshrl.u32 %v6832, 7
  %v6834 = vsub.s32 %v6831, %v6833
  %v6835 = vrot.slane %v6813, %v6834
  %v6837 = vunpack.c.l.s4 1966171168
  %v6838 = vunpack.c.0.s8 %v6837
  %v6839 = vlaneseq
  %v6840 = vshrl.u32 %v6839, 7
  %v6841 = vsub.s32 %v6838, %v6840
  %v6842 = vrot.slane %v6814, %v6841
  %v6843 = vcombine.high %v6821, %v6821
  %v6844 = vcombine.high %v6828, %v6828
  %v6845 = vcombine.high %v6835, %v6835
  %v6846 = vcombine.high %v6842, %v6842
  %v6847 = vlaneseq
  %v6848 = vshrl.u32 %v6847, 7
  %v6849 = vsub.s32 0, %v6848
  %v6850 = vrot.slane %v6821, %v6849
  %v6851 = vlaneseq
  %v6852 = vshrl.u32 %v6851, 7
  %v6853 = vsub.s32 0, %v6852
  %v6854 = vrot.slane %v6835, %v6853
  %v6855 = vlaneseq
  %v6856 = vshrl.u32 %v6855, 7
  %v6857 = vsub.s32 0, %v6856
  %v6858 = vrot.slane %v6843, %v6857
  %v6859 = vlaneseq
  %v6860 = vshrl.u32 %v6859, 7
  %v6861 = vsub.s32 0, %v6860
  %v6862 = vrot.slane %v6845, %v6861
  %v6863 = vlaneseq
  %v6864 = vshrl.u32 %v6863, 7
  %v6865 = vsub.s32 0, %v6864
  %v6866 = vrot.slane %v6828, %v6865
  %v6867 = vlaneseq
  %v6868 = vshrl.u32 %v6867, 7
  %v6869 = vsub.s32 0, %v6868
  %v6870 = vrot.slane %v6842, %v6869
  %v6871 = vlaneseq
  %v6872 = vshrl.u32 %v6871, 7
  %v6873 = vsub.s32 0, %v6872
  %v6874 = vrot.slane %v6844, %v6873
  %v6875 = vlaneseq
  %v6876 = vshrl.u32 %v6875, 7
  %v6877 = vsub.s32 0, %v6876
  %v6878 = vrot.slane %v6846, %v6877
  %v6887 = vadd.f32 %v154, %v6850
  %v6888 = vadd.f32 %v159, %v6854
  %v6889 = vadd.f32 %v164, %v6858
  %v6890 = vadd.f32 %v169, %v6862
  %v6891 = vadd.f32 %v174, %v6866
  %v6892 = vadd.f32 %v179, %v6870
  %v6893 = vadd.f32 %v184, %v6874
  %v6894 = vadd.f32 %v189, %v6878
  %v6895 = vtanh.pop %v6887
  %v6896 = vtanh.pop %v6888
  %v6897 = vtanh.pop %v6889
  %v6898 = vtanh.pop %v6890
  %v6899 = vtanh.pop %v6891
  %v6900 = vtanh.pop %v6892
  %v6901 = vtanh.pop %v6893
  %v6902 = vtanh.pop %v6894
  %v6903 = vmul.f32 %v6895, %v566
  %v6904 = vmul.f32 %v6896, %v566
  %v6905 = vmul.f32 %v6897, %v566
  %v6906 = vmul.f32 %v6898, %v566
  %v6907 = vmul.f32 %v6899, %v566
  %v6908 = vmul.f32 %v6900, %v566
  %v6909 = vmul.f32 %v6901, %v566
  %v6910 = vmul.f32 %v6902, %v566
  %v6911 = vsel %vm576, %v6903, 0.0
  %6912 = vadd.xlane.f32.xlu0 %v6911
  %v6913 = vpop.xlane.xlu0 %6912
  %v6914 = vsel %vm576, %v6904, 0.0
  %6915 = vadd.xlane.f32.xlu0 %v6914
  %v6916 = vpop.xlane.xlu0 %6915
  %v6917 = vsel %vm576, %v6905, 0.0
  %6918 = vadd.xlane.f32.xlu0 %v6917
  %v6919 = vpop.xlane.xlu0 %6918
  %v6920 = vsel %vm576, %v6906, 0.0
  %6921 = vadd.xlane.f32.xlu0 %v6920
  %v6922 = vpop.xlane.xlu0 %6921
  %v6923 = vsel %vm576, %v6907, 0.0
  %6924 = vadd.xlane.f32.xlu0 %v6923
  %v6925 = vpop.xlane.xlu0 %6924
  %v6926 = vsel %vm576, %v6908, 0.0
  %6927 = vadd.xlane.f32.xlu0 %v6926
  %v6928 = vpop.xlane.xlu0 %6927
  %v6929 = vsel %vm576, %v6909, 0.0
  %6930 = vadd.xlane.f32.xlu0 %v6929
  %v6931 = vpop.xlane.xlu0 %6930
  %v6932 = vsel %vm576, %v6910, 0.0
  %6933 = vadd.xlane.f32.xlu0 %v6932
  %v6934 = vpop.xlane.xlu0 %6933
  %v6943 = vlaneseq
  %v6944 = vshrl.u32 %v6943, 7
  %v6945 = vsub.s32 %v610, %v6944
  %v6946 = vrot.slane %v6913, %v6945
  %v6947 = vlaneseq
  %v6948 = vshrl.u32 %v6947, 7
  %v6949 = vsub.s32 %v610, %v6948
  %v6950 = vrot.slane %v6916, %v6949
  %v6951 = vlaneseq
  %v6952 = vshrl.u32 %v6951, 7
  %v6953 = vsub.s32 %v610, %v6952
  %v6954 = vrot.slane %v6919, %v6953
  %v6955 = vlaneseq
  %v6956 = vshrl.u32 %v6955, 7
  %v6957 = vsub.s32 %v610, %v6956
  %v6958 = vrot.slane %v6922, %v6957
  %v6959 = vlaneseq
  %v6960 = vshrl.u32 %v6959, 7
  %v6961 = vsub.s32 %v610, %v6960
  %v6962 = vrot.slane %v6925, %v6961
  %v6963 = vlaneseq
  %v6964 = vshrl.u32 %v6963, 7
  %v6965 = vsub.s32 %v610, %v6964
  %v6966 = vrot.slane %v6928, %v6965
  %v6967 = vlaneseq
  %v6968 = vshrl.u32 %v6967, 7
  %v6969 = vsub.s32 %v610, %v6968
  %v6970 = vrot.slane %v6931, %v6969
  %v6971 = vlaneseq
  %v6972 = vshrl.u32 %v6971, 7
  %v6973 = vsub.s32 %v610, %v6972
  %v6974 = vrot.slane %v6934, %v6973
  %v6975 = vsel %vm276, %v6950, %v6946
  %v6976 = vsel %vm278, %v6954, %v6975
  %v6977 = vsel %vm280, %v6958, %v6976
  %v6978 = vsel %vm282, %v6962, %v6977
  %v6979 = vsel %vm284, %v6966, %v6978
  %v6980 = vsel %vm286, %v6970, %v6979
  %v6981 = vsel %vm288, %v6974, %v6980
  %v6983 = vsel %vm651, %v6981, -inf
  %6984 = vmax.xlane.f32.xlu0 %v6983
  %v6985 = vpop.xlane.xlu0 %6984
  %v6987 = vlaneseq
  %v6988 = vshrl.u32 %v6987, 7
  %v6989 = vsub.s32 0, %v6988
  %v6990 = vrot.slane %v6985, %v6989
  %v6991 = vlaneseq
  %v6992 = vshrl.u32 %v6991, 7
  %v6993 = vsub.s32 1, %v6992
  %v6994 = vrot.slane %v6985, %v6993
  %v6995 = vlaneseq
  %v6996 = vshrl.u32 %v6995, 7
  %v6997 = vsub.s32 2, %v6996
  %v6998 = vrot.slane %v6985, %v6997
  %v6999 = vlaneseq
  %v7000 = vshrl.u32 %v6999, 7
  %v7001 = vsub.s32 3, %v7000
  %v7002 = vrot.slane %v6985, %v7001
  %v7003 = vlaneseq
  %v7004 = vshrl.u32 %v7003, 7
  %v7005 = vsub.s32 4, %v7004
  %v7006 = vrot.slane %v6985, %v7005
  %v7007 = vlaneseq
  %v7008 = vshrl.u32 %v7007, 7
  %v7009 = vsub.s32 5, %v7008
  %v7010 = vrot.slane %v6985, %v7009
  %v7011 = vlaneseq
  %v7012 = vshrl.u32 %v7011, 7
  %v7013 = vsub.s32 6, %v7012
  %v7014 = vrot.slane %v6985, %v7013
  %v7015 = vlaneseq
  %v7016 = vshrl.u32 %v7015, 7
  %v7017 = vsub.s32 7, %v7016
  %v7018 = vrot.slane %v6985, %v7017
  %v7027 = vsub.f32 %v6913, %v6990
  %v7028 = vsub.f32 %v6916, %v6994
  %v7029 = vsub.f32 %v6919, %v6998
  %v7030 = vsub.f32 %v6922, %v7002
  %v7031 = vsub.f32 %v6925, %v7006
  %v7032 = vsub.f32 %v6928, %v7010
  %v7033 = vsub.f32 %v6931, %v7014
  %v7034 = vsub.f32 %v6934, %v7018
  %v7035 = vmul.f32 %v7027, 1.442695
  %v7036 = vpow.pop %v7035
  %v7037 = vmul.f32 %v7028, 1.442695
  %v7038 = vpow.pop %v7037
  %v7039 = vmul.f32 %v7029, 1.442695
  %v7040 = vpow.pop %v7039
  %v7041 = vmul.f32 %v7030, 1.442695
  %v7042 = vpow.pop %v7041
  %v7043 = vmul.f32 %v7031, 1.442695
  %v7044 = vpow.pop %v7043
  %v7045 = vmul.f32 %v7032, 1.442695
  %v7046 = vpow.pop %v7045
  %v7047 = vmul.f32 %v7033, 1.442695
  %v7048 = vpow.pop %v7047
  %v7049 = vmul.f32 %v7034, 1.442695
  %v7050 = vpow.pop %v7049
  %7059 = vset.pattern.permute.xlu0 0
  %7060 = vperm.xlu0 %7059, %v7036
  %v7061 = vpop.permute.xlu0 %7060
  %7062 = vset.pattern.permute.xlu0 0
  %7063 = vperm.xlu0 %7062, %v7038
  %v7064 = vpop.permute.xlu0 %7063
  %7065 = vset.pattern.permute.xlu0 0
  %7066 = vperm.xlu0 %7065, %v7040
  %v7067 = vpop.permute.xlu0 %7066
  %7068 = vset.pattern.permute.xlu0 0
  %7069 = vperm.xlu0 %7068, %v7042
  %v7070 = vpop.permute.xlu0 %7069
  %7071 = vset.pattern.permute.xlu0 0
  %7072 = vperm.xlu0 %7071, %v7044
  %v7073 = vpop.permute.xlu0 %7072
  %7074 = vset.pattern.permute.xlu0 0
  %7075 = vperm.xlu0 %7074, %v7046
  %v7076 = vpop.permute.xlu0 %7075
  %7077 = vset.pattern.permute.xlu0 0
  %7078 = vperm.xlu0 %7077, %v7048
  %v7079 = vpop.permute.xlu0 %7078
  %7080 = vset.pattern.permute.xlu0 0
  %7081 = vperm.xlu0 %7080, %v7050
  %v7082 = vpop.permute.xlu0 %7081
  %v7083 = vlaneseq
  %v7084 = vshrl.u32 %v7083, 7
  %v7085 = vsub.s32 %v610, %v7084
  %v7086 = vrot.slane %v7061, %v7085
  %v7087 = vlaneseq
  %v7088 = vshrl.u32 %v7087, 7
  %v7089 = vsub.s32 %v610, %v7088
  %v7090 = vrot.slane %v7064, %v7089
  %v7091 = vlaneseq
  %v7092 = vshrl.u32 %v7091, 7
  %v7093 = vsub.s32 %v610, %v7092
  %v7094 = vrot.slane %v7067, %v7093
  %v7095 = vlaneseq
  %v7096 = vshrl.u32 %v7095, 7
  %v7097 = vsub.s32 %v610, %v7096
  %v7098 = vrot.slane %v7070, %v7097
  %v7099 = vlaneseq
  %v7100 = vshrl.u32 %v7099, 7
  %v7101 = vsub.s32 %v610, %v7100
  %v7102 = vrot.slane %v7073, %v7101
  %v7103 = vlaneseq
  %v7104 = vshrl.u32 %v7103, 7
  %v7105 = vsub.s32 %v610, %v7104
  %v7106 = vrot.slane %v7076, %v7105
  %v7107 = vlaneseq
  %v7108 = vshrl.u32 %v7107, 7
  %v7109 = vsub.s32 %v610, %v7108
  %v7110 = vrot.slane %v7079, %v7109
  %v7111 = vlaneseq
  %v7112 = vshrl.u32 %v7111, 7
  %v7113 = vsub.s32 %v610, %v7112
  %v7114 = vrot.slane %v7082, %v7113
  %v7115 = vsel %vm276, %v7090, %v7086
  %v7116 = vsel %vm278, %v7094, %v7115
  %v7117 = vsel %vm280, %v7098, %v7116
  %v7118 = vsel %vm282, %v7102, %v7117
  %v7119 = vsel %vm284, %v7106, %v7118
  %v7120 = vsel %vm286, %v7110, %v7119
  %v7121 = vsel %vm288, %v7114, %v7120
  %v7123 = vsel %vm651, %v7121, 0.0
  %7124 = vadd.xlane.f32.xlu0 %v7123
  %v7125 = vpop.xlane.xlu0 %7124
  %v7127 = vlaneseq
  %v7128 = vshrl.u32 %v7127, 7
  %v7129 = vsub.s32 0, %v7128
  %v7130 = vrot.slane %v7125, %v7129
  %v7131 = vlaneseq
  %v7132 = vshrl.u32 %v7131, 7
  %v7133 = vsub.s32 1, %v7132
  %v7134 = vrot.slane %v7125, %v7133
  %v7135 = vlaneseq
  %v7136 = vshrl.u32 %v7135, 7
  %v7137 = vsub.s32 2, %v7136
  %v7138 = vrot.slane %v7125, %v7137
  %v7139 = vlaneseq
  %v7140 = vshrl.u32 %v7139, 7
  %v7141 = vsub.s32 3, %v7140
  %v7142 = vrot.slane %v7125, %v7141
  %v7143 = vlaneseq
  %v7144 = vshrl.u32 %v7143, 7
  %v7145 = vsub.s32 4, %v7144
  %v7146 = vrot.slane %v7125, %v7145
  %v7147 = vlaneseq
  %v7148 = vshrl.u32 %v7147, 7
  %v7149 = vsub.s32 5, %v7148
  %v7150 = vrot.slane %v7125, %v7149
  %v7151 = vlaneseq
  %v7152 = vshrl.u32 %v7151, 7
  %v7153 = vsub.s32 6, %v7152
  %v7154 = vrot.slane %v7125, %v7153
  %v7155 = vlaneseq
  %v7156 = vshrl.u32 %v7155, 7
  %v7157 = vsub.s32 7, %v7156
  %v7158 = vrot.slane %v7125, %v7157
  %v7167 = vrcp.pop %v7130
  %v7168 = vmul.f32 %v7036, %v7167
  %v7169 = vrcp.pop %v7134
  %v7170 = vmul.f32 %v7038, %v7169
  %v7171 = vrcp.pop %v7138
  %v7172 = vmul.f32 %v7040, %v7171
  %v7173 = vrcp.pop %v7142
  %v7174 = vmul.f32 %v7042, %v7173
  %v7175 = vrcp.pop %v7146
  %v7176 = vmul.f32 %v7044, %v7175
  %v7177 = vrcp.pop %v7150
  %v7178 = vmul.f32 %v7046, %v7177
  %v7179 = vrcp.pop %v7154
  %v7180 = vmul.f32 %v7048, %v7179
  %v7181 = vrcp.pop %v7158
  %v7182 = vmul.f32 %v7050, %v7181
  %7184 = vset.pattern.permute.xlu0 0
  %7185 = vperm.xlu0 %7184, %v7168
  %v7186 = vpop.permute.xlu0 %7185
  %7189 = vset.pattern.permute.xlu0 0
  %7190 = vperm.xlu0 %7189, %v7170
  %v7191 = vpop.permute.xlu0 %7190
  %7194 = vset.pattern.permute.xlu0 0
  %7195 = vperm.xlu0 %7194, %v7172
  %v7196 = vpop.permute.xlu0 %7195
  %7199 = vset.pattern.permute.xlu0 0
  %7200 = vperm.xlu0 %7199, %v7174
  %v7201 = vpop.permute.xlu0 %7200
  %7204 = vset.pattern.permute.xlu0 0
  %7205 = vperm.xlu0 %7204, %v7176
  %v7206 = vpop.permute.xlu0 %7205
  %7209 = vset.pattern.permute.xlu0 0
  %7210 = vperm.xlu0 %7209, %v7178
  %v7211 = vpop.permute.xlu0 %7210
  %7214 = vset.pattern.permute.xlu0 0
  %7215 = vperm.xlu0 %7214, %v7180
  %v7216 = vpop.permute.xlu0 %7215
  %7219 = vset.pattern.permute.xlu0 0
  %7220 = vperm.xlu0 %7219, %v7182
  %v7221 = vpop.permute.xlu0 %7220
  %v7223 = vmul.f32 %v43, %v7186
  %v7224 = vmul.f32 %v44, %v7191
  %v7225 = vmul.f32 %v45, %v7196
  %v7226 = vmul.f32 %v46, %v7201
  %v7227 = vmul.f32 %v47, %v7206
  %v7228 = vmul.f32 %v48, %v7211
  %v7229 = vmul.f32 %v49, %v7216
  %v7230 = vmul.f32 %v50, %v7221
  %v7231 = vsel %vm62, %v7223, 0.0
  %v7232 = vrot.slane %v7231, 4
  %v7233 = vadd.f32 %v7231, %v7232
  %v7234 = vrot.slane %v7233, 2
  %v7235 = vadd.f32 %v7233, %v7234
  %v7236 = vrot.slane %v7235, 1
  %v7237 = vadd.f32 %v7235, %v7236
  %v7238 = vsel %vm62, %v7224, 0.0
  %v7239 = vrot.slane %v7238, 4
  %v7240 = vadd.f32 %v7238, %v7239
  %v7241 = vrot.slane %v7240, 2
  %v7242 = vadd.f32 %v7240, %v7241
  %v7243 = vrot.slane %v7242, 1
  %v7244 = vadd.f32 %v7242, %v7243
  %v7245 = vsel %vm62, %v7225, 0.0
  %v7246 = vrot.slane %v7245, 4
  %v7247 = vadd.f32 %v7245, %v7246
  %v7248 = vrot.slane %v7247, 2
  %v7249 = vadd.f32 %v7247, %v7248
  %v7250 = vrot.slane %v7249, 1
  %v7251 = vadd.f32 %v7249, %v7250
  %v7252 = vsel %vm62, %v7226, 0.0
  %v7253 = vrot.slane %v7252, 4
  %v7254 = vadd.f32 %v7252, %v7253
  %v7255 = vrot.slane %v7254, 2
  %v7256 = vadd.f32 %v7254, %v7255
  %v7257 = vrot.slane %v7256, 1
  %v7258 = vadd.f32 %v7256, %v7257
  %v7259 = vsel %vm62, %v7227, 0.0
  %v7260 = vrot.slane %v7259, 4
  %v7261 = vadd.f32 %v7259, %v7260
  %v7262 = vrot.slane %v7261, 2
  %v7263 = vadd.f32 %v7261, %v7262
  %v7264 = vrot.slane %v7263, 1
  %v7265 = vadd.f32 %v7263, %v7264
  %v7266 = vsel %vm62, %v7228, 0.0
  %v7267 = vrot.slane %v7266, 4
  %v7268 = vadd.f32 %v7266, %v7267
  %v7269 = vrot.slane %v7268, 2
  %v7270 = vadd.f32 %v7268, %v7269
  %v7271 = vrot.slane %v7270, 1
  %v7272 = vadd.f32 %v7270, %v7271
  %v7273 = vsel %vm62, %v7229, 0.0
  %v7274 = vrot.slane %v7273, 4
  %v7275 = vadd.f32 %v7273, %v7274
  %v7276 = vrot.slane %v7275, 2
  %v7277 = vadd.f32 %v7275, %v7276
  %v7278 = vrot.slane %v7277, 1
  %v7279 = vadd.f32 %v7277, %v7278
  %v7280 = vsel %vm62, %v7230, 0.0
  %v7281 = vrot.slane %v7280, 4
  %v7282 = vadd.f32 %v7280, %v7281
  %v7283 = vrot.slane %v7282, 2
  %v7284 = vadd.f32 %v7282, %v7283
  %v7285 = vrot.slane %v7284, 1
  %v7286 = vadd.f32 %v7284, %v7285
  %v7287 = vld [vmem:[%s0 + $0x7] sm:$0x1]
  %v7288 = vld [vmem:[%s0 + $0xf] sm:$0x1]
  %v7289 = vld [vmem:[%s0 + $0x17] sm:$0x1]
  %v7290 = vld [vmem:[%s0 + $0x1f] sm:$0x1]
  %v7291 = vld [vmem:[%s0 + $0x27] sm:$0x1]
  %v7292 = vld [vmem:[%s0 + $0x2f] sm:$0x1]
  %v7293 = vld [vmem:[%s0 + $0x37] sm:$0x1]
  %v7294 = vld [vmem:[%s0 + $0x3f] sm:$0x1]
  %v7303 = vrot.slane %v7288, 7
  %v7304 = vsel %vm276, %v7303, %v7287
  %v7305 = vrot.slane %v7289, 6
  %v7306 = vsel %vm278, %v7305, %v7304
  %v7307 = vrot.slane %v7290, 5
  %v7308 = vsel %vm280, %v7307, %v7306
  %v7309 = vrot.slane %v7291, 4
  %v7310 = vsel %vm282, %v7309, %v7308
  %v7311 = vrot.slane %v7292, 3
  %v7312 = vsel %vm284, %v7311, %v7310
  %v7313 = vrot.slane %v7293, 2
  %v7314 = vsel %vm286, %v7313, %v7312
  %v7315 = vrot.slane %v7294, 1
  %v7316 = vsel %vm288, %v7315, %v7314
  %7318 = vst.msk [vmem:[#allocation2] sm:$0xff] %vm576, %v7316
  %v7327 = vsel %vm276, %v7244, %v7237
  %v7328 = vsel %vm278, %v7251, %v7327
  %v7329 = vsel %vm280, %v7258, %v7328
  %v7330 = vsel %vm282, %v7265, %v7329
  %v7331 = vsel %vm284, %v7272, %v7330
  %v7332 = vsel %vm286, %v7279, %v7331
  %v7333 = vsel %vm288, %v7286, %v7332
  %7334 = vrot.lane.b32.xlu0 %v7333, 16
  %v7335 = vpop.permute.xlu0 %7334
  %7337 = vst.msk [vmem:[#allocation2] sm:$0xff] %vm1006, %v7335
  %7338 = vrot.lane.b32.xlu0 %v6537, 80
  %v7339 = vpop.permute.xlu0 %7338
  %7341 = vst.msk [vmem:[#allocation2] sm:$0xff] %vm1011, %v7339
  %v7342 = vld [vmem:[#allocation2] sm:$0xff]
  %v7344 = vsel %vm1020, %v7342, 0
  %7346 = vmatprep.subr.mxu0 0.0
  %7347 = vmatpush1.msra.mxu0 %v367
  %7348 = vmatprep.subr.mxu0 0.0
  %7349 = vmatpush1.msra.mxu0 %v368
  %7350 = vmatprep.subr.mxu0 0.0
  %7351 = vmatpush1.msra.mxu0 %v369
  %7352 = vmatprep.subr.mxu0 0.0
  %7353 = vmatpush1.msra.mxu0 %v370
  %7354 = vmatprep.subr.mxu0 0.0
  %7355 = vmatpush1.msra.mxu0 %v371
  %7356 = vmatprep.subr.mxu0 0.0
  %7357 = vmatpush1.msra.mxu0 %v372
  %7358 = vmatprep.subr.mxu0 0.0
  %7359 = vmatpush1.msra.mxu0 %v373
  %7360 = vmatprep.subr.mxu0 0.0
  %7361 = vmatpush1.msra.mxu0 %v374
  %7362 = vmatprep.subr.mxu0 0.0
  %7363 = vmatpush1.msra.mxu0 %v375
  %7364 = vmatprep.subr.mxu0 0.0
  %7365 = vmatpush1.msra.mxu0 %v376
  %7366 = vmatprep.subr.mxu0 0.0
  %7367 = vmatpush1.msra.mxu0 0.0
  %7368 = vmatprep.subr.mxu0 0.0
  %7369 = vmatpush1.msra.mxu0 0.0
  %7370 = vmatprep.subr.mxu0 0.0
  %7371 = vmatpush1.msra.mxu0 0.0
  %7372 = vmatprep.subr.mxu0 0.0
  %7373 = vmatpush1.msra.mxu0 0.0
  %7374 = vmatprep.subr.mxu0 0.0
  %7375 = vmatpush1.msra.mxu0 0.0
  %7376 = vmatprep.subr.mxu0 0.0
  %7377 = vmatpush1.msra.mxu0 0.0
  %7378 = vmatprep.subr.mxu0 0.0
  %7379 = vmatpush1.msra.mxu0 0.0
  %7380 = vmatprep.subr.mxu0 0.0
  %7381 = vmatpush1.msra.mxu0 0.0
  %7382 = vmatprep.subr.mxu0 0.0
  %7383 = vmatpush1.msra.mxu0 0.0
  %7384 = vmatprep.subr.mxu0 0.0
  %7385 = vmatpush1.msra.mxu0 0.0
  %7386 = vmatprep.subr.mxu0 0.0
  %7387 = vmatpush1.msra.mxu0 0.0
  %7388 = vmatprep.subr.mxu0 0.0
  %7389 = vmatpush1.msra.mxu0 0.0
  %7390 = vmatprep.subr.mxu0 0.0
  %7391 = vmatpush1.msra.mxu0 0.0
  %7392 = vmatprep.subr.mxu0 0.0
  %7393 = vmatpush1.msra.mxu0 0.0
  %7394 = vmatprep.subr.mxu0 0.0
  %7395 = vmatpush1.msra.mxu0 0.0
  %7396 = vmatprep.subr.mxu0 0.0
  %7397 = vmatpush1.msra.mxu0 0.0
  %7398 = vmatprep.subr.mxu0 0.0
  %7399 = vmatpush1.msra.mxu0 0.0
  %7400 = vmatprep.subr.mxu0 0.0
  %7401 = vmatpush1.msra.mxu0 0.0
  %7402 = vmatprep.subr.mxu0 0.0
  %7403 = vmatpush1.msra.mxu0 0.0
  %7404 = vmatprep.subr.mxu0 0.0
  %7405 = vmatpush1.msra.mxu0 0.0
  %7406 = vmatprep.subr.mxu0 0.0
  %7407 = vmatpush1.msra.mxu0 0.0
  %7408 = vmatprep.subr.mxu0 0.0
  %7409 = vmatpush1.msra.mxu0 0.0
  %7410 = vmatprep.mubr.f32.mxu0 0.0
  %7411 = vmatmul.mubr.f32.gmra.mrb[0].mxu0 %v7344
  %v7412 = vpop.f32.mrb[0].mxu0
  %v7413 = vadd.f32 %v1018, %v7412
  %v7414 = vpop.f32.mrb[0].mxu0
  %7415 = vdwg.mxu0
  %v7416 = vxor.u32 %v7413, 2147483648
  %v7417 = vmul.f32 %v7416, 1.442695
  %v7418 = vpow.pop %v7417
  %v7419 = vadd.f32 %v7418, 1.0
  %v7420 = vrcp.pop %v7419
  %v7421 = vmul.f32 1.0, %v7420
  %v7422 = vtanh.pop %v7413
  %v7423 = vmul.f32 %v7421, %v6531
  %7425 = vrot.lane.b32.xlu0 %v7422, 64
  %v7426 = vpop.permute.xlu0 %7425
  %v7428 = vmul.f32 %v7421, %v7426
  %7430 = vrot.lane.b32.xlu0 %v7428, 32
  %v7431 = vpop.permute.xlu0 %7430
  %v7433 = vadd.f32 %v7423, %v7431
  %v7434 = vtanh.pop %v7433
  %7436 = vrot.lane.b32.xlu0 %v7434, 64
  %v7437 = vpop.permute.xlu0 %7436
  %v7439 = vmul.f32 %v7421, %v7437
  %7441 = vrot.lane.b32.xlu0 %v7439, 32
  %v7442 = vpop.permute.xlu0 %7441
  %v7443 = vsel %vm62, %v7442, 0
  %7445 = vmatprep.subr.mxu0 0.0
  %7446 = vmatpush1.msra.mxu0 %v378
  %7447 = vmatprep.subr.mxu0 0.0
  %7448 = vmatpush1.msra.mxu0 %v379
  %7449 = vmatprep.subr.mxu0 0.0
  %7450 = vmatpush1.msra.mxu0 %v380
  %7451 = vmatprep.subr.mxu0 0.0
  %7452 = vmatpush1.msra.mxu0 %v381
  %7453 = vmatprep.subr.mxu0 0.0
  %7454 = vmatpush1.msra.mxu0 0.0
  %7455 = vmatprep.subr.mxu0 0.0
  %7456 = vmatpush1.msra.mxu0 0.0
  %7457 = vmatprep.subr.mxu0 0.0
  %7458 = vmatpush1.msra.mxu0 0.0
  %7459 = vmatprep.subr.mxu0 0.0
  %7460 = vmatpush1.msra.mxu0 0.0
  %7461 = vmatprep.subr.mxu0 0.0
  %7462 = vmatpush1.msra.mxu0 0.0
  %7463 = vmatprep.subr.mxu0 0.0
  %7464 = vmatpush1.msra.mxu0 0.0
  %7465 = vmatprep.subr.mxu0 0.0
  %7466 = vmatpush1.msra.mxu0 0.0
  %7467 = vmatprep.subr.mxu0 0.0
  %7468 = vmatpush1.msra.mxu0 0.0
  %7469 = vmatprep.subr.mxu0 0.0
  %7470 = vmatpush1.msra.mxu0 0.0
  %7471 = vmatprep.subr.mxu0 0.0
  %7472 = vmatpush1.msra.mxu0 0.0
  %7473 = vmatprep.subr.mxu0 0.0
  %7474 = vmatpush1.msra.mxu0 0.0
  %7475 = vmatprep.subr.mxu0 0.0
  %7476 = vmatpush1.msra.mxu0 0.0
  %7477 = vmatprep.subr.mxu0 0.0
  %7478 = vmatpush1.msra.mxu0 0.0
  %7479 = vmatprep.subr.mxu0 0.0
  %7480 = vmatpush1.msra.mxu0 0.0
  %7481 = vmatprep.subr.mxu0 0.0
  %7482 = vmatpush1.msra.mxu0 0.0
  %7483 = vmatprep.subr.mxu0 0.0
  %7484 = vmatpush1.msra.mxu0 0.0
  %7485 = vmatprep.subr.mxu0 0.0
  %7486 = vmatpush1.msra.mxu0 0.0
  %7487 = vmatprep.subr.mxu0 0.0
  %7488 = vmatpush1.msra.mxu0 0.0
  %7489 = vmatprep.subr.mxu0 0.0
  %7490 = vmatpush1.msra.mxu0 0.0
  %7491 = vmatprep.subr.mxu0 0.0
  %7492 = vmatpush1.msra.mxu0 0.0
  %7493 = vmatprep.subr.mxu0 0.0
  %7494 = vmatpush1.msra.mxu0 0.0
  %7495 = vmatprep.subr.mxu0 0.0
  %7496 = vmatpush1.msra.mxu0 0.0
  %7497 = vmatprep.subr.mxu0 0.0
  %7498 = vmatpush1.msra.mxu0 0.0
  %7499 = vmatprep.subr.mxu0 0.0
  %7500 = vmatpush1.msra.mxu0 0.0
  %7501 = vmatprep.subr.mxu0 0.0
  %7502 = vmatpush1.msra.mxu0 0.0
  %7503 = vmatprep.subr.mxu0 0.0
  %7504 = vmatpush1.msra.mxu0 0.0
  %7505 = vmatprep.subr.mxu0 0.0
  %7506 = vmatpush1.msra.mxu0 0.0
  %7507 = vmatprep.subr.mxu0 0.0
  %7508 = vmatpush1.msra.mxu0 0.0
  %7509 = vmatprep.mubr.f32.mxu0 0.0
  %7510 = vmatmul.mubr.f32.gmra.mrb[0].mxu0 %v7443
  %v7511 = vpop.f32.mrb[0].mxu0
  %v7512 = vadd.f32 %v1122, %v7511
  %v7513 = vpop.f32.mrb[0].mxu0
  %7514 = vdwg.mxu0
  %v7516 = vcombine.high %v7512, %v7512
  %v7518 = vunpack.c.l.s4 1966171168
  %v7519 = vunpack.c.0.s8 %v7518
  %v7520 = vlaneseq
  %v7521 = vshrl.u32 %v7520, 7
  %v7522 = vsub.s32 %v7519, %v7521
  %v7523 = vrot.slane %v7512, %v7522
  %v7525 = vunpack.c.l.s4 1966171168
  %v7526 = vunpack.c.0.s8 %v7525
  %v7527 = vlaneseq
  %v7528 = vshrl.u32 %v7527, 7
  %v7529 = vsub.s32 %v7526, %v7528
  %v7530 = vrot.slane %v7516, %v7529
  %v7531 = vcombine.high %v7523, %v7523
  %v7532 = vcombine.high %v7530, %v7530
  %v7534 = vunpack.c.l.s4 1966171168
  %v7535 = vunpack.c.0.s8 %v7534
  %v7536 = vlaneseq
  %v7537 = vshrl.u32 %v7536, 7
  %v7538 = vsub.s32 %v7535, %v7537
  %v7539 = vrot.slane %v7523, %v7538
  %v7541 = vunpack.c.l.s4 1966171168
  %v7542 = vunpack.c.0.s8 %v7541
  %v7543 = vlaneseq
  %v7544 = vshrl.u32 %v7543, 7
  %v7545 = vsub.s32 %v7542, %v7544
  %v7546 = vrot.slane %v7530, %v7545
  %v7548 = vunpack.c.l.s4 1966171168
  %v7549 = vunpack.c.0.s8 %v7548
  %v7550 = vlaneseq
  %v7551 = vshrl.u32 %v7550, 7
  %v7552 = vsub.s32 %v7549, %v7551
  %v7553 = vrot.slane %v7531, %v7552
  %v7555 = vunpack.c.l.s4 1966171168
  %v7556 = vunpack.c.0.s8 %v7555
  %v7557 = vlaneseq
  %v7558 = vshrl.u32 %v7557, 7
  %v7559 = vsub.s32 %v7556, %v7558
  %v7560 = vrot.slane %v7532, %v7559
  %v7561 = vcombine.high %v7539, %v7539
  %v7562 = vcombine.high %v7546, %v7546
  %v7563 = vcombine.high %v7553, %v7553
  %v7564 = vcombine.high %v7560, %v7560
  %7573 = vst.msk [vmem:[%s12 + $0x7] sm:$0x1] %vm1257, %v7539
  %7574 = vst.msk [vmem:[%s12 + $0xf] sm:$0x1] %vm1257, %v7553
  %7575 = vst.msk [vmem:[%s12 + $0x17] sm:$0x1] %vm1257, %v7561
  %7576 = vst.msk [vmem:[%s12 + $0x1f] sm:$0x1] %vm1257, %v7563
  %7577 = vst.msk [vmem:[%s12 + $0x27] sm:$0x1] %vm1257, %v7546
  %7578 = vst.msk [vmem:[%s12 + $0x2f] sm:$0x1] %vm1257, %v7560
  %7579 = vst.msk [vmem:[%s12 + $0x37] sm:$0x1] %vm1257, %v7562
  %7580 = vst.msk [vmem:[%s12 + $0x3f] sm:$0x1] %vm1257, %v7564
  %v7581 = vlaneseq
  %v7582 = vshrl.u32 %v7581, 7
  %v7583 = vsub.s32 %v610, %v7582
  %v7584 = vrot.slane %v7186, %v7583
  %v7585 = vlaneseq
  %v7586 = vshrl.u32 %v7585, 7
  %v7587 = vsub.s32 %v610, %v7586
  %v7588 = vrot.slane %v7191, %v7587
  %v7589 = vlaneseq
  %v7590 = vshrl.u32 %v7589, 7
  %v7591 = vsub.s32 %v610, %v7590
  %v7592 = vrot.slane %v7196, %v7591
  %v7593 = vlaneseq
  %v7594 = vshrl.u32 %v7593, 7
  %v7595 = vsub.s32 %v610, %v7594
  %v7596 = vrot.slane %v7201, %v7595
  %v7597 = vlaneseq
  %v7598 = vshrl.u32 %v7597, 7
  %v7599 = vsub.s32 %v610, %v7598
  %v7600 = vrot.slane %v7206, %v7599
  %v7601 = vlaneseq
  %v7602 = vshrl.u32 %v7601, 7
  %v7603 = vsub.s32 %v610, %v7602
  %v7604 = vrot.slane %v7211, %v7603
  %v7605 = vlaneseq
  %v7606 = vshrl.u32 %v7605, 7
  %v7607 = vsub.s32 %v610, %v7606
  %v7608 = vrot.slane %v7216, %v7607
  %v7609 = vlaneseq
  %v7610 = vshrl.u32 %v7609, 7
  %v7611 = vsub.s32 %v610, %v7610
  %v7612 = vrot.slane %v7221, %v7611
  %7621 = vst.msk [vmem:[%s13 + $0x7] sm:$0x1] %vm1306, %v7584
  %7622 = vst.msk [vmem:[%s13 + $0xf] sm:$0x1] %vm1306, %v7588
  %7623 = vst.msk [vmem:[%s13 + $0x17] sm:$0x1] %vm1306, %v7592
  %7624 = vst.msk [vmem:[%s13 + $0x1f] sm:$0x1] %vm1306, %v7596
  %7625 = vst.msk [vmem:[%s13 + $0x27] sm:$0x1] %vm1306, %v7600
  %7626 = vst.msk [vmem:[%s13 + $0x2f] sm:$0x1] %vm1306, %v7604
  %7627 = vst.msk [vmem:[%s13 + $0x37] sm:$0x1] %vm1306, %v7608
  %7628 = vst.msk [vmem:[%s13 + $0x3f] sm:$0x1] %vm1306, %v7612
  // Predicated region
  $region50: #{decoder_forward.1} parent=0 // pred_check
    _
  $region51: #{decoder_forward.1} parent=0 // pred_check_branch
    %7630 = sbr.rel (0) target = $region53
  $region52: #{decoder_forward.1} parent=0 // pred_region
    _
  $region53: #{decoder_forward.1} parent=0 // pred_fallthru
    _
  // Predicated region
  $region54: #{decoder_forward.1} parent=0 // pred_check
    _
  $region55: #{decoder_forward.1} parent=0 // pred_check_branch
    %7632 = sbr.rel (0) target = $region57
  $region56: #{decoder_forward.1} parent=0 // pred_region
    _
  $region57: #{decoder_forward.1} parent=0 // pred_fallthru
    _
  // Predicated region
  $region58: #{decoder_forward.1} parent=0 // pred_check
    _
  $region59: #{decoder_forward.1} parent=0 // pred_check_branch
    %7634 = sbr.rel (0) target = $region61
  $region60: #{decoder_forward.1} parent=0 // pred_region
    _
  $region61: #{decoder_forward.1} parent=0 // pred_fallthru
    _
  // Predicated region
  $region62: #{decoder_forward.1} parent=0 // pred_check
    _
  $region63: #{decoder_forward.1} parent=0 // pred_check_branch
    %7636 = sbr.rel (0) target = $region65
  $region64: #{decoder_forward.1} parent=0 // pred_region
    _
  $region65: #{decoder_forward.1} parent=0 // pred_fallthru
    _

</llo_original>
